<compile_context>
chip_gen: v7x
topology: tpu7x:2x2x1
jax: 0.10.0
libtpu: 0.0.40
codegen_flags: <defaults>
</compile_context>

<pallas_src>
import jax
import jax.numpy as jnp
from jax import lax
from jax.experimental import pallas as pl
from jax.experimental.pallas import tpu as pltpu

EPS = 1e-5
NUM_BLOCKS = 2          # "blocks" argument of InlierNet.__init__
C_HIDDEN = 128
C_IN = 5
C_IN_PAD = 8            # zero-pad input channels 5 -> 8 (padded weight rows are zero => identical result)


# ----------------------------- in-kernel math helpers -----------------------------

def _conv1x1(x3, w):
    # x3: (N, P, Cin) (any dtype), w: (Cin, Cout) — MXU matmul with f32 accumulation.
    n, p, c = x3.shape
    y = jnp.dot(x3.reshape(n * p, c), w, preferred_element_type=jnp.float32)
    return y.reshape(n, p, w.shape[1])


def _bn_train_relu_bf16(x, gamma, beta):
    # BatchNorm2d training mode (+ReLU): per-channel stats over (N, H*W), biased variance.
    # Single-pass stats (sum + sum-of-squares).  Math in f32, result stored as bf16
    # (the next conv's MXU operand) so the cast is fused into this pass's store.
    n, p, _ = x.shape
    inv = 1.0 / (n * p)
    m = jnp.sum(x, axis=(0, 1), keepdims=True) * inv
    ex2 = jnp.sum(x * x, axis=(0, 1), keepdims=True) * inv
    v = jnp.maximum(ex2 - m * m, 0.0)
    y = jnp.maximum((x - m) * (lax.rsqrt(v + EPS) * gamma) + beta, 0.0)
    return y.astype(jnp.bfloat16)


def _in_bn_relu_bf16(t, gamma, beta):
    # Fused F.instance_norm -> BatchNorm2d(train) -> ReLU in a SINGLE normalize pass.
    # After IN the BN mean over (N, P) is exactly 0 per channel, and
    #   BN var_c = mean_n( v_{n,c} / (v_{n,c} + eps) )
    # so the pair collapses to  (t - m_n) * [rsqrt(v_n+eps)*rsqrt(var_bn+eps)*gamma] + beta.
    # Math in f32 (t is the f32 conv output), result stored as bf16.
    _, p, _ = t.shape
    inv_p = 1.0 / p
    m = jnp.sum(t, axis=1, keepdims=True) * inv_p                     # (N,1,C)
    ex2 = jnp.sum(t * t, axis=1, keepdims=True) * inv_p               # (N,1,C)
    v = jnp.maximum(ex2 - m * m, 0.0)                                 # biased per-(n,c) var
    inv_in = lax.rsqrt(v + EPS)                                       # (N,1,C)
    bn_var = jnp.mean(v * (inv_in * inv_in), axis=0, keepdims=True)   # (1,1,C)
    scale = inv_in * (lax.rsqrt(bn_var + EPS) * gamma)                # (N,1,C)
    y = jnp.maximum((t - m) * scale + beta, 0.0)
    return y.astype(jnp.bfloat16)


# ----------------------------------------------- Pallas kernel -----------------------------------------------

def inliernet_kernel(x_ref, w_in_t_ref, g_in_ref, b_in_ref,
                     w1_ref, g1_ref, be1_ref,
                     w2_ref, g2_ref, be2_ref,
                     w_out_ref, b_out_ref, out_ref):
    # x_ref: (N, C_IN_PAD, P) f32 — channels on sublanes, pixels on lanes (dense in VMEM,
    # 16x smaller than a lane-padded (N, P, 8) layout).
    n_batch = x_ref.shape[0]

    # p_in conv (no bias): per batch  w_in^T (128,8) @ x_n (8,P) -> (128,P) on the MXU,
    # then one (128,P)->(P,128) XLU tile transpose; concatenate to channels-last (N,P,128).
    cols = []
    for nn in range(n_batch):
        a = jnp.dot(w_in_t_ref[...], x_ref[nn], preferred_element_type=jnp.float32)  # (128, P)
        cols.append(jnp.transpose(a)[None])                                          # (1, P, 128)
    y0 = jnp.concatenate(cols, axis=0)                                                # (N, P, 128) f32

    # p_in BatchNorm(train) + ReLU -> bf16 residual stream.
    h = _bn_train_relu_bf16(y0, g_in_ref[...], b_in_ref[...])

    # Residual blocks (statically unrolled).  PyTorch conv biases b1/b2 are NOT passed in:
    # a per-channel constant added right before instance_norm is removed exactly by the
    # per-(n,c) mean subtraction, so they are mathematically dead.
    for i in range(w1_ref.shape[0]):
        res = h                                                        # bf16
        t = _in_bn_relu_bf16(_conv1x1(h, w1_ref[i]), g1_ref[i], be1_ref[i])
        t = _in_bn_relu_bf16(_conv1x1(t, w2_ref[i]), g2_ref[i], be2_ref[i])
        h = t + res                                                    # bf16 residual add

    # p_out: 1-channel projection as broadcast-mul (f32) + lane reduce, written lane-dense
    # as (N, P) (P a multiple of 128 here) instead of (N, P, 1).
    proj = jnp.sum(h.astype(jnp.float32) * w_out_ref[...], axis=-1)    # (N, P) f32
    out_ref[...] = proj + b_out_ref[0, 0]                              # scalar bias from SMEM


# ------------------------------------------------- wrapper ---------------------------------------------------

def inliernet_forward(x_nchw, params):
    n, c, hh, ww = x_nchw.shape
    assert c == C_IN
    p = hh * ww
    # NCHW -> (N, C, H*W), zero-pad channels 5 -> 8 (padded w_in columns are zero).
    # Channels land on sublanes, pixels on lanes -> dense VMEM footprint (N*P*32 bytes).
    x = x_nchw.reshape(n, c, p).astype(jnp.float32)
    x = jnp.pad(x, ((0, 0), (0, C_IN_PAD - c), (0, 0)))

    # 128x128 block-conv weights are fed to the MXU in bf16; everything else stays f32.
    w1_bf16 = params["w1"].astype(jnp.bfloat16)
    w2_bf16 = params["w2"].astype(jnp.bfloat16)
    w_in_t = params["w_in"].T               # (128, C_IN_PAD) for the per-batch p_in matmul
    w_out_row = params["w_out"].T           # (1, 128) row for the lane-reduce projection

    args = (x,
            w_in_t, params["g_in"], params["b_in"],
            w1_bf16, params["g1"], params["be1"],
            w2_bf16, params["g2"], params["be2"],
            w_out_row, params["b_out"])

    # Everything in VMEM except the scalar output bias, which goes to SMEM.
    in_specs = ([pl.BlockSpec(memory_space=pltpu.MemorySpace.VMEM)] * (len(args) - 1)
                + [pl.BlockSpec(memory_space=pltpu.MemorySpace.SMEM)])

    # Chip-aware VMEM budget sized to the real live set:
    #   ~3 f32 activation copies (conv output + stats/normalize temps) +
    #   ~3 bf16 activation copies (res, t, normalize output) + dense input + output + weights.
    a_f32 = n * p * C_HIDDEN * 4
    a_bf16 = n * p * C_HIDDEN * 2
    x_bytes = n * C_IN_PAD * max(p, 128) * 4
    out_bytes = n * max(p, 128) * 4
    w_bytes = 2 * NUM_BLOCKS * C_HIDDEN * C_HIDDEN * 2 + C_IN_PAD * C_HIDDEN * 4
    est = 3 * a_f32 + 3 * a_bf16 + x_bytes + out_bytes + w_bytes + (2 << 20)
    try:
        vmem_cap = pltpu.get_tpu_info().vmem_capacity_bytes
    except Exception:
        vmem_cap = 64 << 20                 # conservative fallback (v7x per-TensorCore VMEM)
    vmem_limit = int(min(max(est, 16 << 20), vmem_cap - (8 << 20)))

    cost = pl.CostEstimate(
        flops=2 * n * p * (C_IN_PAD * C_HIDDEN
                           + 2 * NUM_BLOCKS * C_HIDDEN * C_HIDDEN
                           + C_HIDDEN),
        transcendentals=(1 + 2 * NUM_BLOCKS * (n + 1)) * C_HIDDEN,
        bytes_accessed=x_bytes + out_bytes + w_bytes,
    )

    out = pl.pallas_call(
        inliernet_kernel,
        out_shape=jax.ShapeDtypeStruct((n, p), jnp.float32),
        in_specs=in_specs,
        out_specs=pl.BlockSpec(memory_space=pltpu.MemorySpace.VMEM),
        compiler_params=pltpu.CompilerParams(vmem_limit_bytes=vmem_limit),
        cost_estimate=cost,
    )(*args)

    # back to NCHW: (N, 1, H, W)
    return out.reshape(n, 1, hh, ww)


# --------------------------------------------- pure-JAX reference --------------------------------------------
# Faithful original semantics: conv biases kept, separate instance_norm then BatchNorm,
# two-pass mean/var, all f32.  Used to validate the fused / bf16 kernel.

def _ref_conv(x3, w):
    n, p, c = x3.shape
    return jnp.dot(x3.reshape(n * p, c), w).reshape(n, p, w.shape[1])


def _ref_batchnorm_train(x, gamma, beta):
    m = jnp.mean(x, axis=(0, 1), keepdims=True)
    v = jnp.mean((x - m) ** 2, axis=(0, 1), keepdims=True)
    return (x - m) * lax.rsqrt(v + EPS) * gamma + beta


def _ref_instance_norm(x):
    m = jnp.mean(x, axis=1, keepdims=True)
    v = jnp.mean((x - m) ** 2, axis=1, keepdims=True)
    return (x - m) * lax.rsqrt(v + EPS)


def inliernet_reference(x_nchw, params):
    n, c, hh, ww = x_nchw.shape
    p = hh * ww
    x = jnp.transpose(x_nchw, (0, 2, 3, 1)).reshape(n, p, c).astype(jnp.float32)
    x = jnp.pad(x, ((0, 0), (0, 0), (0, C_IN_PAD - c)))

    h = _ref_conv(x, params["w_in"])
    h = jnp.maximum(_ref_batchnorm_train(h, params["g_in"], params["b_in"]), 0.0)
    for i in range(NUM_BLOCKS):
        res = h
        t = _ref_conv(h, params["w1"][i]) + params["b1"][i]
        t = jnp.maximum(_ref_batchnorm_train(_ref_instance_norm(t),
                                             params["g1"][i], params["be1"][i]), 0.0)
        t = _ref_conv(t, params["w2"][i]) + params["b2"][i]
        t = jnp.maximum(_ref_batchnorm_train(_ref_instance_norm(t),
                                             params["g2"][i], params["be2"][i]), 0.0)
        h = t + res
    out = _ref_conv(h, params["w_out"]) + params["b_out"]
    return jnp.transpose(out.reshape(n, hh, ww, 1), (0, 3, 1, 2))


# --------------------------------------------- deterministic init --------------------------------------------

def init_params(key):
    ks = jax.random.split(key, 16)
    B, C = NUM_BLOCKS, C_HIDDEN

    # p_in conv weight: PyTorch (128, 5, 1, 1) -> stored transposed as (C_IN_PAD, 128),
    # rows >= C_IN are zero so the channel padding is a no-op.
    w_in = jax.random.normal(ks[0], (C_IN_PAD, C), jnp.float32) * 0.2
    w_in = w_in.at[C_IN:, :].set(0.0)

    params = {
        "w_in": w_in,
        "g_in": 1.0 + 0.1 * jax.random.normal(ks[1], (1, C), jnp.float32),
        "b_in": 0.1 * jax.random.normal(ks[2], (1, C), jnp.float32),
        # residual-block params stacked over the block index.  b1/b2 exist in the PyTorch
        # module and are used by the reference; the kernel drops them (provably dead).
        "w1":  jax.random.normal(ks[3], (B, C, C), jnp.float32) * 0.05,
        "b1":  0.1 * jax.random.normal(ks[4], (B, 1, C), jnp.float32),
        "g1":  1.0 + 0.1 * jax.random.normal(ks[5], (B, 1, C), jnp.float32),
        "be1": 0.1 * jax.random.normal(ks[6], (B, 1, C), jnp.float32),
        "w2":  jax.random.normal(ks[7], (B, C, C), jnp.float32) * 0.05,
        "b2":  0.1 * jax.random.normal(ks[8], (B, 1, C), jnp.float32),
        "g2":  1.0 + 0.1 * jax.random.normal(ks[9], (B, 1, C), jnp.float32),
        "be2": 0.1 * jax.random.normal(ks[10], (B, 1, C), jnp.float32),
        # p_out: (128, 1) weight + scalar bias.
        "w_out": jax.random.normal(ks[11], (C, 1), jnp.float32) * 0.1,
        "b_out": 0.1 * jax.random.normal(ks[12], (1, 1), jnp.float32),
    }
    return params


# ------------------------------------------------------ main -------------------------------------------------

if __name__ == "__main__":
    key = jax.random.PRNGKey(0)
    k_x, k_p = jax.random.split(key)

    N, H, W = 2, 16, 16
    x = jax.random.normal(k_x, (N, C_IN, H, W), jnp.float32)   # NCHW, like the PyTorch module
    params = init_params(k_p)

    out = jax.block_until_ready(inliernet_forward(x, params))
    ref = jax.block_until_ready(inliernet_reference(x, params))

    assert out.shape == (N, 1, H, W), out.shape
    assert bool(jnp.all(jnp.isfinite(out)))
    # Scale-normalized error check: bf16 MXU operands + bf16 inter-layer activations
    # (per perf review) keep the max deviation within ~3% of the output scale.
    err = float(jnp.max(jnp.abs(out - ref)))
    scale = float(jnp.max(jnp.abs(ref))) + 1e-6
    assert err / scale < 3e-2, (err, scale)

    print("KERNEL_OK")
</pallas_src>

<mosaic_0001>
module attributes {stable_mosaic.version = 11 : i64} {
  func.func @inliernet_kernel(%arg0: memref<2x8x256xf32, #tpu.memory_space<vmem>>, %arg1: memref<128x8xf32, #tpu.memory_space<vmem>>, %arg2: memref<1x128xf32, #tpu.memory_space<vmem>>, %arg3: memref<1x128xf32, #tpu.memory_space<vmem>>, %arg4: memref<2x128x128xbf16, #tpu.memory_space<vmem>>, %arg5: memref<2x1x128xf32, #tpu.memory_space<vmem>>, %arg6: memref<2x1x128xf32, #tpu.memory_space<vmem>>, %arg7: memref<2x128x128xbf16, #tpu.memory_space<vmem>>, %arg8: memref<2x1x128xf32, #tpu.memory_space<vmem>>, %arg9: memref<2x1x128xf32, #tpu.memory_space<vmem>>, %arg10: memref<1x128xf32, #tpu.memory_space<vmem>>, %arg11: memref<1x1xf32, #tpu.memory_space<smem>>, %arg12: memref<2x256xf32, #tpu.memory_space<vmem>>) attributes {dimension_semantics = [], scalar_prefetch = 0 : i64, scratch_operands = 0 : i64, tpu.core_type = #tpu.core_type<tc>} {
    %c0 = arith.constant 0 : index
    %c0_0 = arith.constant 0 : index
    %0 = vector.load %arg1[%c0, %c0_0] : memref<128x8xf32, #tpu.memory_space<vmem>>, vector<128x8xf32>
    %c0_1 = arith.constant 0 : index
    %c0_2 = arith.constant 0 : index
    %c0_3 = arith.constant 0 : index
    %1 = vector.load %arg0[%c0_1, %c0_2, %c0_3] : memref<2x8x256xf32, #tpu.memory_space<vmem>>, vector<1x8x256xf32>
    %2 = vector.shape_cast %1 : vector<1x8x256xf32> to vector<8x256xf32>
    %cst = arith.constant dense<0.000000e+00> : vector<128x256xf32>
    %3 = tpu.matmul %0, %2, %cst {dimension_numbers = #tpu.dot_dimension_numbers<[1], [0], [0], [1], [0, 0, 1, 1], [], []>} : vector<128x8xf32>, vector<8x256xf32>, vector<128x256xf32> -> vector<128x256xf32>
    %4 = tpu.transpose %3, [1, 0] : vector<128x256xf32> -> vector<256x128xf32>
    %5 = vector.shape_cast %4 : vector<256x128xf32> to vector<1x256x128xf32>
    %c0_4 = arith.constant 0 : index
    %c0_5 = arith.constant 0 : index
    %6 = vector.load %arg1[%c0_4, %c0_5] : memref<128x8xf32, #tpu.memory_space<vmem>>, vector<128x8xf32>
    %c1 = arith.constant 1 : index
    %c0_6 = arith.constant 0 : index
    %c0_7 = arith.constant 0 : index
    %7 = vector.load %arg0[%c1, %c0_6, %c0_7] : memref<2x8x256xf32, #tpu.memory_space<vmem>>, vector<1x8x256xf32>
    %8 = vector.shape_cast %7 : vector<1x8x256xf32> to vector<8x256xf32>
    %cst_8 = arith.constant dense<0.000000e+00> : vector<128x256xf32>
    %9 = tpu.matmul %6, %8, %cst_8 {dimension_numbers = #tpu.dot_dimension_numbers<[1], [0], [0], [1], [0, 0, 1, 1], [], []>} : vector<128x8xf32>, vector<8x256xf32>, vector<128x256xf32> -> vector<128x256xf32>
    %10 = tpu.transpose %9, [1, 0] : vector<128x256xf32> -> vector<256x128xf32>
    %11 = vector.shape_cast %10 : vector<256x128xf32> to vector<1x256x128xf32>
    %12 = tpu.concatenate %5, %11 in 0 : vector<1x256x128xf32>, vector<1x256x128xf32> -> vector<2x256x128xf32>
    %c0_9 = arith.constant 0 : index
    %c0_10 = arith.constant 0 : index
    %13 = vector.load %arg2[%c0_9, %c0_10] : memref<1x128xf32, #tpu.memory_space<vmem>>, vector<1x128xf32>
    %c0_11 = arith.constant 0 : index
    %c0_12 = arith.constant 0 : index
    %14 = vector.load %arg3[%c0_11, %c0_12] : memref<1x128xf32, #tpu.memory_space<vmem>>, vector<1x128xf32>
    %cst_13 = arith.constant dense<0.000000e+00> : vector<128xf32>
    %15 = vector.multi_reduction <add>, %12, %cst_13 [0, 1] : vector<2x256x128xf32> to vector<128xf32>
    %16 = vector.shape_cast %15 : vector<128xf32> to vector<1x1x128xf32>
    %cst_14 = arith.constant 0.001953125 : f32
    %17 = vector.broadcast %cst_14 : f32 to vector<1x1x128xf32>
    %18 = arith.mulf %16, %17 : vector<1x1x128xf32>
    %19 = arith.mulf %12, %12 : vector<2x256x128xf32>
    %cst_15 = arith.constant dense<0.000000e+00> : vector<128xf32>
    %20 = vector.multi_reduction <add>, %19, %cst_15 [0, 1] : vector<2x256x128xf32> to vector<128xf32>
    %21 = vector.shape_cast %20 : vector<128xf32> to vector<1x1x128xf32>
    %cst_16 = arith.constant 0.001953125 : f32
    %22 = vector.broadcast %cst_16 : f32 to vector<1x1x128xf32>
    %23 = arith.mulf %21, %22 : vector<1x1x128xf32>
    %24 = arith.mulf %18, %18 : vector<1x1x128xf32>
    %25 = arith.subf %23, %24 : vector<1x1x128xf32>
    %cst_17 = arith.constant 0.000000e+00 : f32
    %26 = vector.broadcast %cst_17 : f32 to vector<1x1x128xf32>
    %27 = arith.maximumf %25, %26 : vector<1x1x128xf32>
    %28 = vector.broadcast %18 : vector<1x1x128xf32> to vector<2x256x128xf32>
    %29 = arith.subf %12, %28 : vector<2x256x128xf32>
    %cst_18 = arith.constant 9.99999974E-6 : f32
    %30 = vector.broadcast %cst_18 : f32 to vector<1x1x128xf32>
    %31 = arith.addf %27, %30 : vector<1x1x128xf32>
    %32 = math.rsqrt %31 : vector<1x1x128xf32>
    %33 = vector.shape_cast %13 : vector<1x128xf32> to vector<1x1x128xf32>
    %34 = arith.mulf %32, %33 : vector<1x1x128xf32>
    %35 = vector.broadcast %34 : vector<1x1x128xf32> to vector<2x256x128xf32>
    %36 = arith.mulf %29, %35 : vector<2x256x128xf32>
    %37 = vector.shape_cast %14 : vector<1x128xf32> to vector<1x1x128xf32>
    %38 = vector.broadcast %37 : vector<1x1x128xf32> to vector<2x256x128xf32>
    %39 = arith.addf %36, %38 : vector<2x256x128xf32>
    %cst_19 = arith.constant 0.000000e+00 : f32
    %40 = vector.broadcast %cst_19 : f32 to vector<2x256x128xf32>
    %41 = arith.maximumf %39, %40 : vector<2x256x128xf32>
    %42 = arith.truncf %41 : vector<2x256x128xf32> to vector<2x256x128xbf16>
    %c0_20 = arith.constant 0 : index
    %c0_21 = arith.constant 0 : index
    %c0_22 = arith.constant 0 : index
    %43 = vector.load %arg4[%c0_20, %c0_21, %c0_22] : memref<2x128x128xbf16, #tpu.memory_space<vmem>>, vector<1x128x128xbf16>
    %44 = vector.shape_cast %43 : vector<1x128x128xbf16> to vector<128x128xbf16>
    %45 = vector.shape_cast %42 : vector<2x256x128xbf16> to vector<512x128xbf16>
    %cst_23 = arith.constant dense<0.000000e+00> : vector<512x128xf32>
    %46 = tpu.matmul %45, %44, %cst_23 {dimension_numbers = #tpu.dot_dimension_numbers<[1], [0], [0], [1], [0, 0, 1, 1], [], []>} : vector<512x128xbf16>, vector<128x128xbf16>, vector<512x128xf32> -> vector<512x128xf32>
    %47 = vector.shape_cast %46 : vector<512x128xf32> to vector<2x256x128xf32>
    %c0_24 = arith.constant 0 : index
    %c0_25 = arith.constant 0 : index
    %c0_26 = arith.constant 0 : index
    %48 = vector.load %arg5[%c0_24, %c0_25, %c0_26] : memref<2x1x128xf32, #tpu.memory_space<vmem>>, vector<1x1x128xf32>
    %49 = vector.shape_cast %48 : vector<1x1x128xf32> to vector<1x128xf32>
    %c0_27 = arith.constant 0 : index
    %c0_28 = arith.constant 0 : index
    %c0_29 = arith.constant 0 : index
    %50 = vector.load %arg6[%c0_27, %c0_28, %c0_29] : memref<2x1x128xf32, #tpu.memory_space<vmem>>, vector<1x1x128xf32>
    %51 = vector.shape_cast %50 : vector<1x1x128xf32> to vector<1x128xf32>
    %cst_30 = arith.constant dense<0.000000e+00> : vector<2x128xf32>
    %52 = vector.multi_reduction <add>, %47, %cst_30 [1] : vector<2x256x128xf32> to vector<2x128xf32>
    %53 = vector.shape_cast %52 : vector<2x128xf32> to vector<2x1x128xf32>
    %cst_31 = arith.constant 3.906250e-03 : f32
    %54 = vector.broadcast %cst_31 : f32 to vector<2x1x128xf32>
    %55 = arith.mulf %53, %54 : vector<2x1x128xf32>
    %56 = arith.mulf %47, %47 : vector<2x256x128xf32>
    %cst_32 = arith.constant dense<0.000000e+00> : vector<2x128xf32>
    %57 = vector.multi_reduction <add>, %56, %cst_32 [1] : vector<2x256x128xf32> to vector<2x128xf32>
    %58 = vector.shape_cast %57 : vector<2x128xf32> to vector<2x1x128xf32>
    %cst_33 = arith.constant 3.906250e-03 : f32
    %59 = vector.broadcast %cst_33 : f32 to vector<2x1x128xf32>
    %60 = arith.mulf %58, %59 : vector<2x1x128xf32>
    %61 = arith.mulf %55, %55 : vector<2x1x128xf32>
    %62 = arith.subf %60, %61 : vector<2x1x128xf32>
    %cst_34 = arith.constant 0.000000e+00 : f32
    %63 = vector.broadcast %cst_34 : f32 to vector<2x1x128xf32>
    %64 = arith.maximumf %62, %63 : vector<2x1x128xf32>
    %cst_35 = arith.constant 9.99999974E-6 : f32
    %65 = vector.broadcast %cst_35 : f32 to vector<2x1x128xf32>
    %66 = arith.addf %64, %65 : vector<2x1x128xf32>
    %67 = math.rsqrt %66 : vector<2x1x128xf32>
    %68 = arith.mulf %67, %67 : vector<2x1x128xf32>
    %69 = arith.mulf %64, %68 : vector<2x1x128xf32>
    %cst_36 = arith.constant dense<0.000000e+00> : vector<1x128xf32>
    %70 = vector.multi_reduction <add>, %69, %cst_36 [0] : vector<2x1x128xf32> to vector<1x128xf32>
    %71 = vector.shape_cast %70 : vector<1x128xf32> to vector<1x1x128xf32>
    %cst_37 = arith.constant 2.000000e+00 : f32
    %72 = vector.broadcast %cst_37 : f32 to vector<1x1x128xf32>
    %73 = arith.divf %71, %72 : vector<1x1x128xf32>
    %cst_38 = arith.constant 9.99999974E-6 : f32
    %74 = vector.broadcast %cst_38 : f32 to vector<1x1x128xf32>
    %75 = arith.addf %73, %74 : vector<1x1x128xf32>
    %76 = math.rsqrt %75 : vector<1x1x128xf32>
    %77 = vector.shape_cast %49 : vector<1x128xf32> to vector<1x1x128xf32>
    %78 = arith.mulf %76, %77 : vector<1x1x128xf32>
    %79 = vector.broadcast %78 : vector<1x1x128xf32> to vector<2x1x128xf32>
    %80 = arith.mulf %67, %79 : vector<2x1x128xf32>
    %81 = vector.broadcast %55 : vector<2x1x128xf32> to vector<2x256x128xf32>
    %82 = arith.subf %47, %81 : vector<2x256x128xf32>
    %83 = vector.broadcast %80 : vector<2x1x128xf32> to vector<2x256x128xf32>
    %84 = arith.mulf %82, %83 : vector<2x256x128xf32>
    %85 = vector.shape_cast %51 : vector<1x128xf32> to vector<1x1x128xf32>
    %86 = vector.broadcast %85 : vector<1x1x128xf32> to vector<2x256x128xf32>
    %87 = arith.addf %84, %86 : vector<2x256x128xf32>
    %cst_39 = arith.constant 0.000000e+00 : f32
    %88 = vector.broadcast %cst_39 : f32 to vector<2x256x128xf32>
    %89 = arith.maximumf %87, %88 : vector<2x256x128xf32>
    %90 = arith.truncf %89 : vector<2x256x128xf32> to vector<2x256x128xbf16>
    %c0_40 = arith.constant 0 : index
    %c0_41 = arith.constant 0 : index
    %c0_42 = arith.constant 0 : index
    %91 = vector.load %arg7[%c0_40, %c0_41, %c0_42] : memref<2x128x128xbf16, #tpu.memory_space<vmem>>, vector<1x128x128xbf16>
    %92 = vector.shape_cast %91 : vector<1x128x128xbf16> to vector<128x128xbf16>
    %93 = vector.shape_cast %90 : vector<2x256x128xbf16> to vector<512x128xbf16>
    %cst_43 = arith.constant dense<0.000000e+00> : vector<512x128xf32>
    %94 = tpu.matmul %93, %92, %cst_43 {dimension_numbers = #tpu.dot_dimension_numbers<[1], [0], [0], [1], [0, 0, 1, 1], [], []>} : vector<512x128xbf16>, vector<128x128xbf16>, vector<512x128xf32> -> vector<512x128xf32>
    %95 = vector.shape_cast %94 : vector<512x128xf32> to vector<2x256x128xf32>
    %c0_44 = arith.constant 0 : index
    %c0_45 = arith.constant 0 : index
    %c0_46 = arith.constant 0 : index
    %96 = vector.load %arg8[%c0_44, %c0_45, %c0_46] : memref<2x1x128xf32, #tpu.memory_space<vmem>>, vector<1x1x128xf32>
    %97 = vector.shape_cast %96 : vector<1x1x128xf32> to vector<1x128xf32>
    %c0_47 = arith.constant 0 : index
    %c0_48 = arith.constant 0 : index
    %c0_49 = arith.constant 0 : index
    %98 = vector.load %arg9[%c0_47, %c0_48, %c0_49] : memref<2x1x128xf32, #tpu.memory_space<vmem>>, vector<1x1x128xf32>
    %99 = vector.shape_cast %98 : vector<1x1x128xf32> to vector<1x128xf32>
    %cst_50 = arith.constant dense<0.000000e+00> : vector<2x128xf32>
    %100 = vector.multi_reduction <add>, %95, %cst_50 [1] : vector<2x256x128xf32> to vector<2x128xf32>
    %101 = vector.shape_cast %100 : vector<2x128xf32> to vector<2x1x128xf32>
    %cst_51 = arith.constant 3.906250e-03 : f32
    %102 = vector.broadcast %cst_51 : f32 to vector<2x1x128xf32>
    %103 = arith.mulf %101, %102 : vector<2x1x128xf32>
    %104 = arith.mulf %95, %95 : vector<2x256x128xf32>
    %cst_52 = arith.constant dense<0.000000e+00> : vector<2x128xf32>
    %105 = vector.multi_reduction <add>, %104, %cst_52 [1] : vector<2x256x128xf32> to vector<2x128xf32>
    %106 = vector.shape_cast %105 : vector<2x128xf32> to vector<2x1x128xf32>
    %cst_53 = arith.constant 3.906250e-03 : f32
    %107 = vector.broadcast %cst_53 : f32 to vector<2x1x128xf32>
    %108 = arith.mulf %106, %107 : vector<2x1x128xf32>
    %109 = arith.mulf %103, %103 : vector<2x1x128xf32>
    %110 = arith.subf %108, %109 : vector<2x1x128xf32>
    %cst_54 = arith.constant 0.000000e+00 : f32
    %111 = vector.broadcast %cst_54 : f32 to vector<2x1x128xf32>
    %112 = arith.maximumf %110, %111 : vector<2x1x128xf32>
    %cst_55 = arith.constant 9.99999974E-6 : f32
    %113 = vector.broadcast %cst_55 : f32 to vector<2x1x128xf32>
    %114 = arith.addf %112, %113 : vector<2x1x128xf32>
    %115 = math.rsqrt %114 : vector<2x1x128xf32>
    %116 = arith.mulf %115, %115 : vector<2x1x128xf32>
    %117 = arith.mulf %112, %116 : vector<2x1x128xf32>
    %cst_56 = arith.constant dense<0.000000e+00> : vector<1x128xf32>
    %118 = vector.multi_reduction <add>, %117, %cst_56 [0] : vector<2x1x128xf32> to vector<1x128xf32>
    %119 = vector.shape_cast %118 : vector<1x128xf32> to vector<1x1x128xf32>
    %cst_57 = arith.constant 2.000000e+00 : f32
    %120 = vector.broadcast %cst_57 : f32 to vector<1x1x128xf32>
    %121 = arith.divf %119, %120 : vector<1x1x128xf32>
    %cst_58 = arith.constant 9.99999974E-6 : f32
    %122 = vector.broadcast %cst_58 : f32 to vector<1x1x128xf32>
    %123 = arith.addf %121, %122 : vector<1x1x128xf32>
    %124 = math.rsqrt %123 : vector<1x1x128xf32>
    %125 = vector.shape_cast %97 : vector<1x128xf32> to vector<1x1x128xf32>
    %126 = arith.mulf %124, %125 : vector<1x1x128xf32>
    %127 = vector.broadcast %126 : vector<1x1x128xf32> to vector<2x1x128xf32>
    %128 = arith.mulf %115, %127 : vector<2x1x128xf32>
    %129 = vector.broadcast %103 : vector<2x1x128xf32> to vector<2x256x128xf32>
    %130 = arith.subf %95, %129 : vector<2x256x128xf32>
    %131 = vector.broadcast %128 : vector<2x1x128xf32> to vector<2x256x128xf32>
    %132 = arith.mulf %130, %131 : vector<2x256x128xf32>
    %133 = vector.shape_cast %99 : vector<1x128xf32> to vector<1x1x128xf32>
    %134 = vector.broadcast %133 : vector<1x1x128xf32> to vector<2x256x128xf32>
    %135 = arith.addf %132, %134 : vector<2x256x128xf32>
    %cst_59 = arith.constant 0.000000e+00 : f32
    %136 = vector.broadcast %cst_59 : f32 to vector<2x256x128xf32>
    %137 = arith.maximumf %135, %136 : vector<2x256x128xf32>
    %138 = arith.truncf %137 : vector<2x256x128xf32> to vector<2x256x128xbf16>
    %139 = arith.addf %138, %42 : vector<2x256x128xbf16>
    %c1_60 = arith.constant 1 : index
    %c0_61 = arith.constant 0 : index
    %c0_62 = arith.constant 0 : index
    %140 = vector.load %arg4[%c1_60, %c0_61, %c0_62] : memref<2x128x128xbf16, #tpu.memory_space<vmem>>, vector<1x128x128xbf16>
    %141 = vector.shape_cast %140 : vector<1x128x128xbf16> to vector<128x128xbf16>
    %142 = vector.shape_cast %139 : vector<2x256x128xbf16> to vector<512x128xbf16>
    %cst_63 = arith.constant dense<0.000000e+00> : vector<512x128xf32>
    %143 = tpu.matmul %142, %141, %cst_63 {dimension_numbers = #tpu.dot_dimension_numbers<[1], [0], [0], [1], [0, 0, 1, 1], [], []>} : vector<512x128xbf16>, vector<128x128xbf16>, vector<512x128xf32> -> vector<512x128xf32>
    %144 = vector.shape_cast %143 : vector<512x128xf32> to vector<2x256x128xf32>
    %c1_64 = arith.constant 1 : index
    %c0_65 = arith.constant 0 : index
    %c0_66 = arith.constant 0 : index
    %145 = vector.load %arg5[%c1_64, %c0_65, %c0_66] : memref<2x1x128xf32, #tpu.memory_space<vmem>>, vector<1x1x128xf32>
    %146 = vector.shape_cast %145 : vector<1x1x128xf32> to vector<1x128xf32>
    %c1_67 = arith.constant 1 : index
    %c0_68 = arith.constant 0 : index
    %c0_69 = arith.constant 0 : index
    %147 = vector.load %arg6[%c1_67, %c0_68, %c0_69] : memref<2x1x128xf32, #tpu.memory_space<vmem>>, vector<1x1x128xf32>
    %148 = vector.shape_cast %147 : vector<1x1x128xf32> to vector<1x128xf32>
    %cst_70 = arith.constant dense<0.000000e+00> : vector<2x128xf32>
    %149 = vector.multi_reduction <add>, %144, %cst_70 [1] : vector<2x256x128xf32> to vector<2x128xf32>
    %150 = vector.shape_cast %149 : vector<2x128xf32> to vector<2x1x128xf32>
    %cst_71 = arith.constant 3.906250e-03 : f32
    %151 = vector.broadcast %cst_71 : f32 to vector<2x1x128xf32>
    %152 = arith.mulf %150, %151 : vector<2x1x128xf32>
    %153 = arith.mulf %144, %144 : vector<2x256x128xf32>
    %cst_72 = arith.constant dense<0.000000e+00> : vector<2x128xf32>
    %154 = vector.multi_reduction <add>, %153, %cst_72 [1] : vector<2x256x128xf32> to vector<2x128xf32>
    %155 = vector.shape_cast %154 : vector<2x128xf32> to vector<2x1x128xf32>
    %cst_73 = arith.constant 3.906250e-03 : f32
    %156 = vector.broadcast %cst_73 : f32 to vector<2x1x128xf32>
    %157 = arith.mulf %155, %156 : vector<2x1x128xf32>
    %158 = arith.mulf %152, %152 : vector<2x1x128xf32>
    %159 = arith.subf %157, %158 : vector<2x1x128xf32>
    %cst_74 = arith.constant 0.000000e+00 : f32
    %160 = vector.broadcast %cst_74 : f32 to vector<2x1x128xf32>
    %161 = arith.maximumf %159, %160 : vector<2x1x128xf32>
    %cst_75 = arith.constant 9.99999974E-6 : f32
    %162 = vector.broadcast %cst_75 : f32 to vector<2x1x128xf32>
    %163 = arith.addf %161, %162 : vector<2x1x128xf32>
    %164 = math.rsqrt %163 : vector<2x1x128xf32>
    %165 = arith.mulf %164, %164 : vector<2x1x128xf32>
    %166 = arith.mulf %161, %165 : vector<2x1x128xf32>
    %cst_76 = arith.constant dense<0.000000e+00> : vector<1x128xf32>
    %167 = vector.multi_reduction <add>, %166, %cst_76 [0] : vector<2x1x128xf32> to vector<1x128xf32>
    %168 = vector.shape_cast %167 : vector<1x128xf32> to vector<1x1x128xf32>
    %cst_77 = arith.constant 2.000000e+00 : f32
    %169 = vector.broadcast %cst_77 : f32 to vector<1x1x128xf32>
    %170 = arith.divf %168, %169 : vector<1x1x128xf32>
    %cst_78 = arith.constant 9.99999974E-6 : f32
    %171 = vector.broadcast %cst_78 : f32 to vector<1x1x128xf32>
    %172 = arith.addf %170, %171 : vector<1x1x128xf32>
    %173 = math.rsqrt %172 : vector<1x1x128xf32>
    %174 = vector.shape_cast %146 : vector<1x128xf32> to vector<1x1x128xf32>
    %175 = arith.mulf %173, %174 : vector<1x1x128xf32>
    %176 = vector.broadcast %175 : vector<1x1x128xf32> to vector<2x1x128xf32>
    %177 = arith.mulf %164, %176 : vector<2x1x128xf32>
    %178 = vector.broadcast %152 : vector<2x1x128xf32> to vector<2x256x128xf32>
    %179 = arith.subf %144, %178 : vector<2x256x128xf32>
    %180 = vector.broadcast %177 : vector<2x1x128xf32> to vector<2x256x128xf32>
    %181 = arith.mulf %179, %180 : vector<2x256x128xf32>
    %182 = vector.shape_cast %148 : vector<1x128xf32> to vector<1x1x128xf32>
    %183 = vector.broadcast %182 : vector<1x1x128xf32> to vector<2x256x128xf32>
    %184 = arith.addf %181, %183 : vector<2x256x128xf32>
    %cst_79 = arith.constant 0.000000e+00 : f32
    %185 = vector.broadcast %cst_79 : f32 to vector<2x256x128xf32>
    %186 = arith.maximumf %184, %185 : vector<2x256x128xf32>
    %187 = arith.truncf %186 : vector<2x256x128xf32> to vector<2x256x128xbf16>
    %c1_80 = arith.constant 1 : index
    %c0_81 = arith.constant 0 : index
    %c0_82 = arith.constant 0 : index
    %188 = vector.load %arg7[%c1_80, %c0_81, %c0_82] : memref<2x128x128xbf16, #tpu.memory_space<vmem>>, vector<1x128x128xbf16>
    %189 = vector.shape_cast %188 : vector<1x128x128xbf16> to vector<128x128xbf16>
    %190 = vector.shape_cast %187 : vector<2x256x128xbf16> to vector<512x128xbf16>
    %cst_83 = arith.constant dense<0.000000e+00> : vector<512x128xf32>
    %191 = tpu.matmul %190, %189, %cst_83 {dimension_numbers = #tpu.dot_dimension_numbers<[1], [0], [0], [1], [0, 0, 1, 1], [], []>} : vector<512x128xbf16>, vector<128x128xbf16>, vector<512x128xf32> -> vector<512x128xf32>
    %192 = vector.shape_cast %191 : vector<512x128xf32> to vector<2x256x128xf32>
    %c1_84 = arith.constant 1 : index
    %c0_85 = arith.constant 0 : index
    %c0_86 = arith.constant 0 : index
    %193 = vector.load %arg8[%c1_84, %c0_85, %c0_86] : memref<2x1x128xf32, #tpu.memory_space<vmem>>, vector<1x1x128xf32>
    %194 = vector.shape_cast %193 : vector<1x1x128xf32> to vector<1x128xf32>
    %c1_87 = arith.constant 1 : index
    %c0_88 = arith.constant 0 : index
    %c0_89 = arith.constant 0 : index
    %195 = vector.load %arg9[%c1_87, %c0_88, %c0_89] : memref<2x1x128xf32, #tpu.memory_space<vmem>>, vector<1x1x128xf32>
    %196 = vector.shape_cast %195 : vector<1x1x128xf32> to vector<1x128xf32>
    %cst_90 = arith.constant dense<0.000000e+00> : vector<2x128xf32>
    %197 = vector.multi_reduction <add>, %192, %cst_90 [1] : vector<2x256x128xf32> to vector<2x128xf32>
    %198 = vector.shape_cast %197 : vector<2x128xf32> to vector<2x1x128xf32>
    %cst_91 = arith.constant 3.906250e-03 : f32
    %199 = vector.broadcast %cst_91 : f32 to vector<2x1x128xf32>
    %200 = arith.mulf %198, %199 : vector<2x1x128xf32>
    %201 = arith.mulf %192, %192 : vector<2x256x128xf32>
    %cst_92 = arith.constant dense<0.000000e+00> : vector<2x128xf32>
    %202 = vector.multi_reduction <add>, %201, %cst_92 [1] : vector<2x256x128xf32> to vector<2x128xf32>
    %203 = vector.shape_cast %202 : vector<2x128xf32> to vector<2x1x128xf32>
    %cst_93 = arith.constant 3.906250e-03 : f32
    %204 = vector.broadcast %cst_93 : f32 to vector<2x1x128xf32>
    %205 = arith.mulf %203, %204 : vector<2x1x128xf32>
    %206 = arith.mulf %200, %200 : vector<2x1x128xf32>
    %207 = arith.subf %205, %206 : vector<2x1x128xf32>
    %cst_94 = arith.constant 0.000000e+00 : f32
    %208 = vector.broadcast %cst_94 : f32 to vector<2x1x128xf32>
    %209 = arith.maximumf %207, %208 : vector<2x1x128xf32>
    %cst_95 = arith.constant 9.99999974E-6 : f32
    %210 = vector.broadcast %cst_95 : f32 to vector<2x1x128xf32>
    %211 = arith.addf %209, %210 : vector<2x1x128xf32>
    %212 = math.rsqrt %211 : vector<2x1x128xf32>
    %213 = arith.mulf %212, %212 : vector<2x1x128xf32>
    %214 = arith.mulf %209, %213 : vector<2x1x128xf32>
    %cst_96 = arith.constant dense<0.000000e+00> : vector<1x128xf32>
    %215 = vector.multi_reduction <add>, %214, %cst_96 [0] : vector<2x1x128xf32> to vector<1x128xf32>
    %216 = vector.shape_cast %215 : vector<1x128xf32> to vector<1x1x128xf32>
    %cst_97 = arith.constant 2.000000e+00 : f32
    %217 = vector.broadcast %cst_97 : f32 to vector<1x1x128xf32>
    %218 = arith.divf %216, %217 : vector<1x1x128xf32>
    %cst_98 = arith.constant 9.99999974E-6 : f32
    %219 = vector.broadcast %cst_98 : f32 to vector<1x1x128xf32>
    %220 = arith.addf %218, %219 : vector<1x1x128xf32>
    %221 = math.rsqrt %220 : vector<1x1x128xf32>
    %222 = vector.shape_cast %194 : vector<1x128xf32> to vector<1x1x128xf32>
    %223 = arith.mulf %221, %222 : vector<1x1x128xf32>
    %224 = vector.broadcast %223 : vector<1x1x128xf32> to vector<2x1x128xf32>
    %225 = arith.mulf %212, %224 : vector<2x1x128xf32>
    %226 = vector.broadcast %200 : vector<2x1x128xf32> to vector<2x256x128xf32>
    %227 = arith.subf %192, %226 : vector<2x256x128xf32>
    %228 = vector.broadcast %225 : vector<2x1x128xf32> to vector<2x256x128xf32>
    %229 = arith.mulf %227, %228 : vector<2x256x128xf32>
    %230 = vector.shape_cast %196 : vector<1x128xf32> to vector<1x1x128xf32>
    %231 = vector.broadcast %230 : vector<1x1x128xf32> to vector<2x256x128xf32>
    %232 = arith.addf %229, %231 : vector<2x256x128xf32>
    %cst_99 = arith.constant 0.000000e+00 : f32
    %233 = vector.broadcast %cst_99 : f32 to vector<2x256x128xf32>
    %234 = arith.maximumf %232, %233 : vector<2x256x128xf32>
    %235 = arith.truncf %234 : vector<2x256x128xf32> to vector<2x256x128xbf16>
    %236 = arith.addf %235, %139 : vector<2x256x128xbf16>
    %237 = arith.extf %236 : vector<2x256x128xbf16> to vector<2x256x128xf32>
    %c0_100 = arith.constant 0 : index
    %c0_101 = arith.constant 0 : index
    %238 = vector.load %arg10[%c0_100, %c0_101] : memref<1x128xf32, #tpu.memory_space<vmem>>, vector<1x128xf32>
    %239 = vector.shape_cast %238 : vector<1x128xf32> to vector<1x1x128xf32>
    %240 = vector.broadcast %239 : vector<1x1x128xf32> to vector<2x256x128xf32>
    %241 = arith.mulf %237, %240 : vector<2x256x128xf32>
    %cst_102 = arith.constant dense<0.000000e+00> : vector<2x256xf32>
    %242 = vector.multi_reduction <add>, %241, %cst_102 [2] : vector<2x256x128xf32> to vector<2x256xf32>
    %c0_103 = arith.constant 0 : index
    %c0_104 = arith.constant 0 : index
    %243 = memref.load %arg11[%c0_103, %c0_104] : memref<1x1xf32, #tpu.memory_space<smem>>
    %244 = vector.broadcast %243 : f32 to vector<2x256xf32>
    %245 = arith.addf %242, %244 : vector<2x256xf32>
    %c0_105 = arith.constant 0 : index
    %c0_106 = arith.constant 0 : index
    %246 = vector.load %arg12[%c0_105, %c0_106] : memref<2x256xf32, #tpu.memory_space<vmem>>, vector<2x256xf32>
    tpu.vector_store %arg12[%c0_105, %c0_106], %245 {strides = array<i32>} : memref<2x256xf32, #tpu.memory_space<vmem>>, vector<2x256xf32>,
    return
  }
}

</mosaic_0001>

<llo_original>
// kernel: tpu_custom_call.1
$region0: #{tpu_custom_call.1}
  #allocation0 [shape = 'u32[]', space=smem, size = 0x4, offset = 0x4, fixed_abs, tag = 'smem constant byte address 0x4 - core index']
  #allocation1 [shape = 'u32[144,128]{1,0:T(1,128)}', space=vmem, size = 0x12000, scoped, tag = 'internal scratch']
  #allocation2 [shape = 'f32[1,1]{1,0:T(1,128)S(6)}', space=smem, size = 0x200, scoped, tag = 'scoped memory for tpu_custom_call.1']
  %s0 = inlined_call_operand.hbm [shape: f32[2,8,256], index: 0, kind: input, shape index: {}]
  %s1 = inlined_call_operand.vmem [shape: f32[128,8], index: 1, kind: input, shape index: {}]
  %s2 = inlined_call_operand.vmem [shape: f32[1,128], index: 2, kind: input, shape index: {}]
  %s3 = inlined_call_operand.vmem [shape: f32[1,128], index: 3, kind: input, shape index: {}]
  %s4 = inlined_call_operand.vmem [shape: bf16[2,128,128], index: 4, kind: input, shape index: {}]
  %s5 = inlined_call_operand.vmem [shape: f32[2,1,128], index: 5, kind: input, shape index: {}]
  %s6 = inlined_call_operand.vmem [shape: f32[2,1,128], index: 6, kind: input, shape index: {}]
  %s7 = inlined_call_operand.hbm [shape: bf16[2,128,128], index: 7, kind: input, shape index: {}]
  %s8 = inlined_call_operand.vmem [shape: f32[2,1,128], index: 8, kind: input, shape index: {}]
  %s9 = inlined_call_operand.vmem [shape: f32[2,1,128], index: 9, kind: input, shape index: {}]
  %s10 = inlined_call_operand.vmem [shape: f32[1,128], index: 10, kind: input, shape index: {}]
  %s11 = inlined_call_operand.<no memory space> [shape: f32[1,1], index: 11, kind: input, shape index: {}]
  %s12 = inlined_call_operand.hbm [shape: f32[2,256], index: 12, kind: output, shape index: {}]
  %s13 = sld [smem:[#allocation0]]
  $region66: #{tpu_custom_call.1} parent=0
    _
  %s15 = ssub.s32 1, %s13
  %s16 = scalar_select 0, %s15, %s13
  %17 = sst [smem:[#allocation2]] %s11
  $region1: #{tpu_custom_call.1} parent=0
    #allocation3 [shape = 'u8[16384]{0}', space=vmem, size = 0x4000, scoped, tag = 'input window, operand 0, single buffered']
    #allocation4 [shape = 's32[1]{0}', space=sflag, size = 0x4, scoped, tag = 'scoped memory for tpu_custom_call.1']
    #allocation5 [shape = 's32[1]{0}', space=sflag, size = 0x4, scoped, tag = 'scoped memory for tpu_custom_call.1']
    #allocation6 [shape = 'u8[65536]{0}', space=vmem, size = 0x10000, scoped, tag = 'input window, operand 7, single buffered']
    #allocation7 [shape = 's32[1]{0}', space=sflag, size = 0x4, scoped, tag = 'scoped memory for tpu_custom_call.1']
    #allocation8 [shape = 'u8[2048]{0}', space=vmem, size = 0x800, scoped, tag = 'output window, operand 0, single buffered']
    %18 = vsyncpa [#allocation4], 0
    %19 = vsyncpa [#allocation7], 0
    %20 = vsyncpa [#allocation5], 0
    // Predicated region
    $region2: #{tpu_custom_call.1} parent=1 // pred_check
      _
    $region3: #{tpu_custom_call.1} parent=1 // pred_check_branch
      %22 = sbr.rel (0) target = $region5
    $region4: #{tpu_custom_call.1} parent=1 // pred_region
      %s24 = ssub.s32 512, 512
      %25 = vsyncadd [#allocation4], %s24
      %s26 = sshll.u32 [#allocation3], 4
      %s27 = int_to_ptr.vmem [resolvable:$true] %s26
      %32 = dma.hbm_to_vmem [thread:$0]  %s0, 512, %s27, [#allocation4], 256, 256, 16
    $region5: #{tpu_custom_call.1} parent=1 // pred_fallthru
      _
    // Predicated region
    $region6: #{tpu_custom_call.1} parent=1 // pred_check
      _
    $region7: #{tpu_custom_call.1} parent=1 // pred_check_branch
      %34 = sbr.rel (0) target = $region9
    $region8: #{tpu_custom_call.1} parent=1 // pred_region
      _
    $region9: #{tpu_custom_call.1} parent=1 // pred_fallthru
      _
    // Predicated region
    $region10: #{tpu_custom_call.1} parent=1 // pred_check
      _
    $region11: #{tpu_custom_call.1} parent=1 // pred_check_branch
      %36 = sbr.rel (0) target = $region13
    $region12: #{tpu_custom_call.1} parent=1 // pred_region
      _
    $region13: #{tpu_custom_call.1} parent=1 // pred_fallthru
      _
    // Predicated region
    $region14: #{tpu_custom_call.1} parent=1 // pred_check
      _
    $region15: #{tpu_custom_call.1} parent=1 // pred_check_branch
      %38 = sbr.rel (0) target = $region17
    $region16: #{tpu_custom_call.1} parent=1 // pred_region
      _
    $region17: #{tpu_custom_call.1} parent=1 // pred_fallthru
      _
    // Predicated region
    $region18: #{tpu_custom_call.1} parent=1 // pred_check
      _
    $region19: #{tpu_custom_call.1} parent=1 // pred_check_branch
      %40 = sbr.rel (0) target = $region21
    $region20: #{tpu_custom_call.1} parent=1 // pred_region
      _
    $region21: #{tpu_custom_call.1} parent=1 // pred_fallthru
      _
    // Predicated region
    $region22: #{tpu_custom_call.1} parent=1 // pred_check
      _
    $region23: #{tpu_custom_call.1} parent=1 // pred_check_branch
      %42 = sbr.rel (0) target = $region25
    $region24: #{tpu_custom_call.1} parent=1 // pred_region
      _
    $region25: #{tpu_custom_call.1} parent=1 // pred_fallthru
      _
    // Predicated region
    $region26: #{tpu_custom_call.1} parent=1 // pred_check
      _
    $region27: #{tpu_custom_call.1} parent=1 // pred_check_branch
      %44 = sbr.rel (0) target = $region29
    $region28: #{tpu_custom_call.1} parent=1 // pred_region
      _
    $region29: #{tpu_custom_call.1} parent=1 // pred_fallthru
      _
    // Predicated region
    $region30: #{tpu_custom_call.1} parent=1 // pred_check
      _
    $region31: #{tpu_custom_call.1} parent=1 // pred_check_branch
      %46 = sbr.rel (0) target = $region33
    $region32: #{tpu_custom_call.1} parent=1 // pred_region
      %s48 = ssub.s32 2048, 2048
      %49 = vsyncadd [#allocation7], %s48
      %s50 = sshll.u32 [#allocation6], 4
      %s51 = int_to_ptr.vmem [resolvable:$true] %s50
      %56 = dma.hbm_to_vmem [thread:$0]  %s7, 2048, %s51, [#allocation7], 64, 64, 4
    $region33: #{tpu_custom_call.1} parent=1 // pred_fallthru
      _
    // Predicated region
    $region34: #{tpu_custom_call.1} parent=1 // pred_check
      _
    $region35: #{tpu_custom_call.1} parent=1 // pred_check_branch
      %58 = sbr.rel (0) target = $region37
    $region36: #{tpu_custom_call.1} parent=1 // pred_region
      _
    $region37: #{tpu_custom_call.1} parent=1 // pred_fallthru
      _
    // Predicated region
    $region38: #{tpu_custom_call.1} parent=1 // pred_check
      _
    $region39: #{tpu_custom_call.1} parent=1 // pred_check_branch
      %60 = sbr.rel (0) target = $region41
    $region40: #{tpu_custom_call.1} parent=1 // pred_region
      _
    $region41: #{tpu_custom_call.1} parent=1 // pred_fallthru
      _
    // Predicated region
    $region42: #{tpu_custom_call.1} parent=1 // pred_check
      _
    $region43: #{tpu_custom_call.1} parent=1 // pred_check_branch
      %62 = sbr.rel (0) target = $region45
    $region44: #{tpu_custom_call.1} parent=1 // pred_region
      _
    $region45: #{tpu_custom_call.1} parent=1 // pred_fallthru
      _
    // Predicated region
    $region46: #{tpu_custom_call.1} parent=1 // pred_check
      _
    $region47: #{tpu_custom_call.1} parent=1 // pred_check_branch
      %64 = sbr.rel (0) target = $region49
    $region48: #{tpu_custom_call.1} parent=1 // pred_region
      _
    $region49: #{tpu_custom_call.1} parent=1 // pred_fallthru
      _
    // Predicated region
    $region50: #{tpu_custom_call.1} parent=1 // pred_check
      _
    $region51: #{tpu_custom_call.1} parent=1 // pred_check_branch
      %66 = sbr.rel (0) target = $region53
    $region52: #{tpu_custom_call.1} parent=1 // pred_region
      %67 = dma.done [#allocation4], 512
    $region53: #{tpu_custom_call.1} parent=1 // pred_fallthru
      _
    // Predicated region
    $region54: #{tpu_custom_call.1} parent=1 // pred_check
      _
    $region55: #{tpu_custom_call.1} parent=1 // pred_check_branch
      %69 = sbr.rel (0) target = $region57
    $region56: #{tpu_custom_call.1} parent=1 // pred_region
      %70 = dma.done [#allocation7], 2048
    $region57: #{tpu_custom_call.1} parent=1 // pred_fallthru
      _
    %v72 = vld [vmem:[%s1] sm:$0xff]
    %v73 = vld [vmem:[%s1 + $0x8] sm:$0xff]
    %v74 = vld [vmem:[%s1 + $0x10] sm:$0xff]
    %v75 = vld [vmem:[%s1 + $0x18] sm:$0xff]
    %v76 = vld [vmem:[%s1 + $0x20] sm:$0xff]
    %v77 = vld [vmem:[%s1 + $0x28] sm:$0xff]
    %v78 = vld [vmem:[%s1 + $0x30] sm:$0xff]
    %v79 = vld [vmem:[%s1 + $0x38] sm:$0xff]
    %v80 = vld [vmem:[%s1 + $0x40] sm:$0xff]
    %v81 = vld [vmem:[%s1 + $0x48] sm:$0xff]
    %v82 = vld [vmem:[%s1 + $0x50] sm:$0xff]
    %v83 = vld [vmem:[%s1 + $0x58] sm:$0xff]
    %v84 = vld [vmem:[%s1 + $0x60] sm:$0xff]
    %v85 = vld [vmem:[%s1 + $0x68] sm:$0xff]
    %v86 = vld [vmem:[%s1 + $0x70] sm:$0xff]
    %v87 = vld [vmem:[%s1 + $0x78] sm:$0xff]
    %v88 = vld [vmem:[#allocation3] sm:$0xff]
    %v89 = vld [vmem:[#allocation3 + $0x8] sm:$0xff]
    %vm90 = vcmask 64512
    %v92 = vsel %vm90, %v72, 0
    %v95 = vsel %vm90, %v73, 0
    %v98 = vsel %vm90, %v74, 0
    %v101 = vsel %vm90, %v75, 0
    %v104 = vsel %vm90, %v76, 0
    %v107 = vsel %vm90, %v77, 0
    %v110 = vsel %vm90, %v78, 0
    %v113 = vsel %vm90, %v79, 0
    %v116 = vsel %vm90, %v80, 0
    %v119 = vsel %vm90, %v81, 0
    %v122 = vsel %vm90, %v82, 0
    %v125 = vsel %vm90, %v83, 0
    %v128 = vsel %vm90, %v84, 0
    %v131 = vsel %vm90, %v85, 0
    %v134 = vsel %vm90, %v86, 0
    %v137 = vsel %vm90, %v87, 0
    %139 = vmatprep.subr.mxu0 %v89
    %140 = vmatpush1.msra.mxu0 %v88
    %141 = vmatprep.subr.mxu0 0.0
    %142 = vmatpush1.msra.mxu0 0.0
    %143 = vmatprep.subr.mxu0 0.0
    %144 = vmatpush1.msra.mxu0 0.0
    %145 = vmatprep.subr.mxu0 0.0
    %146 = vmatpush1.msra.mxu0 0.0
    %147 = vmatprep.subr.mxu0 0.0
    %148 = vmatpush1.msra.mxu0 0.0
    %149 = vmatprep.subr.mxu0 0.0
    %150 = vmatpush1.msra.mxu0 0.0
    %151 = vmatprep.subr.mxu0 0.0
    %152 = vmatpush1.msra.mxu0 0.0
    %153 = vmatprep.subr.mxu0 0.0
    %154 = vmatpush1.msra.mxu0 0.0
    %155 = vmatprep.subr.mxu0 0.0
    %156 = vmatpush1.msra.mxu0 0.0
    %157 = vmatprep.subr.mxu0 0.0
    %158 = vmatpush1.msra.mxu0 0.0
    %159 = vmatprep.subr.mxu0 0.0
    %160 = vmatpush1.msra.mxu0 0.0
    %161 = vmatprep.subr.mxu0 0.0
    %162 = vmatpush1.msra.mxu0 0.0
    %163 = vmatprep.subr.mxu0 0.0
    %164 = vmatpush1.msra.mxu0 0.0
    %165 = vmatprep.subr.mxu0 0.0
    %166 = vmatpush1.msra.mxu0 0.0
    %167 = vmatprep.subr.mxu0 0.0
    %168 = vmatpush1.msra.mxu0 0.0
    %169 = vmatprep.subr.mxu0 0.0
    %170 = vmatpush1.msra.mxu0 0.0
    %171 = vmatprep.subr.mxu0 0.0
    %172 = vmatpush1.msra.mxu0 0.0
    %173 = vmatprep.subr.mxu0 0.0
    %174 = vmatpush1.msra.mxu0 0.0
    %175 = vmatprep.subr.mxu0 0.0
    %176 = vmatpush1.msra.mxu0 0.0
    %177 = vmatprep.subr.mxu0 0.0
    %178 = vmatpush1.msra.mxu0 0.0
    %179 = vmatprep.subr.mxu0 0.0
    %180 = vmatpush1.msra.mxu0 0.0
    %181 = vmatprep.subr.mxu0 0.0
    %182 = vmatpush1.msra.mxu0 0.0
    %183 = vmatprep.subr.mxu0 0.0
    %184 = vmatpush1.msra.mxu0 0.0
    %185 = vmatprep.subr.mxu0 0.0
    %186 = vmatpush1.msra.mxu0 0.0
    %187 = vmatprep.subr.mxu0 0.0
    %188 = vmatpush1.msra.mxu0 0.0
    %189 = vmatprep.subr.mxu0 0.0
    %190 = vmatpush1.msra.mxu0 0.0
    %191 = vmatprep.subr.mxu0 0.0
    %192 = vmatpush1.msra.mxu0 0.0
    %193 = vmatprep.subr.mxu0 0.0
    %194 = vmatpush1.msra.mxu0 0.0
    %195 = vmatprep.subr.mxu0 0.0
    %196 = vmatpush1.msra.mxu0 0.0
    %197 = vmatprep.subr.mxu0 0.0
    %198 = vmatpush1.msra.mxu0 0.0
    %199 = vmatprep.subr.mxu0 0.0
    %200 = vmatpush1.msra.mxu0 0.0
    %201 = vmatprep.subr.mxu0 0.0
    %202 = vmatpush1.msra.mxu0 0.0
    %203 = vmatprep.mubr.f32.mxu0 0.0
    %204 = vmatmul.mubr.f32.gmra.mrb[0].mxu0 %v92
    %v205 = vpop.f32.mrb[0].mxu0
    %v206 = vadd.f32 0.0, %v205
    %v207 = vpop.f32.mrb[0].mxu0
    %v208 = vadd.f32 0.0, %v207
    %209 = vmatprep.mubr.f32.mxu0 0.0
    %210 = vmatmul.mubr.f32.gmra.mrb[0].mxu0 %v95
    %v211 = vpop.f32.mrb[0].mxu0
    %v212 = vadd.f32 0.0, %v211
    %v213 = vpop.f32.mrb[0].mxu0
    %v214 = vadd.f32 0.0, %v213
    %215 = vmatprep.mubr.f32.mxu0 0.0
    %216 = vmatmul.mubr.f32.gmra.mrb[0].mxu0 %v98
    %v217 = vpop.f32.mrb[0].mxu0
    %v218 = vadd.f32 0.0, %v217
    %v219 = vpop.f32.mrb[0].mxu0
    %v220 = vadd.f32 0.0, %v219
    %221 = vmatprep.mubr.f32.mxu0 0.0
    %222 = vmatmul.mubr.f32.gmra.mrb[0].mxu0 %v101
    %v223 = vpop.f32.mrb[0].mxu0
    %v224 = vadd.f32 0.0, %v223
    %v225 = vpop.f32.mrb[0].mxu0
    %v226 = vadd.f32 0.0, %v225
    %227 = vmatprep.mubr.f32.mxu0 0.0
    %228 = vmatmul.mubr.f32.gmra.mrb[0].mxu0 %v104
    %v229 = vpop.f32.mrb[0].mxu0
    %v230 = vadd.f32 0.0, %v229
    %v231 = vpop.f32.mrb[0].mxu0
    %v232 = vadd.f32 0.0, %v231
    %233 = vmatprep.mubr.f32.mxu0 0.0
    %234 = vmatmul.mubr.f32.gmra.mrb[0].mxu0 %v107
    %v235 = vpop.f32.mrb[0].mxu0
    %v236 = vadd.f32 0.0, %v235
    %v237 = vpop.f32.mrb[0].mxu0
    %v238 = vadd.f32 0.0, %v237
    %239 = vmatprep.mubr.f32.mxu0 0.0
    %240 = vmatmul.mubr.f32.gmra.mrb[0].mxu0 %v110
    %v241 = vpop.f32.mrb[0].mxu0
    %v242 = vadd.f32 0.0, %v241
    %v243 = vpop.f32.mrb[0].mxu0
    %v244 = vadd.f32 0.0, %v243
    %245 = vmatprep.mubr.f32.mxu0 0.0
    %246 = vmatmul.mubr.f32.gmra.mrb[0].mxu0 %v113
    %v247 = vpop.f32.mrb[0].mxu0
    %v248 = vadd.f32 0.0, %v247
    %v249 = vpop.f32.mrb[0].mxu0
    %v250 = vadd.f32 0.0, %v249
    %251 = vmatprep.mubr.f32.mxu0 0.0
    %252 = vmatmul.mubr.f32.gmra.mrb[0].mxu0 %v116
    %v253 = vpop.f32.mrb[0].mxu0
    %v254 = vadd.f32 0.0, %v253
    %v255 = vpop.f32.mrb[0].mxu0
    %v256 = vadd.f32 0.0, %v255
    %257 = vmatprep.mubr.f32.mxu0 0.0
    %258 = vmatmul.mubr.f32.gmra.mrb[0].mxu0 %v119
    %v259 = vpop.f32.mrb[0].mxu0
    %v260 = vadd.f32 0.0, %v259
    %v261 = vpop.f32.mrb[0].mxu0
    %v262 = vadd.f32 0.0, %v261
    %263 = vmatprep.mubr.f32.mxu0 0.0
    %264 = vmatmul.mubr.f32.gmra.mrb[0].mxu0 %v122
    %v265 = vpop.f32.mrb[0].mxu0
    %v266 = vadd.f32 0.0, %v265
    %v267 = vpop.f32.mrb[0].mxu0
    %v268 = vadd.f32 0.0, %v267
    %269 = vmatprep.mubr.f32.mxu0 0.0
    %270 = vmatmul.mubr.f32.gmra.mrb[0].mxu0 %v125
    %v271 = vpop.f32.mrb[0].mxu0
    %v272 = vadd.f32 0.0, %v271
    %v273 = vpop.f32.mrb[0].mxu0
    %v274 = vadd.f32 0.0, %v273
    %275 = vmatprep.mubr.f32.mxu0 0.0
    %276 = vmatmul.mubr.f32.gmra.mrb[0].mxu0 %v128
    %v277 = vpop.f32.mrb[0].mxu0
    %v278 = vadd.f32 0.0, %v277
    %v279 = vpop.f32.mrb[0].mxu0
    %v280 = vadd.f32 0.0, %v279
    %281 = vmatprep.mubr.f32.mxu0 0.0
    %282 = vmatmul.mubr.f32.gmra.mrb[0].mxu0 %v131
    %v283 = vpop.f32.mrb[0].mxu0
    %v284 = vadd.f32 0.0, %v283
    %v285 = vpop.f32.mrb[0].mxu0
    %v286 = vadd.f32 0.0, %v285
    %287 = vmatprep.mubr.f32.mxu0 0.0
    %288 = vmatmul.mubr.f32.gmra.mrb[0].mxu0 %v134
    %v289 = vpop.f32.mrb[0].mxu0
    %v290 = vadd.f32 0.0, %v289
    %v291 = vpop.f32.mrb[0].mxu0
    %v292 = vadd.f32 0.0, %v291
    %293 = vmatprep.mubr.f32.mxu0 0.0
    %294 = vmatmul.mubr.f32.gmra.mrb[0].mxu0 %v137
    %v295 = vpop.f32.mrb[0].mxu0
    %v296 = vadd.f32 0.0, %v295
    %v297 = vpop.f32.mrb[0].mxu0
    %v298 = vadd.f32 0.0, %v297
    %299 = vdwg.mxu0
    %300 = vxpose.xlu0.b32.start [1/16] %v206, 128
    %301 = vxpose.xlu0.b32.cont [2/16] %v212, 128
    %302 = vxpose.xlu0.b32.cont [3/16] %v218, 128
    %303 = vxpose.xlu0.b32.cont [4/16] %v224, 128
    %304 = vxpose.xlu0.b32.cont [5/16] %v230, 128
    %305 = vxpose.xlu0.b32.cont [6/16] %v236, 128
    %306 = vxpose.xlu0.b32.cont [7/16] %v242, 128
    %307 = vxpose.xlu0.b32.cont [8/16] %v248, 128
    %308 = vxpose.xlu0.b32.cont [9/16] %v254, 128
    %309 = vxpose.xlu0.b32.cont [10/16] %v260, 128
    %310 = vxpose.xlu0.b32.cont [11/16] %v266, 128
    %311 = vxpose.xlu0.b32.cont [12/16] %v272, 128
    %312 = vxpose.xlu0.b32.cont [13/16] %v278, 128
    %313 = vxpose.xlu0.b32.cont [14/16] %v284, 128
    %314 = vxpose.xlu0.b32.cont [15/16] %v290, 128
    %315 = vxpose.xlu0.b32.end [16/16] %v296, 128
    %v316 = vpop.trf.xlu0
    %v317 = vpop.trf.xlu0
    %v318 = vpop.trf.xlu0
    %v319 = vpop.trf.xlu0
    %v320 = vpop.trf.xlu0
    %v321 = vpop.trf.xlu0
    %v322 = vpop.trf.xlu0
    %v323 = vpop.trf.xlu0
    %v324 = vpop.trf.xlu0
    %v325 = vpop.trf.xlu0
    %v326 = vpop.trf.xlu0
    %v327 = vpop.trf.xlu0
    %v328 = vpop.trf.xlu0
    %v329 = vpop.trf.xlu0
    %v330 = vpop.trf.xlu0
    %v331 = vpop.trf.xlu0
    %332 = vxpose.xlu0.b32.start [1/16] %v208, 128
    %333 = vxpose.xlu0.b32.cont [2/16] %v214, 128
    %334 = vxpose.xlu0.b32.cont [3/16] %v220, 128
    %335 = vxpose.xlu0.b32.cont [4/16] %v226, 128
    %336 = vxpose.xlu0.b32.cont [5/16] %v232, 128
    %337 = vxpose.xlu0.b32.cont [6/16] %v238, 128
    %338 = vxpose.xlu0.b32.cont [7/16] %v244, 128
    %339 = vxpose.xlu0.b32.cont [8/16] %v250, 128
    %340 = vxpose.xlu0.b32.cont [9/16] %v256, 128
    %341 = vxpose.xlu0.b32.cont [10/16] %v262, 128
    %342 = vxpose.xlu0.b32.cont [11/16] %v268, 128
    %343 = vxpose.xlu0.b32.cont [12/16] %v274, 128
    %344 = vxpose.xlu0.b32.cont [13/16] %v280, 128
    %345 = vxpose.xlu0.b32.cont [14/16] %v286, 128
    %346 = vxpose.xlu0.b32.cont [15/16] %v292, 128
    %347 = vxpose.xlu0.b32.end [16/16] %v298, 128
    %v348 = vpop.trf.xlu0
    %v349 = vpop.trf.xlu0
    %v350 = vpop.trf.xlu0
    %v351 = vpop.trf.xlu0
    %v352 = vpop.trf.xlu0
    %v353 = vpop.trf.xlu0
    %v354 = vpop.trf.xlu0
    %v355 = vpop.trf.xlu0
    %v356 = vpop.trf.xlu0
    %v357 = vpop.trf.xlu0
    %v358 = vpop.trf.xlu0
    %v359 = vpop.trf.xlu0
    %v360 = vpop.trf.xlu0
    %v361 = vpop.trf.xlu0
    %v362 = vpop.trf.xlu0
    %v363 = vpop.trf.xlu0
    %s364 = scalar_lea.vmem [#allocation3], 16
    %v365 = vld [vmem:[%s364] sm:$0xff]
    %v366 = vld [vmem:[%s364 + $0x8] sm:$0xff]
    %367 = vmatprep.subr.mxu0 %v366
    %368 = vmatpush1.msra.mxu0 %v365
    %369 = vmatprep.subr.mxu0 0.0
    %370 = vmatpush1.msra.mxu0 0.0
    %371 = vmatprep.subr.mxu0 0.0
    %372 = vmatpush1.msra.mxu0 0.0
    %373 = vmatprep.subr.mxu0 0.0
    %374 = vmatpush1.msra.mxu0 0.0
    %375 = vmatprep.subr.mxu0 0.0
    %376 = vmatpush1.msra.mxu0 0.0
    %377 = vmatprep.subr.mxu0 0.0
    %378 = vmatpush1.msra.mxu0 0.0
    %379 = vmatprep.subr.mxu0 0.0
    %380 = vmatpush1.msra.mxu0 0.0
    %381 = vmatprep.subr.mxu0 0.0
    %382 = vmatpush1.msra.mxu0 0.0
    %383 = vmatprep.subr.mxu0 0.0
    %384 = vmatpush1.msra.mxu0 0.0
    %385 = vmatprep.subr.mxu0 0.0
    %386 = vmatpush1.msra.mxu0 0.0
    %387 = vmatprep.subr.mxu0 0.0
    %388 = vmatpush1.msra.mxu0 0.0
    %389 = vmatprep.subr.mxu0 0.0
    %390 = vmatpush1.msra.mxu0 0.0
    %391 = vmatprep.subr.mxu0 0.0
    %392 = vmatpush1.msra.mxu0 0.0
    %393 = vmatprep.subr.mxu0 0.0
    %394 = vmatpush1.msra.mxu0 0.0
    %395 = vmatprep.subr.mxu0 0.0
    %396 = vmatpush1.msra.mxu0 0.0
    %397 = vmatprep.subr.mxu0 0.0
    %398 = vmatpush1.msra.mxu0 0.0
    %399 = vmatprep.subr.mxu0 0.0
    %400 = vmatpush1.msra.mxu0 0.0
    %401 = vmatprep.subr.mxu0 0.0
    %402 = vmatpush1.msra.mxu0 0.0
    %403 = vmatprep.subr.mxu0 0.0
    %404 = vmatpush1.msra.mxu0 0.0
    %405 = vmatprep.subr.mxu0 0.0
    %406 = vmatpush1.msra.mxu0 0.0
    %407 = vmatprep.subr.mxu0 0.0
    %408 = vmatpush1.msra.mxu0 0.0
    %409 = vmatprep.subr.mxu0 0.0
    %410 = vmatpush1.msra.mxu0 0.0
    %411 = vmatprep.subr.mxu0 0.0
    %412 = vmatpush1.msra.mxu0 0.0
    %413 = vmatprep.subr.mxu0 0.0
    %414 = vmatpush1.msra.mxu0 0.0
    %415 = vmatprep.subr.mxu0 0.0
    %416 = vmatpush1.msra.mxu0 0.0
    %417 = vmatprep.subr.mxu0 0.0
    %418 = vmatpush1.msra.mxu0 0.0
    %419 = vmatprep.subr.mxu0 0.0
    %420 = vmatpush1.msra.mxu0 0.0
    %421 = vmatprep.subr.mxu0 0.0
    %422 = vmatpush1.msra.mxu0 0.0
    %423 = vmatprep.subr.mxu0 0.0
    %424 = vmatpush1.msra.mxu0 0.0
    %425 = vmatprep.subr.mxu0 0.0
    %426 = vmatpush1.msra.mxu0 0.0
    %427 = vmatprep.subr.mxu0 0.0
    %428 = vmatpush1.msra.mxu0 0.0
    %429 = vmatprep.subr.mxu0 0.0
    %430 = vmatpush1.msra.mxu0 0.0
    %431 = vmatprep.mubr.f32.mxu0 0.0
    %432 = vmatmul.mubr.f32.gmra.mrb[0].mxu0 %v92
    %v433 = vpop.f32.mrb[0].mxu0
    %v434 = vadd.f32 0.0, %v433
    %v435 = vpop.f32.mrb[0].mxu0
    %v436 = vadd.f32 0.0, %v435
    %437 = vmatprep.mubr.f32.mxu0 0.0
    %438 = vmatmul.mubr.f32.gmra.mrb[0].mxu0 %v95
    %v439 = vpop.f32.mrb[0].mxu0
    %v440 = vadd.f32 0.0, %v439
    %v441 = vpop.f32.mrb[0].mxu0
    %v442 = vadd.f32 0.0, %v441
    %443 = vmatprep.mubr.f32.mxu0 0.0
    %444 = vmatmul.mubr.f32.gmra.mrb[0].mxu0 %v98
    %v445 = vpop.f32.mrb[0].mxu0
    %v446 = vadd.f32 0.0, %v445
    %v447 = vpop.f32.mrb[0].mxu0
    %v448 = vadd.f32 0.0, %v447
    %449 = vmatprep.mubr.f32.mxu0 0.0
    %450 = vmatmul.mubr.f32.gmra.mrb[0].mxu0 %v101
    %v451 = vpop.f32.mrb[0].mxu0
    %v452 = vadd.f32 0.0, %v451
    %v453 = vpop.f32.mrb[0].mxu0
    %v454 = vadd.f32 0.0, %v453
    %455 = vmatprep.mubr.f32.mxu0 0.0
    %456 = vmatmul.mubr.f32.gmra.mrb[0].mxu0 %v104
    %v457 = vpop.f32.mrb[0].mxu0
    %v458 = vadd.f32 0.0, %v457
    %v459 = vpop.f32.mrb[0].mxu0
    %v460 = vadd.f32 0.0, %v459
    %461 = vmatprep.mubr.f32.mxu0 0.0
    %462 = vmatmul.mubr.f32.gmra.mrb[0].mxu0 %v107
    %v463 = vpop.f32.mrb[0].mxu0
    %v464 = vadd.f32 0.0, %v463
    %v465 = vpop.f32.mrb[0].mxu0
    %v466 = vadd.f32 0.0, %v465
    %467 = vmatprep.mubr.f32.mxu0 0.0
    %468 = vmatmul.mubr.f32.gmra.mrb[0].mxu0 %v110
    %v469 = vpop.f32.mrb[0].mxu0
    %v470 = vadd.f32 0.0, %v469
    %v471 = vpop.f32.mrb[0].mxu0
    %v472 = vadd.f32 0.0, %v471
    %473 = vmatprep.mubr.f32.mxu0 0.0
    %474 = vmatmul.mubr.f32.gmra.mrb[0].mxu0 %v113
    %v475 = vpop.f32.mrb[0].mxu0
    %v476 = vadd.f32 0.0, %v475
    %v477 = vpop.f32.mrb[0].mxu0
    %v478 = vadd.f32 0.0, %v477
    %479 = vmatprep.mubr.f32.mxu0 0.0
    %480 = vmatmul.mubr.f32.gmra.mrb[0].mxu0 %v116
    %v481 = vpop.f32.mrb[0].mxu0
    %v482 = vadd.f32 0.0, %v481
    %v483 = vpop.f32.mrb[0].mxu0
    %v484 = vadd.f32 0.0, %v483
    %485 = vmatprep.mubr.f32.mxu0 0.0
    %486 = vmatmul.mubr.f32.gmra.mrb[0].mxu0 %v119
    %v487 = vpop.f32.mrb[0].mxu0
    %v488 = vadd.f32 0.0, %v487
    %v489 = vpop.f32.mrb[0].mxu0
    %v490 = vadd.f32 0.0, %v489
    %491 = vmatprep.mubr.f32.mxu0 0.0
    %492 = vmatmul.mubr.f32.gmra.mrb[0].mxu0 %v122
    %v493 = vpop.f32.mrb[0].mxu0
    %v494 = vadd.f32 0.0, %v493
    %v495 = vpop.f32.mrb[0].mxu0
    %v496 = vadd.f32 0.0, %v495
    %497 = vmatprep.mubr.f32.mxu0 0.0
    %498 = vmatmul.mubr.f32.gmra.mrb[0].mxu0 %v125
    %v499 = vpop.f32.mrb[0].mxu0
    %v500 = vadd.f32 0.0, %v499
    %v501 = vpop.f32.mrb[0].mxu0
    %v502 = vadd.f32 0.0, %v501
    %503 = vmatprep.mubr.f32.mxu0 0.0
    %504 = vmatmul.mubr.f32.gmra.mrb[0].mxu0 %v128
    %v505 = vpop.f32.mrb[0].mxu0
    %v506 = vadd.f32 0.0, %v505
    %v507 = vpop.f32.mrb[0].mxu0
    %v508 = vadd.f32 0.0, %v507
    %509 = vmatprep.mubr.f32.mxu0 0.0
    %510 = vmatmul.mubr.f32.gmra.mrb[0].mxu0 %v131
    %v511 = vpop.f32.mrb[0].mxu0
    %v512 = vadd.f32 0.0, %v511
    %v513 = vpop.f32.mrb[0].mxu0
    %v514 = vadd.f32 0.0, %v513
    %515 = vmatprep.mubr.f32.mxu0 0.0
    %516 = vmatmul.mubr.f32.gmra.mrb[0].mxu0 %v134
    %v517 = vpop.f32.mrb[0].mxu0
    %v518 = vadd.f32 0.0, %v517
    %v519 = vpop.f32.mrb[0].mxu0
    %v520 = vadd.f32 0.0, %v519
    %521 = vmatprep.mubr.f32.mxu0 0.0
    %522 = vmatmul.mubr.f32.gmra.mrb[0].mxu0 %v137
    %v523 = vpop.f32.mrb[0].mxu0
    %v524 = vadd.f32 0.0, %v523
    %v525 = vpop.f32.mrb[0].mxu0
    %v526 = vadd.f32 0.0, %v525
    %527 = vdwg.mxu0
    %528 = vxpose.xlu0.b32.start [1/16] %v434, 128
    %529 = vxpose.xlu0.b32.cont [2/16] %v440, 128
    %530 = vxpose.xlu0.b32.cont [3/16] %v446, 128
    %531 = vxpose.xlu0.b32.cont [4/16] %v452, 128
    %532 = vxpose.xlu0.b32.cont [5/16] %v458, 128
    %533 = vxpose.xlu0.b32.cont [6/16] %v464, 128
    %534 = vxpose.xlu0.b32.cont [7/16] %v470, 128
    %535 = vxpose.xlu0.b32.cont [8/16] %v476, 128
    %536 = vxpose.xlu0.b32.cont [9/16] %v482, 128
    %537 = vxpose.xlu0.b32.cont [10/16] %v488, 128
    %538 = vxpose.xlu0.b32.cont [11/16] %v494, 128
    %539 = vxpose.xlu0.b32.cont [12/16] %v500, 128
    %540 = vxpose.xlu0.b32.cont [13/16] %v506, 128
    %541 = vxpose.xlu0.b32.cont [14/16] %v512, 128
    %542 = vxpose.xlu0.b32.cont [15/16] %v518, 128
    %543 = vxpose.xlu0.b32.end [16/16] %v524, 128
    %v544 = vpop.trf.xlu0
    %v545 = vpop.trf.xlu0
    %v546 = vpop.trf.xlu0
    %v547 = vpop.trf.xlu0
    %v548 = vpop.trf.xlu0
    %v549 = vpop.trf.xlu0
    %v550 = vpop.trf.xlu0
    %v551 = vpop.trf.xlu0
    %v552 = vpop.trf.xlu0
    %v553 = vpop.trf.xlu0
    %v554 = vpop.trf.xlu0
    %v555 = vpop.trf.xlu0
    %v556 = vpop.trf.xlu0
    %v557 = vpop.trf.xlu0
    %v558 = vpop.trf.xlu0
    %v559 = vpop.trf.xlu0
    %560 = vxpose.xlu0.b32.start [1/16] %v436, 128
    %561 = vxpose.xlu0.b32.cont [2/16] %v442, 128
    %562 = vxpose.xlu0.b32.cont [3/16] %v448, 128
    %563 = vxpose.xlu0.b32.cont [4/16] %v454, 128
    %564 = vxpose.xlu0.b32.cont [5/16] %v460, 128
    %565 = vxpose.xlu0.b32.cont [6/16] %v466, 128
    %566 = vxpose.xlu0.b32.cont [7/16] %v472, 128
    %567 = vxpose.xlu0.b32.cont [8/16] %v478, 128
    %568 = vxpose.xlu0.b32.cont [9/16] %v484, 128
    %569 = vxpose.xlu0.b32.cont [10/16] %v490, 128
    %570 = vxpose.xlu0.b32.cont [11/16] %v496, 128
    %571 = vxpose.xlu0.b32.cont [12/16] %v502, 128
    %572 = vxpose.xlu0.b32.cont [13/16] %v508, 128
    %573 = vxpose.xlu0.b32.cont [14/16] %v514, 128
    %574 = vxpose.xlu0.b32.cont [15/16] %v520, 128
    %575 = vxpose.xlu0.b32.end [16/16] %v526, 128
    %v576 = vpop.trf.xlu0
    %v577 = vpop.trf.xlu0
    %v578 = vpop.trf.xlu0
    %v579 = vpop.trf.xlu0
    %v580 = vpop.trf.xlu0
    %v581 = vpop.trf.xlu0
    %v582 = vpop.trf.xlu0
    %v583 = vpop.trf.xlu0
    %v584 = vpop.trf.xlu0
    %v585 = vpop.trf.xlu0
    %v586 = vpop.trf.xlu0
    %v587 = vpop.trf.xlu0
    %v588 = vpop.trf.xlu0
    %v589 = vpop.trf.xlu0
    %v590 = vpop.trf.xlu0
    %v591 = vpop.trf.xlu0
    %v592 = vld [vmem:[%s2] sm:$0x1]
    %v593 = vld [vmem:[%s3] sm:$0x1]
    %v594 = vadd.f32 %v316, %v317
    %v595 = vadd.f32 %v594, %v318
    %v596 = vadd.f32 %v595, %v319
    %v597 = vadd.f32 %v596, %v320
    %v598 = vadd.f32 %v597, %v321
    %v599 = vadd.f32 %v598, %v322
    %v600 = vadd.f32 %v599, %v323
    %v601 = vadd.f32 %v600, %v324
    %v602 = vadd.f32 %v601, %v325
    %v603 = vadd.f32 %v602, %v326
    %v604 = vadd.f32 %v603, %v327
    %v605 = vadd.f32 %v604, %v328
    %v606 = vadd.f32 %v605, %v329
    %v607 = vadd.f32 %v606, %v330
    %v608 = vadd.f32 %v607, %v331
    %v609 = vadd.f32 %v608, %v348
    %v610 = vadd.f32 %v609, %v349
    %v611 = vadd.f32 %v610, %v350
    %v612 = vadd.f32 %v611, %v351
    %v613 = vadd.f32 %v612, %v352
    %v614 = vadd.f32 %v613, %v353
    %v615 = vadd.f32 %v614, %v354
    %v616 = vadd.f32 %v615, %v355
    %v617 = vadd.f32 %v616, %v356
    %v618 = vadd.f32 %v617, %v357
    %v619 = vadd.f32 %v618, %v358
    %v620 = vadd.f32 %v619, %v359
    %v621 = vadd.f32 %v620, %v360
    %v622 = vadd.f32 %v621, %v361
    %v623 = vadd.f32 %v622, %v362
    %v624 = vadd.f32 %v623, %v363
    %v625 = vadd.f32 %v624, %v544
    %v626 = vadd.f32 %v625, %v545
    %v627 = vadd.f32 %v626, %v546
    %v628 = vadd.f32 %v627, %v547
    %v629 = vadd.f32 %v628, %v548
    %v630 = vadd.f32 %v629, %v549
    %v631 = vadd.f32 %v630, %v550
    %v632 = vadd.f32 %v631, %v551
    %v633 = vadd.f32 %v632, %v552
    %v634 = vadd.f32 %v633, %v553
    %v635 = vadd.f32 %v634, %v554
    %v636 = vadd.f32 %v635, %v555
    %v637 = vadd.f32 %v636, %v556
    %v638 = vadd.f32 %v637, %v557
    %v639 = vadd.f32 %v638, %v558
    %v640 = vadd.f32 %v639, %v559
    %v641 = vadd.f32 %v640, %v576
    %v642 = vadd.f32 %v641, %v577
    %v643 = vadd.f32 %v642, %v578
    %v644 = vadd.f32 %v643, %v579
    %v645 = vadd.f32 %v644, %v580
    %v646 = vadd.f32 %v645, %v581
    %v647 = vadd.f32 %v646, %v582
    %v648 = vadd.f32 %v647, %v583
    %v649 = vadd.f32 %v648, %v584
    %v650 = vadd.f32 %v649, %v585
    %v651 = vadd.f32 %v650, %v586
    %v652 = vadd.f32 %v651, %v587
    %v653 = vadd.f32 %v652, %v588
    %v654 = vadd.f32 %v653, %v589
    %v655 = vadd.f32 %v654, %v590
    %v656 = vadd.f32 %v655, %v591
    %v657 = vrot.slane %v656, 4
    %v658 = vadd.f32 %v656, %v657
    %v659 = vrot.slane %v658, 2
    %v660 = vadd.f32 %v658, %v659
    %v661 = vrot.slane %v660, 1
    %v662 = vadd.f32 %v660, %v661
    %v663 = vmul.f32 %v662, 0.001953125
    %v664 = vmul.f32 %v316, %v316
    %v665 = vmul.f32 %v317, %v317
    %v666 = vmul.f32 %v318, %v318
    %v667 = vmul.f32 %v319, %v319
    %v668 = vmul.f32 %v320, %v320
    %v669 = vmul.f32 %v321, %v321
    %v670 = vmul.f32 %v322, %v322
    %v671 = vmul.f32 %v323, %v323
    %v672 = vmul.f32 %v324, %v324
    %v673 = vmul.f32 %v325, %v325
    %v674 = vmul.f32 %v326, %v326
    %v675 = vmul.f32 %v327, %v327
    %v676 = vmul.f32 %v328, %v328
    %v677 = vmul.f32 %v329, %v329
    %v678 = vmul.f32 %v330, %v330
    %v679 = vmul.f32 %v331, %v331
    %v680 = vmul.f32 %v348, %v348
    %v681 = vmul.f32 %v349, %v349
    %v682 = vmul.f32 %v350, %v350
    %v683 = vmul.f32 %v351, %v351
    %v684 = vmul.f32 %v352, %v352
    %v685 = vmul.f32 %v353, %v353
    %v686 = vmul.f32 %v354, %v354
    %v687 = vmul.f32 %v355, %v355
    %v688 = vmul.f32 %v356, %v356
    %v689 = vmul.f32 %v357, %v357
    %v690 = vmul.f32 %v358, %v358
    %v691 = vmul.f32 %v359, %v359
    %v692 = vmul.f32 %v360, %v360
    %v693 = vmul.f32 %v361, %v361
    %v694 = vmul.f32 %v362, %v362
    %v695 = vmul.f32 %v363, %v363
    %v696 = vmul.f32 %v544, %v544
    %v697 = vmul.f32 %v545, %v545
    %v698 = vmul.f32 %v546, %v546
    %v699 = vmul.f32 %v547, %v547
    %v700 = vmul.f32 %v548, %v548
    %v701 = vmul.f32 %v549, %v549
    %v702 = vmul.f32 %v550, %v550
    %v703 = vmul.f32 %v551, %v551
    %v704 = vmul.f32 %v552, %v552
    %v705 = vmul.f32 %v553, %v553
    %v706 = vmul.f32 %v554, %v554
    %v707 = vmul.f32 %v555, %v555
    %v708 = vmul.f32 %v556, %v556
    %v709 = vmul.f32 %v557, %v557
    %v710 = vmul.f32 %v558, %v558
    %v711 = vmul.f32 %v559, %v559
    %v712 = vmul.f32 %v576, %v576
    %v713 = vmul.f32 %v577, %v577
    %v714 = vmul.f32 %v578, %v578
    %v715 = vmul.f32 %v579, %v579
    %v716 = vmul.f32 %v580, %v580
    %v717 = vmul.f32 %v581, %v581
    %v718 = vmul.f32 %v582, %v582
    %v719 = vmul.f32 %v583, %v583
    %v720 = vmul.f32 %v584, %v584
    %v721 = vmul.f32 %v585, %v585
    %v722 = vmul.f32 %v586, %v586
    %v723 = vmul.f32 %v587, %v587
    %v724 = vmul.f32 %v588, %v588
    %v725 = vmul.f32 %v589, %v589
    %v726 = vmul.f32 %v590, %v590
    %v727 = vmul.f32 %v591, %v591
    %v728 = vadd.f32 %v664, %v665
    %v729 = vadd.f32 %v728, %v666
    %v730 = vadd.f32 %v729, %v667
    %v731 = vadd.f32 %v730, %v668
    %v732 = vadd.f32 %v731, %v669
    %v733 = vadd.f32 %v732, %v670
    %v734 = vadd.f32 %v733, %v671
    %v735 = vadd.f32 %v734, %v672
    %v736 = vadd.f32 %v735, %v673
    %v737 = vadd.f32 %v736, %v674
    %v738 = vadd.f32 %v737, %v675
    %v739 = vadd.f32 %v738, %v676
    %v740 = vadd.f32 %v739, %v677
    %v741 = vadd.f32 %v740, %v678
    %v742 = vadd.f32 %v741, %v679
    %v743 = vadd.f32 %v742, %v680
    %v744 = vadd.f32 %v743, %v681
    %v745 = vadd.f32 %v744, %v682
    %v746 = vadd.f32 %v745, %v683
    %v747 = vadd.f32 %v746, %v684
    %v748 = vadd.f32 %v747, %v685
    %v749 = vadd.f32 %v748, %v686
    %v750 = vadd.f32 %v749, %v687
    %v751 = vadd.f32 %v750, %v688
    %v752 = vadd.f32 %v751, %v689
    %v753 = vadd.f32 %v752, %v690
    %v754 = vadd.f32 %v753, %v691
    %v755 = vadd.f32 %v754, %v692
    %v756 = vadd.f32 %v755, %v693
    %v757 = vadd.f32 %v756, %v694
    %v758 = vadd.f32 %v757, %v695
    %v759 = vadd.f32 %v758, %v696
    %v760 = vadd.f32 %v759, %v697
    %v761 = vadd.f32 %v760, %v698
    %v762 = vadd.f32 %v761, %v699
    %v763 = vadd.f32 %v762, %v700
    %v764 = vadd.f32 %v763, %v701
    %v765 = vadd.f32 %v764, %v702
    %v766 = vadd.f32 %v765, %v703
    %v767 = vadd.f32 %v766, %v704
    %v768 = vadd.f32 %v767, %v705
    %v769 = vadd.f32 %v768, %v706
    %v770 = vadd.f32 %v769, %v707
    %v771 = vadd.f32 %v770, %v708
    %v772 = vadd.f32 %v771, %v709
    %v773 = vadd.f32 %v772, %v710
    %v774 = vadd.f32 %v773, %v711
    %v775 = vadd.f32 %v774, %v712
    %v776 = vadd.f32 %v775, %v713
    %v777 = vadd.f32 %v776, %v714
    %v778 = vadd.f32 %v777, %v715
    %v779 = vadd.f32 %v778, %v716
    %v780 = vadd.f32 %v779, %v717
    %v781 = vadd.f32 %v780, %v718
    %v782 = vadd.f32 %v781, %v719
    %v783 = vadd.f32 %v782, %v720
    %v784 = vadd.f32 %v783, %v721
    %v785 = vadd.f32 %v784, %v722
    %v786 = vadd.f32 %v785, %v723
    %v787 = vadd.f32 %v786, %v724
    %v788 = vadd.f32 %v787, %v725
    %v789 = vadd.f32 %v788, %v726
    %v790 = vadd.f32 %v789, %v727
    %v791 = vrot.slane %v790, 4
    %v792 = vadd.f32 %v790, %v791
    %v793 = vrot.slane %v792, 2
    %v794 = vadd.f32 %v792, %v793
    %v795 = vrot.slane %v794, 1
    %v796 = vadd.f32 %v794, %v795
    %v797 = vmul.f32 %v796, 0.001953125
    %v798 = vmul.f32 %v663, %v663
    %v799 = vsub.f32 %v797, %v798
    %v800 = vmax.f32 %v799, 0.0
    %v801 = vsub.f32 %v316, %v663
    %v802 = vsub.f32 %v317, %v663
    %v803 = vsub.f32 %v318, %v663
    %v804 = vsub.f32 %v319, %v663
    %v805 = vsub.f32 %v320, %v663
    %v806 = vsub.f32 %v321, %v663
    %v807 = vsub.f32 %v322, %v663
    %v808 = vsub.f32 %v323, %v663
    %v809 = vsub.f32 %v324, %v663
    %v810 = vsub.f32 %v325, %v663
    %v811 = vsub.f32 %v326, %v663
    %v812 = vsub.f32 %v327, %v663
    %v813 = vsub.f32 %v328, %v663
    %v814 = vsub.f32 %v329, %v663
    %v815 = vsub.f32 %v330, %v663
    %v816 = vsub.f32 %v331, %v663
    %v817 = vsub.f32 %v348, %v663
    %v818 = vsub.f32 %v349, %v663
    %v819 = vsub.f32 %v350, %v663
    %v820 = vsub.f32 %v351, %v663
    %v821 = vsub.f32 %v352, %v663
    %v822 = vsub.f32 %v353, %v663
    %v823 = vsub.f32 %v354, %v663
    %v824 = vsub.f32 %v355, %v663
    %v825 = vsub.f32 %v356, %v663
    %v826 = vsub.f32 %v357, %v663
    %v827 = vsub.f32 %v358, %v663
    %v828 = vsub.f32 %v359, %v663
    %v829 = vsub.f32 %v360, %v663
    %v830 = vsub.f32 %v361, %v663
    %v831 = vsub.f32 %v362, %v663
    %v832 = vsub.f32 %v363, %v663
    %v833 = vsub.f32 %v544, %v663
    %v834 = vsub.f32 %v545, %v663
    %v835 = vsub.f32 %v546, %v663
    %v836 = vsub.f32 %v547, %v663
    %v837 = vsub.f32 %v548, %v663
    %v838 = vsub.f32 %v549, %v663
    %v839 = vsub.f32 %v550, %v663
    %v840 = vsub.f32 %v551, %v663
    %v841 = vsub.f32 %v552, %v663
    %v842 = vsub.f32 %v553, %v663
    %v843 = vsub.f32 %v554, %v663
    %v844 = vsub.f32 %v555, %v663
    %v845 = vsub.f32 %v556, %v663
    %v846 = vsub.f32 %v557, %v663
    %v847 = vsub.f32 %v558, %v663
    %v848 = vsub.f32 %v559, %v663
    %v849 = vsub.f32 %v576, %v663
    %v850 = vsub.f32 %v577, %v663
    %v851 = vsub.f32 %v578, %v663
    %v852 = vsub.f32 %v579, %v663
    %v853 = vsub.f32 %v580, %v663
    %v854 = vsub.f32 %v581, %v663
    %v855 = vsub.f32 %v582, %v663
    %v856 = vsub.f32 %v583, %v663
    %v857 = vsub.f32 %v584, %v663
    %v858 = vsub.f32 %v585, %v663
    %v859 = vsub.f32 %v586, %v663
    %v860 = vsub.f32 %v587, %v663
    %v861 = vsub.f32 %v588, %v663
    %v862 = vsub.f32 %v589, %v663
    %v863 = vsub.f32 %v590, %v663
    %v864 = vsub.f32 %v591, %v663
    %v865 = vadd.f32 %v800, 1e-05
    %v866 = vrsqrt.pop %v865
    %v867 = vmul.f32 %v866, %v592
    %v868 = vlaneseq
    %v869 = vshrl.u32 %v868, 7
    %v870 = vsub.s32 0, %v869
    %v871 = vrot.slane %v867, %v870
    %v872 = vmul.f32 %v801, %v871
    %v873 = vmul.f32 %v802, %v871
    %v874 = vmul.f32 %v803, %v871
    %v875 = vmul.f32 %v804, %v871
    %v876 = vmul.f32 %v805, %v871
    %v877 = vmul.f32 %v806, %v871
    %v878 = vmul.f32 %v807, %v871
    %v879 = vmul.f32 %v808, %v871
    %v880 = vmul.f32 %v809, %v871
    %v881 = vmul.f32 %v810, %v871
    %v882 = vmul.f32 %v811, %v871
    %v883 = vmul.f32 %v812, %v871
    %v884 = vmul.f32 %v813, %v871
    %v885 = vmul.f32 %v814, %v871
    %v886 = vmul.f32 %v815, %v871
    %v887 = vmul.f32 %v816, %v871
    %v888 = vmul.f32 %v817, %v871
    %v889 = vmul.f32 %v818, %v871
    %v890 = vmul.f32 %v819, %v871
    %v891 = vmul.f32 %v820, %v871
    %v892 = vmul.f32 %v821, %v871
    %v893 = vmul.f32 %v822, %v871
    %v894 = vmul.f32 %v823, %v871
    %v895 = vmul.f32 %v824, %v871
    %v896 = vmul.f32 %v825, %v871
    %v897 = vmul.f32 %v826, %v871
    %v898 = vmul.f32 %v827, %v871
    %v899 = vmul.f32 %v828, %v871
    %v900 = vmul.f32 %v829, %v871
    %v901 = vmul.f32 %v830, %v871
    %v902 = vmul.f32 %v831, %v871
    %v903 = vmul.f32 %v832, %v871
    %v904 = vmul.f32 %v833, %v871
    %v905 = vmul.f32 %v834, %v871
    %v906 = vmul.f32 %v835, %v871
    %v907 = vmul.f32 %v836, %v871
    %v908 = vmul.f32 %v837, %v871
    %v909 = vmul.f32 %v838, %v871
    %v910 = vmul.f32 %v839, %v871
    %v911 = vmul.f32 %v840, %v871
    %v912 = vmul.f32 %v841, %v871
    %v913 = vmul.f32 %v842, %v871
    %v914 = vmul.f32 %v843, %v871
    %v915 = vmul.f32 %v844, %v871
    %v916 = vmul.f32 %v845, %v871
    %v917 = vmul.f32 %v846, %v871
    %v918 = vmul.f32 %v847, %v871
    %v919 = vmul.f32 %v848, %v871
    %v920 = vmul.f32 %v849, %v871
    %v921 = vmul.f32 %v850, %v871
    %v922 = vmul.f32 %v851, %v871
    %v923 = vmul.f32 %v852, %v871
    %v924 = vmul.f32 %v853, %v871
    %v925 = vmul.f32 %v854, %v871
    %v926 = vmul.f32 %v855, %v871
    %v927 = vmul.f32 %v856, %v871
    %v928 = vmul.f32 %v857, %v871
    %v929 = vmul.f32 %v858, %v871
    %v930 = vmul.f32 %v859, %v871
    %v931 = vmul.f32 %v860, %v871
    %v932 = vmul.f32 %v861, %v871
    %v933 = vmul.f32 %v862, %v871
    %v934 = vmul.f32 %v863, %v871
    %v935 = vmul.f32 %v864, %v871
    %v937 = vlaneseq
    %v938 = vshrl.u32 %v937, 7
    %v939 = vsub.s32 0, %v938
    %v940 = vrot.slane %v593, %v939
    %v942 = vadd.f32 %v872, %v940
    %v943 = vadd.f32 %v873, %v940
    %v944 = vadd.f32 %v874, %v940
    %v945 = vadd.f32 %v875, %v940
    %v946 = vadd.f32 %v876, %v940
    %v947 = vadd.f32 %v877, %v940
    %v948 = vadd.f32 %v878, %v940
    %v949 = vadd.f32 %v879, %v940
    %v950 = vadd.f32 %v880, %v940
    %v951 = vadd.f32 %v881, %v940
    %v952 = vadd.f32 %v882, %v940
    %v953 = vadd.f32 %v883, %v940
    %v954 = vadd.f32 %v884, %v940
    %v955 = vadd.f32 %v885, %v940
    %v956 = vadd.f32 %v886, %v940
    %v957 = vadd.f32 %v887, %v940
    %v958 = vadd.f32 %v888, %v940
    %v959 = vadd.f32 %v889, %v940
    %v960 = vadd.f32 %v890, %v940
    %v961 = vadd.f32 %v891, %v940
    %v962 = vadd.f32 %v892, %v940
    %v963 = vadd.f32 %v893, %v940
    %v964 = vadd.f32 %v894, %v940
    %v965 = vadd.f32 %v895, %v940
    %v966 = vadd.f32 %v896, %v940
    %v967 = vadd.f32 %v897, %v940
    %v968 = vadd.f32 %v898, %v940
    %v969 = vadd.f32 %v899, %v940
    %v970 = vadd.f32 %v900, %v940
    %v971 = vadd.f32 %v901, %v940
    %v972 = vadd.f32 %v902, %v940
    %v973 = vadd.f32 %v903, %v940
    %v974 = vadd.f32 %v904, %v940
    %v975 = vadd.f32 %v905, %v940
    %v976 = vadd.f32 %v906, %v940
    %v977 = vadd.f32 %v907, %v940
    %v978 = vadd.f32 %v908, %v940
    %v979 = vadd.f32 %v909, %v940
    %v980 = vadd.f32 %v910, %v940
    %v981 = vadd.f32 %v911, %v940
    %v982 = vadd.f32 %v912, %v940
    %v983 = vadd.f32 %v913, %v940
    %v984 = vadd.f32 %v914, %v940
    %v985 = vadd.f32 %v915, %v940
    %v986 = vadd.f32 %v916, %v940
    %v987 = vadd.f32 %v917, %v940
    %v988 = vadd.f32 %v918, %v940
    %v989 = vadd.f32 %v919, %v940
    %v990 = vadd.f32 %v920, %v940
    %v991 = vadd.f32 %v921, %v940
    %v992 = vadd.f32 %v922, %v940
    %v993 = vadd.f32 %v923, %v940
    %v994 = vadd.f32 %v924, %v940
    %v995 = vadd.f32 %v925, %v940
    %v996 = vadd.f32 %v926, %v940
    %v997 = vadd.f32 %v927, %v940
    %v998 = vadd.f32 %v928, %v940
    %v999 = vadd.f32 %v929, %v940
    %v1000 = vadd.f32 %v930, %v940
    %v1001 = vadd.f32 %v931, %v940
    %v1002 = vadd.f32 %v932, %v940
    %v1003 = vadd.f32 %v933, %v940
    %v1004 = vadd.f32 %v934, %v940
    %v1005 = vadd.f32 %v935, %v940
    %v1006 = vmax.f32 %v942, 0.0
    %v1007 = vmax.f32 %v943, 0.0
    %v1008 = vmax.f32 %v944, 0.0
    %v1009 = vmax.f32 %v945, 0.0
    %v1010 = vmax.f32 %v946, 0.0
    %v1011 = vmax.f32 %v947, 0.0
    %v1012 = vmax.f32 %v948, 0.0
    %v1013 = vmax.f32 %v949, 0.0
    %v1014 = vmax.f32 %v950, 0.0
    %v1015 = vmax.f32 %v951, 0.0
    %v1016 = vmax.f32 %v952, 0.0
    %v1017 = vmax.f32 %v953, 0.0
    %v1018 = vmax.f32 %v954, 0.0
    %v1019 = vmax.f32 %v955, 0.0
    %v1020 = vmax.f32 %v956, 0.0
    %v1021 = vmax.f32 %v957, 0.0
    %v1022 = vmax.f32 %v958, 0.0
    %v1023 = vmax.f32 %v959, 0.0
    %v1024 = vmax.f32 %v960, 0.0
    %v1025 = vmax.f32 %v961, 0.0
    %v1026 = vmax.f32 %v962, 0.0
    %v1027 = vmax.f32 %v963, 0.0
    %v1028 = vmax.f32 %v964, 0.0
    %v1029 = vmax.f32 %v965, 0.0
    %v1030 = vmax.f32 %v966, 0.0
    %v1031 = vmax.f32 %v967, 0.0
    %v1032 = vmax.f32 %v968, 0.0
    %v1033 = vmax.f32 %v969, 0.0
    %v1034 = vmax.f32 %v970, 0.0
    %v1035 = vmax.f32 %v971, 0.0
    %v1036 = vmax.f32 %v972, 0.0
    %v1037 = vmax.f32 %v973, 0.0
    %v1038 = vmax.f32 %v974, 0.0
    %v1039 = vmax.f32 %v975, 0.0
    %v1040 = vmax.f32 %v976, 0.0
    %v1041 = vmax.f32 %v977, 0.0
    %v1042 = vmax.f32 %v978, 0.0
    %v1043 = vmax.f32 %v979, 0.0
    %v1044 = vmax.f32 %v980, 0.0
    %v1045 = vmax.f32 %v981, 0.0
    %v1046 = vmax.f32 %v982, 0.0
    %v1047 = vmax.f32 %v983, 0.0
    %v1048 = vmax.f32 %v984, 0.0
    %v1049 = vmax.f32 %v985, 0.0
    %v1050 = vmax.f32 %v986, 0.0
    %v1051 = vmax.f32 %v987, 0.0
    %v1052 = vmax.f32 %v988, 0.0
    %v1053 = vmax.f32 %v989, 0.0
    %v1054 = vmax.f32 %v990, 0.0
    %v1055 = vmax.f32 %v991, 0.0
    %v1056 = vmax.f32 %v992, 0.0
    %v1057 = vmax.f32 %v993, 0.0
    %v1058 = vmax.f32 %v994, 0.0
    %v1059 = vmax.f32 %v995, 0.0
    %v1060 = vmax.f32 %v996, 0.0
    %v1061 = vmax.f32 %v997, 0.0
    %v1062 = vmax.f32 %v998, 0.0
    %v1063 = vmax.f32 %v999, 0.0
    %v1064 = vmax.f32 %v1000, 0.0
    %v1065 = vmax.f32 %v1001, 0.0
    %v1066 = vmax.f32 %v1002, 0.0
    %v1067 = vmax.f32 %v1003, 0.0
    %v1068 = vmax.f32 %v1004, 0.0
    %v1069 = vmax.f32 %v1005, 0.0
    %v1070 = vpack.c.bf16 %v1007, %v1006
    %v1071 = vpack.c.bf16 %v1009, %v1008
    %v1072 = vpack.c.bf16 %v1011, %v1010
    %v1073 = vpack.c.bf16 %v1013, %v1012
    %v1074 = vpack.c.bf16 %v1015, %v1014
    %v1075 = vpack.c.bf16 %v1017, %v1016
    %v1076 = vpack.c.bf16 %v1019, %v1018
    %v1077 = vpack.c.bf16 %v1021, %v1020
    %v1078 = vpack.c.bf16 %v1023, %v1022
    %v1079 = vpack.c.bf16 %v1025, %v1024
    %v1080 = vpack.c.bf16 %v1027, %v1026
    %v1081 = vpack.c.bf16 %v1029, %v1028
    %v1082 = vpack.c.bf16 %v1031, %v1030
    %v1083 = vpack.c.bf16 %v1033, %v1032
    %v1084 = vpack.c.bf16 %v1035, %v1034
    %v1085 = vpack.c.bf16 %v1037, %v1036
    %v1086 = vpack.c.bf16 %v1039, %v1038
    %v1087 = vpack.c.bf16 %v1041, %v1040
    %v1088 = vpack.c.bf16 %v1043, %v1042
    %v1089 = vpack.c.bf16 %v1045, %v1044
    %v1090 = vpack.c.bf16 %v1047, %v1046
    %v1091 = vpack.c.bf16 %v1049, %v1048
    %v1092 = vpack.c.bf16 %v1051, %v1050
    %v1093 = vpack.c.bf16 %v1053, %v1052
    %v1094 = vpack.c.bf16 %v1055, %v1054
    %v1095 = vpack.c.bf16 %v1057, %v1056
    %v1096 = vpack.c.bf16 %v1059, %v1058
    %v1097 = vpack.c.bf16 %v1061, %v1060
    %v1098 = vpack.c.bf16 %v1063, %v1062
    %v1099 = vpack.c.bf16 %v1065, %v1064
    %v1100 = vpack.c.bf16 %v1067, %v1066
    %v1101 = vpack.c.bf16 %v1069, %v1068
    %v1102 = vld [vmem:[%s4] sm:$0xf]
    %v1103 = vld [vmem:[%s4 + $0x4] sm:$0xf]
    %v1104 = vld [vmem:[%s4 + $0x8] sm:$0xf]
    %v1105 = vld [vmem:[%s4 + $0xc] sm:$0xf]
    %v1106 = vld [vmem:[%s4 + $0x10] sm:$0xf]
    %v1107 = vld [vmem:[%s4 + $0x14] sm:$0xf]
    %v1108 = vld [vmem:[%s4 + $0x18] sm:$0xf]
    %v1109 = vld [vmem:[%s4 + $0x1c] sm:$0xf]
    %v1110 = vld [vmem:[%s4 + $0x20] sm:$0xf]
    %v1111 = vld [vmem:[%s4 + $0x24] sm:$0xf]
    %v1112 = vld [vmem:[%s4 + $0x28] sm:$0xf]
    %v1113 = vld [vmem:[%s4 + $0x2c] sm:$0xf]
    %v1114 = vld [vmem:[%s4 + $0x30] sm:$0xf]
    %v1115 = vld [vmem:[%s4 + $0x34] sm:$0xf]
    %v1116 = vld [vmem:[%s4 + $0x38] sm:$0xf]
    %v1117 = vld [vmem:[%s4 + $0x3c] sm:$0xf]
    %v1134 = vunpack.c.l.b16 %v1102
    %v1135 = vunpack.c.l.b16 %v1103
    %v1136 = vunpack.c.l.b16 %v1104
    %v1137 = vunpack.c.l.b16 %v1105
    %v1138 = vunpack.c.l.b16 %v1106
    %v1139 = vunpack.c.l.b16 %v1107
    %v1140 = vunpack.c.l.b16 %v1108
    %v1141 = vunpack.c.l.b16 %v1109
    %v1142 = vunpack.c.l.b16 %v1110
    %v1143 = vunpack.c.l.b16 %v1111
    %v1144 = vunpack.c.l.b16 %v1112
    %v1145 = vunpack.c.l.b16 %v1113
    %v1146 = vunpack.c.l.b16 %v1114
    %v1147 = vunpack.c.l.b16 %v1115
    %v1148 = vunpack.c.l.b16 %v1116
    %v1149 = vunpack.c.l.b16 %v1117
    %v1150 = vpack.c.b16 %v1135, %v1134
    %v1151 = vpack.c.b16 %v1137, %v1136
    %v1152 = vpack.c.b16 %v1139, %v1138
    %v1153 = vpack.c.b16 %v1141, %v1140
    %v1154 = vpack.c.b16 %v1143, %v1142
    %v1155 = vpack.c.b16 %v1145, %v1144
    %v1156 = vpack.c.b16 %v1147, %v1146
    %v1157 = vpack.c.b16 %v1149, %v1148
    %1166 = vmatprep.subr.bf16.mxu0 0
    %1167 = vmatpush1.bf16.msra.mxu0 %v1150
    %1168 = vmatprep.subr.bf16.mxu0 0
    %1169 = vmatpush1.bf16.msra.mxu0 %v1151
    %1170 = vmatprep.subr.bf16.mxu0 0
    %1171 = vmatpush1.bf16.msra.mxu0 %v1152
    %1172 = vmatprep.subr.bf16.mxu0 0
    %1173 = vmatpush1.bf16.msra.mxu0 %v1153
    %1174 = vmatprep.subr.bf16.mxu0 0
    %1175 = vmatpush1.bf16.msra.mxu0 %v1154
    %1176 = vmatprep.subr.bf16.mxu0 0
    %1177 = vmatpush1.bf16.msra.mxu0 %v1155
    %1178 = vmatprep.subr.bf16.mxu0 0
    %1179 = vmatpush1.bf16.msra.mxu0 %v1156
    %1180 = vmatprep.subr.bf16.mxu0 0
    %1181 = vmatpush1.bf16.msra.mxu0 %v1157
    %1182 = vmatprep.subr.bf16.mxu0 0
    %1183 = vmatpush1.bf16.msra.mxu0 0
    %1184 = vmatprep.subr.bf16.mxu0 0
    %1185 = vmatpush1.bf16.msra.mxu0 0
    %1186 = vmatprep.subr.bf16.mxu0 0
    %1187 = vmatpush1.bf16.msra.mxu0 0
    %1188 = vmatprep.subr.bf16.mxu0 0
    %1189 = vmatpush1.bf16.msra.mxu0 0
    %1190 = vmatprep.subr.bf16.mxu0 0
    %1191 = vmatpush1.bf16.msra.mxu0 0
    %1192 = vmatprep.subr.bf16.mxu0 0
    %1193 = vmatpush1.bf16.msra.mxu0 0
    %1194 = vmatprep.subr.bf16.mxu0 0
    %1195 = vmatpush1.bf16.msra.mxu0 0
    %1196 = vmatprep.subr.bf16.mxu0 0
    %1197 = vmatpush1.bf16.msra.mxu0 0
    %1198 = vmatprep.mubr.bf16.mxu0 0
    %1199 = vmatmul.mubr.bf16.gmra.mrb[0].mxu0 %v1070
    %v1200 = vpop.f32.mrb[0].mxu0
    %v1201 = vadd.f32 0.0, %v1200
    %v1202 = vpop.f32.mrb[0].mxu0
    %v1203 = vpop.f32.mrb[0].mxu0
    %v1204 = vadd.f32 0.0, %v1203
    %v1205 = vpop.f32.mrb[0].mxu0
    %1206 = vmatprep.mubr.bf16.mxu0 0
    %1207 = vmatmul.mubr.bf16.gmra.mrb[0].mxu0 %v1071
    %v1208 = vpop.f32.mrb[0].mxu0
    %v1209 = vadd.f32 0.0, %v1208
    %v1210 = vpop.f32.mrb[0].mxu0
    %v1211 = vpop.f32.mrb[0].mxu0
    %v1212 = vadd.f32 0.0, %v1211
    %v1213 = vpop.f32.mrb[0].mxu0
    %1214 = vmatprep.mubr.bf16.mxu0 0
    %1215 = vmatmul.mubr.bf16.gmra.mrb[0].mxu0 %v1072
    %v1216 = vpop.f32.mrb[0].mxu0
    %v1217 = vadd.f32 0.0, %v1216
    %v1218 = vpop.f32.mrb[0].mxu0
    %v1219 = vpop.f32.mrb[0].mxu0
    %v1220 = vadd.f32 0.0, %v1219
    %v1221 = vpop.f32.mrb[0].mxu0
    %1222 = vmatprep.mubr.bf16.mxu0 0
    %1223 = vmatmul.mubr.bf16.gmra.mrb[0].mxu0 %v1073
    %v1224 = vpop.f32.mrb[0].mxu0
    %v1225 = vadd.f32 0.0, %v1224
    %v1226 = vpop.f32.mrb[0].mxu0
    %v1227 = vpop.f32.mrb[0].mxu0
    %v1228 = vadd.f32 0.0, %v1227
    %v1229 = vpop.f32.mrb[0].mxu0
    %1230 = vmatprep.mubr.bf16.mxu0 0
    %1231 = vmatmul.mubr.bf16.gmra.mrb[0].mxu0 %v1074
    %v1232 = vpop.f32.mrb[0].mxu0
    %v1233 = vadd.f32 0.0, %v1232
    %v1234 = vpop.f32.mrb[0].mxu0
    %v1235 = vpop.f32.mrb[0].mxu0
    %v1236 = vadd.f32 0.0, %v1235
    %v1237 = vpop.f32.mrb[0].mxu0
    %1238 = vmatprep.mubr.bf16.mxu0 0
    %1239 = vmatmul.mubr.bf16.gmra.mrb[0].mxu0 %v1075
    %v1240 = vpop.f32.mrb[0].mxu0
    %v1241 = vadd.f32 0.0, %v1240
    %v1242 = vpop.f32.mrb[0].mxu0
    %v1243 = vpop.f32.mrb[0].mxu0
    %v1244 = vadd.f32 0.0, %v1243
    %v1245 = vpop.f32.mrb[0].mxu0
    %1246 = vmatprep.mubr.bf16.mxu0 0
    %1247 = vmatmul.mubr.bf16.gmra.mrb[0].mxu0 %v1076
    %v1248 = vpop.f32.mrb[0].mxu0
    %v1249 = vadd.f32 0.0, %v1248
    %v1250 = vpop.f32.mrb[0].mxu0
    %v1251 = vpop.f32.mrb[0].mxu0
    %v1252 = vadd.f32 0.0, %v1251
    %v1253 = vpop.f32.mrb[0].mxu0
    %1254 = vmatprep.mubr.bf16.mxu0 0
    %1255 = vmatmul.mubr.bf16.gmra.mrb[0].mxu0 %v1077
    %v1256 = vpop.f32.mrb[0].mxu0
    %v1257 = vadd.f32 0.0, %v1256
    %v1258 = vpop.f32.mrb[0].mxu0
    %v1259 = vpop.f32.mrb[0].mxu0
    %v1260 = vadd.f32 0.0, %v1259
    %v1261 = vpop.f32.mrb[0].mxu0
    %1262 = vmatprep.mubr.bf16.mxu0 0
    %1263 = vmatmul.mubr.bf16.gmra.mrb[0].mxu0 %v1078
    %v1264 = vpop.f32.mrb[0].mxu0
    %v1265 = vadd.f32 0.0, %v1264
    %v1266 = vpop.f32.mrb[0].mxu0
    %v1267 = vpop.f32.mrb[0].mxu0
    %v1268 = vadd.f32 0.0, %v1267
    %v1269 = vpop.f32.mrb[0].mxu0
    %1270 = vmatprep.mubr.bf16.mxu0 0
    %1271 = vmatmul.mubr.bf16.gmra.mrb[0].mxu0 %v1079
    %v1272 = vpop.f32.mrb[0].mxu0
    %v1273 = vadd.f32 0.0, %v1272
    %v1274 = vpop.f32.mrb[0].mxu0
    %v1275 = vpop.f32.mrb[0].mxu0
    %v1276 = vadd.f32 0.0, %v1275
    %v1277 = vpop.f32.mrb[0].mxu0
    %1278 = vmatprep.mubr.bf16.mxu0 0
    %1279 = vmatmul.mubr.bf16.gmra.mrb[0].mxu0 %v1080
    %v1280 = vpop.f32.mrb[0].mxu0
    %v1281 = vadd.f32 0.0, %v1280
    %v1282 = vpop.f32.mrb[0].mxu0
    %v1283 = vpop.f32.mrb[0].mxu0
    %v1284 = vadd.f32 0.0, %v1283
    %v1285 = vpop.f32.mrb[0].mxu0
    %1286 = vmatprep.mubr.bf16.mxu0 0
    %1287 = vmatmul.mubr.bf16.gmra.mrb[0].mxu0 %v1081
    %v1288 = vpop.f32.mrb[0].mxu0
    %v1289 = vadd.f32 0.0, %v1288
    %v1290 = vpop.f32.mrb[0].mxu0
    %v1291 = vpop.f32.mrb[0].mxu0
    %v1292 = vadd.f32 0.0, %v1291
    %v1293 = vpop.f32.mrb[0].mxu0
    %1294 = vmatprep.mubr.bf16.mxu0 0
    %1295 = vmatmul.mubr.bf16.gmra.mrb[0].mxu0 %v1082
    %v1296 = vpop.f32.mrb[0].mxu0
    %v1297 = vadd.f32 0.0, %v1296
    %v1298 = vpop.f32.mrb[0].mxu0
    %v1299 = vpop.f32.mrb[0].mxu0
    %v1300 = vadd.f32 0.0, %v1299
    %v1301 = vpop.f32.mrb[0].mxu0
    %1302 = vmatprep.mubr.bf16.mxu0 0
    %1303 = vmatmul.mubr.bf16.gmra.mrb[0].mxu0 %v1083
    %v1304 = vpop.f32.mrb[0].mxu0
    %v1305 = vadd.f32 0.0, %v1304
    %v1306 = vpop.f32.mrb[0].mxu0
    %v1307 = vpop.f32.mrb[0].mxu0
    %v1308 = vadd.f32 0.0, %v1307
    %v1309 = vpop.f32.mrb[0].mxu0
    %1310 = vmatprep.mubr.bf16.mxu0 0
    %1311 = vmatmul.mubr.bf16.gmra.mrb[0].mxu0 %v1084
    %v1312 = vpop.f32.mrb[0].mxu0
    %v1313 = vadd.f32 0.0, %v1312
    %v1314 = vpop.f32.mrb[0].mxu0
    %v1315 = vpop.f32.mrb[0].mxu0
    %v1316 = vadd.f32 0.0, %v1315
    %v1317 = vpop.f32.mrb[0].mxu0
    %1318 = vmatprep.mubr.bf16.mxu0 0
    %1319 = vmatmul.mubr.bf16.gmra.mrb[0].mxu0 %v1085
    %v1320 = vpop.f32.mrb[0].mxu0
    %v1321 = vadd.f32 0.0, %v1320
    %v1322 = vpop.f32.mrb[0].mxu0
    %v1323 = vpop.f32.mrb[0].mxu0
    %v1324 = vadd.f32 0.0, %v1323
    %v1325 = vpop.f32.mrb[0].mxu0
    %1326 = vmatprep.mubr.bf16.mxu0 0
    %1327 = vmatmul.mubr.bf16.gmra.mrb[0].mxu0 %v1086
    %v1328 = vpop.f32.mrb[0].mxu0
    %v1329 = vadd.f32 0.0, %v1328
    %v1330 = vpop.f32.mrb[0].mxu0
    %v1331 = vpop.f32.mrb[0].mxu0
    %v1332 = vadd.f32 0.0, %v1331
    %v1333 = vpop.f32.mrb[0].mxu0
    %1334 = vmatprep.mubr.bf16.mxu0 0
    %1335 = vmatmul.mubr.bf16.gmra.mrb[0].mxu0 %v1087
    %v1336 = vpop.f32.mrb[0].mxu0
    %v1337 = vadd.f32 0.0, %v1336
    %v1338 = vpop.f32.mrb[0].mxu0
    %v1339 = vpop.f32.mrb[0].mxu0
    %v1340 = vadd.f32 0.0, %v1339
    %v1341 = vpop.f32.mrb[0].mxu0
    %1342 = vmatprep.mubr.bf16.mxu0 0
    %1343 = vmatmul.mubr.bf16.gmra.mrb[0].mxu0 %v1088
    %v1344 = vpop.f32.mrb[0].mxu0
    %v1345 = vadd.f32 0.0, %v1344
    %v1346 = vpop.f32.mrb[0].mxu0
    %v1347 = vpop.f32.mrb[0].mxu0
    %v1348 = vadd.f32 0.0, %v1347
    %v1349 = vpop.f32.mrb[0].mxu0
    %1350 = vmatprep.mubr.bf16.mxu0 0
    %1351 = vmatmul.mubr.bf16.gmra.mrb[0].mxu0 %v1089
    %v1352 = vpop.f32.mrb[0].mxu0
    %v1353 = vadd.f32 0.0, %v1352
    %v1354 = vpop.f32.mrb[0].mxu0
    %v1355 = vpop.f32.mrb[0].mxu0
    %v1356 = vadd.f32 0.0, %v1355
    %v1357 = vpop.f32.mrb[0].mxu0
    %1358 = vmatprep.mubr.bf16.mxu0 0
    %1359 = vmatmul.mubr.bf16.gmra.mrb[0].mxu0 %v1090
    %v1360 = vpop.f32.mrb[0].mxu0
    %v1361 = vadd.f32 0.0, %v1360
    %v1362 = vpop.f32.mrb[0].mxu0
    %v1363 = vpop.f32.mrb[0].mxu0
    %v1364 = vadd.f32 0.0, %v1363
    %v1365 = vpop.f32.mrb[0].mxu0
    %1366 = vmatprep.mubr.bf16.mxu0 0
    %1367 = vmatmul.mubr.bf16.gmra.mrb[0].mxu0 %v1091
    %v1368 = vpop.f32.mrb[0].mxu0
    %v1369 = vadd.f32 0.0, %v1368
    %v1370 = vpop.f32.mrb[0].mxu0
    %v1371 = vpop.f32.mrb[0].mxu0
    %v1372 = vadd.f32 0.0, %v1371
    %v1373 = vpop.f32.mrb[0].mxu0
    %1374 = vmatprep.mubr.bf16.mxu0 0
    %1375 = vmatmul.mubr.bf16.gmra.mrb[0].mxu0 %v1092
    %v1376 = vpop.f32.mrb[0].mxu0
    %v1377 = vadd.f32 0.0, %v1376
    %v1378 = vpop.f32.mrb[0].mxu0
    %v1379 = vpop.f32.mrb[0].mxu0
    %v1380 = vadd.f32 0.0, %v1379
    %v1381 = vpop.f32.mrb[0].mxu0
    %1382 = vmatprep.mubr.bf16.mxu0 0
    %1383 = vmatmul.mubr.bf16.gmra.mrb[0].mxu0 %v1093
    %v1384 = vpop.f32.mrb[0].mxu0
    %v1385 = vadd.f32 0.0, %v1384
    %v1386 = vpop.f32.mrb[0].mxu0
    %v1387 = vpop.f32.mrb[0].mxu0
    %v1388 = vadd.f32 0.0, %v1387
    %v1389 = vpop.f32.mrb[0].mxu0
    %1390 = vmatprep.mubr.bf16.mxu0 0
    %1391 = vmatmul.mubr.bf16.gmra.mrb[0].mxu0 %v1094
    %v1392 = vpop.f32.mrb[0].mxu0
    %v1393 = vadd.f32 0.0, %v1392
    %v1394 = vpop.f32.mrb[0].mxu0
    %v1395 = vpop.f32.mrb[0].mxu0
    %v1396 = vadd.f32 0.0, %v1395
    %v1397 = vpop.f32.mrb[0].mxu0
    %1398 = vmatprep.mubr.bf16.mxu0 0
    %1399 = vmatmul.mubr.bf16.gmra.mrb[0].mxu0 %v1095
    %v1400 = vpop.f32.mrb[0].mxu0
    %v1401 = vadd.f32 0.0, %v1400
    %v1402 = vpop.f32.mrb[0].mxu0
    %v1403 = vpop.f32.mrb[0].mxu0
    %v1404 = vadd.f32 0.0, %v1403
    %v1405 = vpop.f32.mrb[0].mxu0
    %1406 = vmatprep.mubr.bf16.mxu0 0
    %1407 = vmatmul.mubr.bf16.gmra.mrb[0].mxu0 %v1096
    %v1408 = vpop.f32.mrb[0].mxu0
    %v1409 = vadd.f32 0.0, %v1408
    %v1410 = vpop.f32.mrb[0].mxu0
    %v1411 = vpop.f32.mrb[0].mxu0
    %v1412 = vadd.f32 0.0, %v1411
    %v1413 = vpop.f32.mrb[0].mxu0
    %1414 = vmatprep.mubr.bf16.mxu0 0
    %1415 = vmatmul.mubr.bf16.gmra.mrb[0].mxu0 %v1097
    %v1416 = vpop.f32.mrb[0].mxu0
    %v1417 = vadd.f32 0.0, %v1416
    %v1418 = vpop.f32.mrb[0].mxu0
    %v1419 = vpop.f32.mrb[0].mxu0
    %v1420 = vadd.f32 0.0, %v1419
    %v1421 = vpop.f32.mrb[0].mxu0
    %1422 = vmatprep.mubr.bf16.mxu0 0
    %1423 = vmatmul.mubr.bf16.gmra.mrb[0].mxu0 %v1098
    %v1424 = vpop.f32.mrb[0].mxu0
    %v1425 = vadd.f32 0.0, %v1424
    %v1426 = vpop.f32.mrb[0].mxu0
    %v1427 = vpop.f32.mrb[0].mxu0
    %v1428 = vadd.f32 0.0, %v1427
    %v1429 = vpop.f32.mrb[0].mxu0
    %1430 = vmatprep.mubr.bf16.mxu0 0
    %1431 = vmatmul.mubr.bf16.gmra.mrb[0].mxu0 %v1099
    %v1432 = vpop.f32.mrb[0].mxu0
    %v1433 = vadd.f32 0.0, %v1432
    %v1434 = vpop.f32.mrb[0].mxu0
    %v1435 = vpop.f32.mrb[0].mxu0
    %v1436 = vadd.f32 0.0, %v1435
    %v1437 = vpop.f32.mrb[0].mxu0
    %1438 = vmatprep.mubr.bf16.mxu0 0
    %1439 = vmatmul.mubr.bf16.gmra.mrb[0].mxu0 %v1100
    %v1440 = vpop.f32.mrb[0].mxu0
    %v1441 = vadd.f32 0.0, %v1440
    %v1442 = vpop.f32.mrb[0].mxu0
    %v1443 = vpop.f32.mrb[0].mxu0
    %v1444 = vadd.f32 0.0, %v1443
    %v1445 = vpop.f32.mrb[0].mxu0
    %1446 = vmatprep.mubr.bf16.mxu0 0
    %1447 = vmatmul.mubr.bf16.gmra.mrb[0].mxu0 %v1101
    %v1448 = vpop.f32.mrb[0].mxu0
    %v1449 = vadd.f32 0.0, %v1448
    %v1450 = vpop.f32.mrb[0].mxu0
    %v1451 = vpop.f32.mrb[0].mxu0
    %v1452 = vadd.f32 0.0, %v1451
    %v1453 = vpop.f32.mrb[0].mxu0
    %1454 = vdwg.mxu0
    %v1455 = vld [vmem:[%s5] sm:$0x1]
    %v1456 = vld [vmem:[%s6] sm:$0x1]
    %v1457 = vadd.f32 %v1201, %v1204
    %v1458 = vadd.f32 %v1457, %v1209
    %v1459 = vadd.f32 %v1458, %v1212
    %v1460 = vadd.f32 %v1459, %v1217
    %v1461 = vadd.f32 %v1460, %v1220
    %v1462 = vadd.f32 %v1461, %v1225
    %v1463 = vadd.f32 %v1462, %v1228
    %v1464 = vadd.f32 %v1463, %v1233
    %v1465 = vadd.f32 %v1464, %v1236
    %v1466 = vadd.f32 %v1465, %v1241
    %v1467 = vadd.f32 %v1466, %v1244
    %v1468 = vadd.f32 %v1467, %v1249
    %v1469 = vadd.f32 %v1468, %v1252
    %v1470 = vadd.f32 %v1469, %v1257
    %v1471 = vadd.f32 %v1470, %v1260
    %v1472 = vadd.f32 %v1471, %v1265
    %v1473 = vadd.f32 %v1472, %v1268
    %v1474 = vadd.f32 %v1473, %v1273
    %v1475 = vadd.f32 %v1474, %v1276
    %v1476 = vadd.f32 %v1475, %v1281
    %v1477 = vadd.f32 %v1476, %v1284
    %v1478 = vadd.f32 %v1477, %v1289
    %v1479 = vadd.f32 %v1478, %v1292
    %v1480 = vadd.f32 %v1479, %v1297
    %v1481 = vadd.f32 %v1480, %v1300
    %v1482 = vadd.f32 %v1481, %v1305
    %v1483 = vadd.f32 %v1482, %v1308
    %v1484 = vadd.f32 %v1483, %v1313
    %v1485 = vadd.f32 %v1484, %v1316
    %v1486 = vadd.f32 %v1485, %v1321
    %v1487 = vadd.f32 %v1486, %v1324
    %v1488 = vrot.slane %v1487, 4
    %v1489 = vadd.f32 %v1487, %v1488
    %v1490 = vrot.slane %v1489, 2
    %v1491 = vadd.f32 %v1489, %v1490
    %v1492 = vrot.slane %v1491, 1
    %v1493 = vadd.f32 %v1491, %v1492
    %v1494 = vadd.f32 %v1329, %v1332
    %v1495 = vadd.f32 %v1494, %v1337
    %v1496 = vadd.f32 %v1495, %v1340
    %v1497 = vadd.f32 %v1496, %v1345
    %v1498 = vadd.f32 %v1497, %v1348
    %v1499 = vadd.f32 %v1498, %v1353
    %v1500 = vadd.f32 %v1499, %v1356
    %v1501 = vadd.f32 %v1500, %v1361
    %v1502 = vadd.f32 %v1501, %v1364
    %v1503 = vadd.f32 %v1502, %v1369
    %v1504 = vadd.f32 %v1503, %v1372
    %v1505 = vadd.f32 %v1504, %v1377
    %v1506 = vadd.f32 %v1505, %v1380
    %v1507 = vadd.f32 %v1506, %v1385
    %v1508 = vadd.f32 %v1507, %v1388
    %v1509 = vadd.f32 %v1508, %v1393
    %v1510 = vadd.f32 %v1509, %v1396
    %v1511 = vadd.f32 %v1510, %v1401
    %v1512 = vadd.f32 %v1511, %v1404
    %v1513 = vadd.f32 %v1512, %v1409
    %v1514 = vadd.f32 %v1513, %v1412
    %v1515 = vadd.f32 %v1514, %v1417
    %v1516 = vadd.f32 %v1515, %v1420
    %v1517 = vadd.f32 %v1516, %v1425
    %v1518 = vadd.f32 %v1517, %v1428
    %v1519 = vadd.f32 %v1518, %v1433
    %v1520 = vadd.f32 %v1519, %v1436
    %v1521 = vadd.f32 %v1520, %v1441
    %v1522 = vadd.f32 %v1521, %v1444
    %v1523 = vadd.f32 %v1522, %v1449
    %v1524 = vadd.f32 %v1523, %v1452
    %v1525 = vrot.slane %v1524, 4
    %v1526 = vadd.f32 %v1524, %v1525
    %v1527 = vrot.slane %v1526, 2
    %v1528 = vadd.f32 %v1526, %v1527
    %v1529 = vrot.slane %v1528, 1
    %v1530 = vadd.f32 %v1528, %v1529
    %v1531 = vmul.f32 %v1493, 0.00390625
    %v1532 = vmul.f32 %v1530, 0.00390625
    %v1533 = vmul.f32 %v1201, %v1201
    %v1534 = vmul.f32 %v1204, %v1204
    %v1535 = vmul.f32 %v1209, %v1209
    %v1536 = vmul.f32 %v1212, %v1212
    %v1537 = vmul.f32 %v1217, %v1217
    %v1538 = vmul.f32 %v1220, %v1220
    %v1539 = vmul.f32 %v1225, %v1225
    %v1540 = vmul.f32 %v1228, %v1228
    %v1541 = vmul.f32 %v1233, %v1233
    %v1542 = vmul.f32 %v1236, %v1236
    %v1543 = vmul.f32 %v1241, %v1241
    %v1544 = vmul.f32 %v1244, %v1244
    %v1545 = vmul.f32 %v1249, %v1249
    %v1546 = vmul.f32 %v1252, %v1252
    %v1547 = vmul.f32 %v1257, %v1257
    %v1548 = vmul.f32 %v1260, %v1260
    %v1549 = vmul.f32 %v1265, %v1265
    %v1550 = vmul.f32 %v1268, %v1268
    %v1551 = vmul.f32 %v1273, %v1273
    %v1552 = vmul.f32 %v1276, %v1276
    %v1553 = vmul.f32 %v1281, %v1281
    %v1554 = vmul.f32 %v1284, %v1284
    %v1555 = vmul.f32 %v1289, %v1289
    %v1556 = vmul.f32 %v1292, %v1292
    %v1557 = vmul.f32 %v1297, %v1297
    %v1558 = vmul.f32 %v1300, %v1300
    %v1559 = vmul.f32 %v1305, %v1305
    %v1560 = vmul.f32 %v1308, %v1308
    %v1561 = vmul.f32 %v1313, %v1313
    %v1562 = vmul.f32 %v1316, %v1316
    %v1563 = vmul.f32 %v1321, %v1321
    %v1564 = vmul.f32 %v1324, %v1324
    %v1565 = vmul.f32 %v1329, %v1329
    %v1566 = vmul.f32 %v1332, %v1332
    %v1567 = vmul.f32 %v1337, %v1337
    %v1568 = vmul.f32 %v1340, %v1340
    %v1569 = vmul.f32 %v1345, %v1345
    %v1570 = vmul.f32 %v1348, %v1348
    %v1571 = vmul.f32 %v1353, %v1353
    %v1572 = vmul.f32 %v1356, %v1356
    %v1573 = vmul.f32 %v1361, %v1361
    %v1574 = vmul.f32 %v1364, %v1364
    %v1575 = vmul.f32 %v1369, %v1369
    %v1576 = vmul.f32 %v1372, %v1372
    %v1577 = vmul.f32 %v1377, %v1377
    %v1578 = vmul.f32 %v1380, %v1380
    %v1579 = vmul.f32 %v1385, %v1385
    %v1580 = vmul.f32 %v1388, %v1388
    %v1581 = vmul.f32 %v1393, %v1393
    %v1582 = vmul.f32 %v1396, %v1396
    %v1583 = vmul.f32 %v1401, %v1401
    %v1584 = vmul.f32 %v1404, %v1404
    %v1585 = vmul.f32 %v1409, %v1409
    %v1586 = vmul.f32 %v1412, %v1412
    %v1587 = vmul.f32 %v1417, %v1417
    %v1588 = vmul.f32 %v1420, %v1420
    %v1589 = vmul.f32 %v1425, %v1425
    %v1590 = vmul.f32 %v1428, %v1428
    %v1591 = vmul.f32 %v1433, %v1433
    %v1592 = vmul.f32 %v1436, %v1436
    %v1593 = vmul.f32 %v1441, %v1441
    %v1594 = vmul.f32 %v1444, %v1444
    %v1595 = vmul.f32 %v1449, %v1449
    %v1596 = vmul.f32 %v1452, %v1452
    %v1597 = vadd.f32 %v1533, %v1534
    %v1598 = vadd.f32 %v1597, %v1535
    %v1599 = vadd.f32 %v1598, %v1536
    %v1600 = vadd.f32 %v1599, %v1537
    %v1601 = vadd.f32 %v1600, %v1538
    %v1602 = vadd.f32 %v1601, %v1539
    %v1603 = vadd.f32 %v1602, %v1540
    %v1604 = vadd.f32 %v1603, %v1541
    %v1605 = vadd.f32 %v1604, %v1542
    %v1606 = vadd.f32 %v1605, %v1543
    %v1607 = vadd.f32 %v1606, %v1544
    %v1608 = vadd.f32 %v1607, %v1545
    %v1609 = vadd.f32 %v1608, %v1546
    %v1610 = vadd.f32 %v1609, %v1547
    %v1611 = vadd.f32 %v1610, %v1548
    %v1612 = vadd.f32 %v1611, %v1549
    %v1613 = vadd.f32 %v1612, %v1550
    %v1614 = vadd.f32 %v1613, %v1551
    %v1615 = vadd.f32 %v1614, %v1552
    %v1616 = vadd.f32 %v1615, %v1553
    %v1617 = vadd.f32 %v1616, %v1554
    %v1618 = vadd.f32 %v1617, %v1555
    %v1619 = vadd.f32 %v1618, %v1556
    %v1620 = vadd.f32 %v1619, %v1557
    %v1621 = vadd.f32 %v1620, %v1558
    %v1622 = vadd.f32 %v1621, %v1559
    %v1623 = vadd.f32 %v1622, %v1560
    %v1624 = vadd.f32 %v1623, %v1561
    %v1625 = vadd.f32 %v1624, %v1562
    %v1626 = vadd.f32 %v1625, %v1563
    %v1627 = vadd.f32 %v1626, %v1564
    %v1628 = vrot.slane %v1627, 4
    %v1629 = vadd.f32 %v1627, %v1628
    %v1630 = vrot.slane %v1629, 2
    %v1631 = vadd.f32 %v1629, %v1630
    %v1632 = vrot.slane %v1631, 1
    %v1633 = vadd.f32 %v1631, %v1632
    %v1634 = vadd.f32 %v1565, %v1566
    %v1635 = vadd.f32 %v1634, %v1567
    %v1636 = vadd.f32 %v1635, %v1568
    %v1637 = vadd.f32 %v1636, %v1569
    %v1638 = vadd.f32 %v1637, %v1570
    %v1639 = vadd.f32 %v1638, %v1571
    %v1640 = vadd.f32 %v1639, %v1572
    %v1641 = vadd.f32 %v1640, %v1573
    %v1642 = vadd.f32 %v1641, %v1574
    %v1643 = vadd.f32 %v1642, %v1575
    %v1644 = vadd.f32 %v1643, %v1576
    %v1645 = vadd.f32 %v1644, %v1577
    %v1646 = vadd.f32 %v1645, %v1578
    %v1647 = vadd.f32 %v1646, %v1579
    %v1648 = vadd.f32 %v1647, %v1580
    %v1649 = vadd.f32 %v1648, %v1581
    %v1650 = vadd.f32 %v1649, %v1582
    %v1651 = vadd.f32 %v1650, %v1583
    %v1652 = vadd.f32 %v1651, %v1584
    %v1653 = vadd.f32 %v1652, %v1585
    %v1654 = vadd.f32 %v1653, %v1586
    %v1655 = vadd.f32 %v1654, %v1587
    %v1656 = vadd.f32 %v1655, %v1588
    %v1657 = vadd.f32 %v1656, %v1589
    %v1658 = vadd.f32 %v1657, %v1590
    %v1659 = vadd.f32 %v1658, %v1591
    %v1660 = vadd.f32 %v1659, %v1592
    %v1661 = vadd.f32 %v1660, %v1593
    %v1662 = vadd.f32 %v1661, %v1594
    %v1663 = vadd.f32 %v1662, %v1595
    %v1664 = vadd.f32 %v1663, %v1596
    %v1665 = vrot.slane %v1664, 4
    %v1666 = vadd.f32 %v1664, %v1665
    %v1667 = vrot.slane %v1666, 2
    %v1668 = vadd.f32 %v1666, %v1667
    %v1669 = vrot.slane %v1668, 1
    %v1670 = vadd.f32 %v1668, %v1669
    %v1671 = vmul.f32 %v1633, 0.00390625
    %v1672 = vmul.f32 %v1670, 0.00390625
    %v1673 = vmul.f32 %v1531, %v1531
    %v1674 = vmul.f32 %v1532, %v1532
    %v1675 = vsub.f32 %v1671, %v1673
    %v1676 = vsub.f32 %v1672, %v1674
    %v1677 = vmax.f32 %v1675, 0.0
    %v1678 = vmax.f32 %v1676, 0.0
    %v1679 = vadd.f32 %v1677, 1e-05
    %v1680 = vadd.f32 %v1678, 1e-05
    %v1681 = vrsqrt.pop %v1679
    %v1682 = vrsqrt.pop %v1680
    %v1683 = vmul.f32 %v1681, %v1681
    %v1684 = vmul.f32 %v1682, %v1682
    %v1685 = vmul.f32 %v1677, %v1683
    %v1686 = vmul.f32 %v1678, %v1684
    %v1687 = vadd.f32 %v1685, %v1686
    %v1688 = vrcp.pop 2.0
    %v1689 = vmul.f32 %v1687, %v1688
    %v1690 = vadd.f32 %v1689, 1e-05
    %v1691 = vrsqrt.pop %v1690
    %v1692 = vmul.f32 %v1691, %v1455
    %v1693 = vmul.f32 %v1681, %v1692
    %v1694 = vmul.f32 %v1682, %v1692
    %v1695 = vsub.f32 %v1201, %v1531
    %v1696 = vsub.f32 %v1204, %v1531
    %v1697 = vsub.f32 %v1209, %v1531
    %v1698 = vsub.f32 %v1212, %v1531
    %v1699 = vsub.f32 %v1217, %v1531
    %v1700 = vsub.f32 %v1220, %v1531
    %v1701 = vsub.f32 %v1225, %v1531
    %v1702 = vsub.f32 %v1228, %v1531
    %v1703 = vsub.f32 %v1233, %v1531
    %v1704 = vsub.f32 %v1236, %v1531
    %v1705 = vsub.f32 %v1241, %v1531
    %v1706 = vsub.f32 %v1244, %v1531
    %v1707 = vsub.f32 %v1249, %v1531
    %v1708 = vsub.f32 %v1252, %v1531
    %v1709 = vsub.f32 %v1257, %v1531
    %v1710 = vsub.f32 %v1260, %v1531
    %v1711 = vsub.f32 %v1265, %v1531
    %v1712 = vsub.f32 %v1268, %v1531
    %v1713 = vsub.f32 %v1273, %v1531
    %v1714 = vsub.f32 %v1276, %v1531
    %v1715 = vsub.f32 %v1281, %v1531
    %v1716 = vsub.f32 %v1284, %v1531
    %v1717 = vsub.f32 %v1289, %v1531
    %v1718 = vsub.f32 %v1292, %v1531
    %v1719 = vsub.f32 %v1297, %v1531
    %v1720 = vsub.f32 %v1300, %v1531
    %v1721 = vsub.f32 %v1305, %v1531
    %v1722 = vsub.f32 %v1308, %v1531
    %v1723 = vsub.f32 %v1313, %v1531
    %v1724 = vsub.f32 %v1316, %v1531
    %v1725 = vsub.f32 %v1321, %v1531
    %v1726 = vsub.f32 %v1324, %v1531
    %v1727 = vsub.f32 %v1329, %v1532
    %v1728 = vsub.f32 %v1332, %v1532
    %v1729 = vsub.f32 %v1337, %v1532
    %v1730 = vsub.f32 %v1340, %v1532
    %v1731 = vsub.f32 %v1345, %v1532
    %v1732 = vsub.f32 %v1348, %v1532
    %v1733 = vsub.f32 %v1353, %v1532
    %v1734 = vsub.f32 %v1356, %v1532
    %v1735 = vsub.f32 %v1361, %v1532
    %v1736 = vsub.f32 %v1364, %v1532
    %v1737 = vsub.f32 %v1369, %v1532
    %v1738 = vsub.f32 %v1372, %v1532
    %v1739 = vsub.f32 %v1377, %v1532
    %v1740 = vsub.f32 %v1380, %v1532
    %v1741 = vsub.f32 %v1385, %v1532
    %v1742 = vsub.f32 %v1388, %v1532
    %v1743 = vsub.f32 %v1393, %v1532
    %v1744 = vsub.f32 %v1396, %v1532
    %v1745 = vsub.f32 %v1401, %v1532
    %v1746 = vsub.f32 %v1404, %v1532
    %v1747 = vsub.f32 %v1409, %v1532
    %v1748 = vsub.f32 %v1412, %v1532
    %v1749 = vsub.f32 %v1417, %v1532
    %v1750 = vsub.f32 %v1420, %v1532
    %v1751 = vsub.f32 %v1425, %v1532
    %v1752 = vsub.f32 %v1428, %v1532
    %v1753 = vsub.f32 %v1433, %v1532
    %v1754 = vsub.f32 %v1436, %v1532
    %v1755 = vsub.f32 %v1441, %v1532
    %v1756 = vsub.f32 %v1444, %v1532
    %v1757 = vsub.f32 %v1449, %v1532
    %v1758 = vsub.f32 %v1452, %v1532
    %v1759 = vlaneseq
    %v1760 = vshrl.u32 %v1759, 7
    %v1761 = vsub.s32 0, %v1760
    %v1762 = vrot.slane %v1693, %v1761
    %v1763 = vlaneseq
    %v1764 = vshrl.u32 %v1763, 7
    %v1765 = vsub.s32 0, %v1764
    %v1766 = vrot.slane %v1694, %v1765
    %v1767 = vmul.f32 %v1695, %v1762
    %v1768 = vmul.f32 %v1696, %v1762
    %v1769 = vmul.f32 %v1697, %v1762
    %v1770 = vmul.f32 %v1698, %v1762
    %v1771 = vmul.f32 %v1699, %v1762
    %v1772 = vmul.f32 %v1700, %v1762
    %v1773 = vmul.f32 %v1701, %v1762
    %v1774 = vmul.f32 %v1702, %v1762
    %v1775 = vmul.f32 %v1703, %v1762
    %v1776 = vmul.f32 %v1704, %v1762
    %v1777 = vmul.f32 %v1705, %v1762
    %v1778 = vmul.f32 %v1706, %v1762
    %v1779 = vmul.f32 %v1707, %v1762
    %v1780 = vmul.f32 %v1708, %v1762
    %v1781 = vmul.f32 %v1709, %v1762
    %v1782 = vmul.f32 %v1710, %v1762
    %v1783 = vmul.f32 %v1711, %v1762
    %v1784 = vmul.f32 %v1712, %v1762
    %v1785 = vmul.f32 %v1713, %v1762
    %v1786 = vmul.f32 %v1714, %v1762
    %v1787 = vmul.f32 %v1715, %v1762
    %v1788 = vmul.f32 %v1716, %v1762
    %v1789 = vmul.f32 %v1717, %v1762
    %v1790 = vmul.f32 %v1718, %v1762
    %v1791 = vmul.f32 %v1719, %v1762
    %v1792 = vmul.f32 %v1720, %v1762
    %v1793 = vmul.f32 %v1721, %v1762
    %v1794 = vmul.f32 %v1722, %v1762
    %v1795 = vmul.f32 %v1723, %v1762
    %v1796 = vmul.f32 %v1724, %v1762
    %v1797 = vmul.f32 %v1725, %v1762
    %v1798 = vmul.f32 %v1726, %v1762
    %v1799 = vmul.f32 %v1727, %v1766
    %v1800 = vmul.f32 %v1728, %v1766
    %v1801 = vmul.f32 %v1729, %v1766
    %v1802 = vmul.f32 %v1730, %v1766
    %v1803 = vmul.f32 %v1731, %v1766
    %v1804 = vmul.f32 %v1732, %v1766
    %v1805 = vmul.f32 %v1733, %v1766
    %v1806 = vmul.f32 %v1734, %v1766
    %v1807 = vmul.f32 %v1735, %v1766
    %v1808 = vmul.f32 %v1736, %v1766
    %v1809 = vmul.f32 %v1737, %v1766
    %v1810 = vmul.f32 %v1738, %v1766
    %v1811 = vmul.f32 %v1739, %v1766
    %v1812 = vmul.f32 %v1740, %v1766
    %v1813 = vmul.f32 %v1741, %v1766
    %v1814 = vmul.f32 %v1742, %v1766
    %v1815 = vmul.f32 %v1743, %v1766
    %v1816 = vmul.f32 %v1744, %v1766
    %v1817 = vmul.f32 %v1745, %v1766
    %v1818 = vmul.f32 %v1746, %v1766
    %v1819 = vmul.f32 %v1747, %v1766
    %v1820 = vmul.f32 %v1748, %v1766
    %v1821 = vmul.f32 %v1749, %v1766
    %v1822 = vmul.f32 %v1750, %v1766
    %v1823 = vmul.f32 %v1751, %v1766
    %v1824 = vmul.f32 %v1752, %v1766
    %v1825 = vmul.f32 %v1753, %v1766
    %v1826 = vmul.f32 %v1754, %v1766
    %v1827 = vmul.f32 %v1755, %v1766
    %v1828 = vmul.f32 %v1756, %v1766
    %v1829 = vmul.f32 %v1757, %v1766
    %v1830 = vmul.f32 %v1758, %v1766
    %v1832 = vlaneseq
    %v1833 = vshrl.u32 %v1832, 7
    %v1834 = vsub.s32 0, %v1833
    %v1835 = vrot.slane %v1456, %v1834
    %v1837 = vadd.f32 %v1767, %v1835
    %v1838 = vadd.f32 %v1768, %v1835
    %v1839 = vadd.f32 %v1769, %v1835
    %v1840 = vadd.f32 %v1770, %v1835
    %v1841 = vadd.f32 %v1771, %v1835
    %v1842 = vadd.f32 %v1772, %v1835
    %v1843 = vadd.f32 %v1773, %v1835
    %v1844 = vadd.f32 %v1774, %v1835
    %v1845 = vadd.f32 %v1775, %v1835
    %v1846 = vadd.f32 %v1776, %v1835
    %v1847 = vadd.f32 %v1777, %v1835
    %v1848 = vadd.f32 %v1778, %v1835
    %v1849 = vadd.f32 %v1779, %v1835
    %v1850 = vadd.f32 %v1780, %v1835
    %v1851 = vadd.f32 %v1781, %v1835
    %v1852 = vadd.f32 %v1782, %v1835
    %v1853 = vadd.f32 %v1783, %v1835
    %v1854 = vadd.f32 %v1784, %v1835
    %v1855 = vadd.f32 %v1785, %v1835
    %v1856 = vadd.f32 %v1786, %v1835
    %v1857 = vadd.f32 %v1787, %v1835
    %v1858 = vadd.f32 %v1788, %v1835
    %v1859 = vadd.f32 %v1789, %v1835
    %v1860 = vadd.f32 %v1790, %v1835
    %v1861 = vadd.f32 %v1791, %v1835
    %v1862 = vadd.f32 %v1792, %v1835
    %v1863 = vadd.f32 %v1793, %v1835
    %v1864 = vadd.f32 %v1794, %v1835
    %v1865 = vadd.f32 %v1795, %v1835
    %v1866 = vadd.f32 %v1796, %v1835
    %v1867 = vadd.f32 %v1797, %v1835
    %v1868 = vadd.f32 %v1798, %v1835
    %v1869 = vadd.f32 %v1799, %v1835
    %v1870 = vadd.f32 %v1800, %v1835
    %v1871 = vadd.f32 %v1801, %v1835
    %v1872 = vadd.f32 %v1802, %v1835
    %v1873 = vadd.f32 %v1803, %v1835
    %v1874 = vadd.f32 %v1804, %v1835
    %v1875 = vadd.f32 %v1805, %v1835
    %v1876 = vadd.f32 %v1806, %v1835
    %v1877 = vadd.f32 %v1807, %v1835
    %v1878 = vadd.f32 %v1808, %v1835
    %v1879 = vadd.f32 %v1809, %v1835
    %v1880 = vadd.f32 %v1810, %v1835
    %v1881 = vadd.f32 %v1811, %v1835
    %v1882 = vadd.f32 %v1812, %v1835
    %v1883 = vadd.f32 %v1813, %v1835
    %v1884 = vadd.f32 %v1814, %v1835
    %v1885 = vadd.f32 %v1815, %v1835
    %v1886 = vadd.f32 %v1816, %v1835
    %v1887 = vadd.f32 %v1817, %v1835
    %v1888 = vadd.f32 %v1818, %v1835
    %v1889 = vadd.f32 %v1819, %v1835
    %v1890 = vadd.f32 %v1820, %v1835
    %v1891 = vadd.f32 %v1821, %v1835
    %v1892 = vadd.f32 %v1822, %v1835
    %v1893 = vadd.f32 %v1823, %v1835
    %v1894 = vadd.f32 %v1824, %v1835
    %v1895 = vadd.f32 %v1825, %v1835
    %v1896 = vadd.f32 %v1826, %v1835
    %v1897 = vadd.f32 %v1827, %v1835
    %v1898 = vadd.f32 %v1828, %v1835
    %v1899 = vadd.f32 %v1829, %v1835
    %v1900 = vadd.f32 %v1830, %v1835
    %v1901 = vmax.f32 %v1837, 0.0
    %v1902 = vmax.f32 %v1838, 0.0
    %v1903 = vmax.f32 %v1839, 0.0
    %v1904 = vmax.f32 %v1840, 0.0
    %v1905 = vmax.f32 %v1841, 0.0
    %v1906 = vmax.f32 %v1842, 0.0
    %v1907 = vmax.f32 %v1843, 0.0
    %v1908 = vmax.f32 %v1844, 0.0
    %v1909 = vmax.f32 %v1845, 0.0
    %v1910 = vmax.f32 %v1846, 0.0
    %v1911 = vmax.f32 %v1847, 0.0
    %v1912 = vmax.f32 %v1848, 0.0
    %v1913 = vmax.f32 %v1849, 0.0
    %v1914 = vmax.f32 %v1850, 0.0
    %v1915 = vmax.f32 %v1851, 0.0
    %v1916 = vmax.f32 %v1852, 0.0
    %v1917 = vmax.f32 %v1853, 0.0
    %v1918 = vmax.f32 %v1854, 0.0
    %v1919 = vmax.f32 %v1855, 0.0
    %v1920 = vmax.f32 %v1856, 0.0
    %v1921 = vmax.f32 %v1857, 0.0
    %v1922 = vmax.f32 %v1858, 0.0
    %v1923 = vmax.f32 %v1859, 0.0
    %v1924 = vmax.f32 %v1860, 0.0
    %v1925 = vmax.f32 %v1861, 0.0
    %v1926 = vmax.f32 %v1862, 0.0
    %v1927 = vmax.f32 %v1863, 0.0
    %v1928 = vmax.f32 %v1864, 0.0
    %v1929 = vmax.f32 %v1865, 0.0
    %v1930 = vmax.f32 %v1866, 0.0
    %v1931 = vmax.f32 %v1867, 0.0
    %v1932 = vmax.f32 %v1868, 0.0
    %v1933 = vmax.f32 %v1869, 0.0
    %v1934 = vmax.f32 %v1870, 0.0
    %v1935 = vmax.f32 %v1871, 0.0
    %v1936 = vmax.f32 %v1872, 0.0
    %v1937 = vmax.f32 %v1873, 0.0
    %v1938 = vmax.f32 %v1874, 0.0
    %v1939 = vmax.f32 %v1875, 0.0
    %v1940 = vmax.f32 %v1876, 0.0
    %v1941 = vmax.f32 %v1877, 0.0
    %v1942 = vmax.f32 %v1878, 0.0
    %v1943 = vmax.f32 %v1879, 0.0
    %v1944 = vmax.f32 %v1880, 0.0
    %v1945 = vmax.f32 %v1881, 0.0
    %v1946 = vmax.f32 %v1882, 0.0
    %v1947 = vmax.f32 %v1883, 0.0
    %v1948 = vmax.f32 %v1884, 0.0
    %v1949 = vmax.f32 %v1885, 0.0
    %v1950 = vmax.f32 %v1886, 0.0
    %v1951 = vmax.f32 %v1887, 0.0
    %v1952 = vmax.f32 %v1888, 0.0
    %v1953 = vmax.f32 %v1889, 0.0
    %v1954 = vmax.f32 %v1890, 0.0
    %v1955 = vmax.f32 %v1891, 0.0
    %v1956 = vmax.f32 %v1892, 0.0
    %v1957 = vmax.f32 %v1893, 0.0
    %v1958 = vmax.f32 %v1894, 0.0
    %v1959 = vmax.f32 %v1895, 0.0
    %v1960 = vmax.f32 %v1896, 0.0
    %v1961 = vmax.f32 %v1897, 0.0
    %v1962 = vmax.f32 %v1898, 0.0
    %v1963 = vmax.f32 %v1899, 0.0
    %v1964 = vmax.f32 %v1900, 0.0
    %v1965 = vpack.c.bf16 %v1902, %v1901
    %v1966 = vpack.c.bf16 %v1904, %v1903
    %v1967 = vpack.c.bf16 %v1906, %v1905
    %v1968 = vpack.c.bf16 %v1908, %v1907
    %v1969 = vpack.c.bf16 %v1910, %v1909
    %v1970 = vpack.c.bf16 %v1912, %v1911
    %v1971 = vpack.c.bf16 %v1914, %v1913
    %v1972 = vpack.c.bf16 %v1916, %v1915
    %v1973 = vpack.c.bf16 %v1918, %v1917
    %v1974 = vpack.c.bf16 %v1920, %v1919
    %v1975 = vpack.c.bf16 %v1922, %v1921
    %v1976 = vpack.c.bf16 %v1924, %v1923
    %v1977 = vpack.c.bf16 %v1926, %v1925
    %v1978 = vpack.c.bf16 %v1928, %v1927
    %v1979 = vpack.c.bf16 %v1930, %v1929
    %v1980 = vpack.c.bf16 %v1932, %v1931
    %v1981 = vpack.c.bf16 %v1934, %v1933
    %v1982 = vpack.c.bf16 %v1936, %v1935
    %v1983 = vpack.c.bf16 %v1938, %v1937
    %v1984 = vpack.c.bf16 %v1940, %v1939
    %v1985 = vpack.c.bf16 %v1942, %v1941
    %v1986 = vpack.c.bf16 %v1944, %v1943
    %v1987 = vpack.c.bf16 %v1946, %v1945
    %v1988 = vpack.c.bf16 %v1948, %v1947
    %v1989 = vpack.c.bf16 %v1950, %v1949
    %v1990 = vpack.c.bf16 %v1952, %v1951
    %v1991 = vpack.c.bf16 %v1954, %v1953
    %v1992 = vpack.c.bf16 %v1956, %v1955
    %v1993 = vpack.c.bf16 %v1958, %v1957
    %v1994 = vpack.c.bf16 %v1960, %v1959
    %v1995 = vpack.c.bf16 %v1962, %v1961
    %v1996 = vpack.c.bf16 %v1964, %v1963
    %v1997 = vld [vmem:[#allocation6] sm:$0xf]
    %v1998 = vld [vmem:[#allocation6 + $0x4] sm:$0xf]
    %v1999 = vld [vmem:[#allocation6 + $0x8] sm:$0xf]
    %v2000 = vld [vmem:[#allocation6 + $0xc] sm:$0xf]
    %v2001 = vld [vmem:[#allocation6 + $0x10] sm:$0xf]
    %v2002 = vld [vmem:[#allocation6 + $0x14] sm:$0xf]
    %v2003 = vld [vmem:[#allocation6 + $0x18] sm:$0xf]
    %v2004 = vld [vmem:[#allocation6 + $0x1c] sm:$0xf]
    %v2005 = vld [vmem:[#allocation6 + $0x20] sm:$0xf]
    %v2006 = vld [vmem:[#allocation6 + $0x24] sm:$0xf]
    %v2007 = vld [vmem:[#allocation6 + $0x28] sm:$0xf]
    %v2008 = vld [vmem:[#allocation6 + $0x2c] sm:$0xf]
    %v2009 = vld [vmem:[#allocation6 + $0x30] sm:$0xf]
    %v2010 = vld [vmem:[#allocation6 + $0x34] sm:$0xf]
    %v2011 = vld [vmem:[#allocation6 + $0x38] sm:$0xf]
    %v2012 = vld [vmem:[#allocation6 + $0x3c] sm:$0xf]
    %v2029 = vunpack.c.l.b16 %v1997
    %v2030 = vunpack.c.l.b16 %v1998
    %v2031 = vunpack.c.l.b16 %v1999
    %v2032 = vunpack.c.l.b16 %v2000
    %v2033 = vunpack.c.l.b16 %v2001
    %v2034 = vunpack.c.l.b16 %v2002
    %v2035 = vunpack.c.l.b16 %v2003
    %v2036 = vunpack.c.l.b16 %v2004
    %v2037 = vunpack.c.l.b16 %v2005
    %v2038 = vunpack.c.l.b16 %v2006
    %v2039 = vunpack.c.l.b16 %v2007
    %v2040 = vunpack.c.l.b16 %v2008
    %v2041 = vunpack.c.l.b16 %v2009
    %v2042 = vunpack.c.l.b16 %v2010
    %v2043 = vunpack.c.l.b16 %v2011
    %v2044 = vunpack.c.l.b16 %v2012
    %v2045 = vpack.c.b16 %v2030, %v2029
    %v2046 = vpack.c.b16 %v2032, %v2031
    %v2047 = vpack.c.b16 %v2034, %v2033
    %v2048 = vpack.c.b16 %v2036, %v2035
    %v2049 = vpack.c.b16 %v2038, %v2037
    %v2050 = vpack.c.b16 %v2040, %v2039
    %v2051 = vpack.c.b16 %v2042, %v2041
    %v2052 = vpack.c.b16 %v2044, %v2043
    %2061 = vmatprep.subr.bf16.mxu0 0
    %2062 = vmatpush1.bf16.msra.mxu0 %v2045
    %2063 = vmatprep.subr.bf16.mxu0 0
    %2064 = vmatpush1.bf16.msra.mxu0 %v2046
    %2065 = vmatprep.subr.bf16.mxu0 0
    %2066 = vmatpush1.bf16.msra.mxu0 %v2047
    %2067 = vmatprep.subr.bf16.mxu0 0
    %2068 = vmatpush1.bf16.msra.mxu0 %v2048
    %2069 = vmatprep.subr.bf16.mxu0 0
    %2070 = vmatpush1.bf16.msra.mxu0 %v2049
    %2071 = vmatprep.subr.bf16.mxu0 0
    %2072 = vmatpush1.bf16.msra.mxu0 %v2050
    %2073 = vmatprep.subr.bf16.mxu0 0
    %2074 = vmatpush1.bf16.msra.mxu0 %v2051
    %2075 = vmatprep.subr.bf16.mxu0 0
    %2076 = vmatpush1.bf16.msra.mxu0 %v2052
    %2077 = vmatprep.subr.bf16.mxu0 0
    %2078 = vmatpush1.bf16.msra.mxu0 0
    %2079 = vmatprep.subr.bf16.mxu0 0
    %2080 = vmatpush1.bf16.msra.mxu0 0
    %2081 = vmatprep.subr.bf16.mxu0 0
    %2082 = vmatpush1.bf16.msra.mxu0 0
    %2083 = vmatprep.subr.bf16.mxu0 0
    %2084 = vmatpush1.bf16.msra.mxu0 0
    %2085 = vmatprep.subr.bf16.mxu0 0
    %2086 = vmatpush1.bf16.msra.mxu0 0
    %2087 = vmatprep.subr.bf16.mxu0 0
    %2088 = vmatpush1.bf16.msra.mxu0 0
    %2089 = vmatprep.subr.bf16.mxu0 0
    %2090 = vmatpush1.bf16.msra.mxu0 0
    %2091 = vmatprep.subr.bf16.mxu0 0
    %2092 = vmatpush1.bf16.msra.mxu0 0
    %2093 = vmatprep.mubr.bf16.mxu0 0
    %2094 = vmatmul.mubr.bf16.gmra.mrb[0].mxu0 %v1965
    %v2095 = vpop.f32.mrb[0].mxu0
    %v2096 = vadd.f32 0.0, %v2095
    %v2097 = vpop.f32.mrb[0].mxu0
    %v2098 = vpop.f32.mrb[0].mxu0
    %v2099 = vadd.f32 0.0, %v2098
    %v2100 = vpop.f32.mrb[0].mxu0
    %2101 = vmatprep.mubr.bf16.mxu0 0
    %2102 = vmatmul.mubr.bf16.gmra.mrb[0].mxu0 %v1966
    %v2103 = vpop.f32.mrb[0].mxu0
    %v2104 = vadd.f32 0.0, %v2103
    %v2105 = vpop.f32.mrb[0].mxu0
    %v2106 = vpop.f32.mrb[0].mxu0
    %v2107 = vadd.f32 0.0, %v2106
    %v2108 = vpop.f32.mrb[0].mxu0
    %2109 = vmatprep.mubr.bf16.mxu0 0
    %2110 = vmatmul.mubr.bf16.gmra.mrb[0].mxu0 %v1967
    %v2111 = vpop.f32.mrb[0].mxu0
    %v2112 = vadd.f32 0.0, %v2111
    %v2113 = vpop.f32.mrb[0].mxu0
    %v2114 = vpop.f32.mrb[0].mxu0
    %v2115 = vadd.f32 0.0, %v2114
    %v2116 = vpop.f32.mrb[0].mxu0
    %2117 = vmatprep.mubr.bf16.mxu0 0
    %2118 = vmatmul.mubr.bf16.gmra.mrb[0].mxu0 %v1968
    %v2119 = vpop.f32.mrb[0].mxu0
    %v2120 = vadd.f32 0.0, %v2119
    %v2121 = vpop.f32.mrb[0].mxu0
    %v2122 = vpop.f32.mrb[0].mxu0
    %v2123 = vadd.f32 0.0, %v2122
    %v2124 = vpop.f32.mrb[0].mxu0
    %2125 = vmatprep.mubr.bf16.mxu0 0
    %2126 = vmatmul.mubr.bf16.gmra.mrb[0].mxu0 %v1969
    %v2127 = vpop.f32.mrb[0].mxu0
    %v2128 = vadd.f32 0.0, %v2127
    %v2129 = vpop.f32.mrb[0].mxu0
    %v2130 = vpop.f32.mrb[0].mxu0
    %v2131 = vadd.f32 0.0, %v2130
    %v2132 = vpop.f32.mrb[0].mxu0
    %2133 = vmatprep.mubr.bf16.mxu0 0
    %2134 = vmatmul.mubr.bf16.gmra.mrb[0].mxu0 %v1970
    %v2135 = vpop.f32.mrb[0].mxu0
    %v2136 = vadd.f32 0.0, %v2135
    %v2137 = vpop.f32.mrb[0].mxu0
    %v2138 = vpop.f32.mrb[0].mxu0
    %v2139 = vadd.f32 0.0, %v2138
    %v2140 = vpop.f32.mrb[0].mxu0
    %2141 = vmatprep.mubr.bf16.mxu0 0
    %2142 = vmatmul.mubr.bf16.gmra.mrb[0].mxu0 %v1971
    %v2143 = vpop.f32.mrb[0].mxu0
    %v2144 = vadd.f32 0.0, %v2143
    %v2145 = vpop.f32.mrb[0].mxu0
    %v2146 = vpop.f32.mrb[0].mxu0
    %v2147 = vadd.f32 0.0, %v2146
    %v2148 = vpop.f32.mrb[0].mxu0
    %2149 = vmatprep.mubr.bf16.mxu0 0
    %2150 = vmatmul.mubr.bf16.gmra.mrb[0].mxu0 %v1972
    %v2151 = vpop.f32.mrb[0].mxu0
    %v2152 = vadd.f32 0.0, %v2151
    %v2153 = vpop.f32.mrb[0].mxu0
    %v2154 = vpop.f32.mrb[0].mxu0
    %v2155 = vadd.f32 0.0, %v2154
    %v2156 = vpop.f32.mrb[0].mxu0
    %2157 = vmatprep.mubr.bf16.mxu0 0
    %2158 = vmatmul.mubr.bf16.gmra.mrb[0].mxu0 %v1973
    %v2159 = vpop.f32.mrb[0].mxu0
    %v2160 = vadd.f32 0.0, %v2159
    %v2161 = vpop.f32.mrb[0].mxu0
    %v2162 = vpop.f32.mrb[0].mxu0
    %v2163 = vadd.f32 0.0, %v2162
    %v2164 = vpop.f32.mrb[0].mxu0
    %2165 = vmatprep.mubr.bf16.mxu0 0
    %2166 = vmatmul.mubr.bf16.gmra.mrb[0].mxu0 %v1974
    %v2167 = vpop.f32.mrb[0].mxu0
    %v2168 = vadd.f32 0.0, %v2167
    %v2169 = vpop.f32.mrb[0].mxu0
    %v2170 = vpop.f32.mrb[0].mxu0
    %v2171 = vadd.f32 0.0, %v2170
    %v2172 = vpop.f32.mrb[0].mxu0
    %2173 = vmatprep.mubr.bf16.mxu0 0
    %2174 = vmatmul.mubr.bf16.gmra.mrb[0].mxu0 %v1975
    %v2175 = vpop.f32.mrb[0].mxu0
    %v2176 = vadd.f32 0.0, %v2175
    %v2177 = vpop.f32.mrb[0].mxu0
    %v2178 = vpop.f32.mrb[0].mxu0
    %v2179 = vadd.f32 0.0, %v2178
    %v2180 = vpop.f32.mrb[0].mxu0
    %2181 = vmatprep.mubr.bf16.mxu0 0
    %2182 = vmatmul.mubr.bf16.gmra.mrb[0].mxu0 %v1976
    %v2183 = vpop.f32.mrb[0].mxu0
    %v2184 = vadd.f32 0.0, %v2183
    %v2185 = vpop.f32.mrb[0].mxu0
    %v2186 = vpop.f32.mrb[0].mxu0
    %v2187 = vadd.f32 0.0, %v2186
    %v2188 = vpop.f32.mrb[0].mxu0
    %2189 = vmatprep.mubr.bf16.mxu0 0
    %2190 = vmatmul.mubr.bf16.gmra.mrb[0].mxu0 %v1977
    %v2191 = vpop.f32.mrb[0].mxu0
    %v2192 = vadd.f32 0.0, %v2191
    %v2193 = vpop.f32.mrb[0].mxu0
    %v2194 = vpop.f32.mrb[0].mxu0
    %v2195 = vadd.f32 0.0, %v2194
    %v2196 = vpop.f32.mrb[0].mxu0
    %2197 = vmatprep.mubr.bf16.mxu0 0
    %2198 = vmatmul.mubr.bf16.gmra.mrb[0].mxu0 %v1978
    %v2199 = vpop.f32.mrb[0].mxu0
    %v2200 = vadd.f32 0.0, %v2199
    %v2201 = vpop.f32.mrb[0].mxu0
    %v2202 = vpop.f32.mrb[0].mxu0
    %v2203 = vadd.f32 0.0, %v2202
    %v2204 = vpop.f32.mrb[0].mxu0
    %2205 = vmatprep.mubr.bf16.mxu0 0
    %2206 = vmatmul.mubr.bf16.gmra.mrb[0].mxu0 %v1979
    %v2207 = vpop.f32.mrb[0].mxu0
    %v2208 = vadd.f32 0.0, %v2207
    %v2209 = vpop.f32.mrb[0].mxu0
    %v2210 = vpop.f32.mrb[0].mxu0
    %v2211 = vadd.f32 0.0, %v2210
    %v2212 = vpop.f32.mrb[0].mxu0
    %2213 = vmatprep.mubr.bf16.mxu0 0
    %2214 = vmatmul.mubr.bf16.gmra.mrb[0].mxu0 %v1980
    %v2215 = vpop.f32.mrb[0].mxu0
    %v2216 = vadd.f32 0.0, %v2215
    %v2217 = vpop.f32.mrb[0].mxu0
    %v2218 = vpop.f32.mrb[0].mxu0
    %v2219 = vadd.f32 0.0, %v2218
    %v2220 = vpop.f32.mrb[0].mxu0
    %2221 = vmatprep.mubr.bf16.mxu0 0
    %2222 = vmatmul.mubr.bf16.gmra.mrb[0].mxu0 %v1981
    %v2223 = vpop.f32.mrb[0].mxu0
    %v2224 = vadd.f32 0.0, %v2223
    %v2225 = vpop.f32.mrb[0].mxu0
    %v2226 = vpop.f32.mrb[0].mxu0
    %v2227 = vadd.f32 0.0, %v2226
    %v2228 = vpop.f32.mrb[0].mxu0
    %2229 = vmatprep.mubr.bf16.mxu0 0
    %2230 = vmatmul.mubr.bf16.gmra.mrb[0].mxu0 %v1982
    %v2231 = vpop.f32.mrb[0].mxu0
    %v2232 = vadd.f32 0.0, %v2231
    %v2233 = vpop.f32.mrb[0].mxu0
    %v2234 = vpop.f32.mrb[0].mxu0
    %v2235 = vadd.f32 0.0, %v2234
    %v2236 = vpop.f32.mrb[0].mxu0
    %2237 = vmatprep.mubr.bf16.mxu0 0
    %2238 = vmatmul.mubr.bf16.gmra.mrb[0].mxu0 %v1983
    %v2239 = vpop.f32.mrb[0].mxu0
    %v2240 = vadd.f32 0.0, %v2239
    %v2241 = vpop.f32.mrb[0].mxu0
    %v2242 = vpop.f32.mrb[0].mxu0
    %v2243 = vadd.f32 0.0, %v2242
    %v2244 = vpop.f32.mrb[0].mxu0
    %2245 = vmatprep.mubr.bf16.mxu0 0
    %2246 = vmatmul.mubr.bf16.gmra.mrb[0].mxu0 %v1984
    %v2247 = vpop.f32.mrb[0].mxu0
    %v2248 = vadd.f32 0.0, %v2247
    %v2249 = vpop.f32.mrb[0].mxu0
    %v2250 = vpop.f32.mrb[0].mxu0
    %v2251 = vadd.f32 0.0, %v2250
    %v2252 = vpop.f32.mrb[0].mxu0
    %2253 = vmatprep.mubr.bf16.mxu0 0
    %2254 = vmatmul.mubr.bf16.gmra.mrb[0].mxu0 %v1985
    %v2255 = vpop.f32.mrb[0].mxu0
    %v2256 = vadd.f32 0.0, %v2255
    %v2257 = vpop.f32.mrb[0].mxu0
    %v2258 = vpop.f32.mrb[0].mxu0
    %v2259 = vadd.f32 0.0, %v2258
    %v2260 = vpop.f32.mrb[0].mxu0
    %2261 = vmatprep.mubr.bf16.mxu0 0
    %2262 = vmatmul.mubr.bf16.gmra.mrb[0].mxu0 %v1986
    %v2263 = vpop.f32.mrb[0].mxu0
    %v2264 = vadd.f32 0.0, %v2263
    %v2265 = vpop.f32.mrb[0].mxu0
    %v2266 = vpop.f32.mrb[0].mxu0
    %v2267 = vadd.f32 0.0, %v2266
    %v2268 = vpop.f32.mrb[0].mxu0
    %2269 = vmatprep.mubr.bf16.mxu0 0
    %2270 = vmatmul.mubr.bf16.gmra.mrb[0].mxu0 %v1987
    %v2271 = vpop.f32.mrb[0].mxu0
    %v2272 = vadd.f32 0.0, %v2271
    %v2273 = vpop.f32.mrb[0].mxu0
    %v2274 = vpop.f32.mrb[0].mxu0
    %v2275 = vadd.f32 0.0, %v2274
    %v2276 = vpop.f32.mrb[0].mxu0
    %2277 = vmatprep.mubr.bf16.mxu0 0
    %2278 = vmatmul.mubr.bf16.gmra.mrb[0].mxu0 %v1988
    %v2279 = vpop.f32.mrb[0].mxu0
    %v2280 = vadd.f32 0.0, %v2279
    %v2281 = vpop.f32.mrb[0].mxu0
    %v2282 = vpop.f32.mrb[0].mxu0
    %v2283 = vadd.f32 0.0, %v2282
    %v2284 = vpop.f32.mrb[0].mxu0
    %2285 = vmatprep.mubr.bf16.mxu0 0
    %2286 = vmatmul.mubr.bf16.gmra.mrb[0].mxu0 %v1989
    %v2287 = vpop.f32.mrb[0].mxu0
    %v2288 = vadd.f32 0.0, %v2287
    %v2289 = vpop.f32.mrb[0].mxu0
    %v2290 = vpop.f32.mrb[0].mxu0
    %v2291 = vadd.f32 0.0, %v2290
    %v2292 = vpop.f32.mrb[0].mxu0
    %2293 = vmatprep.mubr.bf16.mxu0 0
    %2294 = vmatmul.mubr.bf16.gmra.mrb[0].mxu0 %v1990
    %v2295 = vpop.f32.mrb[0].mxu0
    %v2296 = vadd.f32 0.0, %v2295
    %v2297 = vpop.f32.mrb[0].mxu0
    %v2298 = vpop.f32.mrb[0].mxu0
    %v2299 = vadd.f32 0.0, %v2298
    %v2300 = vpop.f32.mrb[0].mxu0
    %2301 = vmatprep.mubr.bf16.mxu0 0
    %2302 = vmatmul.mubr.bf16.gmra.mrb[0].mxu0 %v1991
    %v2303 = vpop.f32.mrb[0].mxu0
    %v2304 = vadd.f32 0.0, %v2303
    %v2305 = vpop.f32.mrb[0].mxu0
    %v2306 = vpop.f32.mrb[0].mxu0
    %v2307 = vadd.f32 0.0, %v2306
    %v2308 = vpop.f32.mrb[0].mxu0
    %2309 = vmatprep.mubr.bf16.mxu0 0
    %2310 = vmatmul.mubr.bf16.gmra.mrb[0].mxu0 %v1992
    %v2311 = vpop.f32.mrb[0].mxu0
    %v2312 = vadd.f32 0.0, %v2311
    %v2313 = vpop.f32.mrb[0].mxu0
    %v2314 = vpop.f32.mrb[0].mxu0
    %v2315 = vadd.f32 0.0, %v2314
    %v2316 = vpop.f32.mrb[0].mxu0
    %2317 = vmatprep.mubr.bf16.mxu0 0
    %2318 = vmatmul.mubr.bf16.gmra.mrb[0].mxu0 %v1993
    %v2319 = vpop.f32.mrb[0].mxu0
    %v2320 = vadd.f32 0.0, %v2319
    %v2321 = vpop.f32.mrb[0].mxu0
    %v2322 = vpop.f32.mrb[0].mxu0
    %v2323 = vadd.f32 0.0, %v2322
    %v2324 = vpop.f32.mrb[0].mxu0
    %2325 = vmatprep.mubr.bf16.mxu0 0
    %2326 = vmatmul.mubr.bf16.gmra.mrb[0].mxu0 %v1994
    %v2327 = vpop.f32.mrb[0].mxu0
    %v2328 = vadd.f32 0.0, %v2327
    %v2329 = vpop.f32.mrb[0].mxu0
    %v2330 = vpop.f32.mrb[0].mxu0
    %v2331 = vadd.f32 0.0, %v2330
    %v2332 = vpop.f32.mrb[0].mxu0
    %2333 = vmatprep.mubr.bf16.mxu0 0
    %2334 = vmatmul.mubr.bf16.gmra.mrb[0].mxu0 %v1995
    %v2335 = vpop.f32.mrb[0].mxu0
    %v2336 = vadd.f32 0.0, %v2335
    %v2337 = vpop.f32.mrb[0].mxu0
    %v2338 = vpop.f32.mrb[0].mxu0
    %v2339 = vadd.f32 0.0, %v2338
    %v2340 = vpop.f32.mrb[0].mxu0
    %2341 = vmatprep.mubr.bf16.mxu0 0
    %2342 = vmatmul.mubr.bf16.gmra.mrb[0].mxu0 %v1996
    %v2343 = vpop.f32.mrb[0].mxu0
    %v2344 = vadd.f32 0.0, %v2343
    %v2345 = vpop.f32.mrb[0].mxu0
    %v2346 = vpop.f32.mrb[0].mxu0
    %v2347 = vadd.f32 0.0, %v2346
    %v2348 = vpop.f32.mrb[0].mxu0
    %2349 = vdwg.mxu0
    %v2350 = vld [vmem:[%s8] sm:$0x1]
    %v2351 = vld [vmem:[%s9] sm:$0x1]
    %v2352 = vadd.f32 %v2096, %v2099
    %v2353 = vadd.f32 %v2352, %v2104
    %v2354 = vadd.f32 %v2353, %v2107
    %v2355 = vadd.f32 %v2354, %v2112
    %v2356 = vadd.f32 %v2355, %v2115
    %v2357 = vadd.f32 %v2356, %v2120
    %v2358 = vadd.f32 %v2357, %v2123
    %v2359 = vadd.f32 %v2358, %v2128
    %v2360 = vadd.f32 %v2359, %v2131
    %v2361 = vadd.f32 %v2360, %v2136
    %v2362 = vadd.f32 %v2361, %v2139
    %v2363 = vadd.f32 %v2362, %v2144
    %v2364 = vadd.f32 %v2363, %v2147
    %v2365 = vadd.f32 %v2364, %v2152
    %v2366 = vadd.f32 %v2365, %v2155
    %v2367 = vadd.f32 %v2366, %v2160
    %v2368 = vadd.f32 %v2367, %v2163
    %v2369 = vadd.f32 %v2368, %v2168
    %v2370 = vadd.f32 %v2369, %v2171
    %v2371 = vadd.f32 %v2370, %v2176
    %v2372 = vadd.f32 %v2371, %v2179
    %v2373 = vadd.f32 %v2372, %v2184
    %v2374 = vadd.f32 %v2373, %v2187
    %v2375 = vadd.f32 %v2374, %v2192
    %v2376 = vadd.f32 %v2375, %v2195
    %v2377 = vadd.f32 %v2376, %v2200
    %v2378 = vadd.f32 %v2377, %v2203
    %v2379 = vadd.f32 %v2378, %v2208
    %v2380 = vadd.f32 %v2379, %v2211
    %v2381 = vadd.f32 %v2380, %v2216
    %v2382 = vadd.f32 %v2381, %v2219
    %v2383 = vrot.slane %v2382, 4
    %v2384 = vadd.f32 %v2382, %v2383
    %v2385 = vrot.slane %v2384, 2
    %v2386 = vadd.f32 %v2384, %v2385
    %v2387 = vrot.slane %v2386, 1
    %v2388 = vadd.f32 %v2386, %v2387
    %v2389 = vadd.f32 %v2224, %v2227
    %v2390 = vadd.f32 %v2389, %v2232
    %v2391 = vadd.f32 %v2390, %v2235
    %v2392 = vadd.f32 %v2391, %v2240
    %v2393 = vadd.f32 %v2392, %v2243
    %v2394 = vadd.f32 %v2393, %v2248
    %v2395 = vadd.f32 %v2394, %v2251
    %v2396 = vadd.f32 %v2395, %v2256
    %v2397 = vadd.f32 %v2396, %v2259
    %v2398 = vadd.f32 %v2397, %v2264
    %v2399 = vadd.f32 %v2398, %v2267
    %v2400 = vadd.f32 %v2399, %v2272
    %v2401 = vadd.f32 %v2400, %v2275
    %v2402 = vadd.f32 %v2401, %v2280
    %v2403 = vadd.f32 %v2402, %v2283
    %v2404 = vadd.f32 %v2403, %v2288
    %v2405 = vadd.f32 %v2404, %v2291
    %v2406 = vadd.f32 %v2405, %v2296
    %v2407 = vadd.f32 %v2406, %v2299
    %v2408 = vadd.f32 %v2407, %v2304
    %v2409 = vadd.f32 %v2408, %v2307
    %v2410 = vadd.f32 %v2409, %v2312
    %v2411 = vadd.f32 %v2410, %v2315
    %v2412 = vadd.f32 %v2411, %v2320
    %v2413 = vadd.f32 %v2412, %v2323
    %v2414 = vadd.f32 %v2413, %v2328
    %v2415 = vadd.f32 %v2414, %v2331
    %v2416 = vadd.f32 %v2415, %v2336
    %v2417 = vadd.f32 %v2416, %v2339
    %v2418 = vadd.f32 %v2417, %v2344
    %v2419 = vadd.f32 %v2418, %v2347
    %v2420 = vrot.slane %v2419, 4
    %v2421 = vadd.f32 %v2419, %v2420
    %v2422 = vrot.slane %v2421, 2
    %v2423 = vadd.f32 %v2421, %v2422
    %v2424 = vrot.slane %v2423, 1
    %v2425 = vadd.f32 %v2423, %v2424
    %v2426 = vmul.f32 %v2388, 0.00390625
    %v2427 = vmul.f32 %v2425, 0.00390625
    %v2428 = vmul.f32 %v2096, %v2096
    %v2429 = vmul.f32 %v2099, %v2099
    %v2430 = vmul.f32 %v2104, %v2104
    %v2431 = vmul.f32 %v2107, %v2107
    %v2432 = vmul.f32 %v2112, %v2112
    %v2433 = vmul.f32 %v2115, %v2115
    %v2434 = vmul.f32 %v2120, %v2120
    %v2435 = vmul.f32 %v2123, %v2123
    %v2436 = vmul.f32 %v2128, %v2128
    %v2437 = vmul.f32 %v2131, %v2131
    %v2438 = vmul.f32 %v2136, %v2136
    %v2439 = vmul.f32 %v2139, %v2139
    %v2440 = vmul.f32 %v2144, %v2144
    %v2441 = vmul.f32 %v2147, %v2147
    %v2442 = vmul.f32 %v2152, %v2152
    %v2443 = vmul.f32 %v2155, %v2155
    %v2444 = vmul.f32 %v2160, %v2160
    %v2445 = vmul.f32 %v2163, %v2163
    %v2446 = vmul.f32 %v2168, %v2168
    %v2447 = vmul.f32 %v2171, %v2171
    %v2448 = vmul.f32 %v2176, %v2176
    %v2449 = vmul.f32 %v2179, %v2179
    %v2450 = vmul.f32 %v2184, %v2184
    %v2451 = vmul.f32 %v2187, %v2187
    %v2452 = vmul.f32 %v2192, %v2192
    %v2453 = vmul.f32 %v2195, %v2195
    %v2454 = vmul.f32 %v2200, %v2200
    %v2455 = vmul.f32 %v2203, %v2203
    %v2456 = vmul.f32 %v2208, %v2208
    %v2457 = vmul.f32 %v2211, %v2211
    %v2458 = vmul.f32 %v2216, %v2216
    %v2459 = vmul.f32 %v2219, %v2219
    %v2460 = vmul.f32 %v2224, %v2224
    %v2461 = vmul.f32 %v2227, %v2227
    %v2462 = vmul.f32 %v2232, %v2232
    %v2463 = vmul.f32 %v2235, %v2235
    %v2464 = vmul.f32 %v2240, %v2240
    %v2465 = vmul.f32 %v2243, %v2243
    %v2466 = vmul.f32 %v2248, %v2248
    %v2467 = vmul.f32 %v2251, %v2251
    %v2468 = vmul.f32 %v2256, %v2256
    %v2469 = vmul.f32 %v2259, %v2259
    %v2470 = vmul.f32 %v2264, %v2264
    %v2471 = vmul.f32 %v2267, %v2267
    %v2472 = vmul.f32 %v2272, %v2272
    %v2473 = vmul.f32 %v2275, %v2275
    %v2474 = vmul.f32 %v2280, %v2280
    %v2475 = vmul.f32 %v2283, %v2283
    %v2476 = vmul.f32 %v2288, %v2288
    %v2477 = vmul.f32 %v2291, %v2291
    %v2478 = vmul.f32 %v2296, %v2296
    %v2479 = vmul.f32 %v2299, %v2299
    %v2480 = vmul.f32 %v2304, %v2304
    %v2481 = vmul.f32 %v2307, %v2307
    %v2482 = vmul.f32 %v2312, %v2312
    %v2483 = vmul.f32 %v2315, %v2315
    %v2484 = vmul.f32 %v2320, %v2320
    %v2485 = vmul.f32 %v2323, %v2323
    %v2486 = vmul.f32 %v2328, %v2328
    %v2487 = vmul.f32 %v2331, %v2331
    %v2488 = vmul.f32 %v2336, %v2336
    %v2489 = vmul.f32 %v2339, %v2339
    %v2490 = vmul.f32 %v2344, %v2344
    %v2491 = vmul.f32 %v2347, %v2347
    %v2492 = vadd.f32 %v2428, %v2429
    %v2493 = vadd.f32 %v2492, %v2430
    %v2494 = vadd.f32 %v2493, %v2431
    %v2495 = vadd.f32 %v2494, %v2432
    %v2496 = vadd.f32 %v2495, %v2433
    %v2497 = vadd.f32 %v2496, %v2434
    %v2498 = vadd.f32 %v2497, %v2435
    %v2499 = vadd.f32 %v2498, %v2436
    %v2500 = vadd.f32 %v2499, %v2437
    %v2501 = vadd.f32 %v2500, %v2438
    %v2502 = vadd.f32 %v2501, %v2439
    %v2503 = vadd.f32 %v2502, %v2440
    %v2504 = vadd.f32 %v2503, %v2441
    %v2505 = vadd.f32 %v2504, %v2442
    %v2506 = vadd.f32 %v2505, %v2443
    %v2507 = vadd.f32 %v2506, %v2444
    %v2508 = vadd.f32 %v2507, %v2445
    %v2509 = vadd.f32 %v2508, %v2446
    %v2510 = vadd.f32 %v2509, %v2447
    %v2511 = vadd.f32 %v2510, %v2448
    %v2512 = vadd.f32 %v2511, %v2449
    %v2513 = vadd.f32 %v2512, %v2450
    %v2514 = vadd.f32 %v2513, %v2451
    %v2515 = vadd.f32 %v2514, %v2452
    %v2516 = vadd.f32 %v2515, %v2453
    %v2517 = vadd.f32 %v2516, %v2454
    %v2518 = vadd.f32 %v2517, %v2455
    %v2519 = vadd.f32 %v2518, %v2456
    %v2520 = vadd.f32 %v2519, %v2457
    %v2521 = vadd.f32 %v2520, %v2458
    %v2522 = vadd.f32 %v2521, %v2459
    %v2523 = vrot.slane %v2522, 4
    %v2524 = vadd.f32 %v2522, %v2523
    %v2525 = vrot.slane %v2524, 2
    %v2526 = vadd.f32 %v2524, %v2525
    %v2527 = vrot.slane %v2526, 1
    %v2528 = vadd.f32 %v2526, %v2527
    %v2529 = vadd.f32 %v2460, %v2461
    %v2530 = vadd.f32 %v2529, %v2462
    %v2531 = vadd.f32 %v2530, %v2463
    %v2532 = vadd.f32 %v2531, %v2464
    %v2533 = vadd.f32 %v2532, %v2465
    %v2534 = vadd.f32 %v2533, %v2466
    %v2535 = vadd.f32 %v2534, %v2467
    %v2536 = vadd.f32 %v2535, %v2468
    %v2537 = vadd.f32 %v2536, %v2469
    %v2538 = vadd.f32 %v2537, %v2470
    %v2539 = vadd.f32 %v2538, %v2471
    %v2540 = vadd.f32 %v2539, %v2472
    %v2541 = vadd.f32 %v2540, %v2473
    %v2542 = vadd.f32 %v2541, %v2474
    %v2543 = vadd.f32 %v2542, %v2475
    %v2544 = vadd.f32 %v2543, %v2476
    %v2545 = vadd.f32 %v2544, %v2477
    %v2546 = vadd.f32 %v2545, %v2478
    %v2547 = vadd.f32 %v2546, %v2479
    %v2548 = vadd.f32 %v2547, %v2480
    %v2549 = vadd.f32 %v2548, %v2481
    %v2550 = vadd.f32 %v2549, %v2482
    %v2551 = vadd.f32 %v2550, %v2483
    %v2552 = vadd.f32 %v2551, %v2484
    %v2553 = vadd.f32 %v2552, %v2485
    %v2554 = vadd.f32 %v2553, %v2486
    %v2555 = vadd.f32 %v2554, %v2487
    %v2556 = vadd.f32 %v2555, %v2488
    %v2557 = vadd.f32 %v2556, %v2489
    %v2558 = vadd.f32 %v2557, %v2490
    %v2559 = vadd.f32 %v2558, %v2491
    %v2560 = vrot.slane %v2559, 4
    %v2561 = vadd.f32 %v2559, %v2560
    %v2562 = vrot.slane %v2561, 2
    %v2563 = vadd.f32 %v2561, %v2562
    %v2564 = vrot.slane %v2563, 1
    %v2565 = vadd.f32 %v2563, %v2564
    %v2566 = vmul.f32 %v2528, 0.00390625
    %v2567 = vmul.f32 %v2565, 0.00390625
    %v2568 = vmul.f32 %v2426, %v2426
    %v2569 = vmul.f32 %v2427, %v2427
    %v2570 = vsub.f32 %v2566, %v2568
    %v2571 = vsub.f32 %v2567, %v2569
    %v2572 = vmax.f32 %v2570, 0.0
    %v2573 = vmax.f32 %v2571, 0.0
    %v2574 = vadd.f32 %v2572, 1e-05
    %v2575 = vadd.f32 %v2573, 1e-05
    %v2576 = vrsqrt.pop %v2574
    %v2577 = vrsqrt.pop %v2575
    %v2578 = vmul.f32 %v2576, %v2576
    %v2579 = vmul.f32 %v2577, %v2577
    %v2580 = vmul.f32 %v2572, %v2578
    %v2581 = vmul.f32 %v2573, %v2579
    %v2582 = vadd.f32 %v2580, %v2581
    %v2583 = vmul.f32 %v2582, %v1688
    %v2584 = vadd.f32 %v2583, 1e-05
    %v2585 = vrsqrt.pop %v2584
    %v2586 = vmul.f32 %v2585, %v2350
    %v2587 = vmul.f32 %v2576, %v2586
    %v2588 = vmul.f32 %v2577, %v2586
    %v2589 = vsub.f32 %v2096, %v2426
    %v2590 = vsub.f32 %v2099, %v2426
    %v2591 = vsub.f32 %v2104, %v2426
    %v2592 = vsub.f32 %v2107, %v2426
    %v2593 = vsub.f32 %v2112, %v2426
    %v2594 = vsub.f32 %v2115, %v2426
    %v2595 = vsub.f32 %v2120, %v2426
    %v2596 = vsub.f32 %v2123, %v2426
    %v2597 = vsub.f32 %v2128, %v2426
    %v2598 = vsub.f32 %v2131, %v2426
    %v2599 = vsub.f32 %v2136, %v2426
    %v2600 = vsub.f32 %v2139, %v2426
    %v2601 = vsub.f32 %v2144, %v2426
    %v2602 = vsub.f32 %v2147, %v2426
    %v2603 = vsub.f32 %v2152, %v2426
    %v2604 = vsub.f32 %v2155, %v2426
    %v2605 = vsub.f32 %v2160, %v2426
    %v2606 = vsub.f32 %v2163, %v2426
    %v2607 = vsub.f32 %v2168, %v2426
    %v2608 = vsub.f32 %v2171, %v2426
    %v2609 = vsub.f32 %v2176, %v2426
    %v2610 = vsub.f32 %v2179, %v2426
    %v2611 = vsub.f32 %v2184, %v2426
    %v2612 = vsub.f32 %v2187, %v2426
    %v2613 = vsub.f32 %v2192, %v2426
    %v2614 = vsub.f32 %v2195, %v2426
    %v2615 = vsub.f32 %v2200, %v2426
    %v2616 = vsub.f32 %v2203, %v2426
    %v2617 = vsub.f32 %v2208, %v2426
    %v2618 = vsub.f32 %v2211, %v2426
    %v2619 = vsub.f32 %v2216, %v2426
    %v2620 = vsub.f32 %v2219, %v2426
    %v2621 = vsub.f32 %v2224, %v2427
    %v2622 = vsub.f32 %v2227, %v2427
    %v2623 = vsub.f32 %v2232, %v2427
    %v2624 = vsub.f32 %v2235, %v2427
    %v2625 = vsub.f32 %v2240, %v2427
    %v2626 = vsub.f32 %v2243, %v2427
    %v2627 = vsub.f32 %v2248, %v2427
    %v2628 = vsub.f32 %v2251, %v2427
    %v2629 = vsub.f32 %v2256, %v2427
    %v2630 = vsub.f32 %v2259, %v2427
    %v2631 = vsub.f32 %v2264, %v2427
    %v2632 = vsub.f32 %v2267, %v2427
    %v2633 = vsub.f32 %v2272, %v2427
    %v2634 = vsub.f32 %v2275, %v2427
    %v2635 = vsub.f32 %v2280, %v2427
    %v2636 = vsub.f32 %v2283, %v2427
    %v2637 = vsub.f32 %v2288, %v2427
    %v2638 = vsub.f32 %v2291, %v2427
    %v2639 = vsub.f32 %v2296, %v2427
    %v2640 = vsub.f32 %v2299, %v2427
    %v2641 = vsub.f32 %v2304, %v2427
    %v2642 = vsub.f32 %v2307, %v2427
    %v2643 = vsub.f32 %v2312, %v2427
    %v2644 = vsub.f32 %v2315, %v2427
    %v2645 = vsub.f32 %v2320, %v2427
    %v2646 = vsub.f32 %v2323, %v2427
    %v2647 = vsub.f32 %v2328, %v2427
    %v2648 = vsub.f32 %v2331, %v2427
    %v2649 = vsub.f32 %v2336, %v2427
    %v2650 = vsub.f32 %v2339, %v2427
    %v2651 = vsub.f32 %v2344, %v2427
    %v2652 = vsub.f32 %v2347, %v2427
    %v2653 = vlaneseq
    %v2654 = vshrl.u32 %v2653, 7
    %v2655 = vsub.s32 0, %v2654
    %v2656 = vrot.slane %v2587, %v2655
    %v2657 = vlaneseq
    %v2658 = vshrl.u32 %v2657, 7
    %v2659 = vsub.s32 0, %v2658
    %v2660 = vrot.slane %v2588, %v2659
    %v2661 = vmul.f32 %v2589, %v2656
    %v2662 = vmul.f32 %v2590, %v2656
    %v2663 = vmul.f32 %v2591, %v2656
    %v2664 = vmul.f32 %v2592, %v2656
    %v2665 = vmul.f32 %v2593, %v2656
    %v2666 = vmul.f32 %v2594, %v2656
    %v2667 = vmul.f32 %v2595, %v2656
    %v2668 = vmul.f32 %v2596, %v2656
    %v2669 = vmul.f32 %v2597, %v2656
    %v2670 = vmul.f32 %v2598, %v2656
    %v2671 = vmul.f32 %v2599, %v2656
    %v2672 = vmul.f32 %v2600, %v2656
    %v2673 = vmul.f32 %v2601, %v2656
    %v2674 = vmul.f32 %v2602, %v2656
    %v2675 = vmul.f32 %v2603, %v2656
    %v2676 = vmul.f32 %v2604, %v2656
    %v2677 = vmul.f32 %v2605, %v2656
    %v2678 = vmul.f32 %v2606, %v2656
    %v2679 = vmul.f32 %v2607, %v2656
    %v2680 = vmul.f32 %v2608, %v2656
    %v2681 = vmul.f32 %v2609, %v2656
    %v2682 = vmul.f32 %v2610, %v2656
    %v2683 = vmul.f32 %v2611, %v2656
    %v2684 = vmul.f32 %v2612, %v2656
    %v2685 = vmul.f32 %v2613, %v2656
    %v2686 = vmul.f32 %v2614, %v2656
    %v2687 = vmul.f32 %v2615, %v2656
    %v2688 = vmul.f32 %v2616, %v2656
    %v2689 = vmul.f32 %v2617, %v2656
    %v2690 = vmul.f32 %v2618, %v2656
    %v2691 = vmul.f32 %v2619, %v2656
    %v2692 = vmul.f32 %v2620, %v2656
    %v2693 = vmul.f32 %v2621, %v2660
    %v2694 = vmul.f32 %v2622, %v2660
    %v2695 = vmul.f32 %v2623, %v2660
    %v2696 = vmul.f32 %v2624, %v2660
    %v2697 = vmul.f32 %v2625, %v2660
    %v2698 = vmul.f32 %v2626, %v2660
    %v2699 = vmul.f32 %v2627, %v2660
    %v2700 = vmul.f32 %v2628, %v2660
    %v2701 = vmul.f32 %v2629, %v2660
    %v2702 = vmul.f32 %v2630, %v2660
    %v2703 = vmul.f32 %v2631, %v2660
    %v2704 = vmul.f32 %v2632, %v2660
    %v2705 = vmul.f32 %v2633, %v2660
    %v2706 = vmul.f32 %v2634, %v2660
    %v2707 = vmul.f32 %v2635, %v2660
    %v2708 = vmul.f32 %v2636, %v2660
    %v2709 = vmul.f32 %v2637, %v2660
    %v2710 = vmul.f32 %v2638, %v2660
    %v2711 = vmul.f32 %v2639, %v2660
    %v2712 = vmul.f32 %v2640, %v2660
    %v2713 = vmul.f32 %v2641, %v2660
    %v2714 = vmul.f32 %v2642, %v2660
    %v2715 = vmul.f32 %v2643, %v2660
    %v2716 = vmul.f32 %v2644, %v2660
    %v2717 = vmul.f32 %v2645, %v2660
    %v2718 = vmul.f32 %v2646, %v2660
    %v2719 = vmul.f32 %v2647, %v2660
    %v2720 = vmul.f32 %v2648, %v2660
    %v2721 = vmul.f32 %v2649, %v2660
    %v2722 = vmul.f32 %v2650, %v2660
    %v2723 = vmul.f32 %v2651, %v2660
    %v2724 = vmul.f32 %v2652, %v2660
    %v2726 = vlaneseq
    %v2727 = vshrl.u32 %v2726, 7
    %v2728 = vsub.s32 0, %v2727
    %v2729 = vrot.slane %v2351, %v2728
    %v2731 = vadd.f32 %v2661, %v2729
    %v2732 = vadd.f32 %v2662, %v2729
    %v2733 = vadd.f32 %v2663, %v2729
    %v2734 = vadd.f32 %v2664, %v2729
    %v2735 = vadd.f32 %v2665, %v2729
    %v2736 = vadd.f32 %v2666, %v2729
    %v2737 = vadd.f32 %v2667, %v2729
    %v2738 = vadd.f32 %v2668, %v2729
    %v2739 = vadd.f32 %v2669, %v2729
    %v2740 = vadd.f32 %v2670, %v2729
    %v2741 = vadd.f32 %v2671, %v2729
    %v2742 = vadd.f32 %v2672, %v2729
    %v2743 = vadd.f32 %v2673, %v2729
    %v2744 = vadd.f32 %v2674, %v2729
    %v2745 = vadd.f32 %v2675, %v2729
    %v2746 = vadd.f32 %v2676, %v2729
    %v2747 = vadd.f32 %v2677, %v2729
    %v2748 = vadd.f32 %v2678, %v2729
    %v2749 = vadd.f32 %v2679, %v2729
    %v2750 = vadd.f32 %v2680, %v2729
    %v2751 = vadd.f32 %v2681, %v2729
    %v2752 = vadd.f32 %v2682, %v2729
    %v2753 = vadd.f32 %v2683, %v2729
    %v2754 = vadd.f32 %v2684, %v2729
    %v2755 = vadd.f32 %v2685, %v2729
    %v2756 = vadd.f32 %v2686, %v2729
    %v2757 = vadd.f32 %v2687, %v2729
    %v2758 = vadd.f32 %v2688, %v2729
    %v2759 = vadd.f32 %v2689, %v2729
    %v2760 = vadd.f32 %v2690, %v2729
    %v2761 = vadd.f32 %v2691, %v2729
    %v2762 = vadd.f32 %v2692, %v2729
    %v2763 = vadd.f32 %v2693, %v2729
    %v2764 = vadd.f32 %v2694, %v2729
    %v2765 = vadd.f32 %v2695, %v2729
    %v2766 = vadd.f32 %v2696, %v2729
    %v2767 = vadd.f32 %v2697, %v2729
    %v2768 = vadd.f32 %v2698, %v2729
    %v2769 = vadd.f32 %v2699, %v2729
    %v2770 = vadd.f32 %v2700, %v2729
    %v2771 = vadd.f32 %v2701, %v2729
    %v2772 = vadd.f32 %v2702, %v2729
    %v2773 = vadd.f32 %v2703, %v2729
    %v2774 = vadd.f32 %v2704, %v2729
    %v2775 = vadd.f32 %v2705, %v2729
    %v2776 = vadd.f32 %v2706, %v2729
    %v2777 = vadd.f32 %v2707, %v2729
    %v2778 = vadd.f32 %v2708, %v2729
    %v2779 = vadd.f32 %v2709, %v2729
    %v2780 = vadd.f32 %v2710, %v2729
    %v2781 = vadd.f32 %v2711, %v2729
    %v2782 = vadd.f32 %v2712, %v2729
    %v2783 = vadd.f32 %v2713, %v2729
    %v2784 = vadd.f32 %v2714, %v2729
    %v2785 = vadd.f32 %v2715, %v2729
    %v2786 = vadd.f32 %v2716, %v2729
    %v2787 = vadd.f32 %v2717, %v2729
    %v2788 = vadd.f32 %v2718, %v2729
    %v2789 = vadd.f32 %v2719, %v2729
    %v2790 = vadd.f32 %v2720, %v2729
    %v2791 = vadd.f32 %v2721, %v2729
    %v2792 = vadd.f32 %v2722, %v2729
    %v2793 = vadd.f32 %v2723, %v2729
    %v2794 = vadd.f32 %v2724, %v2729
    %v2795 = vmax.f32 %v2731, 0.0
    %v2796 = vmax.f32 %v2732, 0.0
    %v2797 = vmax.f32 %v2733, 0.0
    %v2798 = vmax.f32 %v2734, 0.0
    %v2799 = vmax.f32 %v2735, 0.0
    %v2800 = vmax.f32 %v2736, 0.0
    %v2801 = vmax.f32 %v2737, 0.0
    %v2802 = vmax.f32 %v2738, 0.0
    %v2803 = vmax.f32 %v2739, 0.0
    %v2804 = vmax.f32 %v2740, 0.0
    %v2805 = vmax.f32 %v2741, 0.0
    %v2806 = vmax.f32 %v2742, 0.0
    %v2807 = vmax.f32 %v2743, 0.0
    %v2808 = vmax.f32 %v2744, 0.0
    %v2809 = vmax.f32 %v2745, 0.0
    %v2810 = vmax.f32 %v2746, 0.0
    %v2811 = vmax.f32 %v2747, 0.0
    %v2812 = vmax.f32 %v2748, 0.0
    %v2813 = vmax.f32 %v2749, 0.0
    %v2814 = vmax.f32 %v2750, 0.0
    %v2815 = vmax.f32 %v2751, 0.0
    %v2816 = vmax.f32 %v2752, 0.0
    %v2817 = vmax.f32 %v2753, 0.0
    %v2818 = vmax.f32 %v2754, 0.0
    %v2819 = vmax.f32 %v2755, 0.0
    %v2820 = vmax.f32 %v2756, 0.0
    %v2821 = vmax.f32 %v2757, 0.0
    %v2822 = vmax.f32 %v2758, 0.0
    %v2823 = vmax.f32 %v2759, 0.0
    %v2824 = vmax.f32 %v2760, 0.0
    %v2825 = vmax.f32 %v2761, 0.0
    %v2826 = vmax.f32 %v2762, 0.0
    %v2827 = vmax.f32 %v2763, 0.0
    %v2828 = vmax.f32 %v2764, 0.0
    %v2829 = vmax.f32 %v2765, 0.0
    %v2830 = vmax.f32 %v2766, 0.0
    %v2831 = vmax.f32 %v2767, 0.0
    %v2832 = vmax.f32 %v2768, 0.0
    %v2833 = vmax.f32 %v2769, 0.0
    %v2834 = vmax.f32 %v2770, 0.0
    %v2835 = vmax.f32 %v2771, 0.0
    %v2836 = vmax.f32 %v2772, 0.0
    %v2837 = vmax.f32 %v2773, 0.0
    %v2838 = vmax.f32 %v2774, 0.0
    %v2839 = vmax.f32 %v2775, 0.0
    %v2840 = vmax.f32 %v2776, 0.0
    %v2841 = vmax.f32 %v2777, 0.0
    %v2842 = vmax.f32 %v2778, 0.0
    %v2843 = vmax.f32 %v2779, 0.0
    %v2844 = vmax.f32 %v2780, 0.0
    %v2845 = vmax.f32 %v2781, 0.0
    %v2846 = vmax.f32 %v2782, 0.0
    %v2847 = vmax.f32 %v2783, 0.0
    %v2848 = vmax.f32 %v2784, 0.0
    %v2849 = vmax.f32 %v2785, 0.0
    %v2850 = vmax.f32 %v2786, 0.0
    %v2851 = vmax.f32 %v2787, 0.0
    %v2852 = vmax.f32 %v2788, 0.0
    %v2853 = vmax.f32 %v2789, 0.0
    %v2854 = vmax.f32 %v2790, 0.0
    %v2855 = vmax.f32 %v2791, 0.0
    %v2856 = vmax.f32 %v2792, 0.0
    %v2857 = vmax.f32 %v2793, 0.0
    %v2858 = vmax.f32 %v2794, 0.0
    %v2859 = vpack.c.bf16 %v2796, %v2795
    %v2860 = vpack.c.bf16 %v2798, %v2797
    %v2861 = vpack.c.bf16 %v2800, %v2799
    %v2862 = vpack.c.bf16 %v2802, %v2801
    %v2863 = vpack.c.bf16 %v2804, %v2803
    %v2864 = vpack.c.bf16 %v2806, %v2805
    %v2865 = vpack.c.bf16 %v2808, %v2807
    %v2866 = vpack.c.bf16 %v2810, %v2809
    %v2867 = vpack.c.bf16 %v2812, %v2811
    %v2868 = vpack.c.bf16 %v2814, %v2813
    %v2869 = vpack.c.bf16 %v2816, %v2815
    %v2870 = vpack.c.bf16 %v2818, %v2817
    %v2871 = vpack.c.bf16 %v2820, %v2819
    %v2872 = vpack.c.bf16 %v2822, %v2821
    %v2873 = vpack.c.bf16 %v2824, %v2823
    %v2874 = vpack.c.bf16 %v2826, %v2825
    %v2875 = vpack.c.bf16 %v2828, %v2827
    %v2876 = vpack.c.bf16 %v2830, %v2829
    %v2877 = vpack.c.bf16 %v2832, %v2831
    %v2878 = vpack.c.bf16 %v2834, %v2833
    %v2879 = vpack.c.bf16 %v2836, %v2835
    %v2880 = vpack.c.bf16 %v2838, %v2837
    %v2881 = vpack.c.bf16 %v2840, %v2839
    %v2882 = vpack.c.bf16 %v2842, %v2841
    %v2883 = vpack.c.bf16 %v2844, %v2843
    %v2884 = vpack.c.bf16 %v2846, %v2845
    %v2885 = vpack.c.bf16 %v2848, %v2847
    %v2886 = vpack.c.bf16 %v2850, %v2849
    %v2887 = vpack.c.bf16 %v2852, %v2851
    %v2888 = vpack.c.bf16 %v2854, %v2853
    %v2889 = vpack.c.bf16 %v2856, %v2855
    %v2890 = vpack.c.bf16 %v2858, %v2857
    %v2891 = vadd.bf16 %v2859, %v1070
    %v2892 = vadd.bf16 %v2860, %v1071
    %v2893 = vadd.bf16 %v2861, %v1072
    %v2894 = vadd.bf16 %v2862, %v1073
    %v2895 = vadd.bf16 %v2863, %v1074
    %v2896 = vadd.bf16 %v2864, %v1075
    %v2897 = vadd.bf16 %v2865, %v1076
    %v2898 = vadd.bf16 %v2866, %v1077
    %v2899 = vadd.bf16 %v2867, %v1078
    %v2900 = vadd.bf16 %v2868, %v1079
    %v2901 = vadd.bf16 %v2869, %v1080
    %v2902 = vadd.bf16 %v2870, %v1081
    %v2903 = vadd.bf16 %v2871, %v1082
    %v2904 = vadd.bf16 %v2872, %v1083
    %v2905 = vadd.bf16 %v2873, %v1084
    %v2906 = vadd.bf16 %v2874, %v1085
    %v2907 = vadd.bf16 %v2875, %v1086
    %v2908 = vadd.bf16 %v2876, %v1087
    %v2909 = vadd.bf16 %v2877, %v1088
    %v2910 = vadd.bf16 %v2878, %v1089
    %v2911 = vadd.bf16 %v2879, %v1090
    %v2912 = vadd.bf16 %v2880, %v1091
    %v2913 = vadd.bf16 %v2881, %v1092
    %v2914 = vadd.bf16 %v2882, %v1093
    %v2915 = vadd.bf16 %v2883, %v1094
    %v2916 = vadd.bf16 %v2884, %v1095
    %v2917 = vadd.bf16 %v2885, %v1096
    %v2918 = vadd.bf16 %v2886, %v1097
    %v2919 = vadd.bf16 %v2887, %v1098
    %v2920 = vadd.bf16 %v2888, %v1099
    %v2921 = vadd.bf16 %v2889, %v1100
    %v2922 = vadd.bf16 %v2890, %v1101
    %s2923 = scalar_lea.vmem %s4, 64
    %v2924 = vld [vmem:[%s2923] sm:$0xf]
    %v2925 = vld [vmem:[%s2923 + $0x4] sm:$0xf]
    %v2926 = vld [vmem:[%s2923 + $0x8] sm:$0xf]
    %v2927 = vld [vmem:[%s2923 + $0xc] sm:$0xf]
    %v2928 = vld [vmem:[%s2923 + $0x10] sm:$0xf]
    %v2929 = vld [vmem:[%s2923 + $0x14] sm:$0xf]
    %v2930 = vld [vmem:[%s2923 + $0x18] sm:$0xf]
    %v2931 = vld [vmem:[%s2923 + $0x1c] sm:$0xf]
    %v2932 = vld [vmem:[%s2923 + $0x20] sm:$0xf]
    %v2933 = vld [vmem:[%s2923 + $0x24] sm:$0xf]
    %v2934 = vld [vmem:[%s2923 + $0x28] sm:$0xf]
    %v2935 = vld [vmem:[%s2923 + $0x2c] sm:$0xf]
    %v2936 = vld [vmem:[%s2923 + $0x30] sm:$0xf]
    %v2937 = vld [vmem:[%s2923 + $0x34] sm:$0xf]
    %v2938 = vld [vmem:[%s2923 + $0x38] sm:$0xf]
    %v2939 = vld [vmem:[%s2923 + $0x3c] sm:$0xf]
    %v2956 = vunpack.c.l.b16 %v2924
    %v2957 = vunpack.c.l.b16 %v2925
    %v2958 = vunpack.c.l.b16 %v2926
    %v2959 = vunpack.c.l.b16 %v2927
    %v2960 = vunpack.c.l.b16 %v2928
    %v2961 = vunpack.c.l.b16 %v2929
    %v2962 = vunpack.c.l.b16 %v2930
    %v2963 = vunpack.c.l.b16 %v2931
    %v2964 = vunpack.c.l.b16 %v2932
    %v2965 = vunpack.c.l.b16 %v2933
    %v2966 = vunpack.c.l.b16 %v2934
    %v2967 = vunpack.c.l.b16 %v2935
    %v2968 = vunpack.c.l.b16 %v2936
    %v2969 = vunpack.c.l.b16 %v2937
    %v2970 = vunpack.c.l.b16 %v2938
    %v2971 = vunpack.c.l.b16 %v2939
    %v2972 = vpack.c.b16 %v2957, %v2956
    %v2973 = vpack.c.b16 %v2959, %v2958
    %v2974 = vpack.c.b16 %v2961, %v2960
    %v2975 = vpack.c.b16 %v2963, %v2962
    %v2976 = vpack.c.b16 %v2965, %v2964
    %v2977 = vpack.c.b16 %v2967, %v2966
    %v2978 = vpack.c.b16 %v2969, %v2968
    %v2979 = vpack.c.b16 %v2971, %v2970
    %2988 = vmatprep.subr.bf16.mxu0 0
    %2989 = vmatpush1.bf16.msra.mxu0 %v2972
    %2990 = vmatprep.subr.bf16.mxu0 0
    %2991 = vmatpush1.bf16.msra.mxu0 %v2973
    %2992 = vmatprep.subr.bf16.mxu0 0
    %2993 = vmatpush1.bf16.msra.mxu0 %v2974
    %2994 = vmatprep.subr.bf16.mxu0 0
    %2995 = vmatpush1.bf16.msra.mxu0 %v2975
    %2996 = vmatprep.subr.bf16.mxu0 0
    %2997 = vmatpush1.bf16.msra.mxu0 %v2976
    %2998 = vmatprep.subr.bf16.mxu0 0
    %2999 = vmatpush1.bf16.msra.mxu0 %v2977
    %3000 = vmatprep.subr.bf16.mxu0 0
    %3001 = vmatpush1.bf16.msra.mxu0 %v2978
    %3002 = vmatprep.subr.bf16.mxu0 0
    %3003 = vmatpush1.bf16.msra.mxu0 %v2979
    %3004 = vmatprep.subr.bf16.mxu0 0
    %3005 = vmatpush1.bf16.msra.mxu0 0
    %3006 = vmatprep.subr.bf16.mxu0 0
    %3007 = vmatpush1.bf16.msra.mxu0 0
    %3008 = vmatprep.subr.bf16.mxu0 0
    %3009 = vmatpush1.bf16.msra.mxu0 0
    %3010 = vmatprep.subr.bf16.mxu0 0
    %3011 = vmatpush1.bf16.msra.mxu0 0
    %3012 = vmatprep.subr.bf16.mxu0 0
    %3013 = vmatpush1.bf16.msra.mxu0 0
    %3014 = vmatprep.subr.bf16.mxu0 0
    %3015 = vmatpush1.bf16.msra.mxu0 0
    %3016 = vmatprep.subr.bf16.mxu0 0
    %3017 = vmatpush1.bf16.msra.mxu0 0
    %3018 = vmatprep.subr.bf16.mxu0 0
    %3019 = vmatpush1.bf16.msra.mxu0 0
    %3020 = vmatprep.mubr.bf16.mxu0 0
    %3021 = vmatmul.mubr.bf16.gmra.mrb[0].mxu0 %v2891
    %v3022 = vpop.f32.mrb[0].mxu0
    %v3023 = vadd.f32 0.0, %v3022
    %v3024 = vpop.f32.mrb[0].mxu0
    %v3025 = vpop.f32.mrb[0].mxu0
    %v3026 = vadd.f32 0.0, %v3025
    %v3027 = vpop.f32.mrb[0].mxu0
    %3028 = vmatprep.mubr.bf16.mxu0 0
    %3029 = vmatmul.mubr.bf16.gmra.mrb[0].mxu0 %v2892
    %v3030 = vpop.f32.mrb[0].mxu0
    %v3031 = vadd.f32 0.0, %v3030
    %v3032 = vpop.f32.mrb[0].mxu0
    %v3033 = vpop.f32.mrb[0].mxu0
    %v3034 = vadd.f32 0.0, %v3033
    %v3035 = vpop.f32.mrb[0].mxu0
    %3036 = vmatprep.mubr.bf16.mxu0 0
    %3037 = vmatmul.mubr.bf16.gmra.mrb[0].mxu0 %v2893
    %v3038 = vpop.f32.mrb[0].mxu0
    %v3039 = vadd.f32 0.0, %v3038
    %v3040 = vpop.f32.mrb[0].mxu0
    %v3041 = vpop.f32.mrb[0].mxu0
    %v3042 = vadd.f32 0.0, %v3041
    %v3043 = vpop.f32.mrb[0].mxu0
    %3044 = vmatprep.mubr.bf16.mxu0 0
    %3045 = vmatmul.mubr.bf16.gmra.mrb[0].mxu0 %v2894
    %v3046 = vpop.f32.mrb[0].mxu0
    %v3047 = vadd.f32 0.0, %v3046
    %v3048 = vpop.f32.mrb[0].mxu0
    %v3049 = vpop.f32.mrb[0].mxu0
    %v3050 = vadd.f32 0.0, %v3049
    %v3051 = vpop.f32.mrb[0].mxu0
    %3052 = vmatprep.mubr.bf16.mxu0 0
    %3053 = vmatmul.mubr.bf16.gmra.mrb[0].mxu0 %v2895
    %v3054 = vpop.f32.mrb[0].mxu0
    %v3055 = vadd.f32 0.0, %v3054
    %v3056 = vpop.f32.mrb[0].mxu0
    %v3057 = vpop.f32.mrb[0].mxu0
    %v3058 = vadd.f32 0.0, %v3057
    %v3059 = vpop.f32.mrb[0].mxu0
    %3060 = vmatprep.mubr.bf16.mxu0 0
    %3061 = vmatmul.mubr.bf16.gmra.mrb[0].mxu0 %v2896
    %v3062 = vpop.f32.mrb[0].mxu0
    %v3063 = vadd.f32 0.0, %v3062
    %v3064 = vpop.f32.mrb[0].mxu0
    %v3065 = vpop.f32.mrb[0].mxu0
    %v3066 = vadd.f32 0.0, %v3065
    %v3067 = vpop.f32.mrb[0].mxu0
    %3068 = vmatprep.mubr.bf16.mxu0 0
    %3069 = vmatmul.mubr.bf16.gmra.mrb[0].mxu0 %v2897
    %v3070 = vpop.f32.mrb[0].mxu0
    %v3071 = vadd.f32 0.0, %v3070
    %v3072 = vpop.f32.mrb[0].mxu0
    %v3073 = vpop.f32.mrb[0].mxu0
    %v3074 = vadd.f32 0.0, %v3073
    %v3075 = vpop.f32.mrb[0].mxu0
    %3076 = vmatprep.mubr.bf16.mxu0 0
    %3077 = vmatmul.mubr.bf16.gmra.mrb[0].mxu0 %v2898
    %v3078 = vpop.f32.mrb[0].mxu0
    %v3079 = vadd.f32 0.0, %v3078
    %v3080 = vpop.f32.mrb[0].mxu0
    %v3081 = vpop.f32.mrb[0].mxu0
    %v3082 = vadd.f32 0.0, %v3081
    %v3083 = vpop.f32.mrb[0].mxu0
    %3084 = vmatprep.mubr.bf16.mxu0 0
    %3085 = vmatmul.mubr.bf16.gmra.mrb[0].mxu0 %v2899
    %v3086 = vpop.f32.mrb[0].mxu0
    %v3087 = vadd.f32 0.0, %v3086
    %v3088 = vpop.f32.mrb[0].mxu0
    %v3089 = vpop.f32.mrb[0].mxu0
    %v3090 = vadd.f32 0.0, %v3089
    %v3091 = vpop.f32.mrb[0].mxu0
    %3092 = vmatprep.mubr.bf16.mxu0 0
    %3093 = vmatmul.mubr.bf16.gmra.mrb[0].mxu0 %v2900
    %v3094 = vpop.f32.mrb[0].mxu0
    %v3095 = vadd.f32 0.0, %v3094
    %v3096 = vpop.f32.mrb[0].mxu0
    %v3097 = vpop.f32.mrb[0].mxu0
    %v3098 = vadd.f32 0.0, %v3097
    %v3099 = vpop.f32.mrb[0].mxu0
    %3100 = vmatprep.mubr.bf16.mxu0 0
    %3101 = vmatmul.mubr.bf16.gmra.mrb[0].mxu0 %v2901
    %v3102 = vpop.f32.mrb[0].mxu0
    %v3103 = vadd.f32 0.0, %v3102
    %v3104 = vpop.f32.mrb[0].mxu0
    %v3105 = vpop.f32.mrb[0].mxu0
    %v3106 = vadd.f32 0.0, %v3105
    %v3107 = vpop.f32.mrb[0].mxu0
    %3108 = vmatprep.mubr.bf16.mxu0 0
    %3109 = vmatmul.mubr.bf16.gmra.mrb[0].mxu0 %v2902
    %v3110 = vpop.f32.mrb[0].mxu0
    %v3111 = vadd.f32 0.0, %v3110
    %v3112 = vpop.f32.mrb[0].mxu0
    %v3113 = vpop.f32.mrb[0].mxu0
    %v3114 = vadd.f32 0.0, %v3113
    %v3115 = vpop.f32.mrb[0].mxu0
    %3116 = vmatprep.mubr.bf16.mxu0 0
    %3117 = vmatmul.mubr.bf16.gmra.mrb[0].mxu0 %v2903
    %v3118 = vpop.f32.mrb[0].mxu0
    %v3119 = vadd.f32 0.0, %v3118
    %v3120 = vpop.f32.mrb[0].mxu0
    %v3121 = vpop.f32.mrb[0].mxu0
    %v3122 = vadd.f32 0.0, %v3121
    %v3123 = vpop.f32.mrb[0].mxu0
    %3124 = vmatprep.mubr.bf16.mxu0 0
    %3125 = vmatmul.mubr.bf16.gmra.mrb[0].mxu0 %v2904
    %v3126 = vpop.f32.mrb[0].mxu0
    %v3127 = vadd.f32 0.0, %v3126
    %v3128 = vpop.f32.mrb[0].mxu0
    %v3129 = vpop.f32.mrb[0].mxu0
    %v3130 = vadd.f32 0.0, %v3129
    %v3131 = vpop.f32.mrb[0].mxu0
    %3132 = vmatprep.mubr.bf16.mxu0 0
    %3133 = vmatmul.mubr.bf16.gmra.mrb[0].mxu0 %v2905
    %v3134 = vpop.f32.mrb[0].mxu0
    %v3135 = vadd.f32 0.0, %v3134
    %v3136 = vpop.f32.mrb[0].mxu0
    %v3137 = vpop.f32.mrb[0].mxu0
    %v3138 = vadd.f32 0.0, %v3137
    %v3139 = vpop.f32.mrb[0].mxu0
    %3140 = vmatprep.mubr.bf16.mxu0 0
    %3141 = vmatmul.mubr.bf16.gmra.mrb[0].mxu0 %v2906
    %v3142 = vpop.f32.mrb[0].mxu0
    %v3143 = vadd.f32 0.0, %v3142
    %v3144 = vpop.f32.mrb[0].mxu0
    %v3145 = vpop.f32.mrb[0].mxu0
    %v3146 = vadd.f32 0.0, %v3145
    %v3147 = vpop.f32.mrb[0].mxu0
    %3148 = vmatprep.mubr.bf16.mxu0 0
    %3149 = vmatmul.mubr.bf16.gmra.mrb[0].mxu0 %v2907
    %v3150 = vpop.f32.mrb[0].mxu0
    %v3151 = vadd.f32 0.0, %v3150
    %v3152 = vpop.f32.mrb[0].mxu0
    %v3153 = vpop.f32.mrb[0].mxu0
    %v3154 = vadd.f32 0.0, %v3153
    %v3155 = vpop.f32.mrb[0].mxu0
    %3156 = vmatprep.mubr.bf16.mxu0 0
    %3157 = vmatmul.mubr.bf16.gmra.mrb[0].mxu0 %v2908
    %v3158 = vpop.f32.mrb[0].mxu0
    %v3159 = vadd.f32 0.0, %v3158
    %v3160 = vpop.f32.mrb[0].mxu0
    %v3161 = vpop.f32.mrb[0].mxu0
    %v3162 = vadd.f32 0.0, %v3161
    %v3163 = vpop.f32.mrb[0].mxu0
    %3164 = vmatprep.mubr.bf16.mxu0 0
    %3165 = vmatmul.mubr.bf16.gmra.mrb[0].mxu0 %v2909
    %v3166 = vpop.f32.mrb[0].mxu0
    %v3167 = vadd.f32 0.0, %v3166
    %v3168 = vpop.f32.mrb[0].mxu0
    %v3169 = vpop.f32.mrb[0].mxu0
    %v3170 = vadd.f32 0.0, %v3169
    %v3171 = vpop.f32.mrb[0].mxu0
    %3172 = vmatprep.mubr.bf16.mxu0 0
    %3173 = vmatmul.mubr.bf16.gmra.mrb[0].mxu0 %v2910
    %v3174 = vpop.f32.mrb[0].mxu0
    %v3175 = vadd.f32 0.0, %v3174
    %v3176 = vpop.f32.mrb[0].mxu0
    %v3177 = vpop.f32.mrb[0].mxu0
    %v3178 = vadd.f32 0.0, %v3177
    %v3179 = vpop.f32.mrb[0].mxu0
    %3180 = vmatprep.mubr.bf16.mxu0 0
    %3181 = vmatmul.mubr.bf16.gmra.mrb[0].mxu0 %v2911
    %v3182 = vpop.f32.mrb[0].mxu0
    %v3183 = vadd.f32 0.0, %v3182
    %v3184 = vpop.f32.mrb[0].mxu0
    %v3185 = vpop.f32.mrb[0].mxu0
    %v3186 = vadd.f32 0.0, %v3185
    %v3187 = vpop.f32.mrb[0].mxu0
    %3188 = vmatprep.mubr.bf16.mxu0 0
    %3189 = vmatmul.mubr.bf16.gmra.mrb[0].mxu0 %v2912
    %v3190 = vpop.f32.mrb[0].mxu0
    %v3191 = vadd.f32 0.0, %v3190
    %v3192 = vpop.f32.mrb[0].mxu0
    %v3193 = vpop.f32.mrb[0].mxu0
    %v3194 = vadd.f32 0.0, %v3193
    %v3195 = vpop.f32.mrb[0].mxu0
    %3196 = vmatprep.mubr.bf16.mxu0 0
    %3197 = vmatmul.mubr.bf16.gmra.mrb[0].mxu0 %v2913
    %v3198 = vpop.f32.mrb[0].mxu0
    %v3199 = vadd.f32 0.0, %v3198
    %v3200 = vpop.f32.mrb[0].mxu0
    %v3201 = vpop.f32.mrb[0].mxu0
    %v3202 = vadd.f32 0.0, %v3201
    %v3203 = vpop.f32.mrb[0].mxu0
    %3204 = vmatprep.mubr.bf16.mxu0 0
    %3205 = vmatmul.mubr.bf16.gmra.mrb[0].mxu0 %v2914
    %v3206 = vpop.f32.mrb[0].mxu0
    %v3207 = vadd.f32 0.0, %v3206
    %v3208 = vpop.f32.mrb[0].mxu0
    %v3209 = vpop.f32.mrb[0].mxu0
    %v3210 = vadd.f32 0.0, %v3209
    %v3211 = vpop.f32.mrb[0].mxu0
    %3212 = vmatprep.mubr.bf16.mxu0 0
    %3213 = vmatmul.mubr.bf16.gmra.mrb[0].mxu0 %v2915
    %v3214 = vpop.f32.mrb[0].mxu0
    %v3215 = vadd.f32 0.0, %v3214
    %v3216 = vpop.f32.mrb[0].mxu0
    %v3217 = vpop.f32.mrb[0].mxu0
    %v3218 = vadd.f32 0.0, %v3217
    %v3219 = vpop.f32.mrb[0].mxu0
    %3220 = vmatprep.mubr.bf16.mxu0 0
    %3221 = vmatmul.mubr.bf16.gmra.mrb[0].mxu0 %v2916
    %v3222 = vpop.f32.mrb[0].mxu0
    %v3223 = vadd.f32 0.0, %v3222
    %v3224 = vpop.f32.mrb[0].mxu0
    %v3225 = vpop.f32.mrb[0].mxu0
    %v3226 = vadd.f32 0.0, %v3225
    %v3227 = vpop.f32.mrb[0].mxu0
    %3228 = vmatprep.mubr.bf16.mxu0 0
    %3229 = vmatmul.mubr.bf16.gmra.mrb[0].mxu0 %v2917
    %v3230 = vpop.f32.mrb[0].mxu0
    %v3231 = vadd.f32 0.0, %v3230
    %v3232 = vpop.f32.mrb[0].mxu0
    %v3233 = vpop.f32.mrb[0].mxu0
    %v3234 = vadd.f32 0.0, %v3233
    %v3235 = vpop.f32.mrb[0].mxu0
    %3236 = vmatprep.mubr.bf16.mxu0 0
    %3237 = vmatmul.mubr.bf16.gmra.mrb[0].mxu0 %v2918
    %v3238 = vpop.f32.mrb[0].mxu0
    %v3239 = vadd.f32 0.0, %v3238
    %v3240 = vpop.f32.mrb[0].mxu0
    %v3241 = vpop.f32.mrb[0].mxu0
    %v3242 = vadd.f32 0.0, %v3241
    %v3243 = vpop.f32.mrb[0].mxu0
    %3244 = vmatprep.mubr.bf16.mxu0 0
    %3245 = vmatmul.mubr.bf16.gmra.mrb[0].mxu0 %v2919
    %v3246 = vpop.f32.mrb[0].mxu0
    %v3247 = vadd.f32 0.0, %v3246
    %v3248 = vpop.f32.mrb[0].mxu0
    %v3249 = vpop.f32.mrb[0].mxu0
    %v3250 = vadd.f32 0.0, %v3249
    %v3251 = vpop.f32.mrb[0].mxu0
    %3252 = vmatprep.mubr.bf16.mxu0 0
    %3253 = vmatmul.mubr.bf16.gmra.mrb[0].mxu0 %v2920
    %v3254 = vpop.f32.mrb[0].mxu0
    %v3255 = vadd.f32 0.0, %v3254
    %v3256 = vpop.f32.mrb[0].mxu0
    %v3257 = vpop.f32.mrb[0].mxu0
    %v3258 = vadd.f32 0.0, %v3257
    %v3259 = vpop.f32.mrb[0].mxu0
    %3260 = vmatprep.mubr.bf16.mxu0 0
    %3261 = vmatmul.mubr.bf16.gmra.mrb[0].mxu0 %v2921
    %v3262 = vpop.f32.mrb[0].mxu0
    %v3263 = vadd.f32 0.0, %v3262
    %v3264 = vpop.f32.mrb[0].mxu0
    %v3265 = vpop.f32.mrb[0].mxu0
    %v3266 = vadd.f32 0.0, %v3265
    %v3267 = vpop.f32.mrb[0].mxu0
    %3268 = vmatprep.mubr.bf16.mxu0 0
    %3269 = vmatmul.mubr.bf16.gmra.mrb[0].mxu0 %v2922
    %v3270 = vpop.f32.mrb[0].mxu0
    %v3271 = vadd.f32 0.0, %v3270
    %v3272 = vpop.f32.mrb[0].mxu0
    %v3273 = vpop.f32.mrb[0].mxu0
    %v3274 = vadd.f32 0.0, %v3273
    %v3275 = vpop.f32.mrb[0].mxu0
    %3276 = vdwg.mxu0
    %s3277 = scalar_lea.vmem %s5, 1
    %v3278 = vld [vmem:[%s3277] sm:$0x1]
    %s3279 = scalar_lea.vmem %s6, 1
    %v3280 = vld [vmem:[%s3279] sm:$0x1]
    %v3281 = vadd.f32 %v3023, %v3026
    %v3282 = vadd.f32 %v3281, %v3031
    %v3283 = vadd.f32 %v3282, %v3034
    %v3284 = vadd.f32 %v3283, %v3039
    %v3285 = vadd.f32 %v3284, %v3042
    %v3286 = vadd.f32 %v3285, %v3047
    %v3287 = vadd.f32 %v3286, %v3050
    %v3288 = vadd.f32 %v3287, %v3055
    %v3289 = vadd.f32 %v3288, %v3058
    %v3290 = vadd.f32 %v3289, %v3063
    %v3291 = vadd.f32 %v3290, %v3066
    %v3292 = vadd.f32 %v3291, %v3071
    %v3293 = vadd.f32 %v3292, %v3074
    %v3294 = vadd.f32 %v3293, %v3079
    %v3295 = vadd.f32 %v3294, %v3082
    %v3296 = vadd.f32 %v3295, %v3087
    %v3297 = vadd.f32 %v3296, %v3090
    %v3298 = vadd.f32 %v3297, %v3095
    %v3299 = vadd.f32 %v3298, %v3098
    %v3300 = vadd.f32 %v3299, %v3103
    %v3301 = vadd.f32 %v3300, %v3106
    %v3302 = vadd.f32 %v3301, %v3111
    %v3303 = vadd.f32 %v3302, %v3114
    %v3304 = vadd.f32 %v3303, %v3119
    %v3305 = vadd.f32 %v3304, %v3122
    %v3306 = vadd.f32 %v3305, %v3127
    %v3307 = vadd.f32 %v3306, %v3130
    %v3308 = vadd.f32 %v3307, %v3135
    %v3309 = vadd.f32 %v3308, %v3138
    %v3310 = vadd.f32 %v3309, %v3143
    %v3311 = vadd.f32 %v3310, %v3146
    %v3312 = vrot.slane %v3311, 4
    %v3313 = vadd.f32 %v3311, %v3312
    %v3314 = vrot.slane %v3313, 2
    %v3315 = vadd.f32 %v3313, %v3314
    %v3316 = vrot.slane %v3315, 1
    %v3317 = vadd.f32 %v3315, %v3316
    %v3318 = vadd.f32 %v3151, %v3154
    %v3319 = vadd.f32 %v3318, %v3159
    %v3320 = vadd.f32 %v3319, %v3162
    %v3321 = vadd.f32 %v3320, %v3167
    %v3322 = vadd.f32 %v3321, %v3170
    %v3323 = vadd.f32 %v3322, %v3175
    %v3324 = vadd.f32 %v3323, %v3178
    %v3325 = vadd.f32 %v3324, %v3183
    %v3326 = vadd.f32 %v3325, %v3186
    %v3327 = vadd.f32 %v3326, %v3191
    %v3328 = vadd.f32 %v3327, %v3194
    %v3329 = vadd.f32 %v3328, %v3199
    %v3330 = vadd.f32 %v3329, %v3202
    %v3331 = vadd.f32 %v3330, %v3207
    %v3332 = vadd.f32 %v3331, %v3210
    %v3333 = vadd.f32 %v3332, %v3215
    %v3334 = vadd.f32 %v3333, %v3218
    %v3335 = vadd.f32 %v3334, %v3223
    %v3336 = vadd.f32 %v3335, %v3226
    %v3337 = vadd.f32 %v3336, %v3231
    %v3338 = vadd.f32 %v3337, %v3234
    %v3339 = vadd.f32 %v3338, %v3239
    %v3340 = vadd.f32 %v3339, %v3242
    %v3341 = vadd.f32 %v3340, %v3247
    %v3342 = vadd.f32 %v3341, %v3250
    %v3343 = vadd.f32 %v3342, %v3255
    %v3344 = vadd.f32 %v3343, %v3258
    %v3345 = vadd.f32 %v3344, %v3263
    %v3346 = vadd.f32 %v3345, %v3266
    %v3347 = vadd.f32 %v3346, %v3271
    %v3348 = vadd.f32 %v3347, %v3274
    %v3349 = vrot.slane %v3348, 4
    %v3350 = vadd.f32 %v3348, %v3349
    %v3351 = vrot.slane %v3350, 2
    %v3352 = vadd.f32 %v3350, %v3351
    %v3353 = vrot.slane %v3352, 1
    %v3354 = vadd.f32 %v3352, %v3353
    %v3355 = vmul.f32 %v3317, 0.00390625
    %v3356 = vmul.f32 %v3354, 0.00390625
    %v3357 = vmul.f32 %v3023, %v3023
    %v3358 = vmul.f32 %v3026, %v3026
    %v3359 = vmul.f32 %v3031, %v3031
    %v3360 = vmul.f32 %v3034, %v3034
    %v3361 = vmul.f32 %v3039, %v3039
    %v3362 = vmul.f32 %v3042, %v3042
    %v3363 = vmul.f32 %v3047, %v3047
    %v3364 = vmul.f32 %v3050, %v3050
    %v3365 = vmul.f32 %v3055, %v3055
    %v3366 = vmul.f32 %v3058, %v3058
    %v3367 = vmul.f32 %v3063, %v3063
    %v3368 = vmul.f32 %v3066, %v3066
    %v3369 = vmul.f32 %v3071, %v3071
    %v3370 = vmul.f32 %v3074, %v3074
    %v3371 = vmul.f32 %v3079, %v3079
    %v3372 = vmul.f32 %v3082, %v3082
    %v3373 = vmul.f32 %v3087, %v3087
    %v3374 = vmul.f32 %v3090, %v3090
    %v3375 = vmul.f32 %v3095, %v3095
    %v3376 = vmul.f32 %v3098, %v3098
    %v3377 = vmul.f32 %v3103, %v3103
    %v3378 = vmul.f32 %v3106, %v3106
    %v3379 = vmul.f32 %v3111, %v3111
    %v3380 = vmul.f32 %v3114, %v3114
    %v3381 = vmul.f32 %v3119, %v3119
    %v3382 = vmul.f32 %v3122, %v3122
    %v3383 = vmul.f32 %v3127, %v3127
    %v3384 = vmul.f32 %v3130, %v3130
    %v3385 = vmul.f32 %v3135, %v3135
    %v3386 = vmul.f32 %v3138, %v3138
    %v3387 = vmul.f32 %v3143, %v3143
    %v3388 = vmul.f32 %v3146, %v3146
    %v3389 = vmul.f32 %v3151, %v3151
    %v3390 = vmul.f32 %v3154, %v3154
    %v3391 = vmul.f32 %v3159, %v3159
    %v3392 = vmul.f32 %v3162, %v3162
    %v3393 = vmul.f32 %v3167, %v3167
    %v3394 = vmul.f32 %v3170, %v3170
    %v3395 = vmul.f32 %v3175, %v3175
    %v3396 = vmul.f32 %v3178, %v3178
    %v3397 = vmul.f32 %v3183, %v3183
    %v3398 = vmul.f32 %v3186, %v3186
    %v3399 = vmul.f32 %v3191, %v3191
    %v3400 = vmul.f32 %v3194, %v3194
    %v3401 = vmul.f32 %v3199, %v3199
    %v3402 = vmul.f32 %v3202, %v3202
    %v3403 = vmul.f32 %v3207, %v3207
    %v3404 = vmul.f32 %v3210, %v3210
    %v3405 = vmul.f32 %v3215, %v3215
    %v3406 = vmul.f32 %v3218, %v3218
    %v3407 = vmul.f32 %v3223, %v3223
    %v3408 = vmul.f32 %v3226, %v3226
    %v3409 = vmul.f32 %v3231, %v3231
    %v3410 = vmul.f32 %v3234, %v3234
    %v3411 = vmul.f32 %v3239, %v3239
    %v3412 = vmul.f32 %v3242, %v3242
    %v3413 = vmul.f32 %v3247, %v3247
    %v3414 = vmul.f32 %v3250, %v3250
    %v3415 = vmul.f32 %v3255, %v3255
    %v3416 = vmul.f32 %v3258, %v3258
    %v3417 = vmul.f32 %v3263, %v3263
    %v3418 = vmul.f32 %v3266, %v3266
    %v3419 = vmul.f32 %v3271, %v3271
    %v3420 = vmul.f32 %v3274, %v3274
    %v3421 = vadd.f32 %v3357, %v3358
    %v3422 = vadd.f32 %v3421, %v3359
    %v3423 = vadd.f32 %v3422, %v3360
    %v3424 = vadd.f32 %v3423, %v3361
    %v3425 = vadd.f32 %v3424, %v3362
    %v3426 = vadd.f32 %v3425, %v3363
    %v3427 = vadd.f32 %v3426, %v3364
    %v3428 = vadd.f32 %v3427, %v3365
    %v3429 = vadd.f32 %v3428, %v3366
    %v3430 = vadd.f32 %v3429, %v3367
    %v3431 = vadd.f32 %v3430, %v3368
    %v3432 = vadd.f32 %v3431, %v3369
    %v3433 = vadd.f32 %v3432, %v3370
    %v3434 = vadd.f32 %v3433, %v3371
    %v3435 = vadd.f32 %v3434, %v3372
    %v3436 = vadd.f32 %v3435, %v3373
    %v3437 = vadd.f32 %v3436, %v3374
    %v3438 = vadd.f32 %v3437, %v3375
    %v3439 = vadd.f32 %v3438, %v3376
    %v3440 = vadd.f32 %v3439, %v3377
    %v3441 = vadd.f32 %v3440, %v3378
    %v3442 = vadd.f32 %v3441, %v3379
    %v3443 = vadd.f32 %v3442, %v3380
    %v3444 = vadd.f32 %v3443, %v3381
    %v3445 = vadd.f32 %v3444, %v3382
    %v3446 = vadd.f32 %v3445, %v3383
    %v3447 = vadd.f32 %v3446, %v3384
    %v3448 = vadd.f32 %v3447, %v3385
    %v3449 = vadd.f32 %v3448, %v3386
    %v3450 = vadd.f32 %v3449, %v3387
    %v3451 = vadd.f32 %v3450, %v3388
    %v3452 = vrot.slane %v3451, 4
    %v3453 = vadd.f32 %v3451, %v3452
    %v3454 = vrot.slane %v3453, 2
    %v3455 = vadd.f32 %v3453, %v3454
    %v3456 = vrot.slane %v3455, 1
    %v3457 = vadd.f32 %v3455, %v3456
    %v3458 = vadd.f32 %v3389, %v3390
    %v3459 = vadd.f32 %v3458, %v3391
    %v3460 = vadd.f32 %v3459, %v3392
    %v3461 = vadd.f32 %v3460, %v3393
    %v3462 = vadd.f32 %v3461, %v3394
    %v3463 = vadd.f32 %v3462, %v3395
    %v3464 = vadd.f32 %v3463, %v3396
    %v3465 = vadd.f32 %v3464, %v3397
    %v3466 = vadd.f32 %v3465, %v3398
    %v3467 = vadd.f32 %v3466, %v3399
    %v3468 = vadd.f32 %v3467, %v3400
    %v3469 = vadd.f32 %v3468, %v3401
    %v3470 = vadd.f32 %v3469, %v3402
    %v3471 = vadd.f32 %v3470, %v3403
    %v3472 = vadd.f32 %v3471, %v3404
    %v3473 = vadd.f32 %v3472, %v3405
    %v3474 = vadd.f32 %v3473, %v3406
    %v3475 = vadd.f32 %v3474, %v3407
    %v3476 = vadd.f32 %v3475, %v3408
    %v3477 = vadd.f32 %v3476, %v3409
    %v3478 = vadd.f32 %v3477, %v3410
    %v3479 = vadd.f32 %v3478, %v3411
    %v3480 = vadd.f32 %v3479, %v3412
    %v3481 = vadd.f32 %v3480, %v3413
    %v3482 = vadd.f32 %v3481, %v3414
    %v3483 = vadd.f32 %v3482, %v3415
    %v3484 = vadd.f32 %v3483, %v3416
    %v3485 = vadd.f32 %v3484, %v3417
    %v3486 = vadd.f32 %v3485, %v3418
    %v3487 = vadd.f32 %v3486, %v3419
    %v3488 = vadd.f32 %v3487, %v3420
    %v3489 = vrot.slane %v3488, 4
    %v3490 = vadd.f32 %v3488, %v3489
    %v3491 = vrot.slane %v3490, 2
    %v3492 = vadd.f32 %v3490, %v3491
    %v3493 = vrot.slane %v3492, 1
    %v3494 = vadd.f32 %v3492, %v3493
    %v3495 = vmul.f32 %v3457, 0.00390625
    %v3496 = vmul.f32 %v3494, 0.00390625
    %v3497 = vmul.f32 %v3355, %v3355
    %v3498 = vmul.f32 %v3356, %v3356
    %v3499 = vsub.f32 %v3495, %v3497
    %v3500 = vsub.f32 %v3496, %v3498
    %v3501 = vmax.f32 %v3499, 0.0
    %v3502 = vmax.f32 %v3500, 0.0
    %v3503 = vadd.f32 %v3501, 1e-05
    %v3504 = vadd.f32 %v3502, 1e-05
    %v3505 = vrsqrt.pop %v3503
    %v3506 = vrsqrt.pop %v3504
    %v3507 = vmul.f32 %v3505, %v3505
    %v3508 = vmul.f32 %v3506, %v3506
    %v3509 = vmul.f32 %v3501, %v3507
    %v3510 = vmul.f32 %v3502, %v3508
    %v3511 = vadd.f32 %v3509, %v3510
    %v3512 = vmul.f32 %v3511, %v1688
    %v3513 = vadd.f32 %v3512, 1e-05
    %v3514 = vrsqrt.pop %v3513
    %v3515 = vmul.f32 %v3514, %v3278
    %v3516 = vmul.f32 %v3505, %v3515
    %v3517 = vmul.f32 %v3506, %v3515
    %v3518 = vsub.f32 %v3023, %v3355
    %v3519 = vsub.f32 %v3026, %v3355
    %v3520 = vsub.f32 %v3031, %v3355
    %v3521 = vsub.f32 %v3034, %v3355
    %v3522 = vsub.f32 %v3039, %v3355
    %v3523 = vsub.f32 %v3042, %v3355
    %v3524 = vsub.f32 %v3047, %v3355
    %v3525 = vsub.f32 %v3050, %v3355
    %v3526 = vsub.f32 %v3055, %v3355
    %v3527 = vsub.f32 %v3058, %v3355
    %v3528 = vsub.f32 %v3063, %v3355
    %v3529 = vsub.f32 %v3066, %v3355
    %v3530 = vsub.f32 %v3071, %v3355
    %v3531 = vsub.f32 %v3074, %v3355
    %v3532 = vsub.f32 %v3079, %v3355
    %v3533 = vsub.f32 %v3082, %v3355
    %v3534 = vsub.f32 %v3087, %v3355
    %v3535 = vsub.f32 %v3090, %v3355
    %v3536 = vsub.f32 %v3095, %v3355
    %v3537 = vsub.f32 %v3098, %v3355
    %v3538 = vsub.f32 %v3103, %v3355
    %v3539 = vsub.f32 %v3106, %v3355
    %v3540 = vsub.f32 %v3111, %v3355
    %v3541 = vsub.f32 %v3114, %v3355
    %v3542 = vsub.f32 %v3119, %v3355
    %v3543 = vsub.f32 %v3122, %v3355
    %v3544 = vsub.f32 %v3127, %v3355
    %v3545 = vsub.f32 %v3130, %v3355
    %v3546 = vsub.f32 %v3135, %v3355
    %v3547 = vsub.f32 %v3138, %v3355
    %v3548 = vsub.f32 %v3143, %v3355
    %v3549 = vsub.f32 %v3146, %v3355
    %v3550 = vsub.f32 %v3151, %v3356
    %v3551 = vsub.f32 %v3154, %v3356
    %v3552 = vsub.f32 %v3159, %v3356
    %v3553 = vsub.f32 %v3162, %v3356
    %v3554 = vsub.f32 %v3167, %v3356
    %v3555 = vsub.f32 %v3170, %v3356
    %v3556 = vsub.f32 %v3175, %v3356
    %v3557 = vsub.f32 %v3178, %v3356
    %v3558 = vsub.f32 %v3183, %v3356
    %v3559 = vsub.f32 %v3186, %v3356
    %v3560 = vsub.f32 %v3191, %v3356
    %v3561 = vsub.f32 %v3194, %v3356
    %v3562 = vsub.f32 %v3199, %v3356
    %v3563 = vsub.f32 %v3202, %v3356
    %v3564 = vsub.f32 %v3207, %v3356
    %v3565 = vsub.f32 %v3210, %v3356
    %v3566 = vsub.f32 %v3215, %v3356
    %v3567 = vsub.f32 %v3218, %v3356
    %v3568 = vsub.f32 %v3223, %v3356
    %v3569 = vsub.f32 %v3226, %v3356
    %v3570 = vsub.f32 %v3231, %v3356
    %v3571 = vsub.f32 %v3234, %v3356
    %v3572 = vsub.f32 %v3239, %v3356
    %v3573 = vsub.f32 %v3242, %v3356
    %v3574 = vsub.f32 %v3247, %v3356
    %v3575 = vsub.f32 %v3250, %v3356
    %v3576 = vsub.f32 %v3255, %v3356
    %v3577 = vsub.f32 %v3258, %v3356
    %v3578 = vsub.f32 %v3263, %v3356
    %v3579 = vsub.f32 %v3266, %v3356
    %v3580 = vsub.f32 %v3271, %v3356
    %v3581 = vsub.f32 %v3274, %v3356
    %v3582 = vlaneseq
    %v3583 = vshrl.u32 %v3582, 7
    %v3584 = vsub.s32 0, %v3583
    %v3585 = vrot.slane %v3516, %v3584
    %v3586 = vlaneseq
    %v3587 = vshrl.u32 %v3586, 7
    %v3588 = vsub.s32 0, %v3587
    %v3589 = vrot.slane %v3517, %v3588
    %v3590 = vmul.f32 %v3518, %v3585
    %v3591 = vmul.f32 %v3519, %v3585
    %v3592 = vmul.f32 %v3520, %v3585
    %v3593 = vmul.f32 %v3521, %v3585
    %v3594 = vmul.f32 %v3522, %v3585
    %v3595 = vmul.f32 %v3523, %v3585
    %v3596 = vmul.f32 %v3524, %v3585
    %v3597 = vmul.f32 %v3525, %v3585
    %v3598 = vmul.f32 %v3526, %v3585
    %v3599 = vmul.f32 %v3527, %v3585
    %v3600 = vmul.f32 %v3528, %v3585
    %v3601 = vmul.f32 %v3529, %v3585
    %v3602 = vmul.f32 %v3530, %v3585
    %v3603 = vmul.f32 %v3531, %v3585
    %v3604 = vmul.f32 %v3532, %v3585
    %v3605 = vmul.f32 %v3533, %v3585
    %v3606 = vmul.f32 %v3534, %v3585
    %v3607 = vmul.f32 %v3535, %v3585
    %v3608 = vmul.f32 %v3536, %v3585
    %v3609 = vmul.f32 %v3537, %v3585
    %v3610 = vmul.f32 %v3538, %v3585
    %v3611 = vmul.f32 %v3539, %v3585
    %v3612 = vmul.f32 %v3540, %v3585
    %v3613 = vmul.f32 %v3541, %v3585
    %v3614 = vmul.f32 %v3542, %v3585
    %v3615 = vmul.f32 %v3543, %v3585
    %v3616 = vmul.f32 %v3544, %v3585
    %v3617 = vmul.f32 %v3545, %v3585
    %v3618 = vmul.f32 %v3546, %v3585
    %v3619 = vmul.f32 %v3547, %v3585
    %v3620 = vmul.f32 %v3548, %v3585
    %v3621 = vmul.f32 %v3549, %v3585
    %v3622 = vmul.f32 %v3550, %v3589
    %v3623 = vmul.f32 %v3551, %v3589
    %v3624 = vmul.f32 %v3552, %v3589
    %v3625 = vmul.f32 %v3553, %v3589
    %v3626 = vmul.f32 %v3554, %v3589
    %v3627 = vmul.f32 %v3555, %v3589
    %v3628 = vmul.f32 %v3556, %v3589
    %v3629 = vmul.f32 %v3557, %v3589
    %v3630 = vmul.f32 %v3558, %v3589
    %v3631 = vmul.f32 %v3559, %v3589
    %v3632 = vmul.f32 %v3560, %v3589
    %v3633 = vmul.f32 %v3561, %v3589
    %v3634 = vmul.f32 %v3562, %v3589
    %v3635 = vmul.f32 %v3563, %v3589
    %v3636 = vmul.f32 %v3564, %v3589
    %v3637 = vmul.f32 %v3565, %v3589
    %v3638 = vmul.f32 %v3566, %v3589
    %v3639 = vmul.f32 %v3567, %v3589
    %v3640 = vmul.f32 %v3568, %v3589
    %v3641 = vmul.f32 %v3569, %v3589
    %v3642 = vmul.f32 %v3570, %v3589
    %v3643 = vmul.f32 %v3571, %v3589
    %v3644 = vmul.f32 %v3572, %v3589
    %v3645 = vmul.f32 %v3573, %v3589
    %v3646 = vmul.f32 %v3574, %v3589
    %v3647 = vmul.f32 %v3575, %v3589
    %v3648 = vmul.f32 %v3576, %v3589
    %v3649 = vmul.f32 %v3577, %v3589
    %v3650 = vmul.f32 %v3578, %v3589
    %v3651 = vmul.f32 %v3579, %v3589
    %v3652 = vmul.f32 %v3580, %v3589
    %v3653 = vmul.f32 %v3581, %v3589
    %v3655 = vlaneseq
    %v3656 = vshrl.u32 %v3655, 7
    %v3657 = vsub.s32 0, %v3656
    %v3658 = vrot.slane %v3280, %v3657
    %v3660 = vadd.f32 %v3590, %v3658
    %v3661 = vadd.f32 %v3591, %v3658
    %v3662 = vadd.f32 %v3592, %v3658
    %v3663 = vadd.f32 %v3593, %v3658
    %v3664 = vadd.f32 %v3594, %v3658
    %v3665 = vadd.f32 %v3595, %v3658
    %v3666 = vadd.f32 %v3596, %v3658
    %v3667 = vadd.f32 %v3597, %v3658
    %v3668 = vadd.f32 %v3598, %v3658
    %v3669 = vadd.f32 %v3599, %v3658
    %v3670 = vadd.f32 %v3600, %v3658
    %v3671 = vadd.f32 %v3601, %v3658
    %v3672 = vadd.f32 %v3602, %v3658
    %v3673 = vadd.f32 %v3603, %v3658
    %v3674 = vadd.f32 %v3604, %v3658
    %v3675 = vadd.f32 %v3605, %v3658
    %v3676 = vadd.f32 %v3606, %v3658
    %v3677 = vadd.f32 %v3607, %v3658
    %v3678 = vadd.f32 %v3608, %v3658
    %v3679 = vadd.f32 %v3609, %v3658
    %v3680 = vadd.f32 %v3610, %v3658
    %v3681 = vadd.f32 %v3611, %v3658
    %v3682 = vadd.f32 %v3612, %v3658
    %v3683 = vadd.f32 %v3613, %v3658
    %v3684 = vadd.f32 %v3614, %v3658
    %v3685 = vadd.f32 %v3615, %v3658
    %v3686 = vadd.f32 %v3616, %v3658
    %v3687 = vadd.f32 %v3617, %v3658
    %v3688 = vadd.f32 %v3618, %v3658
    %v3689 = vadd.f32 %v3619, %v3658
    %v3690 = vadd.f32 %v3620, %v3658
    %v3691 = vadd.f32 %v3621, %v3658
    %v3692 = vadd.f32 %v3622, %v3658
    %v3693 = vadd.f32 %v3623, %v3658
    %v3694 = vadd.f32 %v3624, %v3658
    %v3695 = vadd.f32 %v3625, %v3658
    %v3696 = vadd.f32 %v3626, %v3658
    %v3697 = vadd.f32 %v3627, %v3658
    %v3698 = vadd.f32 %v3628, %v3658
    %v3699 = vadd.f32 %v3629, %v3658
    %v3700 = vadd.f32 %v3630, %v3658
    %v3701 = vadd.f32 %v3631, %v3658
    %v3702 = vadd.f32 %v3632, %v3658
    %v3703 = vadd.f32 %v3633, %v3658
    %v3704 = vadd.f32 %v3634, %v3658
    %v3705 = vadd.f32 %v3635, %v3658
    %v3706 = vadd.f32 %v3636, %v3658
    %v3707 = vadd.f32 %v3637, %v3658
    %v3708 = vadd.f32 %v3638, %v3658
    %v3709 = vadd.f32 %v3639, %v3658
    %v3710 = vadd.f32 %v3640, %v3658
    %v3711 = vadd.f32 %v3641, %v3658
    %v3712 = vadd.f32 %v3642, %v3658
    %v3713 = vadd.f32 %v3643, %v3658
    %v3714 = vadd.f32 %v3644, %v3658
    %v3715 = vadd.f32 %v3645, %v3658
    %v3716 = vadd.f32 %v3646, %v3658
    %v3717 = vadd.f32 %v3647, %v3658
    %v3718 = vadd.f32 %v3648, %v3658
    %v3719 = vadd.f32 %v3649, %v3658
    %v3720 = vadd.f32 %v3650, %v3658
    %v3721 = vadd.f32 %v3651, %v3658
    %v3722 = vadd.f32 %v3652, %v3658
    %v3723 = vadd.f32 %v3653, %v3658
    %v3724 = vmax.f32 %v3660, 0.0
    %v3725 = vmax.f32 %v3661, 0.0
    %v3726 = vmax.f32 %v3662, 0.0
    %v3727 = vmax.f32 %v3663, 0.0
    %v3728 = vmax.f32 %v3664, 0.0
    %v3729 = vmax.f32 %v3665, 0.0
    %v3730 = vmax.f32 %v3666, 0.0
    %v3731 = vmax.f32 %v3667, 0.0
    %v3732 = vmax.f32 %v3668, 0.0
    %v3733 = vmax.f32 %v3669, 0.0
    %v3734 = vmax.f32 %v3670, 0.0
    %v3735 = vmax.f32 %v3671, 0.0
    %v3736 = vmax.f32 %v3672, 0.0
    %v3737 = vmax.f32 %v3673, 0.0
    %v3738 = vmax.f32 %v3674, 0.0
    %v3739 = vmax.f32 %v3675, 0.0
    %v3740 = vmax.f32 %v3676, 0.0
    %v3741 = vmax.f32 %v3677, 0.0
    %v3742 = vmax.f32 %v3678, 0.0
    %v3743 = vmax.f32 %v3679, 0.0
    %v3744 = vmax.f32 %v3680, 0.0
    %v3745 = vmax.f32 %v3681, 0.0
    %v3746 = vmax.f32 %v3682, 0.0
    %v3747 = vmax.f32 %v3683, 0.0
    %v3748 = vmax.f32 %v3684, 0.0
    %v3749 = vmax.f32 %v3685, 0.0
    %v3750 = vmax.f32 %v3686, 0.0
    %v3751 = vmax.f32 %v3687, 0.0
    %v3752 = vmax.f32 %v3688, 0.0
    %v3753 = vmax.f32 %v3689, 0.0
    %v3754 = vmax.f32 %v3690, 0.0
    %v3755 = vmax.f32 %v3691, 0.0
    %v3756 = vmax.f32 %v3692, 0.0
    %v3757 = vmax.f32 %v3693, 0.0
    %v3758 = vmax.f32 %v3694, 0.0
    %v3759 = vmax.f32 %v3695, 0.0
    %v3760 = vmax.f32 %v3696, 0.0
    %v3761 = vmax.f32 %v3697, 0.0
    %v3762 = vmax.f32 %v3698, 0.0
    %v3763 = vmax.f32 %v3699, 0.0
    %v3764 = vmax.f32 %v3700, 0.0
    %v3765 = vmax.f32 %v3701, 0.0
    %v3766 = vmax.f32 %v3702, 0.0
    %v3767 = vmax.f32 %v3703, 0.0
    %v3768 = vmax.f32 %v3704, 0.0
    %v3769 = vmax.f32 %v3705, 0.0
    %v3770 = vmax.f32 %v3706, 0.0
    %v3771 = vmax.f32 %v3707, 0.0
    %v3772 = vmax.f32 %v3708, 0.0
    %v3773 = vmax.f32 %v3709, 0.0
    %v3774 = vmax.f32 %v3710, 0.0
    %v3775 = vmax.f32 %v3711, 0.0
    %v3776 = vmax.f32 %v3712, 0.0
    %v3777 = vmax.f32 %v3713, 0.0
    %v3778 = vmax.f32 %v3714, 0.0
    %v3779 = vmax.f32 %v3715, 0.0
    %v3780 = vmax.f32 %v3716, 0.0
    %v3781 = vmax.f32 %v3717, 0.0
    %v3782 = vmax.f32 %v3718, 0.0
    %v3783 = vmax.f32 %v3719, 0.0
    %v3784 = vmax.f32 %v3720, 0.0
    %v3785 = vmax.f32 %v3721, 0.0
    %v3786 = vmax.f32 %v3722, 0.0
    %v3787 = vmax.f32 %v3723, 0.0
    %v3788 = vpack.c.bf16 %v3725, %v3724
    %v3789 = vpack.c.bf16 %v3727, %v3726
    %v3790 = vpack.c.bf16 %v3729, %v3728
    %v3791 = vpack.c.bf16 %v3731, %v3730
    %v3792 = vpack.c.bf16 %v3733, %v3732
    %v3793 = vpack.c.bf16 %v3735, %v3734
    %v3794 = vpack.c.bf16 %v3737, %v3736
    %v3795 = vpack.c.bf16 %v3739, %v3738
    %v3796 = vpack.c.bf16 %v3741, %v3740
    %v3797 = vpack.c.bf16 %v3743, %v3742
    %v3798 = vpack.c.bf16 %v3745, %v3744
    %v3799 = vpack.c.bf16 %v3747, %v3746
    %v3800 = vpack.c.bf16 %v3749, %v3748
    %v3801 = vpack.c.bf16 %v3751, %v3750
    %v3802 = vpack.c.bf16 %v3753, %v3752
    %v3803 = vpack.c.bf16 %v3755, %v3754
    %v3804 = vpack.c.bf16 %v3757, %v3756
    %v3805 = vpack.c.bf16 %v3759, %v3758
    %v3806 = vpack.c.bf16 %v3761, %v3760
    %v3807 = vpack.c.bf16 %v3763, %v3762
    %v3808 = vpack.c.bf16 %v3765, %v3764
    %v3809 = vpack.c.bf16 %v3767, %v3766
    %v3810 = vpack.c.bf16 %v3769, %v3768
    %v3811 = vpack.c.bf16 %v3771, %v3770
    %v3812 = vpack.c.bf16 %v3773, %v3772
    %v3813 = vpack.c.bf16 %v3775, %v3774
    %v3814 = vpack.c.bf16 %v3777, %v3776
    %v3815 = vpack.c.bf16 %v3779, %v3778
    %v3816 = vpack.c.bf16 %v3781, %v3780
    %v3817 = vpack.c.bf16 %v3783, %v3782
    %v3818 = vpack.c.bf16 %v3785, %v3784
    %v3819 = vpack.c.bf16 %v3787, %v3786
    %s3820 = scalar_lea.vmem [#allocation6], 64
    %v3821 = vld [vmem:[%s3820] sm:$0xf]
    %v3822 = vld [vmem:[%s3820 + $0x4] sm:$0xf]
    %v3823 = vld [vmem:[%s3820 + $0x8] sm:$0xf]
    %v3824 = vld [vmem:[%s3820 + $0xc] sm:$0xf]
    %v3825 = vld [vmem:[%s3820 + $0x10] sm:$0xf]
    %v3826 = vld [vmem:[%s3820 + $0x14] sm:$0xf]
    %v3827 = vld [vmem:[%s3820 + $0x18] sm:$0xf]
    %v3828 = vld [vmem:[%s3820 + $0x1c] sm:$0xf]
    %v3829 = vld [vmem:[%s3820 + $0x20] sm:$0xf]
    %v3830 = vld [vmem:[%s3820 + $0x24] sm:$0xf]
    %v3831 = vld [vmem:[%s3820 + $0x28] sm:$0xf]
    %v3832 = vld [vmem:[%s3820 + $0x2c] sm:$0xf]
    %v3833 = vld [vmem:[%s3820 + $0x30] sm:$0xf]
    %v3834 = vld [vmem:[%s3820 + $0x34] sm:$0xf]
    %v3835 = vld [vmem:[%s3820 + $0x38] sm:$0xf]
    %v3836 = vld [vmem:[%s3820 + $0x3c] sm:$0xf]
    %v3853 = vunpack.c.l.b16 %v3821
    %v3854 = vunpack.c.l.b16 %v3822
    %v3855 = vunpack.c.l.b16 %v3823
    %v3856 = vunpack.c.l.b16 %v3824
    %v3857 = vunpack.c.l.b16 %v3825
    %v3858 = vunpack.c.l.b16 %v3826
    %v3859 = vunpack.c.l.b16 %v3827
    %v3860 = vunpack.c.l.b16 %v3828
    %v3861 = vunpack.c.l.b16 %v3829
    %v3862 = vunpack.c.l.b16 %v3830
    %v3863 = vunpack.c.l.b16 %v3831
    %v3864 = vunpack.c.l.b16 %v3832
    %v3865 = vunpack.c.l.b16 %v3833
    %v3866 = vunpack.c.l.b16 %v3834
    %v3867 = vunpack.c.l.b16 %v3835
    %v3868 = vunpack.c.l.b16 %v3836
    %v3869 = vpack.c.b16 %v3854, %v3853
    %v3870 = vpack.c.b16 %v3856, %v3855
    %v3871 = vpack.c.b16 %v3858, %v3857
    %v3872 = vpack.c.b16 %v3860, %v3859
    %v3873 = vpack.c.b16 %v3862, %v3861
    %v3874 = vpack.c.b16 %v3864, %v3863
    %v3875 = vpack.c.b16 %v3866, %v3865
    %v3876 = vpack.c.b16 %v3868, %v3867
    %3885 = vmatprep.subr.bf16.mxu0 0
    %3886 = vmatpush1.bf16.msra.mxu0 %v3869
    %3887 = vmatprep.subr.bf16.mxu0 0
    %3888 = vmatpush1.bf16.msra.mxu0 %v3870
    %3889 = vmatprep.subr.bf16.mxu0 0
    %3890 = vmatpush1.bf16.msra.mxu0 %v3871
    %3891 = vmatprep.subr.bf16.mxu0 0
    %3892 = vmatpush1.bf16.msra.mxu0 %v3872
    %3893 = vmatprep.subr.bf16.mxu0 0
    %3894 = vmatpush1.bf16.msra.mxu0 %v3873
    %3895 = vmatprep.subr.bf16.mxu0 0
    %3896 = vmatpush1.bf16.msra.mxu0 %v3874
    %3897 = vmatprep.subr.bf16.mxu0 0
    %3898 = vmatpush1.bf16.msra.mxu0 %v3875
    %3899 = vmatprep.subr.bf16.mxu0 0
    %3900 = vmatpush1.bf16.msra.mxu0 %v3876
    %3901 = vmatprep.subr.bf16.mxu0 0
    %3902 = vmatpush1.bf16.msra.mxu0 0
    %3903 = vmatprep.subr.bf16.mxu0 0
    %3904 = vmatpush1.bf16.msra.mxu0 0
    %3905 = vmatprep.subr.bf16.mxu0 0
    %3906 = vmatpush1.bf16.msra.mxu0 0
    %3907 = vmatprep.subr.bf16.mxu0 0
    %3908 = vmatpush1.bf16.msra.mxu0 0
    %3909 = vmatprep.subr.bf16.mxu0 0
    %3910 = vmatpush1.bf16.msra.mxu0 0
    %3911 = vmatprep.subr.bf16.mxu0 0
    %3912 = vmatpush1.bf16.msra.mxu0 0
    %3913 = vmatprep.subr.bf16.mxu0 0
    %3914 = vmatpush1.bf16.msra.mxu0 0
    %3915 = vmatprep.subr.bf16.mxu0 0
    %3916 = vmatpush1.bf16.msra.mxu0 0
    %3917 = vmatprep.mubr.bf16.mxu0 0
    %3918 = vmatmul.mubr.bf16.gmra.mrb[0].mxu0 %v3788
    %v3919 = vpop.f32.mrb[0].mxu0
    %v3920 = vadd.f32 0.0, %v3919
    %v3921 = vpop.f32.mrb[0].mxu0
    %v3922 = vpop.f32.mrb[0].mxu0
    %v3923 = vadd.f32 0.0, %v3922
    %v3924 = vpop.f32.mrb[0].mxu0
    %3925 = vmatprep.mubr.bf16.mxu0 0
    %3926 = vmatmul.mubr.bf16.gmra.mrb[0].mxu0 %v3789
    %v3927 = vpop.f32.mrb[0].mxu0
    %v3928 = vadd.f32 0.0, %v3927
    %v3929 = vpop.f32.mrb[0].mxu0
    %v3930 = vpop.f32.mrb[0].mxu0
    %v3931 = vadd.f32 0.0, %v3930
    %v3932 = vpop.f32.mrb[0].mxu0
    %3933 = vmatprep.mubr.bf16.mxu0 0
    %3934 = vmatmul.mubr.bf16.gmra.mrb[0].mxu0 %v3790
    %v3935 = vpop.f32.mrb[0].mxu0
    %v3936 = vadd.f32 0.0, %v3935
    %v3937 = vpop.f32.mrb[0].mxu0
    %v3938 = vpop.f32.mrb[0].mxu0
    %v3939 = vadd.f32 0.0, %v3938
    %v3940 = vpop.f32.mrb[0].mxu0
    %3941 = vmatprep.mubr.bf16.mxu0 0
    %3942 = vmatmul.mubr.bf16.gmra.mrb[0].mxu0 %v3791
    %v3943 = vpop.f32.mrb[0].mxu0
    %v3944 = vadd.f32 0.0, %v3943
    %v3945 = vpop.f32.mrb[0].mxu0
    %v3946 = vpop.f32.mrb[0].mxu0
    %v3947 = vadd.f32 0.0, %v3946
    %v3948 = vpop.f32.mrb[0].mxu0
    %3949 = vmatprep.mubr.bf16.mxu0 0
    %3950 = vmatmul.mubr.bf16.gmra.mrb[0].mxu0 %v3792
    %v3951 = vpop.f32.mrb[0].mxu0
    %v3952 = vadd.f32 0.0, %v3951
    %v3953 = vpop.f32.mrb[0].mxu0
    %v3954 = vpop.f32.mrb[0].mxu0
    %v3955 = vadd.f32 0.0, %v3954
    %v3956 = vpop.f32.mrb[0].mxu0
    %3957 = vmatprep.mubr.bf16.mxu0 0
    %3958 = vmatmul.mubr.bf16.gmra.mrb[0].mxu0 %v3793
    %v3959 = vpop.f32.mrb[0].mxu0
    %v3960 = vadd.f32 0.0, %v3959
    %v3961 = vpop.f32.mrb[0].mxu0
    %v3962 = vpop.f32.mrb[0].mxu0
    %v3963 = vadd.f32 0.0, %v3962
    %v3964 = vpop.f32.mrb[0].mxu0
    %3965 = vmatprep.mubr.bf16.mxu0 0
    %3966 = vmatmul.mubr.bf16.gmra.mrb[0].mxu0 %v3794
    %v3967 = vpop.f32.mrb[0].mxu0
    %v3968 = vadd.f32 0.0, %v3967
    %v3969 = vpop.f32.mrb[0].mxu0
    %v3970 = vpop.f32.mrb[0].mxu0
    %v3971 = vadd.f32 0.0, %v3970
    %v3972 = vpop.f32.mrb[0].mxu0
    %3973 = vmatprep.mubr.bf16.mxu0 0
    %3974 = vmatmul.mubr.bf16.gmra.mrb[0].mxu0 %v3795
    %v3975 = vpop.f32.mrb[0].mxu0
    %v3976 = vadd.f32 0.0, %v3975
    %v3977 = vpop.f32.mrb[0].mxu0
    %v3978 = vpop.f32.mrb[0].mxu0
    %v3979 = vadd.f32 0.0, %v3978
    %v3980 = vpop.f32.mrb[0].mxu0
    %3981 = vmatprep.mubr.bf16.mxu0 0
    %3982 = vmatmul.mubr.bf16.gmra.mrb[0].mxu0 %v3796
    %v3983 = vpop.f32.mrb[0].mxu0
    %v3984 = vadd.f32 0.0, %v3983
    %v3985 = vpop.f32.mrb[0].mxu0
    %v3986 = vpop.f32.mrb[0].mxu0
    %v3987 = vadd.f32 0.0, %v3986
    %v3988 = vpop.f32.mrb[0].mxu0
    %3989 = vmatprep.mubr.bf16.mxu0 0
    %3990 = vmatmul.mubr.bf16.gmra.mrb[0].mxu0 %v3797
    %v3991 = vpop.f32.mrb[0].mxu0
    %v3992 = vadd.f32 0.0, %v3991
    %v3993 = vpop.f32.mrb[0].mxu0
    %v3994 = vpop.f32.mrb[0].mxu0
    %v3995 = vadd.f32 0.0, %v3994
    %v3996 = vpop.f32.mrb[0].mxu0
    %3997 = vmatprep.mubr.bf16.mxu0 0
    %3998 = vmatmul.mubr.bf16.gmra.mrb[0].mxu0 %v3798
    %v3999 = vpop.f32.mrb[0].mxu0
    %v4000 = vadd.f32 0.0, %v3999
    %v4001 = vpop.f32.mrb[0].mxu0
    %v4002 = vpop.f32.mrb[0].mxu0
    %v4003 = vadd.f32 0.0, %v4002
    %v4004 = vpop.f32.mrb[0].mxu0
    %4005 = vmatprep.mubr.bf16.mxu0 0
    %4006 = vmatmul.mubr.bf16.gmra.mrb[0].mxu0 %v3799
    %v4007 = vpop.f32.mrb[0].mxu0
    %v4008 = vadd.f32 0.0, %v4007
    %v4009 = vpop.f32.mrb[0].mxu0
    %v4010 = vpop.f32.mrb[0].mxu0
    %v4011 = vadd.f32 0.0, %v4010
    %v4012 = vpop.f32.mrb[0].mxu0
    %4013 = vmatprep.mubr.bf16.mxu0 0
    %4014 = vmatmul.mubr.bf16.gmra.mrb[0].mxu0 %v3800
    %v4015 = vpop.f32.mrb[0].mxu0
    %v4016 = vadd.f32 0.0, %v4015
    %v4017 = vpop.f32.mrb[0].mxu0
    %v4018 = vpop.f32.mrb[0].mxu0
    %v4019 = vadd.f32 0.0, %v4018
    %v4020 = vpop.f32.mrb[0].mxu0
    %4021 = vmatprep.mubr.bf16.mxu0 0
    %4022 = vmatmul.mubr.bf16.gmra.mrb[0].mxu0 %v3801
    %v4023 = vpop.f32.mrb[0].mxu0
    %v4024 = vadd.f32 0.0, %v4023
    %v4025 = vpop.f32.mrb[0].mxu0
    %v4026 = vpop.f32.mrb[0].mxu0
    %v4027 = vadd.f32 0.0, %v4026
    %v4028 = vpop.f32.mrb[0].mxu0
    %4029 = vmatprep.mubr.bf16.mxu0 0
    %4030 = vmatmul.mubr.bf16.gmra.mrb[0].mxu0 %v3802
    %v4031 = vpop.f32.mrb[0].mxu0
    %v4032 = vadd.f32 0.0, %v4031
    %v4033 = vpop.f32.mrb[0].mxu0
    %v4034 = vpop.f32.mrb[0].mxu0
    %v4035 = vadd.f32 0.0, %v4034
    %v4036 = vpop.f32.mrb[0].mxu0
    %4037 = vmatprep.mubr.bf16.mxu0 0
    %4038 = vmatmul.mubr.bf16.gmra.mrb[0].mxu0 %v3803
    %v4039 = vpop.f32.mrb[0].mxu0
    %v4040 = vadd.f32 0.0, %v4039
    %v4041 = vpop.f32.mrb[0].mxu0
    %v4042 = vpop.f32.mrb[0].mxu0
    %v4043 = vadd.f32 0.0, %v4042
    %v4044 = vpop.f32.mrb[0].mxu0
    %4045 = vmatprep.mubr.bf16.mxu0 0
    %4046 = vmatmul.mubr.bf16.gmra.mrb[0].mxu0 %v3804
    %v4047 = vpop.f32.mrb[0].mxu0
    %v4048 = vadd.f32 0.0, %v4047
    %v4049 = vpop.f32.mrb[0].mxu0
    %v4050 = vpop.f32.mrb[0].mxu0
    %v4051 = vadd.f32 0.0, %v4050
    %v4052 = vpop.f32.mrb[0].mxu0
    %4053 = vmatprep.mubr.bf16.mxu0 0
    %4054 = vmatmul.mubr.bf16.gmra.mrb[0].mxu0 %v3805
    %v4055 = vpop.f32.mrb[0].mxu0
    %v4056 = vadd.f32 0.0, %v4055
    %v4057 = vpop.f32.mrb[0].mxu0
    %v4058 = vpop.f32.mrb[0].mxu0
    %v4059 = vadd.f32 0.0, %v4058
    %v4060 = vpop.f32.mrb[0].mxu0
    %4061 = vmatprep.mubr.bf16.mxu0 0
    %4062 = vmatmul.mubr.bf16.gmra.mrb[0].mxu0 %v3806
    %v4063 = vpop.f32.mrb[0].mxu0
    %v4064 = vadd.f32 0.0, %v4063
    %v4065 = vpop.f32.mrb[0].mxu0
    %v4066 = vpop.f32.mrb[0].mxu0
    %v4067 = vadd.f32 0.0, %v4066
    %v4068 = vpop.f32.mrb[0].mxu0
    %4069 = vmatprep.mubr.bf16.mxu0 0
    %4070 = vmatmul.mubr.bf16.gmra.mrb[0].mxu0 %v3807
    %v4071 = vpop.f32.mrb[0].mxu0
    %v4072 = vadd.f32 0.0, %v4071
    %v4073 = vpop.f32.mrb[0].mxu0
    %v4074 = vpop.f32.mrb[0].mxu0
    %v4075 = vadd.f32 0.0, %v4074
    %v4076 = vpop.f32.mrb[0].mxu0
    %4077 = vmatprep.mubr.bf16.mxu0 0
    %4078 = vmatmul.mubr.bf16.gmra.mrb[0].mxu0 %v3808
    %v4079 = vpop.f32.mrb[0].mxu0
    %v4080 = vadd.f32 0.0, %v4079
    %v4081 = vpop.f32.mrb[0].mxu0
    %v4082 = vpop.f32.mrb[0].mxu0
    %v4083 = vadd.f32 0.0, %v4082
    %v4084 = vpop.f32.mrb[0].mxu0
    %4085 = vmatprep.mubr.bf16.mxu0 0
    %4086 = vmatmul.mubr.bf16.gmra.mrb[0].mxu0 %v3809
    %v4087 = vpop.f32.mrb[0].mxu0
    %v4088 = vadd.f32 0.0, %v4087
    %v4089 = vpop.f32.mrb[0].mxu0
    %v4090 = vpop.f32.mrb[0].mxu0
    %v4091 = vadd.f32 0.0, %v4090
    %v4092 = vpop.f32.mrb[0].mxu0
    %4093 = vmatprep.mubr.bf16.mxu0 0
    %4094 = vmatmul.mubr.bf16.gmra.mrb[0].mxu0 %v3810
    %v4095 = vpop.f32.mrb[0].mxu0
    %v4096 = vadd.f32 0.0, %v4095
    %v4097 = vpop.f32.mrb[0].mxu0
    %v4098 = vpop.f32.mrb[0].mxu0
    %v4099 = vadd.f32 0.0, %v4098
    %v4100 = vpop.f32.mrb[0].mxu0
    %4101 = vmatprep.mubr.bf16.mxu0 0
    %4102 = vmatmul.mubr.bf16.gmra.mrb[0].mxu0 %v3811
    %v4103 = vpop.f32.mrb[0].mxu0
    %v4104 = vadd.f32 0.0, %v4103
    %v4105 = vpop.f32.mrb[0].mxu0
    %v4106 = vpop.f32.mrb[0].mxu0
    %v4107 = vadd.f32 0.0, %v4106
    %v4108 = vpop.f32.mrb[0].mxu0
    %4109 = vmatprep.mubr.bf16.mxu0 0
    %4110 = vmatmul.mubr.bf16.gmra.mrb[0].mxu0 %v3812
    %v4111 = vpop.f32.mrb[0].mxu0
    %v4112 = vadd.f32 0.0, %v4111
    %v4113 = vpop.f32.mrb[0].mxu0
    %v4114 = vpop.f32.mrb[0].mxu0
    %v4115 = vadd.f32 0.0, %v4114
    %v4116 = vpop.f32.mrb[0].mxu0
    %4117 = vmatprep.mubr.bf16.mxu0 0
    %4118 = vmatmul.mubr.bf16.gmra.mrb[0].mxu0 %v3813
    %v4119 = vpop.f32.mrb[0].mxu0
    %v4120 = vadd.f32 0.0, %v4119
    %v4121 = vpop.f32.mrb[0].mxu0
    %v4122 = vpop.f32.mrb[0].mxu0
    %v4123 = vadd.f32 0.0, %v4122
    %v4124 = vpop.f32.mrb[0].mxu0
    %4125 = vmatprep.mubr.bf16.mxu0 0
    %4126 = vmatmul.mubr.bf16.gmra.mrb[0].mxu0 %v3814
    %v4127 = vpop.f32.mrb[0].mxu0
    %v4128 = vadd.f32 0.0, %v4127
    %v4129 = vpop.f32.mrb[0].mxu0
    %v4130 = vpop.f32.mrb[0].mxu0
    %v4131 = vadd.f32 0.0, %v4130
    %v4132 = vpop.f32.mrb[0].mxu0
    %4133 = vmatprep.mubr.bf16.mxu0 0
    %4134 = vmatmul.mubr.bf16.gmra.mrb[0].mxu0 %v3815
    %v4135 = vpop.f32.mrb[0].mxu0
    %v4136 = vadd.f32 0.0, %v4135
    %v4137 = vpop.f32.mrb[0].mxu0
    %v4138 = vpop.f32.mrb[0].mxu0
    %v4139 = vadd.f32 0.0, %v4138
    %v4140 = vpop.f32.mrb[0].mxu0
    %4141 = vmatprep.mubr.bf16.mxu0 0
    %4142 = vmatmul.mubr.bf16.gmra.mrb[0].mxu0 %v3816
    %v4143 = vpop.f32.mrb[0].mxu0
    %v4144 = vadd.f32 0.0, %v4143
    %v4145 = vpop.f32.mrb[0].mxu0
    %v4146 = vpop.f32.mrb[0].mxu0
    %v4147 = vadd.f32 0.0, %v4146
    %v4148 = vpop.f32.mrb[0].mxu0
    %4149 = vmatprep.mubr.bf16.mxu0 0
    %4150 = vmatmul.mubr.bf16.gmra.mrb[0].mxu0 %v3817
    %v4151 = vpop.f32.mrb[0].mxu0
    %v4152 = vadd.f32 0.0, %v4151
    %v4153 = vpop.f32.mrb[0].mxu0
    %v4154 = vpop.f32.mrb[0].mxu0
    %v4155 = vadd.f32 0.0, %v4154
    %v4156 = vpop.f32.mrb[0].mxu0
    %4157 = vmatprep.mubr.bf16.mxu0 0
    %4158 = vmatmul.mubr.bf16.gmra.mrb[0].mxu0 %v3818
    %v4159 = vpop.f32.mrb[0].mxu0
    %v4160 = vadd.f32 0.0, %v4159
    %v4161 = vpop.f32.mrb[0].mxu0
    %v4162 = vpop.f32.mrb[0].mxu0
    %v4163 = vadd.f32 0.0, %v4162
    %v4164 = vpop.f32.mrb[0].mxu0
    %4165 = vmatprep.mubr.bf16.mxu0 0
    %4166 = vmatmul.mubr.bf16.gmra.mrb[0].mxu0 %v3819
    %v4167 = vpop.f32.mrb[0].mxu0
    %v4168 = vadd.f32 0.0, %v4167
    %v4169 = vpop.f32.mrb[0].mxu0
    %v4170 = vpop.f32.mrb[0].mxu0
    %v4171 = vadd.f32 0.0, %v4170
    %v4172 = vpop.f32.mrb[0].mxu0
    %4173 = vdwg.mxu0
    %s4174 = scalar_lea.vmem %s8, 1
    %v4175 = vld [vmem:[%s4174] sm:$0x1]
    %s4176 = scalar_lea.vmem %s9, 1
    %v4177 = vld [vmem:[%s4176] sm:$0x1]
    %v4178 = vadd.f32 %v3920, %v3923
    %v4179 = vadd.f32 %v4178, %v3928
    %v4180 = vadd.f32 %v4179, %v3931
    %v4181 = vadd.f32 %v4180, %v3936
    %v4182 = vadd.f32 %v4181, %v3939
    %v4183 = vadd.f32 %v4182, %v3944
    %v4184 = vadd.f32 %v4183, %v3947
    %v4185 = vadd.f32 %v4184, %v3952
    %v4186 = vadd.f32 %v4185, %v3955
    %v4187 = vadd.f32 %v4186, %v3960
    %v4188 = vadd.f32 %v4187, %v3963
    %v4189 = vadd.f32 %v4188, %v3968
    %v4190 = vadd.f32 %v4189, %v3971
    %v4191 = vadd.f32 %v4190, %v3976
    %v4192 = vadd.f32 %v4191, %v3979
    %v4193 = vadd.f32 %v4192, %v3984
    %v4194 = vadd.f32 %v4193, %v3987
    %v4195 = vadd.f32 %v4194, %v3992
    %v4196 = vadd.f32 %v4195, %v3995
    %v4197 = vadd.f32 %v4196, %v4000
    %v4198 = vadd.f32 %v4197, %v4003
    %v4199 = vadd.f32 %v4198, %v4008
    %v4200 = vadd.f32 %v4199, %v4011
    %v4201 = vadd.f32 %v4200, %v4016
    %v4202 = vadd.f32 %v4201, %v4019
    %v4203 = vadd.f32 %v4202, %v4024
    %v4204 = vadd.f32 %v4203, %v4027
    %v4205 = vadd.f32 %v4204, %v4032
    %v4206 = vadd.f32 %v4205, %v4035
    %v4207 = vadd.f32 %v4206, %v4040
    %v4208 = vadd.f32 %v4207, %v4043
    %v4209 = vrot.slane %v4208, 4
    %v4210 = vadd.f32 %v4208, %v4209
    %v4211 = vrot.slane %v4210, 2
    %v4212 = vadd.f32 %v4210, %v4211
    %v4213 = vrot.slane %v4212, 1
    %v4214 = vadd.f32 %v4212, %v4213
    %v4215 = vadd.f32 %v4048, %v4051
    %v4216 = vadd.f32 %v4215, %v4056
    %v4217 = vadd.f32 %v4216, %v4059
    %v4218 = vadd.f32 %v4217, %v4064
    %v4219 = vadd.f32 %v4218, %v4067
    %v4220 = vadd.f32 %v4219, %v4072
    %v4221 = vadd.f32 %v4220, %v4075
    %v4222 = vadd.f32 %v4221, %v4080
    %v4223 = vadd.f32 %v4222, %v4083
    %v4224 = vadd.f32 %v4223, %v4088
    %v4225 = vadd.f32 %v4224, %v4091
    %v4226 = vadd.f32 %v4225, %v4096
    %v4227 = vadd.f32 %v4226, %v4099
    %v4228 = vadd.f32 %v4227, %v4104
    %v4229 = vadd.f32 %v4228, %v4107
    %v4230 = vadd.f32 %v4229, %v4112
    %v4231 = vadd.f32 %v4230, %v4115
    %v4232 = vadd.f32 %v4231, %v4120
    %v4233 = vadd.f32 %v4232, %v4123
    %v4234 = vadd.f32 %v4233, %v4128
    %v4235 = vadd.f32 %v4234, %v4131
    %v4236 = vadd.f32 %v4235, %v4136
    %v4237 = vadd.f32 %v4236, %v4139
    %v4238 = vadd.f32 %v4237, %v4144
    %v4239 = vadd.f32 %v4238, %v4147
    %v4240 = vadd.f32 %v4239, %v4152
    %v4241 = vadd.f32 %v4240, %v4155
    %v4242 = vadd.f32 %v4241, %v4160
    %v4243 = vadd.f32 %v4242, %v4163
    %v4244 = vadd.f32 %v4243, %v4168
    %v4245 = vadd.f32 %v4244, %v4171
    %v4246 = vrot.slane %v4245, 4
    %v4247 = vadd.f32 %v4245, %v4246
    %v4248 = vrot.slane %v4247, 2
    %v4249 = vadd.f32 %v4247, %v4248
    %v4250 = vrot.slane %v4249, 1
    %v4251 = vadd.f32 %v4249, %v4250
    %v4252 = vmul.f32 %v4214, 0.00390625
    %v4253 = vmul.f32 %v4251, 0.00390625
    %v4254 = vmul.f32 %v3920, %v3920
    %v4255 = vmul.f32 %v3923, %v3923
    %v4256 = vmul.f32 %v3928, %v3928
    %v4257 = vmul.f32 %v3931, %v3931
    %v4258 = vmul.f32 %v3936, %v3936
    %v4259 = vmul.f32 %v3939, %v3939
    %v4260 = vmul.f32 %v3944, %v3944
    %v4261 = vmul.f32 %v3947, %v3947
    %v4262 = vmul.f32 %v3952, %v3952
    %v4263 = vmul.f32 %v3955, %v3955
    %v4264 = vmul.f32 %v3960, %v3960
    %v4265 = vmul.f32 %v3963, %v3963
    %v4266 = vmul.f32 %v3968, %v3968
    %v4267 = vmul.f32 %v3971, %v3971
    %v4268 = vmul.f32 %v3976, %v3976
    %v4269 = vmul.f32 %v3979, %v3979
    %v4270 = vmul.f32 %v3984, %v3984
    %v4271 = vmul.f32 %v3987, %v3987
    %v4272 = vmul.f32 %v3992, %v3992
    %v4273 = vmul.f32 %v3995, %v3995
    %v4274 = vmul.f32 %v4000, %v4000
    %v4275 = vmul.f32 %v4003, %v4003
    %v4276 = vmul.f32 %v4008, %v4008
    %v4277 = vmul.f32 %v4011, %v4011
    %v4278 = vmul.f32 %v4016, %v4016
    %v4279 = vmul.f32 %v4019, %v4019
    %v4280 = vmul.f32 %v4024, %v4024
    %v4281 = vmul.f32 %v4027, %v4027
    %v4282 = vmul.f32 %v4032, %v4032
    %v4283 = vmul.f32 %v4035, %v4035
    %v4284 = vmul.f32 %v4040, %v4040
    %v4285 = vmul.f32 %v4043, %v4043
    %v4286 = vmul.f32 %v4048, %v4048
    %v4287 = vmul.f32 %v4051, %v4051
    %v4288 = vmul.f32 %v4056, %v4056
    %v4289 = vmul.f32 %v4059, %v4059
    %v4290 = vmul.f32 %v4064, %v4064
    %v4291 = vmul.f32 %v4067, %v4067
    %v4292 = vmul.f32 %v4072, %v4072
    %v4293 = vmul.f32 %v4075, %v4075
    %v4294 = vmul.f32 %v4080, %v4080
    %v4295 = vmul.f32 %v4083, %v4083
    %v4296 = vmul.f32 %v4088, %v4088
    %v4297 = vmul.f32 %v4091, %v4091
    %v4298 = vmul.f32 %v4096, %v4096
    %v4299 = vmul.f32 %v4099, %v4099
    %v4300 = vmul.f32 %v4104, %v4104
    %v4301 = vmul.f32 %v4107, %v4107
    %v4302 = vmul.f32 %v4112, %v4112
    %v4303 = vmul.f32 %v4115, %v4115
    %v4304 = vmul.f32 %v4120, %v4120
    %v4305 = vmul.f32 %v4123, %v4123
    %v4306 = vmul.f32 %v4128, %v4128
    %v4307 = vmul.f32 %v4131, %v4131
    %v4308 = vmul.f32 %v4136, %v4136
    %v4309 = vmul.f32 %v4139, %v4139
    %v4310 = vmul.f32 %v4144, %v4144
    %v4311 = vmul.f32 %v4147, %v4147
    %v4312 = vmul.f32 %v4152, %v4152
    %v4313 = vmul.f32 %v4155, %v4155
    %v4314 = vmul.f32 %v4160, %v4160
    %v4315 = vmul.f32 %v4163, %v4163
    %v4316 = vmul.f32 %v4168, %v4168
    %v4317 = vmul.f32 %v4171, %v4171
    %v4318 = vadd.f32 %v4254, %v4255
    %v4319 = vadd.f32 %v4318, %v4256
    %v4320 = vadd.f32 %v4319, %v4257
    %v4321 = vadd.f32 %v4320, %v4258
    %v4322 = vadd.f32 %v4321, %v4259
    %v4323 = vadd.f32 %v4322, %v4260
    %v4324 = vadd.f32 %v4323, %v4261
    %v4325 = vadd.f32 %v4324, %v4262
    %v4326 = vadd.f32 %v4325, %v4263
    %v4327 = vadd.f32 %v4326, %v4264
    %v4328 = vadd.f32 %v4327, %v4265
    %v4329 = vadd.f32 %v4328, %v4266
    %v4330 = vadd.f32 %v4329, %v4267
    %v4331 = vadd.f32 %v4330, %v4268
    %v4332 = vadd.f32 %v4331, %v4269
    %v4333 = vadd.f32 %v4332, %v4270
    %v4334 = vadd.f32 %v4333, %v4271
    %v4335 = vadd.f32 %v4334, %v4272
    %v4336 = vadd.f32 %v4335, %v4273
    %v4337 = vadd.f32 %v4336, %v4274
    %v4338 = vadd.f32 %v4337, %v4275
    %v4339 = vadd.f32 %v4338, %v4276
    %v4340 = vadd.f32 %v4339, %v4277
    %v4341 = vadd.f32 %v4340, %v4278
    %v4342 = vadd.f32 %v4341, %v4279
    %v4343 = vadd.f32 %v4342, %v4280
    %v4344 = vadd.f32 %v4343, %v4281
    %v4345 = vadd.f32 %v4344, %v4282
    %v4346 = vadd.f32 %v4345, %v4283
    %v4347 = vadd.f32 %v4346, %v4284
    %v4348 = vadd.f32 %v4347, %v4285
    %v4349 = vrot.slane %v4348, 4
    %v4350 = vadd.f32 %v4348, %v4349
    %v4351 = vrot.slane %v4350, 2
    %v4352 = vadd.f32 %v4350, %v4351
    %v4353 = vrot.slane %v4352, 1
    %v4354 = vadd.f32 %v4352, %v4353
    %v4355 = vadd.f32 %v4286, %v4287
    %v4356 = vadd.f32 %v4355, %v4288
    %v4357 = vadd.f32 %v4356, %v4289
    %v4358 = vadd.f32 %v4357, %v4290
    %v4359 = vadd.f32 %v4358, %v4291
    %v4360 = vadd.f32 %v4359, %v4292
    %v4361 = vadd.f32 %v4360, %v4293
    %v4362 = vadd.f32 %v4361, %v4294
    %v4363 = vadd.f32 %v4362, %v4295
    %v4364 = vadd.f32 %v4363, %v4296
    %v4365 = vadd.f32 %v4364, %v4297
    %v4366 = vadd.f32 %v4365, %v4298
    %v4367 = vadd.f32 %v4366, %v4299
    %v4368 = vadd.f32 %v4367, %v4300
    %v4369 = vadd.f32 %v4368, %v4301
    %v4370 = vadd.f32 %v4369, %v4302
    %v4371 = vadd.f32 %v4370, %v4303
    %v4372 = vadd.f32 %v4371, %v4304
    %v4373 = vadd.f32 %v4372, %v4305
    %v4374 = vadd.f32 %v4373, %v4306
    %v4375 = vadd.f32 %v4374, %v4307
    %v4376 = vadd.f32 %v4375, %v4308
    %v4377 = vadd.f32 %v4376, %v4309
    %v4378 = vadd.f32 %v4377, %v4310
    %v4379 = vadd.f32 %v4378, %v4311
    %v4380 = vadd.f32 %v4379, %v4312
    %v4381 = vadd.f32 %v4380, %v4313
    %v4382 = vadd.f32 %v4381, %v4314
    %v4383 = vadd.f32 %v4382, %v4315
    %v4384 = vadd.f32 %v4383, %v4316
    %v4385 = vadd.f32 %v4384, %v4317
    %v4386 = vrot.slane %v4385, 4
    %v4387 = vadd.f32 %v4385, %v4386
    %v4388 = vrot.slane %v4387, 2
    %v4389 = vadd.f32 %v4387, %v4388
    %v4390 = vrot.slane %v4389, 1
    %v4391 = vadd.f32 %v4389, %v4390
    %v4392 = vmul.f32 %v4354, 0.00390625
    %v4393 = vmul.f32 %v4391, 0.00390625
    %v4394 = vmul.f32 %v4252, %v4252
    %v4395 = vmul.f32 %v4253, %v4253
    %v4396 = vsub.f32 %v4392, %v4394
    %v4397 = vsub.f32 %v4393, %v4395
    %v4398 = vmax.f32 %v4396, 0.0
    %v4399 = vmax.f32 %v4397, 0.0
    %v4400 = vadd.f32 %v4398, 1e-05
    %v4401 = vadd.f32 %v4399, 1e-05
    %v4402 = vrsqrt.pop %v4400
    %v4403 = vrsqrt.pop %v4401
    %v4404 = vmul.f32 %v4402, %v4402
    %v4405 = vmul.f32 %v4403, %v4403
    %v4406 = vmul.f32 %v4398, %v4404
    %v4407 = vmul.f32 %v4399, %v4405
    %v4408 = vadd.f32 %v4406, %v4407
    %v4409 = vmul.f32 %v4408, %v1688
    %v4410 = vadd.f32 %v4409, 1e-05
    %v4411 = vrsqrt.pop %v4410
    %v4412 = vmul.f32 %v4411, %v4175
    %v4413 = vmul.f32 %v4402, %v4412
    %v4414 = vmul.f32 %v4403, %v4412
    %v4415 = vsub.f32 %v3920, %v4252
    %v4416 = vsub.f32 %v3923, %v4252
    %v4417 = vsub.f32 %v3928, %v4252
    %v4418 = vsub.f32 %v3931, %v4252
    %v4419 = vsub.f32 %v3936, %v4252
    %v4420 = vsub.f32 %v3939, %v4252
    %v4421 = vsub.f32 %v3944, %v4252
    %v4422 = vsub.f32 %v3947, %v4252
    %v4423 = vsub.f32 %v3952, %v4252
    %v4424 = vsub.f32 %v3955, %v4252
    %v4425 = vsub.f32 %v3960, %v4252
    %v4426 = vsub.f32 %v3963, %v4252
    %v4427 = vsub.f32 %v3968, %v4252
    %v4428 = vsub.f32 %v3971, %v4252
    %v4429 = vsub.f32 %v3976, %v4252
    %v4430 = vsub.f32 %v3979, %v4252
    %v4431 = vsub.f32 %v3984, %v4252
    %v4432 = vsub.f32 %v3987, %v4252
    %v4433 = vsub.f32 %v3992, %v4252
    %v4434 = vsub.f32 %v3995, %v4252
    %v4435 = vsub.f32 %v4000, %v4252
    %v4436 = vsub.f32 %v4003, %v4252
    %v4437 = vsub.f32 %v4008, %v4252
    %v4438 = vsub.f32 %v4011, %v4252
    %v4439 = vsub.f32 %v4016, %v4252
    %v4440 = vsub.f32 %v4019, %v4252
    %v4441 = vsub.f32 %v4024, %v4252
    %v4442 = vsub.f32 %v4027, %v4252
    %v4443 = vsub.f32 %v4032, %v4252
    %v4444 = vsub.f32 %v4035, %v4252
    %v4445 = vsub.f32 %v4040, %v4252
    %v4446 = vsub.f32 %v4043, %v4252
    %v4447 = vsub.f32 %v4048, %v4253
    %v4448 = vsub.f32 %v4051, %v4253
    %v4449 = vsub.f32 %v4056, %v4253
    %v4450 = vsub.f32 %v4059, %v4253
    %v4451 = vsub.f32 %v4064, %v4253
    %v4452 = vsub.f32 %v4067, %v4253
    %v4453 = vsub.f32 %v4072, %v4253
    %v4454 = vsub.f32 %v4075, %v4253
    %v4455 = vsub.f32 %v4080, %v4253
    %v4456 = vsub.f32 %v4083, %v4253
    %v4457 = vsub.f32 %v4088, %v4253
    %v4458 = vsub.f32 %v4091, %v4253
    %v4459 = vsub.f32 %v4096, %v4253
    %v4460 = vsub.f32 %v4099, %v4253
    %v4461 = vsub.f32 %v4104, %v4253
    %v4462 = vsub.f32 %v4107, %v4253
    %v4463 = vsub.f32 %v4112, %v4253
    %v4464 = vsub.f32 %v4115, %v4253
    %v4465 = vsub.f32 %v4120, %v4253
    %v4466 = vsub.f32 %v4123, %v4253
    %v4467 = vsub.f32 %v4128, %v4253
    %v4468 = vsub.f32 %v4131, %v4253
    %v4469 = vsub.f32 %v4136, %v4253
    %v4470 = vsub.f32 %v4139, %v4253
    %v4471 = vsub.f32 %v4144, %v4253
    %v4472 = vsub.f32 %v4147, %v4253
    %v4473 = vsub.f32 %v4152, %v4253
    %v4474 = vsub.f32 %v4155, %v4253
    %v4475 = vsub.f32 %v4160, %v4253
    %v4476 = vsub.f32 %v4163, %v4253
    %v4477 = vsub.f32 %v4168, %v4253
    %v4478 = vsub.f32 %v4171, %v4253
    %v4479 = vlaneseq
    %v4480 = vshrl.u32 %v4479, 7
    %v4481 = vsub.s32 0, %v4480
    %v4482 = vrot.slane %v4413, %v4481
    %v4483 = vlaneseq
    %v4484 = vshrl.u32 %v4483, 7
    %v4485 = vsub.s32 0, %v4484
    %v4486 = vrot.slane %v4414, %v4485
    %v4487 = vmul.f32 %v4415, %v4482
    %v4488 = vmul.f32 %v4416, %v4482
    %v4489 = vmul.f32 %v4417, %v4482
    %v4490 = vmul.f32 %v4418, %v4482
    %v4491 = vmul.f32 %v4419, %v4482
    %v4492 = vmul.f32 %v4420, %v4482
    %v4493 = vmul.f32 %v4421, %v4482
    %v4494 = vmul.f32 %v4422, %v4482
    %v4495 = vmul.f32 %v4423, %v4482
    %v4496 = vmul.f32 %v4424, %v4482
    %v4497 = vmul.f32 %v4425, %v4482
    %v4498 = vmul.f32 %v4426, %v4482
    %v4499 = vmul.f32 %v4427, %v4482
    %v4500 = vmul.f32 %v4428, %v4482
    %v4501 = vmul.f32 %v4429, %v4482
    %v4502 = vmul.f32 %v4430, %v4482
    %v4503 = vmul.f32 %v4431, %v4482
    %v4504 = vmul.f32 %v4432, %v4482
    %v4505 = vmul.f32 %v4433, %v4482
    %v4506 = vmul.f32 %v4434, %v4482
    %v4507 = vmul.f32 %v4435, %v4482
    %v4508 = vmul.f32 %v4436, %v4482
    %v4509 = vmul.f32 %v4437, %v4482
    %v4510 = vmul.f32 %v4438, %v4482
    %v4511 = vmul.f32 %v4439, %v4482
    %v4512 = vmul.f32 %v4440, %v4482
    %v4513 = vmul.f32 %v4441, %v4482
    %v4514 = vmul.f32 %v4442, %v4482
    %v4515 = vmul.f32 %v4443, %v4482
    %v4516 = vmul.f32 %v4444, %v4482
    %v4517 = vmul.f32 %v4445, %v4482
    %v4518 = vmul.f32 %v4446, %v4482
    %v4519 = vmul.f32 %v4447, %v4486
    %v4520 = vmul.f32 %v4448, %v4486
    %v4521 = vmul.f32 %v4449, %v4486
    %v4522 = vmul.f32 %v4450, %v4486
    %v4523 = vmul.f32 %v4451, %v4486
    %v4524 = vmul.f32 %v4452, %v4486
    %v4525 = vmul.f32 %v4453, %v4486
    %v4526 = vmul.f32 %v4454, %v4486
    %v4527 = vmul.f32 %v4455, %v4486
    %v4528 = vmul.f32 %v4456, %v4486
    %v4529 = vmul.f32 %v4457, %v4486
    %v4530 = vmul.f32 %v4458, %v4486
    %v4531 = vmul.f32 %v4459, %v4486
    %v4532 = vmul.f32 %v4460, %v4486
    %v4533 = vmul.f32 %v4461, %v4486
    %v4534 = vmul.f32 %v4462, %v4486
    %v4535 = vmul.f32 %v4463, %v4486
    %v4536 = vmul.f32 %v4464, %v4486
    %v4537 = vmul.f32 %v4465, %v4486
    %v4538 = vmul.f32 %v4466, %v4486
    %v4539 = vmul.f32 %v4467, %v4486
    %v4540 = vmul.f32 %v4468, %v4486
    %v4541 = vmul.f32 %v4469, %v4486
    %v4542 = vmul.f32 %v4470, %v4486
    %v4543 = vmul.f32 %v4471, %v4486
    %v4544 = vmul.f32 %v4472, %v4486
    %v4545 = vmul.f32 %v4473, %v4486
    %v4546 = vmul.f32 %v4474, %v4486
    %v4547 = vmul.f32 %v4475, %v4486
    %v4548 = vmul.f32 %v4476, %v4486
    %v4549 = vmul.f32 %v4477, %v4486
    %v4550 = vmul.f32 %v4478, %v4486
    %v4552 = vlaneseq
    %v4553 = vshrl.u32 %v4552, 7
    %v4554 = vsub.s32 0, %v4553
    %v4555 = vrot.slane %v4177, %v4554
    %v4557 = vadd.f32 %v4487, %v4555
    %v4558 = vadd.f32 %v4488, %v4555
    %v4559 = vadd.f32 %v4489, %v4555
    %v4560 = vadd.f32 %v4490, %v4555
    %v4561 = vadd.f32 %v4491, %v4555
    %v4562 = vadd.f32 %v4492, %v4555
    %v4563 = vadd.f32 %v4493, %v4555
    %v4564 = vadd.f32 %v4494, %v4555
    %v4565 = vadd.f32 %v4495, %v4555
    %v4566 = vadd.f32 %v4496, %v4555
    %v4567 = vadd.f32 %v4497, %v4555
    %v4568 = vadd.f32 %v4498, %v4555
    %v4569 = vadd.f32 %v4499, %v4555
    %v4570 = vadd.f32 %v4500, %v4555
    %v4571 = vadd.f32 %v4501, %v4555
    %v4572 = vadd.f32 %v4502, %v4555
    %v4573 = vadd.f32 %v4503, %v4555
    %v4574 = vadd.f32 %v4504, %v4555
    %v4575 = vadd.f32 %v4505, %v4555
    %v4576 = vadd.f32 %v4506, %v4555
    %v4577 = vadd.f32 %v4507, %v4555
    %v4578 = vadd.f32 %v4508, %v4555
    %v4579 = vadd.f32 %v4509, %v4555
    %v4580 = vadd.f32 %v4510, %v4555
    %v4581 = vadd.f32 %v4511, %v4555
    %v4582 = vadd.f32 %v4512, %v4555
    %v4583 = vadd.f32 %v4513, %v4555
    %v4584 = vadd.f32 %v4514, %v4555
    %v4585 = vadd.f32 %v4515, %v4555
    %v4586 = vadd.f32 %v4516, %v4555
    %v4587 = vadd.f32 %v4517, %v4555
    %v4588 = vadd.f32 %v4518, %v4555
    %v4589 = vadd.f32 %v4519, %v4555
    %v4590 = vadd.f32 %v4520, %v4555
    %v4591 = vadd.f32 %v4521, %v4555
    %v4592 = vadd.f32 %v4522, %v4555
    %v4593 = vadd.f32 %v4523, %v4555
    %v4594 = vadd.f32 %v4524, %v4555
    %v4595 = vadd.f32 %v4525, %v4555
    %v4596 = vadd.f32 %v4526, %v4555
    %v4597 = vadd.f32 %v4527, %v4555
    %v4598 = vadd.f32 %v4528, %v4555
    %v4599 = vadd.f32 %v4529, %v4555
    %v4600 = vadd.f32 %v4530, %v4555
    %v4601 = vadd.f32 %v4531, %v4555
    %v4602 = vadd.f32 %v4532, %v4555
    %v4603 = vadd.f32 %v4533, %v4555
    %v4604 = vadd.f32 %v4534, %v4555
    %v4605 = vadd.f32 %v4535, %v4555
    %v4606 = vadd.f32 %v4536, %v4555
    %v4607 = vadd.f32 %v4537, %v4555
    %v4608 = vadd.f32 %v4538, %v4555
    %v4609 = vadd.f32 %v4539, %v4555
    %v4610 = vadd.f32 %v4540, %v4555
    %v4611 = vadd.f32 %v4541, %v4555
    %v4612 = vadd.f32 %v4542, %v4555
    %v4613 = vadd.f32 %v4543, %v4555
    %v4614 = vadd.f32 %v4544, %v4555
    %v4615 = vadd.f32 %v4545, %v4555
    %v4616 = vadd.f32 %v4546, %v4555
    %v4617 = vadd.f32 %v4547, %v4555
    %v4618 = vadd.f32 %v4548, %v4555
    %v4619 = vadd.f32 %v4549, %v4555
    %v4620 = vadd.f32 %v4550, %v4555
    %v4621 = vmax.f32 %v4557, 0.0
    %v4622 = vmax.f32 %v4558, 0.0
    %v4623 = vmax.f32 %v4559, 0.0
    %v4624 = vmax.f32 %v4560, 0.0
    %v4625 = vmax.f32 %v4561, 0.0
    %v4626 = vmax.f32 %v4562, 0.0
    %v4627 = vmax.f32 %v4563, 0.0
    %v4628 = vmax.f32 %v4564, 0.0
    %v4629 = vmax.f32 %v4565, 0.0
    %v4630 = vmax.f32 %v4566, 0.0
    %v4631 = vmax.f32 %v4567, 0.0
    %v4632 = vmax.f32 %v4568, 0.0
    %v4633 = vmax.f32 %v4569, 0.0
    %v4634 = vmax.f32 %v4570, 0.0
    %v4635 = vmax.f32 %v4571, 0.0
    %v4636 = vmax.f32 %v4572, 0.0
    %v4637 = vmax.f32 %v4573, 0.0
    %v4638 = vmax.f32 %v4574, 0.0
    %v4639 = vmax.f32 %v4575, 0.0
    %v4640 = vmax.f32 %v4576, 0.0
    %v4641 = vmax.f32 %v4577, 0.0
    %v4642 = vmax.f32 %v4578, 0.0
    %v4643 = vmax.f32 %v4579, 0.0
    %v4644 = vmax.f32 %v4580, 0.0
    %v4645 = vmax.f32 %v4581, 0.0
    %v4646 = vmax.f32 %v4582, 0.0
    %v4647 = vmax.f32 %v4583, 0.0
    %v4648 = vmax.f32 %v4584, 0.0
    %v4649 = vmax.f32 %v4585, 0.0
    %v4650 = vmax.f32 %v4586, 0.0
    %v4651 = vmax.f32 %v4587, 0.0
    %v4652 = vmax.f32 %v4588, 0.0
    %v4653 = vmax.f32 %v4589, 0.0
    %v4654 = vmax.f32 %v4590, 0.0
    %v4655 = vmax.f32 %v4591, 0.0
    %v4656 = vmax.f32 %v4592, 0.0
    %v4657 = vmax.f32 %v4593, 0.0
    %v4658 = vmax.f32 %v4594, 0.0
    %v4659 = vmax.f32 %v4595, 0.0
    %v4660 = vmax.f32 %v4596, 0.0
    %v4661 = vmax.f32 %v4597, 0.0
    %v4662 = vmax.f32 %v4598, 0.0
    %v4663 = vmax.f32 %v4599, 0.0
    %v4664 = vmax.f32 %v4600, 0.0
    %v4665 = vmax.f32 %v4601, 0.0
    %v4666 = vmax.f32 %v4602, 0.0
    %v4667 = vmax.f32 %v4603, 0.0
    %v4668 = vmax.f32 %v4604, 0.0
    %v4669 = vmax.f32 %v4605, 0.0
    %v4670 = vmax.f32 %v4606, 0.0
    %v4671 = vmax.f32 %v4607, 0.0
    %v4672 = vmax.f32 %v4608, 0.0
    %v4673 = vmax.f32 %v4609, 0.0
    %v4674 = vmax.f32 %v4610, 0.0
    %v4675 = vmax.f32 %v4611, 0.0
    %v4676 = vmax.f32 %v4612, 0.0
    %v4677 = vmax.f32 %v4613, 0.0
    %v4678 = vmax.f32 %v4614, 0.0
    %v4679 = vmax.f32 %v4615, 0.0
    %v4680 = vmax.f32 %v4616, 0.0
    %v4681 = vmax.f32 %v4617, 0.0
    %v4682 = vmax.f32 %v4618, 0.0
    %v4683 = vmax.f32 %v4619, 0.0
    %v4684 = vmax.f32 %v4620, 0.0
    %v4685 = vpack.c.bf16 %v4622, %v4621
    %v4686 = vpack.c.bf16 %v4624, %v4623
    %v4687 = vpack.c.bf16 %v4626, %v4625
    %v4688 = vpack.c.bf16 %v4628, %v4627
    %v4689 = vpack.c.bf16 %v4630, %v4629
    %v4690 = vpack.c.bf16 %v4632, %v4631
    %v4691 = vpack.c.bf16 %v4634, %v4633
    %v4692 = vpack.c.bf16 %v4636, %v4635
    %v4693 = vpack.c.bf16 %v4638, %v4637
    %v4694 = vpack.c.bf16 %v4640, %v4639
    %v4695 = vpack.c.bf16 %v4642, %v4641
    %v4696 = vpack.c.bf16 %v4644, %v4643
    %v4697 = vpack.c.bf16 %v4646, %v4645
    %v4698 = vpack.c.bf16 %v4648, %v4647
    %v4699 = vpack.c.bf16 %v4650, %v4649
    %v4700 = vpack.c.bf16 %v4652, %v4651
    %v4701 = vpack.c.bf16 %v4654, %v4653
    %v4702 = vpack.c.bf16 %v4656, %v4655
    %v4703 = vpack.c.bf16 %v4658, %v4657
    %v4704 = vpack.c.bf16 %v4660, %v4659
    %v4705 = vpack.c.bf16 %v4662, %v4661
    %v4706 = vpack.c.bf16 %v4664, %v4663
    %v4707 = vpack.c.bf16 %v4666, %v4665
    %v4708 = vpack.c.bf16 %v4668, %v4667
    %v4709 = vpack.c.bf16 %v4670, %v4669
    %v4710 = vpack.c.bf16 %v4672, %v4671
    %v4711 = vpack.c.bf16 %v4674, %v4673
    %v4712 = vpack.c.bf16 %v4676, %v4675
    %v4713 = vpack.c.bf16 %v4678, %v4677
    %v4714 = vpack.c.bf16 %v4680, %v4679
    %v4715 = vpack.c.bf16 %v4682, %v4681
    %v4716 = vpack.c.bf16 %v4684, %v4683
    %v4717 = vadd.bf16 %v4685, %v2891
    %v4718 = vadd.bf16 %v4686, %v2892
    %v4719 = vadd.bf16 %v4687, %v2893
    %v4720 = vadd.bf16 %v4688, %v2894
    %v4721 = vadd.bf16 %v4689, %v2895
    %v4722 = vadd.bf16 %v4690, %v2896
    %v4723 = vadd.bf16 %v4691, %v2897
    %v4724 = vadd.bf16 %v4692, %v2898
    %v4725 = vadd.bf16 %v4693, %v2899
    %v4726 = vadd.bf16 %v4694, %v2900
    %v4727 = vadd.bf16 %v4695, %v2901
    %v4728 = vadd.bf16 %v4696, %v2902
    %v4729 = vadd.bf16 %v4697, %v2903
    %v4730 = vadd.bf16 %v4698, %v2904
    %v4731 = vadd.bf16 %v4699, %v2905
    %v4732 = vadd.bf16 %v4700, %v2906
    %v4733 = vadd.bf16 %v4701, %v2907
    %v4734 = vadd.bf16 %v4702, %v2908
    %v4735 = vadd.bf16 %v4703, %v2909
    %v4736 = vadd.bf16 %v4704, %v2910
    %v4737 = vadd.bf16 %v4705, %v2911
    %v4738 = vadd.bf16 %v4706, %v2912
    %v4739 = vadd.bf16 %v4707, %v2913
    %v4740 = vadd.bf16 %v4708, %v2914
    %v4741 = vadd.bf16 %v4709, %v2915
    %v4742 = vadd.bf16 %v4710, %v2916
    %v4743 = vadd.bf16 %v4711, %v2917
    %v4744 = vadd.bf16 %v4712, %v2918
    %v4745 = vadd.bf16 %v4713, %v2919
    %v4746 = vadd.bf16 %v4714, %v2920
    %v4747 = vadd.bf16 %v4715, %v2921
    %v4748 = vadd.bf16 %v4716, %v2922
    %v4749 = vunpack.c.l.bf16 %v4717
    %v4750 = vunpack.c.h.bf16 %v4717
    %v4751 = vunpack.c.l.bf16 %v4718
    %v4752 = vunpack.c.h.bf16 %v4718
    %v4753 = vunpack.c.l.bf16 %v4719
    %v4754 = vunpack.c.h.bf16 %v4719
    %v4755 = vunpack.c.l.bf16 %v4720
    %v4756 = vunpack.c.h.bf16 %v4720
    %v4757 = vunpack.c.l.bf16 %v4721
    %v4758 = vunpack.c.h.bf16 %v4721
    %v4759 = vunpack.c.l.bf16 %v4722
    %v4760 = vunpack.c.h.bf16 %v4722
    %v4761 = vunpack.c.l.bf16 %v4723
    %v4762 = vunpack.c.h.bf16 %v4723
    %v4763 = vunpack.c.l.bf16 %v4724
    %v4764 = vunpack.c.h.bf16 %v4724
    %v4765 = vunpack.c.l.bf16 %v4725
    %v4766 = vunpack.c.h.bf16 %v4725
    %v4767 = vunpack.c.l.bf16 %v4726
    %v4768 = vunpack.c.h.bf16 %v4726
    %v4769 = vunpack.c.l.bf16 %v4727
    %v4770 = vunpack.c.h.bf16 %v4727
    %v4771 = vunpack.c.l.bf16 %v4728
    %v4772 = vunpack.c.h.bf16 %v4728
    %v4773 = vunpack.c.l.bf16 %v4729
    %v4774 = vunpack.c.h.bf16 %v4729
    %v4775 = vunpack.c.l.bf16 %v4730
    %v4776 = vunpack.c.h.bf16 %v4730
    %v4777 = vunpack.c.l.bf16 %v4731
    %v4778 = vunpack.c.h.bf16 %v4731
    %v4779 = vunpack.c.l.bf16 %v4732
    %v4780 = vunpack.c.h.bf16 %v4732
    %v4781 = vunpack.c.l.bf16 %v4733
    %v4782 = vunpack.c.h.bf16 %v4733
    %v4783 = vunpack.c.l.bf16 %v4734
    %v4784 = vunpack.c.h.bf16 %v4734
    %v4785 = vunpack.c.l.bf16 %v4735
    %v4786 = vunpack.c.h.bf16 %v4735
    %v4787 = vunpack.c.l.bf16 %v4736
    %v4788 = vunpack.c.h.bf16 %v4736
    %v4789 = vunpack.c.l.bf16 %v4737
    %v4790 = vunpack.c.h.bf16 %v4737
    %v4791 = vunpack.c.l.bf16 %v4738
    %v4792 = vunpack.c.h.bf16 %v4738
    %v4793 = vunpack.c.l.bf16 %v4739
    %v4794 = vunpack.c.h.bf16 %v4739
    %v4795 = vunpack.c.l.bf16 %v4740
    %v4796 = vunpack.c.h.bf16 %v4740
    %v4797 = vunpack.c.l.bf16 %v4741
    %v4798 = vunpack.c.h.bf16 %v4741
    %v4799 = vunpack.c.l.bf16 %v4742
    %v4800 = vunpack.c.h.bf16 %v4742
    %v4801 = vunpack.c.l.bf16 %v4743
    %v4802 = vunpack.c.h.bf16 %v4743
    %v4803 = vunpack.c.l.bf16 %v4744
    %v4804 = vunpack.c.h.bf16 %v4744
    %v4805 = vunpack.c.l.bf16 %v4745
    %v4806 = vunpack.c.h.bf16 %v4745
    %v4807 = vunpack.c.l.bf16 %v4746
    %v4808 = vunpack.c.h.bf16 %v4746
    %v4809 = vunpack.c.l.bf16 %v4747
    %v4810 = vunpack.c.h.bf16 %v4747
    %v4811 = vunpack.c.l.bf16 %v4748
    %v4812 = vunpack.c.h.bf16 %v4748
    %v4813 = vld [vmem:[%s10] sm:$0x1]
    %v4815 = vlaneseq
    %v4816 = vshrl.u32 %v4815, 7
    %v4817 = vsub.s32 0, %v4816
    %v4818 = vrot.slane %v4813, %v4817
    %v4820 = vmul.f32 %v4749, %v4818
    %v4821 = vmul.f32 %v4750, %v4818
    %v4822 = vmul.f32 %v4751, %v4818
    %v4823 = vmul.f32 %v4752, %v4818
    %v4824 = vmul.f32 %v4753, %v4818
    %v4825 = vmul.f32 %v4754, %v4818
    %v4826 = vmul.f32 %v4755, %v4818
    %v4827 = vmul.f32 %v4756, %v4818
    %v4828 = vmul.f32 %v4757, %v4818
    %v4829 = vmul.f32 %v4758, %v4818
    %v4830 = vmul.f32 %v4759, %v4818
    %v4831 = vmul.f32 %v4760, %v4818
    %v4832 = vmul.f32 %v4761, %v4818
    %v4833 = vmul.f32 %v4762, %v4818
    %v4834 = vmul.f32 %v4763, %v4818
    %v4835 = vmul.f32 %v4764, %v4818
    %v4836 = vmul.f32 %v4765, %v4818
    %v4837 = vmul.f32 %v4766, %v4818
    %v4838 = vmul.f32 %v4767, %v4818
    %v4839 = vmul.f32 %v4768, %v4818
    %v4840 = vmul.f32 %v4769, %v4818
    %v4841 = vmul.f32 %v4770, %v4818
    %v4842 = vmul.f32 %v4771, %v4818
    %v4843 = vmul.f32 %v4772, %v4818
    %v4844 = vmul.f32 %v4773, %v4818
    %v4845 = vmul.f32 %v4774, %v4818
    %v4846 = vmul.f32 %v4775, %v4818
    %v4847 = vmul.f32 %v4776, %v4818
    %v4848 = vmul.f32 %v4777, %v4818
    %v4849 = vmul.f32 %v4778, %v4818
    %v4850 = vmul.f32 %v4779, %v4818
    %v4851 = vmul.f32 %v4780, %v4818
    %v4852 = vmul.f32 %v4781, %v4818
    %v4853 = vmul.f32 %v4782, %v4818
    %v4854 = vmul.f32 %v4783, %v4818
    %v4855 = vmul.f32 %v4784, %v4818
    %v4856 = vmul.f32 %v4785, %v4818
    %v4857 = vmul.f32 %v4786, %v4818
    %v4858 = vmul.f32 %v4787, %v4818
    %v4859 = vmul.f32 %v4788, %v4818
    %v4860 = vmul.f32 %v4789, %v4818
    %v4861 = vmul.f32 %v4790, %v4818
    %v4862 = vmul.f32 %v4791, %v4818
    %v4863 = vmul.f32 %v4792, %v4818
    %v4864 = vmul.f32 %v4793, %v4818
    %v4865 = vmul.f32 %v4794, %v4818
    %v4866 = vmul.f32 %v4795, %v4818
    %v4867 = vmul.f32 %v4796, %v4818
    %v4868 = vmul.f32 %v4797, %v4818
    %v4869 = vmul.f32 %v4798, %v4818
    %v4870 = vmul.f32 %v4799, %v4818
    %v4871 = vmul.f32 %v4800, %v4818
    %v4872 = vmul.f32 %v4801, %v4818
    %v4873 = vmul.f32 %v4802, %v4818
    %v4874 = vmul.f32 %v4803, %v4818
    %v4875 = vmul.f32 %v4804, %v4818
    %v4876 = vmul.f32 %v4805, %v4818
    %v4877 = vmul.f32 %v4806, %v4818
    %v4878 = vmul.f32 %v4807, %v4818
    %v4879 = vmul.f32 %v4808, %v4818
    %v4880 = vmul.f32 %v4809, %v4818
    %v4881 = vmul.f32 %v4810, %v4818
    %v4882 = vmul.f32 %v4811, %v4818
    %v4883 = vmul.f32 %v4812, %v4818
    %4884 = vadd.xlane.f32.xlu0 %v4820
    %v4885 = vpop.xlane.xlu0 %4884
    %4886 = vadd.xlane.f32.xlu0 %v4821
    %v4887 = vpop.xlane.xlu0 %4886
    %4888 = vadd.xlane.f32.xlu0 %v4822
    %v4889 = vpop.xlane.xlu0 %4888
    %4890 = vadd.xlane.f32.xlu0 %v4823
    %v4891 = vpop.xlane.xlu0 %4890
    %4892 = vadd.xlane.f32.xlu0 %v4824
    %v4893 = vpop.xlane.xlu0 %4892
    %4894 = vadd.xlane.f32.xlu0 %v4825
    %v4895 = vpop.xlane.xlu0 %4894
    %4896 = vadd.xlane.f32.xlu0 %v4826
    %v4897 = vpop.xlane.xlu0 %4896
    %4898 = vadd.xlane.f32.xlu0 %v4827
    %v4899 = vpop.xlane.xlu0 %4898
    %4900 = vadd.xlane.f32.xlu0 %v4828
    %v4901 = vpop.xlane.xlu0 %4900
    %4902 = vadd.xlane.f32.xlu0 %v4829
    %v4903 = vpop.xlane.xlu0 %4902
    %4904 = vadd.xlane.f32.xlu0 %v4830
    %v4905 = vpop.xlane.xlu0 %4904
    %4906 = vadd.xlane.f32.xlu0 %v4831
    %v4907 = vpop.xlane.xlu0 %4906
    %4908 = vadd.xlane.f32.xlu0 %v4832
    %v4909 = vpop.xlane.xlu0 %4908
    %4910 = vadd.xlane.f32.xlu0 %v4833
    %v4911 = vpop.xlane.xlu0 %4910
    %4912 = vadd.xlane.f32.xlu0 %v4834
    %v4913 = vpop.xlane.xlu0 %4912
    %4914 = vadd.xlane.f32.xlu0 %v4835
    %v4915 = vpop.xlane.xlu0 %4914
    %4916 = vadd.xlane.f32.xlu0 %v4836
    %v4917 = vpop.xlane.xlu0 %4916
    %4918 = vadd.xlane.f32.xlu0 %v4837
    %v4919 = vpop.xlane.xlu0 %4918
    %4920 = vadd.xlane.f32.xlu0 %v4838
    %v4921 = vpop.xlane.xlu0 %4920
    %4922 = vadd.xlane.f32.xlu0 %v4839
    %v4923 = vpop.xlane.xlu0 %4922
    %4924 = vadd.xlane.f32.xlu0 %v4840
    %v4925 = vpop.xlane.xlu0 %4924
    %4926 = vadd.xlane.f32.xlu0 %v4841
    %v4927 = vpop.xlane.xlu0 %4926
    %4928 = vadd.xlane.f32.xlu0 %v4842
    %v4929 = vpop.xlane.xlu0 %4928
    %4930 = vadd.xlane.f32.xlu0 %v4843
    %v4931 = vpop.xlane.xlu0 %4930
    %4932 = vadd.xlane.f32.xlu0 %v4844
    %v4933 = vpop.xlane.xlu0 %4932
    %4934 = vadd.xlane.f32.xlu0 %v4845
    %v4935 = vpop.xlane.xlu0 %4934
    %4936 = vadd.xlane.f32.xlu0 %v4846
    %v4937 = vpop.xlane.xlu0 %4936
    %4938 = vadd.xlane.f32.xlu0 %v4847
    %v4939 = vpop.xlane.xlu0 %4938
    %4940 = vadd.xlane.f32.xlu0 %v4848
    %v4941 = vpop.xlane.xlu0 %4940
    %4942 = vadd.xlane.f32.xlu0 %v4849
    %v4943 = vpop.xlane.xlu0 %4942
    %4944 = vadd.xlane.f32.xlu0 %v4850
    %v4945 = vpop.xlane.xlu0 %4944
    %4946 = vadd.xlane.f32.xlu0 %v4851
    %v4947 = vpop.xlane.xlu0 %4946
    %4948 = vadd.xlane.f32.xlu0 %v4852
    %v4949 = vpop.xlane.xlu0 %4948
    %4950 = vadd.xlane.f32.xlu0 %v4853
    %v4951 = vpop.xlane.xlu0 %4950
    %4952 = vadd.xlane.f32.xlu0 %v4854
    %v4953 = vpop.xlane.xlu0 %4952
    %4954 = vadd.xlane.f32.xlu0 %v4855
    %v4955 = vpop.xlane.xlu0 %4954
    %4956 = vadd.xlane.f32.xlu0 %v4856
    %v4957 = vpop.xlane.xlu0 %4956
    %4958 = vadd.xlane.f32.xlu0 %v4857
    %v4959 = vpop.xlane.xlu0 %4958
    %4960 = vadd.xlane.f32.xlu0 %v4858
    %v4961 = vpop.xlane.xlu0 %4960
    %4962 = vadd.xlane.f32.xlu0 %v4859
    %v4963 = vpop.xlane.xlu0 %4962
    %4964 = vadd.xlane.f32.xlu0 %v4860
    %v4965 = vpop.xlane.xlu0 %4964
    %4966 = vadd.xlane.f32.xlu0 %v4861
    %v4967 = vpop.xlane.xlu0 %4966
    %4968 = vadd.xlane.f32.xlu0 %v4862
    %v4969 = vpop.xlane.xlu0 %4968
    %4970 = vadd.xlane.f32.xlu0 %v4863
    %v4971 = vpop.xlane.xlu0 %4970
    %4972 = vadd.xlane.f32.xlu0 %v4864
    %v4973 = vpop.xlane.xlu0 %4972
    %4974 = vadd.xlane.f32.xlu0 %v4865
    %v4975 = vpop.xlane.xlu0 %4974
    %4976 = vadd.xlane.f32.xlu0 %v4866
    %v4977 = vpop.xlane.xlu0 %4976
    %4978 = vadd.xlane.f32.xlu0 %v4867
    %v4979 = vpop.xlane.xlu0 %4978
    %4980 = vadd.xlane.f32.xlu0 %v4868
    %v4981 = vpop.xlane.xlu0 %4980
    %4982 = vadd.xlane.f32.xlu0 %v4869
    %v4983 = vpop.xlane.xlu0 %4982
    %4984 = vadd.xlane.f32.xlu0 %v4870
    %v4985 = vpop.xlane.xlu0 %4984
    %4986 = vadd.xlane.f32.xlu0 %v4871
    %v4987 = vpop.xlane.xlu0 %4986
    %4988 = vadd.xlane.f32.xlu0 %v4872
    %v4989 = vpop.xlane.xlu0 %4988
    %4990 = vadd.xlane.f32.xlu0 %v4873
    %v4991 = vpop.xlane.xlu0 %4990
    %4992 = vadd.xlane.f32.xlu0 %v4874
    %v4993 = vpop.xlane.xlu0 %4992
    %4994 = vadd.xlane.f32.xlu0 %v4875
    %v4995 = vpop.xlane.xlu0 %4994
    %4996 = vadd.xlane.f32.xlu0 %v4876
    %v4997 = vpop.xlane.xlu0 %4996
    %4998 = vadd.xlane.f32.xlu0 %v4877
    %v4999 = vpop.xlane.xlu0 %4998
    %5000 = vadd.xlane.f32.xlu0 %v4878
    %v5001 = vpop.xlane.xlu0 %5000
    %5002 = vadd.xlane.f32.xlu0 %v4879
    %v5003 = vpop.xlane.xlu0 %5002
    %5004 = vadd.xlane.f32.xlu0 %v4880
    %v5005 = vpop.xlane.xlu0 %5004
    %5006 = vadd.xlane.f32.xlu0 %v4881
    %v5007 = vpop.xlane.xlu0 %5006
    %5008 = vadd.xlane.f32.xlu0 %v4882
    %v5009 = vpop.xlane.xlu0 %5008
    %5010 = vadd.xlane.f32.xlu0 %v4883
    %v5011 = vpop.xlane.xlu0 %5010
    %s5012 = sld [smem:[#allocation2]]
    %v5013 = vstv %s5012
    %v5014 = vadd.f32 %v4885, %v5013
    %v5015 = vadd.f32 %v4887, %v5013
    %v5016 = vadd.f32 %v4889, %v5013
    %v5017 = vadd.f32 %v4891, %v5013
    %v5018 = vadd.f32 %v4893, %v5013
    %v5019 = vadd.f32 %v4895, %v5013
    %v5020 = vadd.f32 %v4897, %v5013
    %v5021 = vadd.f32 %v4899, %v5013
    %v5022 = vadd.f32 %v4901, %v5013
    %v5023 = vadd.f32 %v4903, %v5013
    %v5024 = vadd.f32 %v4905, %v5013
    %v5025 = vadd.f32 %v4907, %v5013
    %v5026 = vadd.f32 %v4909, %v5013
    %v5027 = vadd.f32 %v4911, %v5013
    %v5028 = vadd.f32 %v4913, %v5013
    %v5029 = vadd.f32 %v4915, %v5013
    %v5030 = vadd.f32 %v4917, %v5013
    %v5031 = vadd.f32 %v4919, %v5013
    %v5032 = vadd.f32 %v4921, %v5013
    %v5033 = vadd.f32 %v4923, %v5013
    %v5034 = vadd.f32 %v4925, %v5013
    %v5035 = vadd.f32 %v4927, %v5013
    %v5036 = vadd.f32 %v4929, %v5013
    %v5037 = vadd.f32 %v4931, %v5013
    %v5038 = vadd.f32 %v4933, %v5013
    %v5039 = vadd.f32 %v4935, %v5013
    %v5040 = vadd.f32 %v4937, %v5013
    %v5041 = vadd.f32 %v4939, %v5013
    %v5042 = vadd.f32 %v4941, %v5013
    %v5043 = vadd.f32 %v4943, %v5013
    %v5044 = vadd.f32 %v4945, %v5013
    %v5045 = vadd.f32 %v4947, %v5013
    %v5046 = vadd.f32 %v4949, %v5013
    %v5047 = vadd.f32 %v4951, %v5013
    %v5048 = vadd.f32 %v4953, %v5013
    %v5049 = vadd.f32 %v4955, %v5013
    %v5050 = vadd.f32 %v4957, %v5013
    %v5051 = vadd.f32 %v4959, %v5013
    %v5052 = vadd.f32 %v4961, %v5013
    %v5053 = vadd.f32 %v4963, %v5013
    %v5054 = vadd.f32 %v4965, %v5013
    %v5055 = vadd.f32 %v4967, %v5013
    %v5056 = vadd.f32 %v4969, %v5013
    %v5057 = vadd.f32 %v4971, %v5013
    %v5058 = vadd.f32 %v4973, %v5013
    %v5059 = vadd.f32 %v4975, %v5013
    %v5060 = vadd.f32 %v4977, %v5013
    %v5061 = vadd.f32 %v4979, %v5013
    %v5062 = vadd.f32 %v4981, %v5013
    %v5063 = vadd.f32 %v4983, %v5013
    %v5064 = vadd.f32 %v4985, %v5013
    %v5065 = vadd.f32 %v4987, %v5013
    %v5066 = vadd.f32 %v4989, %v5013
    %v5067 = vadd.f32 %v4991, %v5013
    %v5068 = vadd.f32 %v4993, %v5013
    %v5069 = vadd.f32 %v4995, %v5013
    %v5070 = vadd.f32 %v4997, %v5013
    %v5071 = vadd.f32 %v4999, %v5013
    %v5072 = vadd.f32 %v5001, %v5013
    %v5073 = vadd.f32 %v5003, %v5013
    %v5074 = vadd.f32 %v5005, %v5013
    %v5075 = vadd.f32 %v5007, %v5013
    %v5076 = vadd.f32 %v5009, %v5013
    %v5077 = vadd.f32 %v5011, %v5013
    %v5143 = vunpack.c.l.s4 269488144
    %v5144 = vunpack.c.0.s8 %v5143
    %v5145 = vlaneseq
    %v5146 = vshrl.u32 %v5145, 7
    %v5147 = vsub.s32 %v5144, %v5146
    %v5148 = vrot.slane %v5014, %v5147
    %v5150 = vunpack.c.l.s4 842150450
    %v5151 = vunpack.c.0.s8 %v5150
    %v5152 = vlaneseq
    %v5153 = vshrl.u32 %v5152, 7
    %v5154 = vsub.s32 %v5151, %v5153
    %v5155 = vrot.slane %v5014, %v5154
    %v5157 = vunpack.c.l.s4 1414812756
    %v5158 = vunpack.c.0.s8 %v5157
    %v5159 = vlaneseq
    %v5160 = vshrl.u32 %v5159, 7
    %v5161 = vsub.s32 %v5158, %v5160
    %v5162 = vrot.slane %v5014, %v5161
    %v5164 = vunpack.c.l.s4 1987475062
    %v5165 = vunpack.c.0.s8 %v5164
    %v5166 = vlaneseq
    %v5167 = vshrl.u32 %v5166, 7
    %v5168 = vsub.s32 %v5165, %v5167
    %v5169 = vrot.slane %v5014, %v5168
    %v5171 = vunpack.c.l.s4 269488144
    %v5172 = vunpack.c.0.s8 %v5171
    %v5173 = vlaneseq
    %v5174 = vshrl.u32 %v5173, 7
    %v5175 = vsub.s32 %v5172, %v5174
    %v5176 = vrot.slane %v5015, %v5175
    %v5178 = vunpack.c.l.s4 842150450
    %v5179 = vunpack.c.0.s8 %v5178
    %v5180 = vlaneseq
    %v5181 = vshrl.u32 %v5180, 7
    %v5182 = vsub.s32 %v5179, %v5181
    %v5183 = vrot.slane %v5015, %v5182
    %v5185 = vunpack.c.l.s4 1414812756
    %v5186 = vunpack.c.0.s8 %v5185
    %v5187 = vlaneseq
    %v5188 = vshrl.u32 %v5187, 7
    %v5189 = vsub.s32 %v5186, %v5188
    %v5190 = vrot.slane %v5015, %v5189
    %v5192 = vunpack.c.l.s4 1987475062
    %v5193 = vunpack.c.0.s8 %v5192
    %v5194 = vlaneseq
    %v5195 = vshrl.u32 %v5194, 7
    %v5196 = vsub.s32 %v5193, %v5195
    %v5197 = vrot.slane %v5015, %v5196
    %v5199 = vunpack.c.l.s4 269488144
    %v5200 = vunpack.c.0.s8 %v5199
    %v5201 = vlaneseq
    %v5202 = vshrl.u32 %v5201, 7
    %v5203 = vsub.s32 %v5200, %v5202
    %v5204 = vrot.slane %v5016, %v5203
    %v5206 = vunpack.c.l.s4 842150450
    %v5207 = vunpack.c.0.s8 %v5206
    %v5208 = vlaneseq
    %v5209 = vshrl.u32 %v5208, 7
    %v5210 = vsub.s32 %v5207, %v5209
    %v5211 = vrot.slane %v5016, %v5210
    %v5213 = vunpack.c.l.s4 1414812756
    %v5214 = vunpack.c.0.s8 %v5213
    %v5215 = vlaneseq
    %v5216 = vshrl.u32 %v5215, 7
    %v5217 = vsub.s32 %v5214, %v5216
    %v5218 = vrot.slane %v5016, %v5217
    %v5220 = vunpack.c.l.s4 1987475062
    %v5221 = vunpack.c.0.s8 %v5220
    %v5222 = vlaneseq
    %v5223 = vshrl.u32 %v5222, 7
    %v5224 = vsub.s32 %v5221, %v5223
    %v5225 = vrot.slane %v5016, %v5224
    %v5227 = vunpack.c.l.s4 269488144
    %v5228 = vunpack.c.0.s8 %v5227
    %v5229 = vlaneseq
    %v5230 = vshrl.u32 %v5229, 7
    %v5231 = vsub.s32 %v5228, %v5230
    %v5232 = vrot.slane %v5017, %v5231
    %v5234 = vunpack.c.l.s4 842150450
    %v5235 = vunpack.c.0.s8 %v5234
    %v5236 = vlaneseq
    %v5237 = vshrl.u32 %v5236, 7
    %v5238 = vsub.s32 %v5235, %v5237
    %v5239 = vrot.slane %v5017, %v5238
    %v5241 = vunpack.c.l.s4 1414812756
    %v5242 = vunpack.c.0.s8 %v5241
    %v5243 = vlaneseq
    %v5244 = vshrl.u32 %v5243, 7
    %v5245 = vsub.s32 %v5242, %v5244
    %v5246 = vrot.slane %v5017, %v5245
    %v5248 = vunpack.c.l.s4 1987475062
    %v5249 = vunpack.c.0.s8 %v5248
    %v5250 = vlaneseq
    %v5251 = vshrl.u32 %v5250, 7
    %v5252 = vsub.s32 %v5249, %v5251
    %v5253 = vrot.slane %v5017, %v5252
    %v5255 = vunpack.c.l.s4 269488144
    %v5256 = vunpack.c.0.s8 %v5255
    %v5257 = vlaneseq
    %v5258 = vshrl.u32 %v5257, 7
    %v5259 = vsub.s32 %v5256, %v5258
    %v5260 = vrot.slane %v5018, %v5259
    %v5262 = vunpack.c.l.s4 842150450
    %v5263 = vunpack.c.0.s8 %v5262
    %v5264 = vlaneseq
    %v5265 = vshrl.u32 %v5264, 7
    %v5266 = vsub.s32 %v5263, %v5265
    %v5267 = vrot.slane %v5018, %v5266
    %v5269 = vunpack.c.l.s4 1414812756
    %v5270 = vunpack.c.0.s8 %v5269
    %v5271 = vlaneseq
    %v5272 = vshrl.u32 %v5271, 7
    %v5273 = vsub.s32 %v5270, %v5272
    %v5274 = vrot.slane %v5018, %v5273
    %v5276 = vunpack.c.l.s4 1987475062
    %v5277 = vunpack.c.0.s8 %v5276
    %v5278 = vlaneseq
    %v5279 = vshrl.u32 %v5278, 7
    %v5280 = vsub.s32 %v5277, %v5279
    %v5281 = vrot.slane %v5018, %v5280
    %v5283 = vunpack.c.l.s4 269488144
    %v5284 = vunpack.c.0.s8 %v5283
    %v5285 = vlaneseq
    %v5286 = vshrl.u32 %v5285, 7
    %v5287 = vsub.s32 %v5284, %v5286
    %v5288 = vrot.slane %v5019, %v5287
    %v5290 = vunpack.c.l.s4 842150450
    %v5291 = vunpack.c.0.s8 %v5290
    %v5292 = vlaneseq
    %v5293 = vshrl.u32 %v5292, 7
    %v5294 = vsub.s32 %v5291, %v5293
    %v5295 = vrot.slane %v5019, %v5294
    %v5297 = vunpack.c.l.s4 1414812756
    %v5298 = vunpack.c.0.s8 %v5297
    %v5299 = vlaneseq
    %v5300 = vshrl.u32 %v5299, 7
    %v5301 = vsub.s32 %v5298, %v5300
    %v5302 = vrot.slane %v5019, %v5301
    %v5304 = vunpack.c.l.s4 1987475062
    %v5305 = vunpack.c.0.s8 %v5304
    %v5306 = vlaneseq
    %v5307 = vshrl.u32 %v5306, 7
    %v5308 = vsub.s32 %v5305, %v5307
    %v5309 = vrot.slane %v5019, %v5308
    %v5311 = vunpack.c.l.s4 269488144
    %v5312 = vunpack.c.0.s8 %v5311
    %v5313 = vlaneseq
    %v5314 = vshrl.u32 %v5313, 7
    %v5315 = vsub.s32 %v5312, %v5314
    %v5316 = vrot.slane %v5020, %v5315
    %v5318 = vunpack.c.l.s4 842150450
    %v5319 = vunpack.c.0.s8 %v5318
    %v5320 = vlaneseq
    %v5321 = vshrl.u32 %v5320, 7
    %v5322 = vsub.s32 %v5319, %v5321
    %v5323 = vrot.slane %v5020, %v5322
    %v5325 = vunpack.c.l.s4 1414812756
    %v5326 = vunpack.c.0.s8 %v5325
    %v5327 = vlaneseq
    %v5328 = vshrl.u32 %v5327, 7
    %v5329 = vsub.s32 %v5326, %v5328
    %v5330 = vrot.slane %v5020, %v5329
    %v5332 = vunpack.c.l.s4 1987475062
    %v5333 = vunpack.c.0.s8 %v5332
    %v5334 = vlaneseq
    %v5335 = vshrl.u32 %v5334, 7
    %v5336 = vsub.s32 %v5333, %v5335
    %v5337 = vrot.slane %v5020, %v5336
    %v5339 = vunpack.c.l.s4 269488144
    %v5340 = vunpack.c.0.s8 %v5339
    %v5341 = vlaneseq
    %v5342 = vshrl.u32 %v5341, 7
    %v5343 = vsub.s32 %v5340, %v5342
    %v5344 = vrot.slane %v5021, %v5343
    %v5346 = vunpack.c.l.s4 842150450
    %v5347 = vunpack.c.0.s8 %v5346
    %v5348 = vlaneseq
    %v5349 = vshrl.u32 %v5348, 7
    %v5350 = vsub.s32 %v5347, %v5349
    %v5351 = vrot.slane %v5021, %v5350
    %v5353 = vunpack.c.l.s4 1414812756
    %v5354 = vunpack.c.0.s8 %v5353
    %v5355 = vlaneseq
    %v5356 = vshrl.u32 %v5355, 7
    %v5357 = vsub.s32 %v5354, %v5356
    %v5358 = vrot.slane %v5021, %v5357
    %v5360 = vunpack.c.l.s4 1987475062
    %v5361 = vunpack.c.0.s8 %v5360
    %v5362 = vlaneseq
    %v5363 = vshrl.u32 %v5362, 7
    %v5364 = vsub.s32 %v5361, %v5363
    %v5365 = vrot.slane %v5021, %v5364
    %v5367 = vunpack.c.l.s4 269488144
    %v5368 = vunpack.c.0.s8 %v5367
    %v5369 = vlaneseq
    %v5370 = vshrl.u32 %v5369, 7
    %v5371 = vsub.s32 %v5368, %v5370
    %v5372 = vrot.slane %v5022, %v5371
    %v5374 = vunpack.c.l.s4 842150450
    %v5375 = vunpack.c.0.s8 %v5374
    %v5376 = vlaneseq
    %v5377 = vshrl.u32 %v5376, 7
    %v5378 = vsub.s32 %v5375, %v5377
    %v5379 = vrot.slane %v5022, %v5378
    %v5381 = vunpack.c.l.s4 1414812756
    %v5382 = vunpack.c.0.s8 %v5381
    %v5383 = vlaneseq
    %v5384 = vshrl.u32 %v5383, 7
    %v5385 = vsub.s32 %v5382, %v5384
    %v5386 = vrot.slane %v5022, %v5385
    %v5388 = vunpack.c.l.s4 1987475062
    %v5389 = vunpack.c.0.s8 %v5388
    %v5390 = vlaneseq
    %v5391 = vshrl.u32 %v5390, 7
    %v5392 = vsub.s32 %v5389, %v5391
    %v5393 = vrot.slane %v5022, %v5392
    %v5395 = vunpack.c.l.s4 269488144
    %v5396 = vunpack.c.0.s8 %v5395
    %v5397 = vlaneseq
    %v5398 = vshrl.u32 %v5397, 7
    %v5399 = vsub.s32 %v5396, %v5398
    %v5400 = vrot.slane %v5023, %v5399
    %v5402 = vunpack.c.l.s4 842150450
    %v5403 = vunpack.c.0.s8 %v5402
    %v5404 = vlaneseq
    %v5405 = vshrl.u32 %v5404, 7
    %v5406 = vsub.s32 %v5403, %v5405
    %v5407 = vrot.slane %v5023, %v5406
    %v5409 = vunpack.c.l.s4 1414812756
    %v5410 = vunpack.c.0.s8 %v5409
    %v5411 = vlaneseq
    %v5412 = vshrl.u32 %v5411, 7
    %v5413 = vsub.s32 %v5410, %v5412
    %v5414 = vrot.slane %v5023, %v5413
    %v5416 = vunpack.c.l.s4 1987475062
    %v5417 = vunpack.c.0.s8 %v5416
    %v5418 = vlaneseq
    %v5419 = vshrl.u32 %v5418, 7
    %v5420 = vsub.s32 %v5417, %v5419
    %v5421 = vrot.slane %v5023, %v5420
    %v5423 = vunpack.c.l.s4 269488144
    %v5424 = vunpack.c.0.s8 %v5423
    %v5425 = vlaneseq
    %v5426 = vshrl.u32 %v5425, 7
    %v5427 = vsub.s32 %v5424, %v5426
    %v5428 = vrot.slane %v5024, %v5427
    %v5430 = vunpack.c.l.s4 842150450
    %v5431 = vunpack.c.0.s8 %v5430
    %v5432 = vlaneseq
    %v5433 = vshrl.u32 %v5432, 7
    %v5434 = vsub.s32 %v5431, %v5433
    %v5435 = vrot.slane %v5024, %v5434
    %v5437 = vunpack.c.l.s4 1414812756
    %v5438 = vunpack.c.0.s8 %v5437
    %v5439 = vlaneseq
    %v5440 = vshrl.u32 %v5439, 7
    %v5441 = vsub.s32 %v5438, %v5440
    %v5442 = vrot.slane %v5024, %v5441
    %v5444 = vunpack.c.l.s4 1987475062
    %v5445 = vunpack.c.0.s8 %v5444
    %v5446 = vlaneseq
    %v5447 = vshrl.u32 %v5446, 7
    %v5448 = vsub.s32 %v5445, %v5447
    %v5449 = vrot.slane %v5024, %v5448
    %v5451 = vunpack.c.l.s4 269488144
    %v5452 = vunpack.c.0.s8 %v5451
    %v5453 = vlaneseq
    %v5454 = vshrl.u32 %v5453, 7
    %v5455 = vsub.s32 %v5452, %v5454
    %v5456 = vrot.slane %v5025, %v5455
    %v5458 = vunpack.c.l.s4 842150450
    %v5459 = vunpack.c.0.s8 %v5458
    %v5460 = vlaneseq
    %v5461 = vshrl.u32 %v5460, 7
    %v5462 = vsub.s32 %v5459, %v5461
    %v5463 = vrot.slane %v5025, %v5462
    %v5465 = vunpack.c.l.s4 1414812756
    %v5466 = vunpack.c.0.s8 %v5465
    %v5467 = vlaneseq
    %v5468 = vshrl.u32 %v5467, 7
    %v5469 = vsub.s32 %v5466, %v5468
    %v5470 = vrot.slane %v5025, %v5469
    %v5472 = vunpack.c.l.s4 1987475062
    %v5473 = vunpack.c.0.s8 %v5472
    %v5474 = vlaneseq
    %v5475 = vshrl.u32 %v5474, 7
    %v5476 = vsub.s32 %v5473, %v5475
    %v5477 = vrot.slane %v5025, %v5476
    %v5479 = vunpack.c.l.s4 269488144
    %v5480 = vunpack.c.0.s8 %v5479
    %v5481 = vlaneseq
    %v5482 = vshrl.u32 %v5481, 7
    %v5483 = vsub.s32 %v5480, %v5482
    %v5484 = vrot.slane %v5026, %v5483
    %v5486 = vunpack.c.l.s4 842150450
    %v5487 = vunpack.c.0.s8 %v5486
    %v5488 = vlaneseq
    %v5489 = vshrl.u32 %v5488, 7
    %v5490 = vsub.s32 %v5487, %v5489
    %v5491 = vrot.slane %v5026, %v5490
    %v5493 = vunpack.c.l.s4 1414812756
    %v5494 = vunpack.c.0.s8 %v5493
    %v5495 = vlaneseq
    %v5496 = vshrl.u32 %v5495, 7
    %v5497 = vsub.s32 %v5494, %v5496
    %v5498 = vrot.slane %v5026, %v5497
    %v5500 = vunpack.c.l.s4 1987475062
    %v5501 = vunpack.c.0.s8 %v5500
    %v5502 = vlaneseq
    %v5503 = vshrl.u32 %v5502, 7
    %v5504 = vsub.s32 %v5501, %v5503
    %v5505 = vrot.slane %v5026, %v5504
    %v5507 = vunpack.c.l.s4 269488144
    %v5508 = vunpack.c.0.s8 %v5507
    %v5509 = vlaneseq
    %v5510 = vshrl.u32 %v5509, 7
    %v5511 = vsub.s32 %v5508, %v5510
    %v5512 = vrot.slane %v5027, %v5511
    %v5514 = vunpack.c.l.s4 842150450
    %v5515 = vunpack.c.0.s8 %v5514
    %v5516 = vlaneseq
    %v5517 = vshrl.u32 %v5516, 7
    %v5518 = vsub.s32 %v5515, %v5517
    %v5519 = vrot.slane %v5027, %v5518
    %v5521 = vunpack.c.l.s4 1414812756
    %v5522 = vunpack.c.0.s8 %v5521
    %v5523 = vlaneseq
    %v5524 = vshrl.u32 %v5523, 7
    %v5525 = vsub.s32 %v5522, %v5524
    %v5526 = vrot.slane %v5027, %v5525
    %v5528 = vunpack.c.l.s4 1987475062
    %v5529 = vunpack.c.0.s8 %v5528
    %v5530 = vlaneseq
    %v5531 = vshrl.u32 %v5530, 7
    %v5532 = vsub.s32 %v5529, %v5531
    %v5533 = vrot.slane %v5027, %v5532
    %v5535 = vunpack.c.l.s4 269488144
    %v5536 = vunpack.c.0.s8 %v5535
    %v5537 = vlaneseq
    %v5538 = vshrl.u32 %v5537, 7
    %v5539 = vsub.s32 %v5536, %v5538
    %v5540 = vrot.slane %v5028, %v5539
    %v5542 = vunpack.c.l.s4 842150450
    %v5543 = vunpack.c.0.s8 %v5542
    %v5544 = vlaneseq
    %v5545 = vshrl.u32 %v5544, 7
    %v5546 = vsub.s32 %v5543, %v5545
    %v5547 = vrot.slane %v5028, %v5546
    %v5549 = vunpack.c.l.s4 1414812756
    %v5550 = vunpack.c.0.s8 %v5549
    %v5551 = vlaneseq
    %v5552 = vshrl.u32 %v5551, 7
    %v5553 = vsub.s32 %v5550, %v5552
    %v5554 = vrot.slane %v5028, %v5553
    %v5556 = vunpack.c.l.s4 1987475062
    %v5557 = vunpack.c.0.s8 %v5556
    %v5558 = vlaneseq
    %v5559 = vshrl.u32 %v5558, 7
    %v5560 = vsub.s32 %v5557, %v5559
    %v5561 = vrot.slane %v5028, %v5560
    %v5563 = vunpack.c.l.s4 269488144
    %v5564 = vunpack.c.0.s8 %v5563
    %v5565 = vlaneseq
    %v5566 = vshrl.u32 %v5565, 7
    %v5567 = vsub.s32 %v5564, %v5566
    %v5568 = vrot.slane %v5029, %v5567
    %v5570 = vunpack.c.l.s4 842150450
    %v5571 = vunpack.c.0.s8 %v5570
    %v5572 = vlaneseq
    %v5573 = vshrl.u32 %v5572, 7
    %v5574 = vsub.s32 %v5571, %v5573
    %v5575 = vrot.slane %v5029, %v5574
    %v5577 = vunpack.c.l.s4 1414812756
    %v5578 = vunpack.c.0.s8 %v5577
    %v5579 = vlaneseq
    %v5580 = vshrl.u32 %v5579, 7
    %v5581 = vsub.s32 %v5578, %v5580
    %v5582 = vrot.slane %v5029, %v5581
    %v5584 = vunpack.c.l.s4 1987475062
    %v5585 = vunpack.c.0.s8 %v5584
    %v5586 = vlaneseq
    %v5587 = vshrl.u32 %v5586, 7
    %v5588 = vsub.s32 %v5585, %v5587
    %v5589 = vrot.slane %v5029, %v5588
    %v5591 = vunpack.c.l.s4 269488144
    %v5592 = vunpack.c.0.s8 %v5591
    %v5593 = vlaneseq
    %v5594 = vshrl.u32 %v5593, 7
    %v5595 = vsub.s32 %v5592, %v5594
    %v5596 = vrot.slane %v5030, %v5595
    %v5598 = vunpack.c.l.s4 842150450
    %v5599 = vunpack.c.0.s8 %v5598
    %v5600 = vlaneseq
    %v5601 = vshrl.u32 %v5600, 7
    %v5602 = vsub.s32 %v5599, %v5601
    %v5603 = vrot.slane %v5030, %v5602
    %v5605 = vunpack.c.l.s4 1414812756
    %v5606 = vunpack.c.0.s8 %v5605
    %v5607 = vlaneseq
    %v5608 = vshrl.u32 %v5607, 7
    %v5609 = vsub.s32 %v5606, %v5608
    %v5610 = vrot.slane %v5030, %v5609
    %v5612 = vunpack.c.l.s4 1987475062
    %v5613 = vunpack.c.0.s8 %v5612
    %v5614 = vlaneseq
    %v5615 = vshrl.u32 %v5614, 7
    %v5616 = vsub.s32 %v5613, %v5615
    %v5617 = vrot.slane %v5030, %v5616
    %v5619 = vunpack.c.l.s4 269488144
    %v5620 = vunpack.c.0.s8 %v5619
    %v5621 = vlaneseq
    %v5622 = vshrl.u32 %v5621, 7
    %v5623 = vsub.s32 %v5620, %v5622
    %v5624 = vrot.slane %v5031, %v5623
    %v5626 = vunpack.c.l.s4 842150450
    %v5627 = vunpack.c.0.s8 %v5626
    %v5628 = vlaneseq
    %v5629 = vshrl.u32 %v5628, 7
    %v5630 = vsub.s32 %v5627, %v5629
    %v5631 = vrot.slane %v5031, %v5630
    %v5633 = vunpack.c.l.s4 1414812756
    %v5634 = vunpack.c.0.s8 %v5633
    %v5635 = vlaneseq
    %v5636 = vshrl.u32 %v5635, 7
    %v5637 = vsub.s32 %v5634, %v5636
    %v5638 = vrot.slane %v5031, %v5637
    %v5640 = vunpack.c.l.s4 1987475062
    %v5641 = vunpack.c.0.s8 %v5640
    %v5642 = vlaneseq
    %v5643 = vshrl.u32 %v5642, 7
    %v5644 = vsub.s32 %v5641, %v5643
    %v5645 = vrot.slane %v5031, %v5644
    %v5647 = vunpack.c.l.s4 269488144
    %v5648 = vunpack.c.0.s8 %v5647
    %v5649 = vlaneseq
    %v5650 = vshrl.u32 %v5649, 7
    %v5651 = vsub.s32 %v5648, %v5650
    %v5652 = vrot.slane %v5032, %v5651
    %v5654 = vunpack.c.l.s4 842150450
    %v5655 = vunpack.c.0.s8 %v5654
    %v5656 = vlaneseq
    %v5657 = vshrl.u32 %v5656, 7
    %v5658 = vsub.s32 %v5655, %v5657
    %v5659 = vrot.slane %v5032, %v5658
    %v5661 = vunpack.c.l.s4 1414812756
    %v5662 = vunpack.c.0.s8 %v5661
    %v5663 = vlaneseq
    %v5664 = vshrl.u32 %v5663, 7
    %v5665 = vsub.s32 %v5662, %v5664
    %v5666 = vrot.slane %v5032, %v5665
    %v5668 = vunpack.c.l.s4 1987475062
    %v5669 = vunpack.c.0.s8 %v5668
    %v5670 = vlaneseq
    %v5671 = vshrl.u32 %v5670, 7
    %v5672 = vsub.s32 %v5669, %v5671
    %v5673 = vrot.slane %v5032, %v5672
    %v5675 = vunpack.c.l.s4 269488144
    %v5676 = vunpack.c.0.s8 %v5675
    %v5677 = vlaneseq
    %v5678 = vshrl.u32 %v5677, 7
    %v5679 = vsub.s32 %v5676, %v5678
    %v5680 = vrot.slane %v5033, %v5679
    %v5682 = vunpack.c.l.s4 842150450
    %v5683 = vunpack.c.0.s8 %v5682
    %v5684 = vlaneseq
    %v5685 = vshrl.u32 %v5684, 7
    %v5686 = vsub.s32 %v5683, %v5685
    %v5687 = vrot.slane %v5033, %v5686
    %v5689 = vunpack.c.l.s4 1414812756
    %v5690 = vunpack.c.0.s8 %v5689
    %v5691 = vlaneseq
    %v5692 = vshrl.u32 %v5691, 7
    %v5693 = vsub.s32 %v5690, %v5692
    %v5694 = vrot.slane %v5033, %v5693
    %v5696 = vunpack.c.l.s4 1987475062
    %v5697 = vunpack.c.0.s8 %v5696
    %v5698 = vlaneseq
    %v5699 = vshrl.u32 %v5698, 7
    %v5700 = vsub.s32 %v5697, %v5699
    %v5701 = vrot.slane %v5033, %v5700
    %v5703 = vunpack.c.l.s4 269488144
    %v5704 = vunpack.c.0.s8 %v5703
    %v5705 = vlaneseq
    %v5706 = vshrl.u32 %v5705, 7
    %v5707 = vsub.s32 %v5704, %v5706
    %v5708 = vrot.slane %v5034, %v5707
    %v5710 = vunpack.c.l.s4 842150450
    %v5711 = vunpack.c.0.s8 %v5710
    %v5712 = vlaneseq
    %v5713 = vshrl.u32 %v5712, 7
    %v5714 = vsub.s32 %v5711, %v5713
    %v5715 = vrot.slane %v5034, %v5714
    %v5717 = vunpack.c.l.s4 1414812756
    %v5718 = vunpack.c.0.s8 %v5717
    %v5719 = vlaneseq
    %v5720 = vshrl.u32 %v5719, 7
    %v5721 = vsub.s32 %v5718, %v5720
    %v5722 = vrot.slane %v5034, %v5721
    %v5724 = vunpack.c.l.s4 1987475062
    %v5725 = vunpack.c.0.s8 %v5724
    %v5726 = vlaneseq
    %v5727 = vshrl.u32 %v5726, 7
    %v5728 = vsub.s32 %v5725, %v5727
    %v5729 = vrot.slane %v5034, %v5728
    %v5731 = vunpack.c.l.s4 269488144
    %v5732 = vunpack.c.0.s8 %v5731
    %v5733 = vlaneseq
    %v5734 = vshrl.u32 %v5733, 7
    %v5735 = vsub.s32 %v5732, %v5734
    %v5736 = vrot.slane %v5035, %v5735
    %v5738 = vunpack.c.l.s4 842150450
    %v5739 = vunpack.c.0.s8 %v5738
    %v5740 = vlaneseq
    %v5741 = vshrl.u32 %v5740, 7
    %v5742 = vsub.s32 %v5739, %v5741
    %v5743 = vrot.slane %v5035, %v5742
    %v5745 = vunpack.c.l.s4 1414812756
    %v5746 = vunpack.c.0.s8 %v5745
    %v5747 = vlaneseq
    %v5748 = vshrl.u32 %v5747, 7
    %v5749 = vsub.s32 %v5746, %v5748
    %v5750 = vrot.slane %v5035, %v5749
    %v5752 = vunpack.c.l.s4 1987475062
    %v5753 = vunpack.c.0.s8 %v5752
    %v5754 = vlaneseq
    %v5755 = vshrl.u32 %v5754, 7
    %v5756 = vsub.s32 %v5753, %v5755
    %v5757 = vrot.slane %v5035, %v5756
    %v5759 = vunpack.c.l.s4 269488144
    %v5760 = vunpack.c.0.s8 %v5759
    %v5761 = vlaneseq
    %v5762 = vshrl.u32 %v5761, 7
    %v5763 = vsub.s32 %v5760, %v5762
    %v5764 = vrot.slane %v5036, %v5763
    %v5766 = vunpack.c.l.s4 842150450
    %v5767 = vunpack.c.0.s8 %v5766
    %v5768 = vlaneseq
    %v5769 = vshrl.u32 %v5768, 7
    %v5770 = vsub.s32 %v5767, %v5769
    %v5771 = vrot.slane %v5036, %v5770
    %v5773 = vunpack.c.l.s4 1414812756
    %v5774 = vunpack.c.0.s8 %v5773
    %v5775 = vlaneseq
    %v5776 = vshrl.u32 %v5775, 7
    %v5777 = vsub.s32 %v5774, %v5776
    %v5778 = vrot.slane %v5036, %v5777
    %v5780 = vunpack.c.l.s4 1987475062
    %v5781 = vunpack.c.0.s8 %v5780
    %v5782 = vlaneseq
    %v5783 = vshrl.u32 %v5782, 7
    %v5784 = vsub.s32 %v5781, %v5783
    %v5785 = vrot.slane %v5036, %v5784
    %v5787 = vunpack.c.l.s4 269488144
    %v5788 = vunpack.c.0.s8 %v5787
    %v5789 = vlaneseq
    %v5790 = vshrl.u32 %v5789, 7
    %v5791 = vsub.s32 %v5788, %v5790
    %v5792 = vrot.slane %v5037, %v5791
    %v5794 = vunpack.c.l.s4 842150450
    %v5795 = vunpack.c.0.s8 %v5794
    %v5796 = vlaneseq
    %v5797 = vshrl.u32 %v5796, 7
    %v5798 = vsub.s32 %v5795, %v5797
    %v5799 = vrot.slane %v5037, %v5798
    %v5801 = vunpack.c.l.s4 1414812756
    %v5802 = vunpack.c.0.s8 %v5801
    %v5803 = vlaneseq
    %v5804 = vshrl.u32 %v5803, 7
    %v5805 = vsub.s32 %v5802, %v5804
    %v5806 = vrot.slane %v5037, %v5805
    %v5808 = vunpack.c.l.s4 1987475062
    %v5809 = vunpack.c.0.s8 %v5808
    %v5810 = vlaneseq
    %v5811 = vshrl.u32 %v5810, 7
    %v5812 = vsub.s32 %v5809, %v5811
    %v5813 = vrot.slane %v5037, %v5812
    %v5815 = vunpack.c.l.s4 269488144
    %v5816 = vunpack.c.0.s8 %v5815
    %v5817 = vlaneseq
    %v5818 = vshrl.u32 %v5817, 7
    %v5819 = vsub.s32 %v5816, %v5818
    %v5820 = vrot.slane %v5038, %v5819
    %v5822 = vunpack.c.l.s4 842150450
    %v5823 = vunpack.c.0.s8 %v5822
    %v5824 = vlaneseq
    %v5825 = vshrl.u32 %v5824, 7
    %v5826 = vsub.s32 %v5823, %v5825
    %v5827 = vrot.slane %v5038, %v5826
    %v5829 = vunpack.c.l.s4 1414812756
    %v5830 = vunpack.c.0.s8 %v5829
    %v5831 = vlaneseq
    %v5832 = vshrl.u32 %v5831, 7
    %v5833 = vsub.s32 %v5830, %v5832
    %v5834 = vrot.slane %v5038, %v5833
    %v5836 = vunpack.c.l.s4 1987475062
    %v5837 = vunpack.c.0.s8 %v5836
    %v5838 = vlaneseq
    %v5839 = vshrl.u32 %v5838, 7
    %v5840 = vsub.s32 %v5837, %v5839
    %v5841 = vrot.slane %v5038, %v5840
    %v5843 = vunpack.c.l.s4 269488144
    %v5844 = vunpack.c.0.s8 %v5843
    %v5845 = vlaneseq
    %v5846 = vshrl.u32 %v5845, 7
    %v5847 = vsub.s32 %v5844, %v5846
    %v5848 = vrot.slane %v5039, %v5847
    %v5850 = vunpack.c.l.s4 842150450
    %v5851 = vunpack.c.0.s8 %v5850
    %v5852 = vlaneseq
    %v5853 = vshrl.u32 %v5852, 7
    %v5854 = vsub.s32 %v5851, %v5853
    %v5855 = vrot.slane %v5039, %v5854
    %v5857 = vunpack.c.l.s4 1414812756
    %v5858 = vunpack.c.0.s8 %v5857
    %v5859 = vlaneseq
    %v5860 = vshrl.u32 %v5859, 7
    %v5861 = vsub.s32 %v5858, %v5860
    %v5862 = vrot.slane %v5039, %v5861
    %v5864 = vunpack.c.l.s4 1987475062
    %v5865 = vunpack.c.0.s8 %v5864
    %v5866 = vlaneseq
    %v5867 = vshrl.u32 %v5866, 7
    %v5868 = vsub.s32 %v5865, %v5867
    %v5869 = vrot.slane %v5039, %v5868
    %v5871 = vunpack.c.l.s4 269488144
    %v5872 = vunpack.c.0.s8 %v5871
    %v5873 = vlaneseq
    %v5874 = vshrl.u32 %v5873, 7
    %v5875 = vsub.s32 %v5872, %v5874
    %v5876 = vrot.slane %v5040, %v5875
    %v5878 = vunpack.c.l.s4 842150450
    %v5879 = vunpack.c.0.s8 %v5878
    %v5880 = vlaneseq
    %v5881 = vshrl.u32 %v5880, 7
    %v5882 = vsub.s32 %v5879, %v5881
    %v5883 = vrot.slane %v5040, %v5882
    %v5885 = vunpack.c.l.s4 1414812756
    %v5886 = vunpack.c.0.s8 %v5885
    %v5887 = vlaneseq
    %v5888 = vshrl.u32 %v5887, 7
    %v5889 = vsub.s32 %v5886, %v5888
    %v5890 = vrot.slane %v5040, %v5889
    %v5892 = vunpack.c.l.s4 1987475062
    %v5893 = vunpack.c.0.s8 %v5892
    %v5894 = vlaneseq
    %v5895 = vshrl.u32 %v5894, 7
    %v5896 = vsub.s32 %v5893, %v5895
    %v5897 = vrot.slane %v5040, %v5896
    %v5899 = vunpack.c.l.s4 269488144
    %v5900 = vunpack.c.0.s8 %v5899
    %v5901 = vlaneseq
    %v5902 = vshrl.u32 %v5901, 7
    %v5903 = vsub.s32 %v5900, %v5902
    %v5904 = vrot.slane %v5041, %v5903
    %v5906 = vunpack.c.l.s4 842150450
    %v5907 = vunpack.c.0.s8 %v5906
    %v5908 = vlaneseq
    %v5909 = vshrl.u32 %v5908, 7
    %v5910 = vsub.s32 %v5907, %v5909
    %v5911 = vrot.slane %v5041, %v5910
    %v5913 = vunpack.c.l.s4 1414812756
    %v5914 = vunpack.c.0.s8 %v5913
    %v5915 = vlaneseq
    %v5916 = vshrl.u32 %v5915, 7
    %v5917 = vsub.s32 %v5914, %v5916
    %v5918 = vrot.slane %v5041, %v5917
    %v5920 = vunpack.c.l.s4 1987475062
    %v5921 = vunpack.c.0.s8 %v5920
    %v5922 = vlaneseq
    %v5923 = vshrl.u32 %v5922, 7
    %v5924 = vsub.s32 %v5921, %v5923
    %v5925 = vrot.slane %v5041, %v5924
    %v5927 = vunpack.c.l.s4 269488144
    %v5928 = vunpack.c.0.s8 %v5927
    %v5929 = vlaneseq
    %v5930 = vshrl.u32 %v5929, 7
    %v5931 = vsub.s32 %v5928, %v5930
    %v5932 = vrot.slane %v5042, %v5931
    %v5934 = vunpack.c.l.s4 842150450
    %v5935 = vunpack.c.0.s8 %v5934
    %v5936 = vlaneseq
    %v5937 = vshrl.u32 %v5936, 7
    %v5938 = vsub.s32 %v5935, %v5937
    %v5939 = vrot.slane %v5042, %v5938
    %v5941 = vunpack.c.l.s4 1414812756
    %v5942 = vunpack.c.0.s8 %v5941
    %v5943 = vlaneseq
    %v5944 = vshrl.u32 %v5943, 7
    %v5945 = vsub.s32 %v5942, %v5944
    %v5946 = vrot.slane %v5042, %v5945
    %v5948 = vunpack.c.l.s4 1987475062
    %v5949 = vunpack.c.0.s8 %v5948
    %v5950 = vlaneseq
    %v5951 = vshrl.u32 %v5950, 7
    %v5952 = vsub.s32 %v5949, %v5951
    %v5953 = vrot.slane %v5042, %v5952
    %v5955 = vunpack.c.l.s4 269488144
    %v5956 = vunpack.c.0.s8 %v5955
    %v5957 = vlaneseq
    %v5958 = vshrl.u32 %v5957, 7
    %v5959 = vsub.s32 %v5956, %v5958
    %v5960 = vrot.slane %v5043, %v5959
    %v5962 = vunpack.c.l.s4 842150450
    %v5963 = vunpack.c.0.s8 %v5962
    %v5964 = vlaneseq
    %v5965 = vshrl.u32 %v5964, 7
    %v5966 = vsub.s32 %v5963, %v5965
    %v5967 = vrot.slane %v5043, %v5966
    %v5969 = vunpack.c.l.s4 1414812756
    %v5970 = vunpack.c.0.s8 %v5969
    %v5971 = vlaneseq
    %v5972 = vshrl.u32 %v5971, 7
    %v5973 = vsub.s32 %v5970, %v5972
    %v5974 = vrot.slane %v5043, %v5973
    %v5976 = vunpack.c.l.s4 1987475062
    %v5977 = vunpack.c.0.s8 %v5976
    %v5978 = vlaneseq
    %v5979 = vshrl.u32 %v5978, 7
    %v5980 = vsub.s32 %v5977, %v5979
    %v5981 = vrot.slane %v5043, %v5980
    %v5983 = vunpack.c.l.s4 269488144
    %v5984 = vunpack.c.0.s8 %v5983
    %v5985 = vlaneseq
    %v5986 = vshrl.u32 %v5985, 7
    %v5987 = vsub.s32 %v5984, %v5986
    %v5988 = vrot.slane %v5044, %v5987
    %v5990 = vunpack.c.l.s4 842150450
    %v5991 = vunpack.c.0.s8 %v5990
    %v5992 = vlaneseq
    %v5993 = vshrl.u32 %v5992, 7
    %v5994 = vsub.s32 %v5991, %v5993
    %v5995 = vrot.slane %v5044, %v5994
    %v5997 = vunpack.c.l.s4 1414812756
    %v5998 = vunpack.c.0.s8 %v5997
    %v5999 = vlaneseq
    %v6000 = vshrl.u32 %v5999, 7
    %v6001 = vsub.s32 %v5998, %v6000
    %v6002 = vrot.slane %v5044, %v6001
    %v6004 = vunpack.c.l.s4 1987475062
    %v6005 = vunpack.c.0.s8 %v6004
    %v6006 = vlaneseq
    %v6007 = vshrl.u32 %v6006, 7
    %v6008 = vsub.s32 %v6005, %v6007
    %v6009 = vrot.slane %v5044, %v6008
    %v6011 = vunpack.c.l.s4 269488144
    %v6012 = vunpack.c.0.s8 %v6011
    %v6013 = vlaneseq
    %v6014 = vshrl.u32 %v6013, 7
    %v6015 = vsub.s32 %v6012, %v6014
    %v6016 = vrot.slane %v5045, %v6015
    %v6018 = vunpack.c.l.s4 842150450
    %v6019 = vunpack.c.0.s8 %v6018
    %v6020 = vlaneseq
    %v6021 = vshrl.u32 %v6020, 7
    %v6022 = vsub.s32 %v6019, %v6021
    %v6023 = vrot.slane %v5045, %v6022
    %v6025 = vunpack.c.l.s4 1414812756
    %v6026 = vunpack.c.0.s8 %v6025
    %v6027 = vlaneseq
    %v6028 = vshrl.u32 %v6027, 7
    %v6029 = vsub.s32 %v6026, %v6028
    %v6030 = vrot.slane %v5045, %v6029
    %v6032 = vunpack.c.l.s4 1987475062
    %v6033 = vunpack.c.0.s8 %v6032
    %v6034 = vlaneseq
    %v6035 = vshrl.u32 %v6034, 7
    %v6036 = vsub.s32 %v6033, %v6035
    %v6037 = vrot.slane %v5045, %v6036
    %v6039 = vunpack.c.l.s4 269488144
    %v6040 = vunpack.c.0.s8 %v6039
    %v6041 = vlaneseq
    %v6042 = vshrl.u32 %v6041, 7
    %v6043 = vsub.s32 %v6040, %v6042
    %v6044 = vrot.slane %v5046, %v6043
    %v6046 = vunpack.c.l.s4 842150450
    %v6047 = vunpack.c.0.s8 %v6046
    %v6048 = vlaneseq
    %v6049 = vshrl.u32 %v6048, 7
    %v6050 = vsub.s32 %v6047, %v6049
    %v6051 = vrot.slane %v5046, %v6050
    %v6053 = vunpack.c.l.s4 1414812756
    %v6054 = vunpack.c.0.s8 %v6053
    %v6055 = vlaneseq
    %v6056 = vshrl.u32 %v6055, 7
    %v6057 = vsub.s32 %v6054, %v6056
    %v6058 = vrot.slane %v5046, %v6057
    %v6060 = vunpack.c.l.s4 1987475062
    %v6061 = vunpack.c.0.s8 %v6060
    %v6062 = vlaneseq
    %v6063 = vshrl.u32 %v6062, 7
    %v6064 = vsub.s32 %v6061, %v6063
    %v6065 = vrot.slane %v5046, %v6064
    %v6067 = vunpack.c.l.s4 269488144
    %v6068 = vunpack.c.0.s8 %v6067
    %v6069 = vlaneseq
    %v6070 = vshrl.u32 %v6069, 7
    %v6071 = vsub.s32 %v6068, %v6070
    %v6072 = vrot.slane %v5047, %v6071
    %v6074 = vunpack.c.l.s4 842150450
    %v6075 = vunpack.c.0.s8 %v6074
    %v6076 = vlaneseq
    %v6077 = vshrl.u32 %v6076, 7
    %v6078 = vsub.s32 %v6075, %v6077
    %v6079 = vrot.slane %v5047, %v6078
    %v6081 = vunpack.c.l.s4 1414812756
    %v6082 = vunpack.c.0.s8 %v6081
    %v6083 = vlaneseq
    %v6084 = vshrl.u32 %v6083, 7
    %v6085 = vsub.s32 %v6082, %v6084
    %v6086 = vrot.slane %v5047, %v6085
    %v6088 = vunpack.c.l.s4 1987475062
    %v6089 = vunpack.c.0.s8 %v6088
    %v6090 = vlaneseq
    %v6091 = vshrl.u32 %v6090, 7
    %v6092 = vsub.s32 %v6089, %v6091
    %v6093 = vrot.slane %v5047, %v6092
    %v6095 = vunpack.c.l.s4 269488144
    %v6096 = vunpack.c.0.s8 %v6095
    %v6097 = vlaneseq
    %v6098 = vshrl.u32 %v6097, 7
    %v6099 = vsub.s32 %v6096, %v6098
    %v6100 = vrot.slane %v5048, %v6099
    %v6102 = vunpack.c.l.s4 842150450
    %v6103 = vunpack.c.0.s8 %v6102
    %v6104 = vlaneseq
    %v6105 = vshrl.u32 %v6104, 7
    %v6106 = vsub.s32 %v6103, %v6105
    %v6107 = vrot.slane %v5048, %v6106
    %v6109 = vunpack.c.l.s4 1414812756
    %v6110 = vunpack.c.0.s8 %v6109
    %v6111 = vlaneseq
    %v6112 = vshrl.u32 %v6111, 7
    %v6113 = vsub.s32 %v6110, %v6112
    %v6114 = vrot.slane %v5048, %v6113
    %v6116 = vunpack.c.l.s4 1987475062
    %v6117 = vunpack.c.0.s8 %v6116
    %v6118 = vlaneseq
    %v6119 = vshrl.u32 %v6118, 7
    %v6120 = vsub.s32 %v6117, %v6119
    %v6121 = vrot.slane %v5048, %v6120
    %v6123 = vunpack.c.l.s4 269488144
    %v6124 = vunpack.c.0.s8 %v6123
    %v6125 = vlaneseq
    %v6126 = vshrl.u32 %v6125, 7
    %v6127 = vsub.s32 %v6124, %v6126
    %v6128 = vrot.slane %v5049, %v6127
    %v6130 = vunpack.c.l.s4 842150450
    %v6131 = vunpack.c.0.s8 %v6130
    %v6132 = vlaneseq
    %v6133 = vshrl.u32 %v6132, 7
    %v6134 = vsub.s32 %v6131, %v6133
    %v6135 = vrot.slane %v5049, %v6134
    %v6137 = vunpack.c.l.s4 1414812756
    %v6138 = vunpack.c.0.s8 %v6137
    %v6139 = vlaneseq
    %v6140 = vshrl.u32 %v6139, 7
    %v6141 = vsub.s32 %v6138, %v6140
    %v6142 = vrot.slane %v5049, %v6141
    %v6144 = vunpack.c.l.s4 1987475062
    %v6145 = vunpack.c.0.s8 %v6144
    %v6146 = vlaneseq
    %v6147 = vshrl.u32 %v6146, 7
    %v6148 = vsub.s32 %v6145, %v6147
    %v6149 = vrot.slane %v5049, %v6148
    %v6151 = vunpack.c.l.s4 269488144
    %v6152 = vunpack.c.0.s8 %v6151
    %v6153 = vlaneseq
    %v6154 = vshrl.u32 %v6153, 7
    %v6155 = vsub.s32 %v6152, %v6154
    %v6156 = vrot.slane %v5050, %v6155
    %v6158 = vunpack.c.l.s4 842150450
    %v6159 = vunpack.c.0.s8 %v6158
    %v6160 = vlaneseq
    %v6161 = vshrl.u32 %v6160, 7
    %v6162 = vsub.s32 %v6159, %v6161
    %v6163 = vrot.slane %v5050, %v6162
    %v6165 = vunpack.c.l.s4 1414812756
    %v6166 = vunpack.c.0.s8 %v6165
    %v6167 = vlaneseq
    %v6168 = vshrl.u32 %v6167, 7
    %v6169 = vsub.s32 %v6166, %v6168
    %v6170 = vrot.slane %v5050, %v6169
    %v6172 = vunpack.c.l.s4 1987475062
    %v6173 = vunpack.c.0.s8 %v6172
    %v6174 = vlaneseq
    %v6175 = vshrl.u32 %v6174, 7
    %v6176 = vsub.s32 %v6173, %v6175
    %v6177 = vrot.slane %v5050, %v6176
    %v6179 = vunpack.c.l.s4 269488144
    %v6180 = vunpack.c.0.s8 %v6179
    %v6181 = vlaneseq
    %v6182 = vshrl.u32 %v6181, 7
    %v6183 = vsub.s32 %v6180, %v6182
    %v6184 = vrot.slane %v5051, %v6183
    %v6186 = vunpack.c.l.s4 842150450
    %v6187 = vunpack.c.0.s8 %v6186
    %v6188 = vlaneseq
    %v6189 = vshrl.u32 %v6188, 7
    %v6190 = vsub.s32 %v6187, %v6189
    %v6191 = vrot.slane %v5051, %v6190
    %v6193 = vunpack.c.l.s4 1414812756
    %v6194 = vunpack.c.0.s8 %v6193
    %v6195 = vlaneseq
    %v6196 = vshrl.u32 %v6195, 7
    %v6197 = vsub.s32 %v6194, %v6196
    %v6198 = vrot.slane %v5051, %v6197
    %v6200 = vunpack.c.l.s4 1987475062
    %v6201 = vunpack.c.0.s8 %v6200
    %v6202 = vlaneseq
    %v6203 = vshrl.u32 %v6202, 7
    %v6204 = vsub.s32 %v6201, %v6203
    %v6205 = vrot.slane %v5051, %v6204
    %v6207 = vunpack.c.l.s4 269488144
    %v6208 = vunpack.c.0.s8 %v6207
    %v6209 = vlaneseq
    %v6210 = vshrl.u32 %v6209, 7
    %v6211 = vsub.s32 %v6208, %v6210
    %v6212 = vrot.slane %v5052, %v6211
    %v6214 = vunpack.c.l.s4 842150450
    %v6215 = vunpack.c.0.s8 %v6214
    %v6216 = vlaneseq
    %v6217 = vshrl.u32 %v6216, 7
    %v6218 = vsub.s32 %v6215, %v6217
    %v6219 = vrot.slane %v5052, %v6218
    %v6221 = vunpack.c.l.s4 1414812756
    %v6222 = vunpack.c.0.s8 %v6221
    %v6223 = vlaneseq
    %v6224 = vshrl.u32 %v6223, 7
    %v6225 = vsub.s32 %v6222, %v6224
    %v6226 = vrot.slane %v5052, %v6225
    %v6228 = vunpack.c.l.s4 1987475062
    %v6229 = vunpack.c.0.s8 %v6228
    %v6230 = vlaneseq
    %v6231 = vshrl.u32 %v6230, 7
    %v6232 = vsub.s32 %v6229, %v6231
    %v6233 = vrot.slane %v5052, %v6232
    %v6235 = vunpack.c.l.s4 269488144
    %v6236 = vunpack.c.0.s8 %v6235
    %v6237 = vlaneseq
    %v6238 = vshrl.u32 %v6237, 7
    %v6239 = vsub.s32 %v6236, %v6238
    %v6240 = vrot.slane %v5053, %v6239
    %v6242 = vunpack.c.l.s4 842150450
    %v6243 = vunpack.c.0.s8 %v6242
    %v6244 = vlaneseq
    %v6245 = vshrl.u32 %v6244, 7
    %v6246 = vsub.s32 %v6243, %v6245
    %v6247 = vrot.slane %v5053, %v6246
    %v6249 = vunpack.c.l.s4 1414812756
    %v6250 = vunpack.c.0.s8 %v6249
    %v6251 = vlaneseq
    %v6252 = vshrl.u32 %v6251, 7
    %v6253 = vsub.s32 %v6250, %v6252
    %v6254 = vrot.slane %v5053, %v6253
    %v6256 = vunpack.c.l.s4 1987475062
    %v6257 = vunpack.c.0.s8 %v6256
    %v6258 = vlaneseq
    %v6259 = vshrl.u32 %v6258, 7
    %v6260 = vsub.s32 %v6257, %v6259
    %v6261 = vrot.slane %v5053, %v6260
    %v6263 = vunpack.c.l.s4 269488144
    %v6264 = vunpack.c.0.s8 %v6263
    %v6265 = vlaneseq
    %v6266 = vshrl.u32 %v6265, 7
    %v6267 = vsub.s32 %v6264, %v6266
    %v6268 = vrot.slane %v5054, %v6267
    %v6270 = vunpack.c.l.s4 842150450
    %v6271 = vunpack.c.0.s8 %v6270
    %v6272 = vlaneseq
    %v6273 = vshrl.u32 %v6272, 7
    %v6274 = vsub.s32 %v6271, %v6273
    %v6275 = vrot.slane %v5054, %v6274
    %v6277 = vunpack.c.l.s4 1414812756
    %v6278 = vunpack.c.0.s8 %v6277
    %v6279 = vlaneseq
    %v6280 = vshrl.u32 %v6279, 7
    %v6281 = vsub.s32 %v6278, %v6280
    %v6282 = vrot.slane %v5054, %v6281
    %v6284 = vunpack.c.l.s4 1987475062
    %v6285 = vunpack.c.0.s8 %v6284
    %v6286 = vlaneseq
    %v6287 = vshrl.u32 %v6286, 7
    %v6288 = vsub.s32 %v6285, %v6287
    %v6289 = vrot.slane %v5054, %v6288
    %v6291 = vunpack.c.l.s4 269488144
    %v6292 = vunpack.c.0.s8 %v6291
    %v6293 = vlaneseq
    %v6294 = vshrl.u32 %v6293, 7
    %v6295 = vsub.s32 %v6292, %v6294
    %v6296 = vrot.slane %v5055, %v6295
    %v6298 = vunpack.c.l.s4 842150450
    %v6299 = vunpack.c.0.s8 %v6298
    %v6300 = vlaneseq
    %v6301 = vshrl.u32 %v6300, 7
    %v6302 = vsub.s32 %v6299, %v6301
    %v6303 = vrot.slane %v5055, %v6302
    %v6305 = vunpack.c.l.s4 1414812756
    %v6306 = vunpack.c.0.s8 %v6305
    %v6307 = vlaneseq
    %v6308 = vshrl.u32 %v6307, 7
    %v6309 = vsub.s32 %v6306, %v6308
    %v6310 = vrot.slane %v5055, %v6309
    %v6312 = vunpack.c.l.s4 1987475062
    %v6313 = vunpack.c.0.s8 %v6312
    %v6314 = vlaneseq
    %v6315 = vshrl.u32 %v6314, 7
    %v6316 = vsub.s32 %v6313, %v6315
    %v6317 = vrot.slane %v5055, %v6316
    %v6319 = vunpack.c.l.s4 269488144
    %v6320 = vunpack.c.0.s8 %v6319
    %v6321 = vlaneseq
    %v6322 = vshrl.u32 %v6321, 7
    %v6323 = vsub.s32 %v6320, %v6322
    %v6324 = vrot.slane %v5056, %v6323
    %v6326 = vunpack.c.l.s4 842150450
    %v6327 = vunpack.c.0.s8 %v6326
    %v6328 = vlaneseq
    %v6329 = vshrl.u32 %v6328, 7
    %v6330 = vsub.s32 %v6327, %v6329
    %v6331 = vrot.slane %v5056, %v6330
    %v6333 = vunpack.c.l.s4 1414812756
    %v6334 = vunpack.c.0.s8 %v6333
    %v6335 = vlaneseq
    %v6336 = vshrl.u32 %v6335, 7
    %v6337 = vsub.s32 %v6334, %v6336
    %v6338 = vrot.slane %v5056, %v6337
    %v6340 = vunpack.c.l.s4 1987475062
    %v6341 = vunpack.c.0.s8 %v6340
    %v6342 = vlaneseq
    %v6343 = vshrl.u32 %v6342, 7
    %v6344 = vsub.s32 %v6341, %v6343
    %v6345 = vrot.slane %v5056, %v6344
    %v6347 = vunpack.c.l.s4 269488144
    %v6348 = vunpack.c.0.s8 %v6347
    %v6349 = vlaneseq
    %v6350 = vshrl.u32 %v6349, 7
    %v6351 = vsub.s32 %v6348, %v6350
    %v6352 = vrot.slane %v5057, %v6351
    %v6354 = vunpack.c.l.s4 842150450
    %v6355 = vunpack.c.0.s8 %v6354
    %v6356 = vlaneseq
    %v6357 = vshrl.u32 %v6356, 7
    %v6358 = vsub.s32 %v6355, %v6357
    %v6359 = vrot.slane %v5057, %v6358
    %v6361 = vunpack.c.l.s4 1414812756
    %v6362 = vunpack.c.0.s8 %v6361
    %v6363 = vlaneseq
    %v6364 = vshrl.u32 %v6363, 7
    %v6365 = vsub.s32 %v6362, %v6364
    %v6366 = vrot.slane %v5057, %v6365
    %v6368 = vunpack.c.l.s4 1987475062
    %v6369 = vunpack.c.0.s8 %v6368
    %v6370 = vlaneseq
    %v6371 = vshrl.u32 %v6370, 7
    %v6372 = vsub.s32 %v6369, %v6371
    %v6373 = vrot.slane %v5057, %v6372
    %v6375 = vunpack.c.l.s4 269488144
    %v6376 = vunpack.c.0.s8 %v6375
    %v6377 = vlaneseq
    %v6378 = vshrl.u32 %v6377, 7
    %v6379 = vsub.s32 %v6376, %v6378
    %v6380 = vrot.slane %v5058, %v6379
    %v6382 = vunpack.c.l.s4 842150450
    %v6383 = vunpack.c.0.s8 %v6382
    %v6384 = vlaneseq
    %v6385 = vshrl.u32 %v6384, 7
    %v6386 = vsub.s32 %v6383, %v6385
    %v6387 = vrot.slane %v5058, %v6386
    %v6389 = vunpack.c.l.s4 1414812756
    %v6390 = vunpack.c.0.s8 %v6389
    %v6391 = vlaneseq
    %v6392 = vshrl.u32 %v6391, 7
    %v6393 = vsub.s32 %v6390, %v6392
    %v6394 = vrot.slane %v5058, %v6393
    %v6396 = vunpack.c.l.s4 1987475062
    %v6397 = vunpack.c.0.s8 %v6396
    %v6398 = vlaneseq
    %v6399 = vshrl.u32 %v6398, 7
    %v6400 = vsub.s32 %v6397, %v6399
    %v6401 = vrot.slane %v5058, %v6400
    %v6403 = vunpack.c.l.s4 269488144
    %v6404 = vunpack.c.0.s8 %v6403
    %v6405 = vlaneseq
    %v6406 = vshrl.u32 %v6405, 7
    %v6407 = vsub.s32 %v6404, %v6406
    %v6408 = vrot.slane %v5059, %v6407
    %v6410 = vunpack.c.l.s4 842150450
    %v6411 = vunpack.c.0.s8 %v6410
    %v6412 = vlaneseq
    %v6413 = vshrl.u32 %v6412, 7
    %v6414 = vsub.s32 %v6411, %v6413
    %v6415 = vrot.slane %v5059, %v6414
    %v6417 = vunpack.c.l.s4 1414812756
    %v6418 = vunpack.c.0.s8 %v6417
    %v6419 = vlaneseq
    %v6420 = vshrl.u32 %v6419, 7
    %v6421 = vsub.s32 %v6418, %v6420
    %v6422 = vrot.slane %v5059, %v6421
    %v6424 = vunpack.c.l.s4 1987475062
    %v6425 = vunpack.c.0.s8 %v6424
    %v6426 = vlaneseq
    %v6427 = vshrl.u32 %v6426, 7
    %v6428 = vsub.s32 %v6425, %v6427
    %v6429 = vrot.slane %v5059, %v6428
    %v6431 = vunpack.c.l.s4 269488144
    %v6432 = vunpack.c.0.s8 %v6431
    %v6433 = vlaneseq
    %v6434 = vshrl.u32 %v6433, 7
    %v6435 = vsub.s32 %v6432, %v6434
    %v6436 = vrot.slane %v5060, %v6435
    %v6438 = vunpack.c.l.s4 842150450
    %v6439 = vunpack.c.0.s8 %v6438
    %v6440 = vlaneseq
    %v6441 = vshrl.u32 %v6440, 7
    %v6442 = vsub.s32 %v6439, %v6441
    %v6443 = vrot.slane %v5060, %v6442
    %v6445 = vunpack.c.l.s4 1414812756
    %v6446 = vunpack.c.0.s8 %v6445
    %v6447 = vlaneseq
    %v6448 = vshrl.u32 %v6447, 7
    %v6449 = vsub.s32 %v6446, %v6448
    %v6450 = vrot.slane %v5060, %v6449
    %v6452 = vunpack.c.l.s4 1987475062
    %v6453 = vunpack.c.0.s8 %v6452
    %v6454 = vlaneseq
    %v6455 = vshrl.u32 %v6454, 7
    %v6456 = vsub.s32 %v6453, %v6455
    %v6457 = vrot.slane %v5060, %v6456
    %v6459 = vunpack.c.l.s4 269488144
    %v6460 = vunpack.c.0.s8 %v6459
    %v6461 = vlaneseq
    %v6462 = vshrl.u32 %v6461, 7
    %v6463 = vsub.s32 %v6460, %v6462
    %v6464 = vrot.slane %v5061, %v6463
    %v6466 = vunpack.c.l.s4 842150450
    %v6467 = vunpack.c.0.s8 %v6466
    %v6468 = vlaneseq
    %v6469 = vshrl.u32 %v6468, 7
    %v6470 = vsub.s32 %v6467, %v6469
    %v6471 = vrot.slane %v5061, %v6470
    %v6473 = vunpack.c.l.s4 1414812756
    %v6474 = vunpack.c.0.s8 %v6473
    %v6475 = vlaneseq
    %v6476 = vshrl.u32 %v6475, 7
    %v6477 = vsub.s32 %v6474, %v6476
    %v6478 = vrot.slane %v5061, %v6477
    %v6480 = vunpack.c.l.s4 1987475062
    %v6481 = vunpack.c.0.s8 %v6480
    %v6482 = vlaneseq
    %v6483 = vshrl.u32 %v6482, 7
    %v6484 = vsub.s32 %v6481, %v6483
    %v6485 = vrot.slane %v5061, %v6484
    %v6487 = vunpack.c.l.s4 269488144
    %v6488 = vunpack.c.0.s8 %v6487
    %v6489 = vlaneseq
    %v6490 = vshrl.u32 %v6489, 7
    %v6491 = vsub.s32 %v6488, %v6490
    %v6492 = vrot.slane %v5062, %v6491
    %v6494 = vunpack.c.l.s4 842150450
    %v6495 = vunpack.c.0.s8 %v6494
    %v6496 = vlaneseq
    %v6497 = vshrl.u32 %v6496, 7
    %v6498 = vsub.s32 %v6495, %v6497
    %v6499 = vrot.slane %v5062, %v6498
    %v6501 = vunpack.c.l.s4 1414812756
    %v6502 = vunpack.c.0.s8 %v6501
    %v6503 = vlaneseq
    %v6504 = vshrl.u32 %v6503, 7
    %v6505 = vsub.s32 %v6502, %v6504
    %v6506 = vrot.slane %v5062, %v6505
    %v6508 = vunpack.c.l.s4 1987475062
    %v6509 = vunpack.c.0.s8 %v6508
    %v6510 = vlaneseq
    %v6511 = vshrl.u32 %v6510, 7
    %v6512 = vsub.s32 %v6509, %v6511
    %v6513 = vrot.slane %v5062, %v6512
    %v6515 = vunpack.c.l.s4 269488144
    %v6516 = vunpack.c.0.s8 %v6515
    %v6517 = vlaneseq
    %v6518 = vshrl.u32 %v6517, 7
    %v6519 = vsub.s32 %v6516, %v6518
    %v6520 = vrot.slane %v5063, %v6519
    %v6522 = vunpack.c.l.s4 842150450
    %v6523 = vunpack.c.0.s8 %v6522
    %v6524 = vlaneseq
    %v6525 = vshrl.u32 %v6524, 7
    %v6526 = vsub.s32 %v6523, %v6525
    %v6527 = vrot.slane %v5063, %v6526
    %v6529 = vunpack.c.l.s4 1414812756
    %v6530 = vunpack.c.0.s8 %v6529
    %v6531 = vlaneseq
    %v6532 = vshrl.u32 %v6531, 7
    %v6533 = vsub.s32 %v6530, %v6532
    %v6534 = vrot.slane %v5063, %v6533
    %v6536 = vunpack.c.l.s4 1987475062
    %v6537 = vunpack.c.0.s8 %v6536
    %v6538 = vlaneseq
    %v6539 = vshrl.u32 %v6538, 7
    %v6540 = vsub.s32 %v6537, %v6539
    %v6541 = vrot.slane %v5063, %v6540
    %v6543 = vunpack.c.l.s4 269488144
    %v6544 = vunpack.c.0.s8 %v6543
    %v6545 = vlaneseq
    %v6546 = vshrl.u32 %v6545, 7
    %v6547 = vsub.s32 %v6544, %v6546
    %v6548 = vrot.slane %v5064, %v6547
    %v6550 = vunpack.c.l.s4 842150450
    %v6551 = vunpack.c.0.s8 %v6550
    %v6552 = vlaneseq
    %v6553 = vshrl.u32 %v6552, 7
    %v6554 = vsub.s32 %v6551, %v6553
    %v6555 = vrot.slane %v5064, %v6554
    %v6557 = vunpack.c.l.s4 1414812756
    %v6558 = vunpack.c.0.s8 %v6557
    %v6559 = vlaneseq
    %v6560 = vshrl.u32 %v6559, 7
    %v6561 = vsub.s32 %v6558, %v6560
    %v6562 = vrot.slane %v5064, %v6561
    %v6564 = vunpack.c.l.s4 1987475062
    %v6565 = vunpack.c.0.s8 %v6564
    %v6566 = vlaneseq
    %v6567 = vshrl.u32 %v6566, 7
    %v6568 = vsub.s32 %v6565, %v6567
    %v6569 = vrot.slane %v5064, %v6568
    %v6571 = vunpack.c.l.s4 269488144
    %v6572 = vunpack.c.0.s8 %v6571
    %v6573 = vlaneseq
    %v6574 = vshrl.u32 %v6573, 7
    %v6575 = vsub.s32 %v6572, %v6574
    %v6576 = vrot.slane %v5065, %v6575
    %v6578 = vunpack.c.l.s4 842150450
    %v6579 = vunpack.c.0.s8 %v6578
    %v6580 = vlaneseq
    %v6581 = vshrl.u32 %v6580, 7
    %v6582 = vsub.s32 %v6579, %v6581
    %v6583 = vrot.slane %v5065, %v6582
    %v6585 = vunpack.c.l.s4 1414812756
    %v6586 = vunpack.c.0.s8 %v6585
    %v6587 = vlaneseq
    %v6588 = vshrl.u32 %v6587, 7
    %v6589 = vsub.s32 %v6586, %v6588
    %v6590 = vrot.slane %v5065, %v6589
    %v6592 = vunpack.c.l.s4 1987475062
    %v6593 = vunpack.c.0.s8 %v6592
    %v6594 = vlaneseq
    %v6595 = vshrl.u32 %v6594, 7
    %v6596 = vsub.s32 %v6593, %v6595
    %v6597 = vrot.slane %v5065, %v6596
    %v6599 = vunpack.c.l.s4 269488144
    %v6600 = vunpack.c.0.s8 %v6599
    %v6601 = vlaneseq
    %v6602 = vshrl.u32 %v6601, 7
    %v6603 = vsub.s32 %v6600, %v6602
    %v6604 = vrot.slane %v5066, %v6603
    %v6606 = vunpack.c.l.s4 842150450
    %v6607 = vunpack.c.0.s8 %v6606
    %v6608 = vlaneseq
    %v6609 = vshrl.u32 %v6608, 7
    %v6610 = vsub.s32 %v6607, %v6609
    %v6611 = vrot.slane %v5066, %v6610
    %v6613 = vunpack.c.l.s4 1414812756
    %v6614 = vunpack.c.0.s8 %v6613
    %v6615 = vlaneseq
    %v6616 = vshrl.u32 %v6615, 7
    %v6617 = vsub.s32 %v6614, %v6616
    %v6618 = vrot.slane %v5066, %v6617
    %v6620 = vunpack.c.l.s4 1987475062
    %v6621 = vunpack.c.0.s8 %v6620
    %v6622 = vlaneseq
    %v6623 = vshrl.u32 %v6622, 7
    %v6624 = vsub.s32 %v6621, %v6623
    %v6625 = vrot.slane %v5066, %v6624
    %v6627 = vunpack.c.l.s4 269488144
    %v6628 = vunpack.c.0.s8 %v6627
    %v6629 = vlaneseq
    %v6630 = vshrl.u32 %v6629, 7
    %v6631 = vsub.s32 %v6628, %v6630
    %v6632 = vrot.slane %v5067, %v6631
    %v6634 = vunpack.c.l.s4 842150450
    %v6635 = vunpack.c.0.s8 %v6634
    %v6636 = vlaneseq
    %v6637 = vshrl.u32 %v6636, 7
    %v6638 = vsub.s32 %v6635, %v6637
    %v6639 = vrot.slane %v5067, %v6638
    %v6641 = vunpack.c.l.s4 1414812756
    %v6642 = vunpack.c.0.s8 %v6641
    %v6643 = vlaneseq
    %v6644 = vshrl.u32 %v6643, 7
    %v6645 = vsub.s32 %v6642, %v6644
    %v6646 = vrot.slane %v5067, %v6645
    %v6648 = vunpack.c.l.s4 1987475062
    %v6649 = vunpack.c.0.s8 %v6648
    %v6650 = vlaneseq
    %v6651 = vshrl.u32 %v6650, 7
    %v6652 = vsub.s32 %v6649, %v6651
    %v6653 = vrot.slane %v5067, %v6652
    %v6655 = vunpack.c.l.s4 269488144
    %v6656 = vunpack.c.0.s8 %v6655
    %v6657 = vlaneseq
    %v6658 = vshrl.u32 %v6657, 7
    %v6659 = vsub.s32 %v6656, %v6658
    %v6660 = vrot.slane %v5068, %v6659
    %v6662 = vunpack.c.l.s4 842150450
    %v6663 = vunpack.c.0.s8 %v6662
    %v6664 = vlaneseq
    %v6665 = vshrl.u32 %v6664, 7
    %v6666 = vsub.s32 %v6663, %v6665
    %v6667 = vrot.slane %v5068, %v6666
    %v6669 = vunpack.c.l.s4 1414812756
    %v6670 = vunpack.c.0.s8 %v6669
    %v6671 = vlaneseq
    %v6672 = vshrl.u32 %v6671, 7
    %v6673 = vsub.s32 %v6670, %v6672
    %v6674 = vrot.slane %v5068, %v6673
    %v6676 = vunpack.c.l.s4 1987475062
    %v6677 = vunpack.c.0.s8 %v6676
    %v6678 = vlaneseq
    %v6679 = vshrl.u32 %v6678, 7
    %v6680 = vsub.s32 %v6677, %v6679
    %v6681 = vrot.slane %v5068, %v6680
    %v6683 = vunpack.c.l.s4 269488144
    %v6684 = vunpack.c.0.s8 %v6683
    %v6685 = vlaneseq
    %v6686 = vshrl.u32 %v6685, 7
    %v6687 = vsub.s32 %v6684, %v6686
    %v6688 = vrot.slane %v5069, %v6687
    %v6690 = vunpack.c.l.s4 842150450
    %v6691 = vunpack.c.0.s8 %v6690
    %v6692 = vlaneseq
    %v6693 = vshrl.u32 %v6692, 7
    %v6694 = vsub.s32 %v6691, %v6693
    %v6695 = vrot.slane %v5069, %v6694
    %v6697 = vunpack.c.l.s4 1414812756
    %v6698 = vunpack.c.0.s8 %v6697
    %v6699 = vlaneseq
    %v6700 = vshrl.u32 %v6699, 7
    %v6701 = vsub.s32 %v6698, %v6700
    %v6702 = vrot.slane %v5069, %v6701
    %v6704 = vunpack.c.l.s4 1987475062
    %v6705 = vunpack.c.0.s8 %v6704
    %v6706 = vlaneseq
    %v6707 = vshrl.u32 %v6706, 7
    %v6708 = vsub.s32 %v6705, %v6707
    %v6709 = vrot.slane %v5069, %v6708
    %v6711 = vunpack.c.l.s4 269488144
    %v6712 = vunpack.c.0.s8 %v6711
    %v6713 = vlaneseq
    %v6714 = vshrl.u32 %v6713, 7
    %v6715 = vsub.s32 %v6712, %v6714
    %v6716 = vrot.slane %v5070, %v6715
    %v6718 = vunpack.c.l.s4 842150450
    %v6719 = vunpack.c.0.s8 %v6718
    %v6720 = vlaneseq
    %v6721 = vshrl.u32 %v6720, 7
    %v6722 = vsub.s32 %v6719, %v6721
    %v6723 = vrot.slane %v5070, %v6722
    %v6725 = vunpack.c.l.s4 1414812756
    %v6726 = vunpack.c.0.s8 %v6725
    %v6727 = vlaneseq
    %v6728 = vshrl.u32 %v6727, 7
    %v6729 = vsub.s32 %v6726, %v6728
    %v6730 = vrot.slane %v5070, %v6729
    %v6732 = vunpack.c.l.s4 1987475062
    %v6733 = vunpack.c.0.s8 %v6732
    %v6734 = vlaneseq
    %v6735 = vshrl.u32 %v6734, 7
    %v6736 = vsub.s32 %v6733, %v6735
    %v6737 = vrot.slane %v5070, %v6736
    %v6739 = vunpack.c.l.s4 269488144
    %v6740 = vunpack.c.0.s8 %v6739
    %v6741 = vlaneseq
    %v6742 = vshrl.u32 %v6741, 7
    %v6743 = vsub.s32 %v6740, %v6742
    %v6744 = vrot.slane %v5071, %v6743
    %v6746 = vunpack.c.l.s4 842150450
    %v6747 = vunpack.c.0.s8 %v6746
    %v6748 = vlaneseq
    %v6749 = vshrl.u32 %v6748, 7
    %v6750 = vsub.s32 %v6747, %v6749
    %v6751 = vrot.slane %v5071, %v6750
    %v6753 = vunpack.c.l.s4 1414812756
    %v6754 = vunpack.c.0.s8 %v6753
    %v6755 = vlaneseq
    %v6756 = vshrl.u32 %v6755, 7
    %v6757 = vsub.s32 %v6754, %v6756
    %v6758 = vrot.slane %v5071, %v6757
    %v6760 = vunpack.c.l.s4 1987475062
    %v6761 = vunpack.c.0.s8 %v6760
    %v6762 = vlaneseq
    %v6763 = vshrl.u32 %v6762, 7
    %v6764 = vsub.s32 %v6761, %v6763
    %v6765 = vrot.slane %v5071, %v6764
    %v6767 = vunpack.c.l.s4 269488144
    %v6768 = vunpack.c.0.s8 %v6767
    %v6769 = vlaneseq
    %v6770 = vshrl.u32 %v6769, 7
    %v6771 = vsub.s32 %v6768, %v6770
    %v6772 = vrot.slane %v5072, %v6771
    %v6774 = vunpack.c.l.s4 842150450
    %v6775 = vunpack.c.0.s8 %v6774
    %v6776 = vlaneseq
    %v6777 = vshrl.u32 %v6776, 7
    %v6778 = vsub.s32 %v6775, %v6777
    %v6779 = vrot.slane %v5072, %v6778
    %v6781 = vunpack.c.l.s4 1414812756
    %v6782 = vunpack.c.0.s8 %v6781
    %v6783 = vlaneseq
    %v6784 = vshrl.u32 %v6783, 7
    %v6785 = vsub.s32 %v6782, %v6784
    %v6786 = vrot.slane %v5072, %v6785
    %v6788 = vunpack.c.l.s4 1987475062
    %v6789 = vunpack.c.0.s8 %v6788
    %v6790 = vlaneseq
    %v6791 = vshrl.u32 %v6790, 7
    %v6792 = vsub.s32 %v6789, %v6791
    %v6793 = vrot.slane %v5072, %v6792
    %v6795 = vunpack.c.l.s4 269488144
    %v6796 = vunpack.c.0.s8 %v6795
    %v6797 = vlaneseq
    %v6798 = vshrl.u32 %v6797, 7
    %v6799 = vsub.s32 %v6796, %v6798
    %v6800 = vrot.slane %v5073, %v6799
    %v6802 = vunpack.c.l.s4 842150450
    %v6803 = vunpack.c.0.s8 %v6802
    %v6804 = vlaneseq
    %v6805 = vshrl.u32 %v6804, 7
    %v6806 = vsub.s32 %v6803, %v6805
    %v6807 = vrot.slane %v5073, %v6806
    %v6809 = vunpack.c.l.s4 1414812756
    %v6810 = vunpack.c.0.s8 %v6809
    %v6811 = vlaneseq
    %v6812 = vshrl.u32 %v6811, 7
    %v6813 = vsub.s32 %v6810, %v6812
    %v6814 = vrot.slane %v5073, %v6813
    %v6816 = vunpack.c.l.s4 1987475062
    %v6817 = vunpack.c.0.s8 %v6816
    %v6818 = vlaneseq
    %v6819 = vshrl.u32 %v6818, 7
    %v6820 = vsub.s32 %v6817, %v6819
    %v6821 = vrot.slane %v5073, %v6820
    %v6823 = vunpack.c.l.s4 269488144
    %v6824 = vunpack.c.0.s8 %v6823
    %v6825 = vlaneseq
    %v6826 = vshrl.u32 %v6825, 7
    %v6827 = vsub.s32 %v6824, %v6826
    %v6828 = vrot.slane %v5074, %v6827
    %v6830 = vunpack.c.l.s4 842150450
    %v6831 = vunpack.c.0.s8 %v6830
    %v6832 = vlaneseq
    %v6833 = vshrl.u32 %v6832, 7
    %v6834 = vsub.s32 %v6831, %v6833
    %v6835 = vrot.slane %v5074, %v6834
    %v6837 = vunpack.c.l.s4 1414812756
    %v6838 = vunpack.c.0.s8 %v6837
    %v6839 = vlaneseq
    %v6840 = vshrl.u32 %v6839, 7
    %v6841 = vsub.s32 %v6838, %v6840
    %v6842 = vrot.slane %v5074, %v6841
    %v6844 = vunpack.c.l.s4 1987475062
    %v6845 = vunpack.c.0.s8 %v6844
    %v6846 = vlaneseq
    %v6847 = vshrl.u32 %v6846, 7
    %v6848 = vsub.s32 %v6845, %v6847
    %v6849 = vrot.slane %v5074, %v6848
    %v6851 = vunpack.c.l.s4 269488144
    %v6852 = vunpack.c.0.s8 %v6851
    %v6853 = vlaneseq
    %v6854 = vshrl.u32 %v6853, 7
    %v6855 = vsub.s32 %v6852, %v6854
    %v6856 = vrot.slane %v5075, %v6855
    %v6858 = vunpack.c.l.s4 842150450
    %v6859 = vunpack.c.0.s8 %v6858
    %v6860 = vlaneseq
    %v6861 = vshrl.u32 %v6860, 7
    %v6862 = vsub.s32 %v6859, %v6861
    %v6863 = vrot.slane %v5075, %v6862
    %v6865 = vunpack.c.l.s4 1414812756
    %v6866 = vunpack.c.0.s8 %v6865
    %v6867 = vlaneseq
    %v6868 = vshrl.u32 %v6867, 7
    %v6869 = vsub.s32 %v6866, %v6868
    %v6870 = vrot.slane %v5075, %v6869
    %v6872 = vunpack.c.l.s4 1987475062
    %v6873 = vunpack.c.0.s8 %v6872
    %v6874 = vlaneseq
    %v6875 = vshrl.u32 %v6874, 7
    %v6876 = vsub.s32 %v6873, %v6875
    %v6877 = vrot.slane %v5075, %v6876
    %v6879 = vunpack.c.l.s4 269488144
    %v6880 = vunpack.c.0.s8 %v6879
    %v6881 = vlaneseq
    %v6882 = vshrl.u32 %v6881, 7
    %v6883 = vsub.s32 %v6880, %v6882
    %v6884 = vrot.slane %v5076, %v6883
    %v6886 = vunpack.c.l.s4 842150450
    %v6887 = vunpack.c.0.s8 %v6886
    %v6888 = vlaneseq
    %v6889 = vshrl.u32 %v6888, 7
    %v6890 = vsub.s32 %v6887, %v6889
    %v6891 = vrot.slane %v5076, %v6890
    %v6893 = vunpack.c.l.s4 1414812756
    %v6894 = vunpack.c.0.s8 %v6893
    %v6895 = vlaneseq
    %v6896 = vshrl.u32 %v6895, 7
    %v6897 = vsub.s32 %v6894, %v6896
    %v6898 = vrot.slane %v5076, %v6897
    %v6900 = vunpack.c.l.s4 1987475062
    %v6901 = vunpack.c.0.s8 %v6900
    %v6902 = vlaneseq
    %v6903 = vshrl.u32 %v6902, 7
    %v6904 = vsub.s32 %v6901, %v6903
    %v6905 = vrot.slane %v5076, %v6904
    %v6907 = vunpack.c.l.s4 269488144
    %v6908 = vunpack.c.0.s8 %v6907
    %v6909 = vlaneseq
    %v6910 = vshrl.u32 %v6909, 7
    %v6911 = vsub.s32 %v6908, %v6910
    %v6912 = vrot.slane %v5077, %v6911
    %v6914 = vunpack.c.l.s4 842150450
    %v6915 = vunpack.c.0.s8 %v6914
    %v6916 = vlaneseq
    %v6917 = vshrl.u32 %v6916, 7
    %v6918 = vsub.s32 %v6915, %v6917
    %v6919 = vrot.slane %v5077, %v6918
    %v6921 = vunpack.c.l.s4 1414812756
    %v6922 = vunpack.c.0.s8 %v6921
    %v6923 = vlaneseq
    %v6924 = vshrl.u32 %v6923, 7
    %v6925 = vsub.s32 %v6922, %v6924
    %v6926 = vrot.slane %v5077, %v6925
    %v6928 = vunpack.c.l.s4 1987475062
    %v6929 = vunpack.c.0.s8 %v6928
    %v6930 = vlaneseq
    %v6931 = vshrl.u32 %v6930, 7
    %v6932 = vsub.s32 %v6929, %v6931
    %v6933 = vrot.slane %v5077, %v6932
    %v6934 = vcombine.low %v5148, %v5155
    %v6935 = vcombine.low %v5162, %v5169
    %v6937 = vunpack.c.l.s4 1983009808
    %v6938 = vunpack.c.0.s8 %v6937
    %v6939 = vlaneseq
    %v6940 = vshrl.u32 %v6939, 7
    %v6941 = vsub.s32 %v6938, %v6940
    %v6942 = vrot.slane %v6934, %v6941
    %v6944 = vunpack.c.l.s4 1983009808
    %v6945 = vunpack.c.0.s8 %v6944
    %v6946 = vlaneseq
    %v6947 = vshrl.u32 %v6946, 7
    %v6948 = vsub.s32 %v6945, %v6947
    %v6949 = vrot.slane %v6935, %v6948
    %v6950 = vcombine.low %v6942, %v6949
    %v6951 = vcombine.low %v5176, %v5183
    %v6952 = vcombine.low %v5190, %v5197
    %v6954 = vunpack.c.l.s4 1983009808
    %v6955 = vunpack.c.0.s8 %v6954
    %v6956 = vlaneseq
    %v6957 = vshrl.u32 %v6956, 7
    %v6958 = vsub.s32 %v6955, %v6957
    %v6959 = vrot.slane %v6951, %v6958
    %v6961 = vunpack.c.l.s4 1983009808
    %v6962 = vunpack.c.0.s8 %v6961
    %v6963 = vlaneseq
    %v6964 = vshrl.u32 %v6963, 7
    %v6965 = vsub.s32 %v6962, %v6964
    %v6966 = vrot.slane %v6952, %v6965
    %v6967 = vcombine.low %v6959, %v6966
    %v6968 = vcombine.low %v5204, %v5211
    %v6969 = vcombine.low %v5218, %v5225
    %v6971 = vunpack.c.l.s4 1983009808
    %v6972 = vunpack.c.0.s8 %v6971
    %v6973 = vlaneseq
    %v6974 = vshrl.u32 %v6973, 7
    %v6975 = vsub.s32 %v6972, %v6974
    %v6976 = vrot.slane %v6968, %v6975
    %v6978 = vunpack.c.l.s4 1983009808
    %v6979 = vunpack.c.0.s8 %v6978
    %v6980 = vlaneseq
    %v6981 = vshrl.u32 %v6980, 7
    %v6982 = vsub.s32 %v6979, %v6981
    %v6983 = vrot.slane %v6969, %v6982
    %v6984 = vcombine.low %v6976, %v6983
    %v6985 = vcombine.low %v5232, %v5239
    %v6986 = vcombine.low %v5246, %v5253
    %v6988 = vunpack.c.l.s4 1983009808
    %v6989 = vunpack.c.0.s8 %v6988
    %v6990 = vlaneseq
    %v6991 = vshrl.u32 %v6990, 7
    %v6992 = vsub.s32 %v6989, %v6991
    %v6993 = vrot.slane %v6985, %v6992
    %v6995 = vunpack.c.l.s4 1983009808
    %v6996 = vunpack.c.0.s8 %v6995
    %v6997 = vlaneseq
    %v6998 = vshrl.u32 %v6997, 7
    %v6999 = vsub.s32 %v6996, %v6998
    %v7000 = vrot.slane %v6986, %v6999
    %v7001 = vcombine.low %v6993, %v7000
    %v7002 = vcombine.low %v5260, %v5267
    %v7003 = vcombine.low %v5274, %v5281
    %v7005 = vunpack.c.l.s4 1983009808
    %v7006 = vunpack.c.0.s8 %v7005
    %v7007 = vlaneseq
    %v7008 = vshrl.u32 %v7007, 7
    %v7009 = vsub.s32 %v7006, %v7008
    %v7010 = vrot.slane %v7002, %v7009
    %v7012 = vunpack.c.l.s4 1983009808
    %v7013 = vunpack.c.0.s8 %v7012
    %v7014 = vlaneseq
    %v7015 = vshrl.u32 %v7014, 7
    %v7016 = vsub.s32 %v7013, %v7015
    %v7017 = vrot.slane %v7003, %v7016
    %v7018 = vcombine.low %v7010, %v7017
    %v7019 = vcombine.low %v5288, %v5295
    %v7020 = vcombine.low %v5302, %v5309
    %v7022 = vunpack.c.l.s4 1983009808
    %v7023 = vunpack.c.0.s8 %v7022
    %v7024 = vlaneseq
    %v7025 = vshrl.u32 %v7024, 7
    %v7026 = vsub.s32 %v7023, %v7025
    %v7027 = vrot.slane %v7019, %v7026
    %v7029 = vunpack.c.l.s4 1983009808
    %v7030 = vunpack.c.0.s8 %v7029
    %v7031 = vlaneseq
    %v7032 = vshrl.u32 %v7031, 7
    %v7033 = vsub.s32 %v7030, %v7032
    %v7034 = vrot.slane %v7020, %v7033
    %v7035 = vcombine.low %v7027, %v7034
    %v7036 = vcombine.low %v5316, %v5323
    %v7037 = vcombine.low %v5330, %v5337
    %v7039 = vunpack.c.l.s4 1983009808
    %v7040 = vunpack.c.0.s8 %v7039
    %v7041 = vlaneseq
    %v7042 = vshrl.u32 %v7041, 7
    %v7043 = vsub.s32 %v7040, %v7042
    %v7044 = vrot.slane %v7036, %v7043
    %v7046 = vunpack.c.l.s4 1983009808
    %v7047 = vunpack.c.0.s8 %v7046
    %v7048 = vlaneseq
    %v7049 = vshrl.u32 %v7048, 7
    %v7050 = vsub.s32 %v7047, %v7049
    %v7051 = vrot.slane %v7037, %v7050
    %v7052 = vcombine.low %v7044, %v7051
    %v7053 = vcombine.low %v5344, %v5351
    %v7054 = vcombine.low %v5358, %v5365
    %v7056 = vunpack.c.l.s4 1983009808
    %v7057 = vunpack.c.0.s8 %v7056
    %v7058 = vlaneseq
    %v7059 = vshrl.u32 %v7058, 7
    %v7060 = vsub.s32 %v7057, %v7059
    %v7061 = vrot.slane %v7053, %v7060
    %v7063 = vunpack.c.l.s4 1983009808
    %v7064 = vunpack.c.0.s8 %v7063
    %v7065 = vlaneseq
    %v7066 = vshrl.u32 %v7065, 7
    %v7067 = vsub.s32 %v7064, %v7066
    %v7068 = vrot.slane %v7054, %v7067
    %v7069 = vcombine.low %v7061, %v7068
    %v7070 = vcombine.low %v5372, %v5379
    %v7071 = vcombine.low %v5386, %v5393
    %v7073 = vunpack.c.l.s4 1983009808
    %v7074 = vunpack.c.0.s8 %v7073
    %v7075 = vlaneseq
    %v7076 = vshrl.u32 %v7075, 7
    %v7077 = vsub.s32 %v7074, %v7076
    %v7078 = vrot.slane %v7070, %v7077
    %v7080 = vunpack.c.l.s4 1983009808
    %v7081 = vunpack.c.0.s8 %v7080
    %v7082 = vlaneseq
    %v7083 = vshrl.u32 %v7082, 7
    %v7084 = vsub.s32 %v7081, %v7083
    %v7085 = vrot.slane %v7071, %v7084
    %v7086 = vcombine.low %v7078, %v7085
    %v7087 = vcombine.low %v5400, %v5407
    %v7088 = vcombine.low %v5414, %v5421
    %v7090 = vunpack.c.l.s4 1983009808
    %v7091 = vunpack.c.0.s8 %v7090
    %v7092 = vlaneseq
    %v7093 = vshrl.u32 %v7092, 7
    %v7094 = vsub.s32 %v7091, %v7093
    %v7095 = vrot.slane %v7087, %v7094
    %v7097 = vunpack.c.l.s4 1983009808
    %v7098 = vunpack.c.0.s8 %v7097
    %v7099 = vlaneseq
    %v7100 = vshrl.u32 %v7099, 7
    %v7101 = vsub.s32 %v7098, %v7100
    %v7102 = vrot.slane %v7088, %v7101
    %v7103 = vcombine.low %v7095, %v7102
    %v7104 = vcombine.low %v5428, %v5435
    %v7105 = vcombine.low %v5442, %v5449
    %v7107 = vunpack.c.l.s4 1983009808
    %v7108 = vunpack.c.0.s8 %v7107
    %v7109 = vlaneseq
    %v7110 = vshrl.u32 %v7109, 7
    %v7111 = vsub.s32 %v7108, %v7110
    %v7112 = vrot.slane %v7104, %v7111
    %v7114 = vunpack.c.l.s4 1983009808
    %v7115 = vunpack.c.0.s8 %v7114
    %v7116 = vlaneseq
    %v7117 = vshrl.u32 %v7116, 7
    %v7118 = vsub.s32 %v7115, %v7117
    %v7119 = vrot.slane %v7105, %v7118
    %v7120 = vcombine.low %v7112, %v7119
    %v7121 = vcombine.low %v5456, %v5463
    %v7122 = vcombine.low %v5470, %v5477
    %v7124 = vunpack.c.l.s4 1983009808
    %v7125 = vunpack.c.0.s8 %v7124
    %v7126 = vlaneseq
    %v7127 = vshrl.u32 %v7126, 7
    %v7128 = vsub.s32 %v7125, %v7127
    %v7129 = vrot.slane %v7121, %v7128
    %v7131 = vunpack.c.l.s4 1983009808
    %v7132 = vunpack.c.0.s8 %v7131
    %v7133 = vlaneseq
    %v7134 = vshrl.u32 %v7133, 7
    %v7135 = vsub.s32 %v7132, %v7134
    %v7136 = vrot.slane %v7122, %v7135
    %v7137 = vcombine.low %v7129, %v7136
    %v7138 = vcombine.low %v5484, %v5491
    %v7139 = vcombine.low %v5498, %v5505
    %v7141 = vunpack.c.l.s4 1983009808
    %v7142 = vunpack.c.0.s8 %v7141
    %v7143 = vlaneseq
    %v7144 = vshrl.u32 %v7143, 7
    %v7145 = vsub.s32 %v7142, %v7144
    %v7146 = vrot.slane %v7138, %v7145
    %v7148 = vunpack.c.l.s4 1983009808
    %v7149 = vunpack.c.0.s8 %v7148
    %v7150 = vlaneseq
    %v7151 = vshrl.u32 %v7150, 7
    %v7152 = vsub.s32 %v7149, %v7151
    %v7153 = vrot.slane %v7139, %v7152
    %v7154 = vcombine.low %v7146, %v7153
    %v7155 = vcombine.low %v5512, %v5519
    %v7156 = vcombine.low %v5526, %v5533
    %v7158 = vunpack.c.l.s4 1983009808
    %v7159 = vunpack.c.0.s8 %v7158
    %v7160 = vlaneseq
    %v7161 = vshrl.u32 %v7160, 7
    %v7162 = vsub.s32 %v7159, %v7161
    %v7163 = vrot.slane %v7155, %v7162
    %v7165 = vunpack.c.l.s4 1983009808
    %v7166 = vunpack.c.0.s8 %v7165
    %v7167 = vlaneseq
    %v7168 = vshrl.u32 %v7167, 7
    %v7169 = vsub.s32 %v7166, %v7168
    %v7170 = vrot.slane %v7156, %v7169
    %v7171 = vcombine.low %v7163, %v7170
    %v7172 = vcombine.low %v5540, %v5547
    %v7173 = vcombine.low %v5554, %v5561
    %v7175 = vunpack.c.l.s4 1983009808
    %v7176 = vunpack.c.0.s8 %v7175
    %v7177 = vlaneseq
    %v7178 = vshrl.u32 %v7177, 7
    %v7179 = vsub.s32 %v7176, %v7178
    %v7180 = vrot.slane %v7172, %v7179
    %v7182 = vunpack.c.l.s4 1983009808
    %v7183 = vunpack.c.0.s8 %v7182
    %v7184 = vlaneseq
    %v7185 = vshrl.u32 %v7184, 7
    %v7186 = vsub.s32 %v7183, %v7185
    %v7187 = vrot.slane %v7173, %v7186
    %v7188 = vcombine.low %v7180, %v7187
    %v7189 = vcombine.low %v5568, %v5575
    %v7190 = vcombine.low %v5582, %v5589
    %v7192 = vunpack.c.l.s4 1983009808
    %v7193 = vunpack.c.0.s8 %v7192
    %v7194 = vlaneseq
    %v7195 = vshrl.u32 %v7194, 7
    %v7196 = vsub.s32 %v7193, %v7195
    %v7197 = vrot.slane %v7189, %v7196
    %v7199 = vunpack.c.l.s4 1983009808
    %v7200 = vunpack.c.0.s8 %v7199
    %v7201 = vlaneseq
    %v7202 = vshrl.u32 %v7201, 7
    %v7203 = vsub.s32 %v7200, %v7202
    %v7204 = vrot.slane %v7190, %v7203
    %v7205 = vcombine.low %v7197, %v7204
    %v7206 = vcombine.low %v5596, %v5603
    %v7207 = vcombine.low %v5610, %v5617
    %v7209 = vunpack.c.l.s4 1983009808
    %v7210 = vunpack.c.0.s8 %v7209
    %v7211 = vlaneseq
    %v7212 = vshrl.u32 %v7211, 7
    %v7213 = vsub.s32 %v7210, %v7212
    %v7214 = vrot.slane %v7206, %v7213
    %v7216 = vunpack.c.l.s4 1983009808
    %v7217 = vunpack.c.0.s8 %v7216
    %v7218 = vlaneseq
    %v7219 = vshrl.u32 %v7218, 7
    %v7220 = vsub.s32 %v7217, %v7219
    %v7221 = vrot.slane %v7207, %v7220
    %v7222 = vcombine.low %v7214, %v7221
    %v7223 = vcombine.low %v5624, %v5631
    %v7224 = vcombine.low %v5638, %v5645
    %v7226 = vunpack.c.l.s4 1983009808
    %v7227 = vunpack.c.0.s8 %v7226
    %v7228 = vlaneseq
    %v7229 = vshrl.u32 %v7228, 7
    %v7230 = vsub.s32 %v7227, %v7229
    %v7231 = vrot.slane %v7223, %v7230
    %v7233 = vunpack.c.l.s4 1983009808
    %v7234 = vunpack.c.0.s8 %v7233
    %v7235 = vlaneseq
    %v7236 = vshrl.u32 %v7235, 7
    %v7237 = vsub.s32 %v7234, %v7236
    %v7238 = vrot.slane %v7224, %v7237
    %v7239 = vcombine.low %v7231, %v7238
    %v7240 = vcombine.low %v5652, %v5659
    %v7241 = vcombine.low %v5666, %v5673
    %v7243 = vunpack.c.l.s4 1983009808
    %v7244 = vunpack.c.0.s8 %v7243
    %v7245 = vlaneseq
    %v7246 = vshrl.u32 %v7245, 7
    %v7247 = vsub.s32 %v7244, %v7246
    %v7248 = vrot.slane %v7240, %v7247
    %v7250 = vunpack.c.l.s4 1983009808
    %v7251 = vunpack.c.0.s8 %v7250
    %v7252 = vlaneseq
    %v7253 = vshrl.u32 %v7252, 7
    %v7254 = vsub.s32 %v7251, %v7253
    %v7255 = vrot.slane %v7241, %v7254
    %v7256 = vcombine.low %v7248, %v7255
    %v7257 = vcombine.low %v5680, %v5687
    %v7258 = vcombine.low %v5694, %v5701
    %v7260 = vunpack.c.l.s4 1983009808
    %v7261 = vunpack.c.0.s8 %v7260
    %v7262 = vlaneseq
    %v7263 = vshrl.u32 %v7262, 7
    %v7264 = vsub.s32 %v7261, %v7263
    %v7265 = vrot.slane %v7257, %v7264
    %v7267 = vunpack.c.l.s4 1983009808
    %v7268 = vunpack.c.0.s8 %v7267
    %v7269 = vlaneseq
    %v7270 = vshrl.u32 %v7269, 7
    %v7271 = vsub.s32 %v7268, %v7270
    %v7272 = vrot.slane %v7258, %v7271
    %v7273 = vcombine.low %v7265, %v7272
    %v7274 = vcombine.low %v5708, %v5715
    %v7275 = vcombine.low %v5722, %v5729
    %v7277 = vunpack.c.l.s4 1983009808
    %v7278 = vunpack.c.0.s8 %v7277
    %v7279 = vlaneseq
    %v7280 = vshrl.u32 %v7279, 7
    %v7281 = vsub.s32 %v7278, %v7280
    %v7282 = vrot.slane %v7274, %v7281
    %v7284 = vunpack.c.l.s4 1983009808
    %v7285 = vunpack.c.0.s8 %v7284
    %v7286 = vlaneseq
    %v7287 = vshrl.u32 %v7286, 7
    %v7288 = vsub.s32 %v7285, %v7287
    %v7289 = vrot.slane %v7275, %v7288
    %v7290 = vcombine.low %v7282, %v7289
    %v7291 = vcombine.low %v5736, %v5743
    %v7292 = vcombine.low %v5750, %v5757
    %v7294 = vunpack.c.l.s4 1983009808
    %v7295 = vunpack.c.0.s8 %v7294
    %v7296 = vlaneseq
    %v7297 = vshrl.u32 %v7296, 7
    %v7298 = vsub.s32 %v7295, %v7297
    %v7299 = vrot.slane %v7291, %v7298
    %v7301 = vunpack.c.l.s4 1983009808
    %v7302 = vunpack.c.0.s8 %v7301
    %v7303 = vlaneseq
    %v7304 = vshrl.u32 %v7303, 7
    %v7305 = vsub.s32 %v7302, %v7304
    %v7306 = vrot.slane %v7292, %v7305
    %v7307 = vcombine.low %v7299, %v7306
    %v7308 = vcombine.low %v5764, %v5771
    %v7309 = vcombine.low %v5778, %v5785
    %v7311 = vunpack.c.l.s4 1983009808
    %v7312 = vunpack.c.0.s8 %v7311
    %v7313 = vlaneseq
    %v7314 = vshrl.u32 %v7313, 7
    %v7315 = vsub.s32 %v7312, %v7314
    %v7316 = vrot.slane %v7308, %v7315
    %v7318 = vunpack.c.l.s4 1983009808
    %v7319 = vunpack.c.0.s8 %v7318
    %v7320 = vlaneseq
    %v7321 = vshrl.u32 %v7320, 7
    %v7322 = vsub.s32 %v7319, %v7321
    %v7323 = vrot.slane %v7309, %v7322
    %v7324 = vcombine.low %v7316, %v7323
    %v7325 = vcombine.low %v5792, %v5799
    %v7326 = vcombine.low %v5806, %v5813
    %v7328 = vunpack.c.l.s4 1983009808
    %v7329 = vunpack.c.0.s8 %v7328
    %v7330 = vlaneseq
    %v7331 = vshrl.u32 %v7330, 7
    %v7332 = vsub.s32 %v7329, %v7331
    %v7333 = vrot.slane %v7325, %v7332
    %v7335 = vunpack.c.l.s4 1983009808
    %v7336 = vunpack.c.0.s8 %v7335
    %v7337 = vlaneseq
    %v7338 = vshrl.u32 %v7337, 7
    %v7339 = vsub.s32 %v7336, %v7338
    %v7340 = vrot.slane %v7326, %v7339
    %v7341 = vcombine.low %v7333, %v7340
    %v7342 = vcombine.low %v5820, %v5827
    %v7343 = vcombine.low %v5834, %v5841
    %v7345 = vunpack.c.l.s4 1983009808
    %v7346 = vunpack.c.0.s8 %v7345
    %v7347 = vlaneseq
    %v7348 = vshrl.u32 %v7347, 7
    %v7349 = vsub.s32 %v7346, %v7348
    %v7350 = vrot.slane %v7342, %v7349
    %v7352 = vunpack.c.l.s4 1983009808
    %v7353 = vunpack.c.0.s8 %v7352
    %v7354 = vlaneseq
    %v7355 = vshrl.u32 %v7354, 7
    %v7356 = vsub.s32 %v7353, %v7355
    %v7357 = vrot.slane %v7343, %v7356
    %v7358 = vcombine.low %v7350, %v7357
    %v7359 = vcombine.low %v5848, %v5855
    %v7360 = vcombine.low %v5862, %v5869
    %v7362 = vunpack.c.l.s4 1983009808
    %v7363 = vunpack.c.0.s8 %v7362
    %v7364 = vlaneseq
    %v7365 = vshrl.u32 %v7364, 7
    %v7366 = vsub.s32 %v7363, %v7365
    %v7367 = vrot.slane %v7359, %v7366
    %v7369 = vunpack.c.l.s4 1983009808
    %v7370 = vunpack.c.0.s8 %v7369
    %v7371 = vlaneseq
    %v7372 = vshrl.u32 %v7371, 7
    %v7373 = vsub.s32 %v7370, %v7372
    %v7374 = vrot.slane %v7360, %v7373
    %v7375 = vcombine.low %v7367, %v7374
    %v7376 = vcombine.low %v5876, %v5883
    %v7377 = vcombine.low %v5890, %v5897
    %v7379 = vunpack.c.l.s4 1983009808
    %v7380 = vunpack.c.0.s8 %v7379
    %v7381 = vlaneseq
    %v7382 = vshrl.u32 %v7381, 7
    %v7383 = vsub.s32 %v7380, %v7382
    %v7384 = vrot.slane %v7376, %v7383
    %v7386 = vunpack.c.l.s4 1983009808
    %v7387 = vunpack.c.0.s8 %v7386
    %v7388 = vlaneseq
    %v7389 = vshrl.u32 %v7388, 7
    %v7390 = vsub.s32 %v7387, %v7389
    %v7391 = vrot.slane %v7377, %v7390
    %v7392 = vcombine.low %v7384, %v7391
    %v7393 = vcombine.low %v5904, %v5911
    %v7394 = vcombine.low %v5918, %v5925
    %v7396 = vunpack.c.l.s4 1983009808
    %v7397 = vunpack.c.0.s8 %v7396
    %v7398 = vlaneseq
    %v7399 = vshrl.u32 %v7398, 7
    %v7400 = vsub.s32 %v7397, %v7399
    %v7401 = vrot.slane %v7393, %v7400
    %v7403 = vunpack.c.l.s4 1983009808
    %v7404 = vunpack.c.0.s8 %v7403
    %v7405 = vlaneseq
    %v7406 = vshrl.u32 %v7405, 7
    %v7407 = vsub.s32 %v7404, %v7406
    %v7408 = vrot.slane %v7394, %v7407
    %v7409 = vcombine.low %v7401, %v7408
    %v7410 = vcombine.low %v5932, %v5939
    %v7411 = vcombine.low %v5946, %v5953
    %v7413 = vunpack.c.l.s4 1983009808
    %v7414 = vunpack.c.0.s8 %v7413
    %v7415 = vlaneseq
    %v7416 = vshrl.u32 %v7415, 7
    %v7417 = vsub.s32 %v7414, %v7416
    %v7418 = vrot.slane %v7410, %v7417
    %v7420 = vunpack.c.l.s4 1983009808
    %v7421 = vunpack.c.0.s8 %v7420
    %v7422 = vlaneseq
    %v7423 = vshrl.u32 %v7422, 7
    %v7424 = vsub.s32 %v7421, %v7423
    %v7425 = vrot.slane %v7411, %v7424
    %v7426 = vcombine.low %v7418, %v7425
    %v7427 = vcombine.low %v5960, %v5967
    %v7428 = vcombine.low %v5974, %v5981
    %v7430 = vunpack.c.l.s4 1983009808
    %v7431 = vunpack.c.0.s8 %v7430
    %v7432 = vlaneseq
    %v7433 = vshrl.u32 %v7432, 7
    %v7434 = vsub.s32 %v7431, %v7433
    %v7435 = vrot.slane %v7427, %v7434
    %v7437 = vunpack.c.l.s4 1983009808
    %v7438 = vunpack.c.0.s8 %v7437
    %v7439 = vlaneseq
    %v7440 = vshrl.u32 %v7439, 7
    %v7441 = vsub.s32 %v7438, %v7440
    %v7442 = vrot.slane %v7428, %v7441
    %v7443 = vcombine.low %v7435, %v7442
    %v7444 = vcombine.low %v5988, %v5995
    %v7445 = vcombine.low %v6002, %v6009
    %v7447 = vunpack.c.l.s4 1983009808
    %v7448 = vunpack.c.0.s8 %v7447
    %v7449 = vlaneseq
    %v7450 = vshrl.u32 %v7449, 7
    %v7451 = vsub.s32 %v7448, %v7450
    %v7452 = vrot.slane %v7444, %v7451
    %v7454 = vunpack.c.l.s4 1983009808
    %v7455 = vunpack.c.0.s8 %v7454
    %v7456 = vlaneseq
    %v7457 = vshrl.u32 %v7456, 7
    %v7458 = vsub.s32 %v7455, %v7457
    %v7459 = vrot.slane %v7445, %v7458
    %v7460 = vcombine.low %v7452, %v7459
    %v7461 = vcombine.low %v6016, %v6023
    %v7462 = vcombine.low %v6030, %v6037
    %v7464 = vunpack.c.l.s4 1983009808
    %v7465 = vunpack.c.0.s8 %v7464
    %v7466 = vlaneseq
    %v7467 = vshrl.u32 %v7466, 7
    %v7468 = vsub.s32 %v7465, %v7467
    %v7469 = vrot.slane %v7461, %v7468
    %v7471 = vunpack.c.l.s4 1983009808
    %v7472 = vunpack.c.0.s8 %v7471
    %v7473 = vlaneseq
    %v7474 = vshrl.u32 %v7473, 7
    %v7475 = vsub.s32 %v7472, %v7474
    %v7476 = vrot.slane %v7462, %v7475
    %v7477 = vcombine.low %v7469, %v7476
    %v7478 = vcombine.low %v6044, %v6051
    %v7479 = vcombine.low %v6058, %v6065
    %v7481 = vunpack.c.l.s4 1983009808
    %v7482 = vunpack.c.0.s8 %v7481
    %v7483 = vlaneseq
    %v7484 = vshrl.u32 %v7483, 7
    %v7485 = vsub.s32 %v7482, %v7484
    %v7486 = vrot.slane %v7478, %v7485
    %v7488 = vunpack.c.l.s4 1983009808
    %v7489 = vunpack.c.0.s8 %v7488
    %v7490 = vlaneseq
    %v7491 = vshrl.u32 %v7490, 7
    %v7492 = vsub.s32 %v7489, %v7491
    %v7493 = vrot.slane %v7479, %v7492
    %v7494 = vcombine.low %v7486, %v7493
    %v7495 = vcombine.low %v6072, %v6079
    %v7496 = vcombine.low %v6086, %v6093
    %v7498 = vunpack.c.l.s4 1983009808
    %v7499 = vunpack.c.0.s8 %v7498
    %v7500 = vlaneseq
    %v7501 = vshrl.u32 %v7500, 7
    %v7502 = vsub.s32 %v7499, %v7501
    %v7503 = vrot.slane %v7495, %v7502
    %v7505 = vunpack.c.l.s4 1983009808
    %v7506 = vunpack.c.0.s8 %v7505
    %v7507 = vlaneseq
    %v7508 = vshrl.u32 %v7507, 7
    %v7509 = vsub.s32 %v7506, %v7508
    %v7510 = vrot.slane %v7496, %v7509
    %v7511 = vcombine.low %v7503, %v7510
    %v7512 = vcombine.low %v6100, %v6107
    %v7513 = vcombine.low %v6114, %v6121
    %v7515 = vunpack.c.l.s4 1983009808
    %v7516 = vunpack.c.0.s8 %v7515
    %v7517 = vlaneseq
    %v7518 = vshrl.u32 %v7517, 7
    %v7519 = vsub.s32 %v7516, %v7518
    %v7520 = vrot.slane %v7512, %v7519
    %v7522 = vunpack.c.l.s4 1983009808
    %v7523 = vunpack.c.0.s8 %v7522
    %v7524 = vlaneseq
    %v7525 = vshrl.u32 %v7524, 7
    %v7526 = vsub.s32 %v7523, %v7525
    %v7527 = vrot.slane %v7513, %v7526
    %v7528 = vcombine.low %v7520, %v7527
    %v7529 = vcombine.low %v6128, %v6135
    %v7530 = vcombine.low %v6142, %v6149
    %v7532 = vunpack.c.l.s4 1983009808
    %v7533 = vunpack.c.0.s8 %v7532
    %v7534 = vlaneseq
    %v7535 = vshrl.u32 %v7534, 7
    %v7536 = vsub.s32 %v7533, %v7535
    %v7537 = vrot.slane %v7529, %v7536
    %v7539 = vunpack.c.l.s4 1983009808
    %v7540 = vunpack.c.0.s8 %v7539
    %v7541 = vlaneseq
    %v7542 = vshrl.u32 %v7541, 7
    %v7543 = vsub.s32 %v7540, %v7542
    %v7544 = vrot.slane %v7530, %v7543
    %v7545 = vcombine.low %v7537, %v7544
    %v7546 = vcombine.low %v6156, %v6163
    %v7547 = vcombine.low %v6170, %v6177
    %v7549 = vunpack.c.l.s4 1983009808
    %v7550 = vunpack.c.0.s8 %v7549
    %v7551 = vlaneseq
    %v7552 = vshrl.u32 %v7551, 7
    %v7553 = vsub.s32 %v7550, %v7552
    %v7554 = vrot.slane %v7546, %v7553
    %v7556 = vunpack.c.l.s4 1983009808
    %v7557 = vunpack.c.0.s8 %v7556
    %v7558 = vlaneseq
    %v7559 = vshrl.u32 %v7558, 7
    %v7560 = vsub.s32 %v7557, %v7559
    %v7561 = vrot.slane %v7547, %v7560
    %v7562 = vcombine.low %v7554, %v7561
    %v7563 = vcombine.low %v6184, %v6191
    %v7564 = vcombine.low %v6198, %v6205
    %v7566 = vunpack.c.l.s4 1983009808
    %v7567 = vunpack.c.0.s8 %v7566
    %v7568 = vlaneseq
    %v7569 = vshrl.u32 %v7568, 7
    %v7570 = vsub.s32 %v7567, %v7569
    %v7571 = vrot.slane %v7563, %v7570
    %v7573 = vunpack.c.l.s4 1983009808
    %v7574 = vunpack.c.0.s8 %v7573
    %v7575 = vlaneseq
    %v7576 = vshrl.u32 %v7575, 7
    %v7577 = vsub.s32 %v7574, %v7576
    %v7578 = vrot.slane %v7564, %v7577
    %v7579 = vcombine.low %v7571, %v7578
    %v7580 = vcombine.low %v6212, %v6219
    %v7581 = vcombine.low %v6226, %v6233
    %v7583 = vunpack.c.l.s4 1983009808
    %v7584 = vunpack.c.0.s8 %v7583
    %v7585 = vlaneseq
    %v7586 = vshrl.u32 %v7585, 7
    %v7587 = vsub.s32 %v7584, %v7586
    %v7588 = vrot.slane %v7580, %v7587
    %v7590 = vunpack.c.l.s4 1983009808
    %v7591 = vunpack.c.0.s8 %v7590
    %v7592 = vlaneseq
    %v7593 = vshrl.u32 %v7592, 7
    %v7594 = vsub.s32 %v7591, %v7593
    %v7595 = vrot.slane %v7581, %v7594
    %v7596 = vcombine.low %v7588, %v7595
    %v7597 = vcombine.low %v6240, %v6247
    %v7598 = vcombine.low %v6254, %v6261
    %v7600 = vunpack.c.l.s4 1983009808
    %v7601 = vunpack.c.0.s8 %v7600
    %v7602 = vlaneseq
    %v7603 = vshrl.u32 %v7602, 7
    %v7604 = vsub.s32 %v7601, %v7603
    %v7605 = vrot.slane %v7597, %v7604
    %v7607 = vunpack.c.l.s4 1983009808
    %v7608 = vunpack.c.0.s8 %v7607
    %v7609 = vlaneseq
    %v7610 = vshrl.u32 %v7609, 7
    %v7611 = vsub.s32 %v7608, %v7610
    %v7612 = vrot.slane %v7598, %v7611
    %v7613 = vcombine.low %v7605, %v7612
    %v7614 = vcombine.low %v6268, %v6275
    %v7615 = vcombine.low %v6282, %v6289
    %v7617 = vunpack.c.l.s4 1983009808
    %v7618 = vunpack.c.0.s8 %v7617
    %v7619 = vlaneseq
    %v7620 = vshrl.u32 %v7619, 7
    %v7621 = vsub.s32 %v7618, %v7620
    %v7622 = vrot.slane %v7614, %v7621
    %v7624 = vunpack.c.l.s4 1983009808
    %v7625 = vunpack.c.0.s8 %v7624
    %v7626 = vlaneseq
    %v7627 = vshrl.u32 %v7626, 7
    %v7628 = vsub.s32 %v7625, %v7627
    %v7629 = vrot.slane %v7615, %v7628
    %v7630 = vcombine.low %v7622, %v7629
    %v7631 = vcombine.low %v6296, %v6303
    %v7632 = vcombine.low %v6310, %v6317
    %v7634 = vunpack.c.l.s4 1983009808
    %v7635 = vunpack.c.0.s8 %v7634
    %v7636 = vlaneseq
    %v7637 = vshrl.u32 %v7636, 7
    %v7638 = vsub.s32 %v7635, %v7637
    %v7639 = vrot.slane %v7631, %v7638
    %v7641 = vunpack.c.l.s4 1983009808
    %v7642 = vunpack.c.0.s8 %v7641
    %v7643 = vlaneseq
    %v7644 = vshrl.u32 %v7643, 7
    %v7645 = vsub.s32 %v7642, %v7644
    %v7646 = vrot.slane %v7632, %v7645
    %v7647 = vcombine.low %v7639, %v7646
    %v7648 = vcombine.low %v6324, %v6331
    %v7649 = vcombine.low %v6338, %v6345
    %v7651 = vunpack.c.l.s4 1983009808
    %v7652 = vunpack.c.0.s8 %v7651
    %v7653 = vlaneseq
    %v7654 = vshrl.u32 %v7653, 7
    %v7655 = vsub.s32 %v7652, %v7654
    %v7656 = vrot.slane %v7648, %v7655
    %v7658 = vunpack.c.l.s4 1983009808
    %v7659 = vunpack.c.0.s8 %v7658
    %v7660 = vlaneseq
    %v7661 = vshrl.u32 %v7660, 7
    %v7662 = vsub.s32 %v7659, %v7661
    %v7663 = vrot.slane %v7649, %v7662
    %v7664 = vcombine.low %v7656, %v7663
    %v7665 = vcombine.low %v6352, %v6359
    %v7666 = vcombine.low %v6366, %v6373
    %v7668 = vunpack.c.l.s4 1983009808
    %v7669 = vunpack.c.0.s8 %v7668
    %v7670 = vlaneseq
    %v7671 = vshrl.u32 %v7670, 7
    %v7672 = vsub.s32 %v7669, %v7671
    %v7673 = vrot.slane %v7665, %v7672
    %v7675 = vunpack.c.l.s4 1983009808
    %v7676 = vunpack.c.0.s8 %v7675
    %v7677 = vlaneseq
    %v7678 = vshrl.u32 %v7677, 7
    %v7679 = vsub.s32 %v7676, %v7678
    %v7680 = vrot.slane %v7666, %v7679
    %v7681 = vcombine.low %v7673, %v7680
    %v7682 = vcombine.low %v6380, %v6387
    %v7683 = vcombine.low %v6394, %v6401
    %v7685 = vunpack.c.l.s4 1983009808
    %v7686 = vunpack.c.0.s8 %v7685
    %v7687 = vlaneseq
    %v7688 = vshrl.u32 %v7687, 7
    %v7689 = vsub.s32 %v7686, %v7688
    %v7690 = vrot.slane %v7682, %v7689
    %v7692 = vunpack.c.l.s4 1983009808
    %v7693 = vunpack.c.0.s8 %v7692
    %v7694 = vlaneseq
    %v7695 = vshrl.u32 %v7694, 7
    %v7696 = vsub.s32 %v7693, %v7695
    %v7697 = vrot.slane %v7683, %v7696
    %v7698 = vcombine.low %v7690, %v7697
    %v7699 = vcombine.low %v6408, %v6415
    %v7700 = vcombine.low %v6422, %v6429
    %v7702 = vunpack.c.l.s4 1983009808
    %v7703 = vunpack.c.0.s8 %v7702
    %v7704 = vlaneseq
    %v7705 = vshrl.u32 %v7704, 7
    %v7706 = vsub.s32 %v7703, %v7705
    %v7707 = vrot.slane %v7699, %v7706
    %v7709 = vunpack.c.l.s4 1983009808
    %v7710 = vunpack.c.0.s8 %v7709
    %v7711 = vlaneseq
    %v7712 = vshrl.u32 %v7711, 7
    %v7713 = vsub.s32 %v7710, %v7712
    %v7714 = vrot.slane %v7700, %v7713
    %v7715 = vcombine.low %v7707, %v7714
    %v7716 = vcombine.low %v6436, %v6443
    %v7717 = vcombine.low %v6450, %v6457
    %v7719 = vunpack.c.l.s4 1983009808
    %v7720 = vunpack.c.0.s8 %v7719
    %v7721 = vlaneseq
    %v7722 = vshrl.u32 %v7721, 7
    %v7723 = vsub.s32 %v7720, %v7722
    %v7724 = vrot.slane %v7716, %v7723
    %v7726 = vunpack.c.l.s4 1983009808
    %v7727 = vunpack.c.0.s8 %v7726
    %v7728 = vlaneseq
    %v7729 = vshrl.u32 %v7728, 7
    %v7730 = vsub.s32 %v7727, %v7729
    %v7731 = vrot.slane %v7717, %v7730
    %v7732 = vcombine.low %v7724, %v7731
    %v7733 = vcombine.low %v6464, %v6471
    %v7734 = vcombine.low %v6478, %v6485
    %v7736 = vunpack.c.l.s4 1983009808
    %v7737 = vunpack.c.0.s8 %v7736
    %v7738 = vlaneseq
    %v7739 = vshrl.u32 %v7738, 7
    %v7740 = vsub.s32 %v7737, %v7739
    %v7741 = vrot.slane %v7733, %v7740
    %v7743 = vunpack.c.l.s4 1983009808
    %v7744 = vunpack.c.0.s8 %v7743
    %v7745 = vlaneseq
    %v7746 = vshrl.u32 %v7745, 7
    %v7747 = vsub.s32 %v7744, %v7746
    %v7748 = vrot.slane %v7734, %v7747
    %v7749 = vcombine.low %v7741, %v7748
    %v7750 = vcombine.low %v6492, %v6499
    %v7751 = vcombine.low %v6506, %v6513
    %v7753 = vunpack.c.l.s4 1983009808
    %v7754 = vunpack.c.0.s8 %v7753
    %v7755 = vlaneseq
    %v7756 = vshrl.u32 %v7755, 7
    %v7757 = vsub.s32 %v7754, %v7756
    %v7758 = vrot.slane %v7750, %v7757
    %v7760 = vunpack.c.l.s4 1983009808
    %v7761 = vunpack.c.0.s8 %v7760
    %v7762 = vlaneseq
    %v7763 = vshrl.u32 %v7762, 7
    %v7764 = vsub.s32 %v7761, %v7763
    %v7765 = vrot.slane %v7751, %v7764
    %v7766 = vcombine.low %v7758, %v7765
    %v7767 = vcombine.low %v6520, %v6527
    %v7768 = vcombine.low %v6534, %v6541
    %v7770 = vunpack.c.l.s4 1983009808
    %v7771 = vunpack.c.0.s8 %v7770
    %v7772 = vlaneseq
    %v7773 = vshrl.u32 %v7772, 7
    %v7774 = vsub.s32 %v7771, %v7773
    %v7775 = vrot.slane %v7767, %v7774
    %v7777 = vunpack.c.l.s4 1983009808
    %v7778 = vunpack.c.0.s8 %v7777
    %v7779 = vlaneseq
    %v7780 = vshrl.u32 %v7779, 7
    %v7781 = vsub.s32 %v7778, %v7780
    %v7782 = vrot.slane %v7768, %v7781
    %v7783 = vcombine.low %v7775, %v7782
    %v7784 = vcombine.low %v6548, %v6555
    %v7785 = vcombine.low %v6562, %v6569
    %v7787 = vunpack.c.l.s4 1983009808
    %v7788 = vunpack.c.0.s8 %v7787
    %v7789 = vlaneseq
    %v7790 = vshrl.u32 %v7789, 7
    %v7791 = vsub.s32 %v7788, %v7790
    %v7792 = vrot.slane %v7784, %v7791
    %v7794 = vunpack.c.l.s4 1983009808
    %v7795 = vunpack.c.0.s8 %v7794
    %v7796 = vlaneseq
    %v7797 = vshrl.u32 %v7796, 7
    %v7798 = vsub.s32 %v7795, %v7797
    %v7799 = vrot.slane %v7785, %v7798
    %v7800 = vcombine.low %v7792, %v7799
    %v7801 = vcombine.low %v6576, %v6583
    %v7802 = vcombine.low %v6590, %v6597
    %v7804 = vunpack.c.l.s4 1983009808
    %v7805 = vunpack.c.0.s8 %v7804
    %v7806 = vlaneseq
    %v7807 = vshrl.u32 %v7806, 7
    %v7808 = vsub.s32 %v7805, %v7807
    %v7809 = vrot.slane %v7801, %v7808
    %v7811 = vunpack.c.l.s4 1983009808
    %v7812 = vunpack.c.0.s8 %v7811
    %v7813 = vlaneseq
    %v7814 = vshrl.u32 %v7813, 7
    %v7815 = vsub.s32 %v7812, %v7814
    %v7816 = vrot.slane %v7802, %v7815
    %v7817 = vcombine.low %v7809, %v7816
    %v7818 = vcombine.low %v6604, %v6611
    %v7819 = vcombine.low %v6618, %v6625
    %v7821 = vunpack.c.l.s4 1983009808
    %v7822 = vunpack.c.0.s8 %v7821
    %v7823 = vlaneseq
    %v7824 = vshrl.u32 %v7823, 7
    %v7825 = vsub.s32 %v7822, %v7824
    %v7826 = vrot.slane %v7818, %v7825
    %v7828 = vunpack.c.l.s4 1983009808
    %v7829 = vunpack.c.0.s8 %v7828
    %v7830 = vlaneseq
    %v7831 = vshrl.u32 %v7830, 7
    %v7832 = vsub.s32 %v7829, %v7831
    %v7833 = vrot.slane %v7819, %v7832
    %v7834 = vcombine.low %v7826, %v7833
    %v7835 = vcombine.low %v6632, %v6639
    %v7836 = vcombine.low %v6646, %v6653
    %v7838 = vunpack.c.l.s4 1983009808
    %v7839 = vunpack.c.0.s8 %v7838
    %v7840 = vlaneseq
    %v7841 = vshrl.u32 %v7840, 7
    %v7842 = vsub.s32 %v7839, %v7841
    %v7843 = vrot.slane %v7835, %v7842
    %v7845 = vunpack.c.l.s4 1983009808
    %v7846 = vunpack.c.0.s8 %v7845
    %v7847 = vlaneseq
    %v7848 = vshrl.u32 %v7847, 7
    %v7849 = vsub.s32 %v7846, %v7848
    %v7850 = vrot.slane %v7836, %v7849
    %v7851 = vcombine.low %v7843, %v7850
    %v7852 = vcombine.low %v6660, %v6667
    %v7853 = vcombine.low %v6674, %v6681
    %v7855 = vunpack.c.l.s4 1983009808
    %v7856 = vunpack.c.0.s8 %v7855
    %v7857 = vlaneseq
    %v7858 = vshrl.u32 %v7857, 7
    %v7859 = vsub.s32 %v7856, %v7858
    %v7860 = vrot.slane %v7852, %v7859
    %v7862 = vunpack.c.l.s4 1983009808
    %v7863 = vunpack.c.0.s8 %v7862
    %v7864 = vlaneseq
    %v7865 = vshrl.u32 %v7864, 7
    %v7866 = vsub.s32 %v7863, %v7865
    %v7867 = vrot.slane %v7853, %v7866
    %v7868 = vcombine.low %v7860, %v7867
    %v7869 = vcombine.low %v6688, %v6695
    %v7870 = vcombine.low %v6702, %v6709
    %v7872 = vunpack.c.l.s4 1983009808
    %v7873 = vunpack.c.0.s8 %v7872
    %v7874 = vlaneseq
    %v7875 = vshrl.u32 %v7874, 7
    %v7876 = vsub.s32 %v7873, %v7875
    %v7877 = vrot.slane %v7869, %v7876
    %v7879 = vunpack.c.l.s4 1983009808
    %v7880 = vunpack.c.0.s8 %v7879
    %v7881 = vlaneseq
    %v7882 = vshrl.u32 %v7881, 7
    %v7883 = vsub.s32 %v7880, %v7882
    %v7884 = vrot.slane %v7870, %v7883
    %v7885 = vcombine.low %v7877, %v7884
    %v7886 = vcombine.low %v6716, %v6723
    %v7887 = vcombine.low %v6730, %v6737
    %v7889 = vunpack.c.l.s4 1983009808
    %v7890 = vunpack.c.0.s8 %v7889
    %v7891 = vlaneseq
    %v7892 = vshrl.u32 %v7891, 7
    %v7893 = vsub.s32 %v7890, %v7892
    %v7894 = vrot.slane %v7886, %v7893
    %v7896 = vunpack.c.l.s4 1983009808
    %v7897 = vunpack.c.0.s8 %v7896
    %v7898 = vlaneseq
    %v7899 = vshrl.u32 %v7898, 7
    %v7900 = vsub.s32 %v7897, %v7899
    %v7901 = vrot.slane %v7887, %v7900
    %v7902 = vcombine.low %v7894, %v7901
    %v7903 = vcombine.low %v6744, %v6751
    %v7904 = vcombine.low %v6758, %v6765
    %v7906 = vunpack.c.l.s4 1983009808
    %v7907 = vunpack.c.0.s8 %v7906
    %v7908 = vlaneseq
    %v7909 = vshrl.u32 %v7908, 7
    %v7910 = vsub.s32 %v7907, %v7909
    %v7911 = vrot.slane %v7903, %v7910
    %v7913 = vunpack.c.l.s4 1983009808
    %v7914 = vunpack.c.0.s8 %v7913
    %v7915 = vlaneseq
    %v7916 = vshrl.u32 %v7915, 7
    %v7917 = vsub.s32 %v7914, %v7916
    %v7918 = vrot.slane %v7904, %v7917
    %v7919 = vcombine.low %v7911, %v7918
    %v7920 = vcombine.low %v6772, %v6779
    %v7921 = vcombine.low %v6786, %v6793
    %v7923 = vunpack.c.l.s4 1983009808
    %v7924 = vunpack.c.0.s8 %v7923
    %v7925 = vlaneseq
    %v7926 = vshrl.u32 %v7925, 7
    %v7927 = vsub.s32 %v7924, %v7926
    %v7928 = vrot.slane %v7920, %v7927
    %v7930 = vunpack.c.l.s4 1983009808
    %v7931 = vunpack.c.0.s8 %v7930
    %v7932 = vlaneseq
    %v7933 = vshrl.u32 %v7932, 7
    %v7934 = vsub.s32 %v7931, %v7933
    %v7935 = vrot.slane %v7921, %v7934
    %v7936 = vcombine.low %v7928, %v7935
    %v7937 = vcombine.low %v6800, %v6807
    %v7938 = vcombine.low %v6814, %v6821
    %v7940 = vunpack.c.l.s4 1983009808
    %v7941 = vunpack.c.0.s8 %v7940
    %v7942 = vlaneseq
    %v7943 = vshrl.u32 %v7942, 7
    %v7944 = vsub.s32 %v7941, %v7943
    %v7945 = vrot.slane %v7937, %v7944
    %v7947 = vunpack.c.l.s4 1983009808
    %v7948 = vunpack.c.0.s8 %v7947
    %v7949 = vlaneseq
    %v7950 = vshrl.u32 %v7949, 7
    %v7951 = vsub.s32 %v7948, %v7950
    %v7952 = vrot.slane %v7938, %v7951
    %v7953 = vcombine.low %v7945, %v7952
    %v7954 = vcombine.low %v6828, %v6835
    %v7955 = vcombine.low %v6842, %v6849
    %v7957 = vunpack.c.l.s4 1983009808
    %v7958 = vunpack.c.0.s8 %v7957
    %v7959 = vlaneseq
    %v7960 = vshrl.u32 %v7959, 7
    %v7961 = vsub.s32 %v7958, %v7960
    %v7962 = vrot.slane %v7954, %v7961
    %v7964 = vunpack.c.l.s4 1983009808
    %v7965 = vunpack.c.0.s8 %v7964
    %v7966 = vlaneseq
    %v7967 = vshrl.u32 %v7966, 7
    %v7968 = vsub.s32 %v7965, %v7967
    %v7969 = vrot.slane %v7955, %v7968
    %v7970 = vcombine.low %v7962, %v7969
    %v7971 = vcombine.low %v6856, %v6863
    %v7972 = vcombine.low %v6870, %v6877
    %v7974 = vunpack.c.l.s4 1983009808
    %v7975 = vunpack.c.0.s8 %v7974
    %v7976 = vlaneseq
    %v7977 = vshrl.u32 %v7976, 7
    %v7978 = vsub.s32 %v7975, %v7977
    %v7979 = vrot.slane %v7971, %v7978
    %v7981 = vunpack.c.l.s4 1983009808
    %v7982 = vunpack.c.0.s8 %v7981
    %v7983 = vlaneseq
    %v7984 = vshrl.u32 %v7983, 7
    %v7985 = vsub.s32 %v7982, %v7984
    %v7986 = vrot.slane %v7972, %v7985
    %v7987 = vcombine.low %v7979, %v7986
    %v7988 = vcombine.low %v6884, %v6891
    %v7989 = vcombine.low %v6898, %v6905
    %v7991 = vunpack.c.l.s4 1983009808
    %v7992 = vunpack.c.0.s8 %v7991
    %v7993 = vlaneseq
    %v7994 = vshrl.u32 %v7993, 7
    %v7995 = vsub.s32 %v7992, %v7994
    %v7996 = vrot.slane %v7988, %v7995
    %v7998 = vunpack.c.l.s4 1983009808
    %v7999 = vunpack.c.0.s8 %v7998
    %v8000 = vlaneseq
    %v8001 = vshrl.u32 %v8000, 7
    %v8002 = vsub.s32 %v7999, %v8001
    %v8003 = vrot.slane %v7989, %v8002
    %v8004 = vcombine.low %v7996, %v8003
    %v8005 = vcombine.low %v6912, %v6919
    %v8006 = vcombine.low %v6926, %v6933
    %v8008 = vunpack.c.l.s4 1983009808
    %v8009 = vunpack.c.0.s8 %v8008
    %v8010 = vlaneseq
    %v8011 = vshrl.u32 %v8010, 7
    %v8012 = vsub.s32 %v8009, %v8011
    %v8013 = vrot.slane %v8005, %v8012
    %v8015 = vunpack.c.l.s4 1983009808
    %v8016 = vunpack.c.0.s8 %v8015
    %v8017 = vlaneseq
    %v8018 = vshrl.u32 %v8017, 7
    %v8019 = vsub.s32 %v8016, %v8018
    %v8020 = vrot.slane %v8006, %v8019
    %v8021 = vcombine.low %v8013, %v8020
    %8022 = vset.pattern.permute.xlu0 0
    %8023 = vperm.xlu0 %8022, %v6950
    %v8024 = vpop.permute.xlu0 %8023
    %8025 = vset.pattern.permute.xlu0 0
    %8026 = vperm.xlu0 %8025, %v6967
    %v8027 = vpop.permute.xlu0 %8026
    %8028 = vset.pattern.permute.xlu0 0
    %8029 = vperm.xlu0 %8028, %v6984
    %v8030 = vpop.permute.xlu0 %8029
    %8031 = vset.pattern.permute.xlu0 0
    %8032 = vperm.xlu0 %8031, %v7001
    %v8033 = vpop.permute.xlu0 %8032
    %8034 = vset.pattern.permute.xlu0 0
    %8035 = vperm.xlu0 %8034, %v7018
    %v8036 = vpop.permute.xlu0 %8035
    %8037 = vset.pattern.permute.xlu0 0
    %8038 = vperm.xlu0 %8037, %v7035
    %v8039 = vpop.permute.xlu0 %8038
    %8040 = vset.pattern.permute.xlu0 0
    %8041 = vperm.xlu0 %8040, %v7052
    %v8042 = vpop.permute.xlu0 %8041
    %8043 = vset.pattern.permute.xlu0 0
    %8044 = vperm.xlu0 %8043, %v7069
    %v8045 = vpop.permute.xlu0 %8044
    %8046 = vset.pattern.permute.xlu0 0
    %8047 = vperm.xlu0 %8046, %v7086
    %v8048 = vpop.permute.xlu0 %8047
    %8049 = vset.pattern.permute.xlu0 0
    %8050 = vperm.xlu0 %8049, %v7103
    %v8051 = vpop.permute.xlu0 %8050
    %8052 = vset.pattern.permute.xlu0 0
    %8053 = vperm.xlu0 %8052, %v7120
    %v8054 = vpop.permute.xlu0 %8053
    %8055 = vset.pattern.permute.xlu0 0
    %8056 = vperm.xlu0 %8055, %v7137
    %v8057 = vpop.permute.xlu0 %8056
    %8058 = vset.pattern.permute.xlu0 0
    %8059 = vperm.xlu0 %8058, %v7154
    %v8060 = vpop.permute.xlu0 %8059
    %8061 = vset.pattern.permute.xlu0 0
    %8062 = vperm.xlu0 %8061, %v7171
    %v8063 = vpop.permute.xlu0 %8062
    %8064 = vset.pattern.permute.xlu0 0
    %8065 = vperm.xlu0 %8064, %v7188
    %v8066 = vpop.permute.xlu0 %8065
    %8067 = vset.pattern.permute.xlu0 0
    %8068 = vperm.xlu0 %8067, %v7205
    %v8069 = vpop.permute.xlu0 %8068
    %8070 = vset.pattern.permute.xlu0 0
    %8071 = vperm.xlu0 %8070, %v7222
    %v8072 = vpop.permute.xlu0 %8071
    %8073 = vset.pattern.permute.xlu0 0
    %8074 = vperm.xlu0 %8073, %v7239
    %v8075 = vpop.permute.xlu0 %8074
    %8076 = vset.pattern.permute.xlu0 0
    %8077 = vperm.xlu0 %8076, %v7256
    %v8078 = vpop.permute.xlu0 %8077
    %8079 = vset.pattern.permute.xlu0 0
    %8080 = vperm.xlu0 %8079, %v7273
    %v8081 = vpop.permute.xlu0 %8080
    %8082 = vset.pattern.permute.xlu0 0
    %8083 = vperm.xlu0 %8082, %v7290
    %v8084 = vpop.permute.xlu0 %8083
    %8085 = vset.pattern.permute.xlu0 0
    %8086 = vperm.xlu0 %8085, %v7307
    %v8087 = vpop.permute.xlu0 %8086
    %8088 = vset.pattern.permute.xlu0 0
    %8089 = vperm.xlu0 %8088, %v7324
    %v8090 = vpop.permute.xlu0 %8089
    %8091 = vset.pattern.permute.xlu0 0
    %8092 = vperm.xlu0 %8091, %v7341
    %v8093 = vpop.permute.xlu0 %8092
    %8094 = vset.pattern.permute.xlu0 0
    %8095 = vperm.xlu0 %8094, %v7358
    %v8096 = vpop.permute.xlu0 %8095
    %8097 = vset.pattern.permute.xlu0 0
    %8098 = vperm.xlu0 %8097, %v7375
    %v8099 = vpop.permute.xlu0 %8098
    %8100 = vset.pattern.permute.xlu0 0
    %8101 = vperm.xlu0 %8100, %v7392
    %v8102 = vpop.permute.xlu0 %8101
    %8103 = vset.pattern.permute.xlu0 0
    %8104 = vperm.xlu0 %8103, %v7409
    %v8105 = vpop.permute.xlu0 %8104
    %8106 = vset.pattern.permute.xlu0 0
    %8107 = vperm.xlu0 %8106, %v7426
    %v8108 = vpop.permute.xlu0 %8107
    %8109 = vset.pattern.permute.xlu0 0
    %8110 = vperm.xlu0 %8109, %v7443
    %v8111 = vpop.permute.xlu0 %8110
    %8112 = vset.pattern.permute.xlu0 0
    %8113 = vperm.xlu0 %8112, %v7460
    %v8114 = vpop.permute.xlu0 %8113
    %8115 = vset.pattern.permute.xlu0 0
    %8116 = vperm.xlu0 %8115, %v7477
    %v8117 = vpop.permute.xlu0 %8116
    %8118 = vset.pattern.permute.xlu0 0
    %8119 = vperm.xlu0 %8118, %v7494
    %v8120 = vpop.permute.xlu0 %8119
    %8121 = vset.pattern.permute.xlu0 0
    %8122 = vperm.xlu0 %8121, %v7511
    %v8123 = vpop.permute.xlu0 %8122
    %8124 = vset.pattern.permute.xlu0 0
    %8125 = vperm.xlu0 %8124, %v7528
    %v8126 = vpop.permute.xlu0 %8125
    %8127 = vset.pattern.permute.xlu0 0
    %8128 = vperm.xlu0 %8127, %v7545
    %v8129 = vpop.permute.xlu0 %8128
    %8130 = vset.pattern.permute.xlu0 0
    %8131 = vperm.xlu0 %8130, %v7562
    %v8132 = vpop.permute.xlu0 %8131
    %8133 = vset.pattern.permute.xlu0 0
    %8134 = vperm.xlu0 %8133, %v7579
    %v8135 = vpop.permute.xlu0 %8134
    %8136 = vset.pattern.permute.xlu0 0
    %8137 = vperm.xlu0 %8136, %v7596
    %v8138 = vpop.permute.xlu0 %8137
    %8139 = vset.pattern.permute.xlu0 0
    %8140 = vperm.xlu0 %8139, %v7613
    %v8141 = vpop.permute.xlu0 %8140
    %8142 = vset.pattern.permute.xlu0 0
    %8143 = vperm.xlu0 %8142, %v7630
    %v8144 = vpop.permute.xlu0 %8143
    %8145 = vset.pattern.permute.xlu0 0
    %8146 = vperm.xlu0 %8145, %v7647
    %v8147 = vpop.permute.xlu0 %8146
    %8148 = vset.pattern.permute.xlu0 0
    %8149 = vperm.xlu0 %8148, %v7664
    %v8150 = vpop.permute.xlu0 %8149
    %8151 = vset.pattern.permute.xlu0 0
    %8152 = vperm.xlu0 %8151, %v7681
    %v8153 = vpop.permute.xlu0 %8152
    %8154 = vset.pattern.permute.xlu0 0
    %8155 = vperm.xlu0 %8154, %v7698
    %v8156 = vpop.permute.xlu0 %8155
    %8157 = vset.pattern.permute.xlu0 0
    %8158 = vperm.xlu0 %8157, %v7715
    %v8159 = vpop.permute.xlu0 %8158
    %8160 = vset.pattern.permute.xlu0 0
    %8161 = vperm.xlu0 %8160, %v7732
    %v8162 = vpop.permute.xlu0 %8161
    %8163 = vset.pattern.permute.xlu0 0
    %8164 = vperm.xlu0 %8163, %v7749
    %v8165 = vpop.permute.xlu0 %8164
    %8166 = vset.pattern.permute.xlu0 0
    %8167 = vperm.xlu0 %8166, %v7766
    %v8168 = vpop.permute.xlu0 %8167
    %8169 = vset.pattern.permute.xlu0 0
    %8170 = vperm.xlu0 %8169, %v7783
    %v8171 = vpop.permute.xlu0 %8170
    %8172 = vset.pattern.permute.xlu0 0
    %8173 = vperm.xlu0 %8172, %v7800
    %v8174 = vpop.permute.xlu0 %8173
    %8175 = vset.pattern.permute.xlu0 0
    %8176 = vperm.xlu0 %8175, %v7817
    %v8177 = vpop.permute.xlu0 %8176
    %8178 = vset.pattern.permute.xlu0 0
    %8179 = vperm.xlu0 %8178, %v7834
    %v8180 = vpop.permute.xlu0 %8179
    %8181 = vset.pattern.permute.xlu0 0
    %8182 = vperm.xlu0 %8181, %v7851
    %v8183 = vpop.permute.xlu0 %8182
    %8184 = vset.pattern.permute.xlu0 0
    %8185 = vperm.xlu0 %8184, %v7868
    %v8186 = vpop.permute.xlu0 %8185
    %8187 = vset.pattern.permute.xlu0 0
    %8188 = vperm.xlu0 %8187, %v7885
    %v8189 = vpop.permute.xlu0 %8188
    %8190 = vset.pattern.permute.xlu0 0
    %8191 = vperm.xlu0 %8190, %v7902
    %v8192 = vpop.permute.xlu0 %8191
    %8193 = vset.pattern.permute.xlu0 0
    %8194 = vperm.xlu0 %8193, %v7919
    %v8195 = vpop.permute.xlu0 %8194
    %8196 = vset.pattern.permute.xlu0 0
    %8197 = vperm.xlu0 %8196, %v7936
    %v8198 = vpop.permute.xlu0 %8197
    %8199 = vset.pattern.permute.xlu0 0
    %8200 = vperm.xlu0 %8199, %v7953
    %v8201 = vpop.permute.xlu0 %8200
    %8202 = vset.pattern.permute.xlu0 0
    %8203 = vperm.xlu0 %8202, %v7970
    %v8204 = vpop.permute.xlu0 %8203
    %8205 = vset.pattern.permute.xlu0 0
    %8206 = vperm.xlu0 %8205, %v7987
    %v8207 = vpop.permute.xlu0 %8206
    %8208 = vset.pattern.permute.xlu0 0
    %8209 = vperm.xlu0 %8208, %v8004
    %v8210 = vpop.permute.xlu0 %8209
    %8211 = vset.pattern.permute.xlu0 0
    %8212 = vperm.xlu0 %8211, %v8021
    %v8213 = vpop.permute.xlu0 %8212
    %v8214 = vlaneseq
    %v8215 = vand.u32 %v8214, 127
    %v8216 = vlaneseq
    %v8217 = vshrl.u32 %v8216, 7
    %v8218 = vsub.s32 %v8215, %v8217
    %v8219 = vrot.slane %v8024, %v8218
    %v8220 = vadd.s32 %v8215, 4294967288
    %v8221 = vlaneseq
    %v8222 = vshrl.u32 %v8221, 7
    %v8223 = vsub.s32 %v8220, %v8222
    %v8224 = vrot.slane %v8027, %v8223
    %vm8225 = vcmask 130112
    %v8226 = vsel %vm8225, %v8224, %v8219
    %v8227 = vadd.s32 %v8215, 4294967280
    %v8228 = vlaneseq
    %v8229 = vshrl.u32 %v8228, 7
    %v8230 = vsub.s32 %v8227, %v8229
    %v8231 = vrot.slane %v8030, %v8230
    %vm8232 = vcmask 195712
    %v8233 = vsel %vm8232, %v8231, %v8226
    %v8234 = vadd.s32 %v8215, 4294967272
    %v8235 = vlaneseq
    %v8236 = vshrl.u32 %v8235, 7
    %v8237 = vsub.s32 %v8234, %v8236
    %v8238 = vrot.slane %v8033, %v8237
    %vm8239 = vcmask 261312
    %v8240 = vsel %vm8239, %v8238, %v8233
    %v8241 = vadd.s32 %v8215, 4294967264
    %v8242 = vlaneseq
    %v8243 = vshrl.u32 %v8242, 7
    %v8244 = vsub.s32 %v8241, %v8243
    %v8245 = vrot.slane %v8036, %v8244
    %vm8246 = vcmask 326912
    %v8247 = vsel %vm8246, %v8245, %v8240
    %v8248 = vadd.s32 %v8215, 4294967256
    %v8249 = vlaneseq
    %v8250 = vshrl.u32 %v8249, 7
    %v8251 = vsub.s32 %v8248, %v8250
    %v8252 = vrot.slane %v8039, %v8251
    %vm8253 = vcmask 392512
    %v8254 = vsel %vm8253, %v8252, %v8247
    %v8255 = vadd.s32 %v8215, 4294967248
    %v8256 = vlaneseq
    %v8257 = vshrl.u32 %v8256, 7
    %v8258 = vsub.s32 %v8255, %v8257
    %v8259 = vrot.slane %v8042, %v8258
    %vm8260 = vcmask 458112
    %v8261 = vsel %vm8260, %v8259, %v8254
    %v8262 = vadd.s32 %v8215, 4294967240
    %v8263 = vlaneseq
    %v8264 = vshrl.u32 %v8263, 7
    %v8265 = vsub.s32 %v8262, %v8264
    %v8266 = vrot.slane %v8045, %v8265
    %vm8267 = vcmask 523712
    %v8268 = vsel %vm8267, %v8266, %v8261
    %v8269 = vadd.s32 %v8215, 4294967232
    %v8270 = vlaneseq
    %v8271 = vshrl.u32 %v8270, 7
    %v8272 = vsub.s32 %v8269, %v8271
    %v8273 = vrot.slane %v8048, %v8272
    %vm8274 = vcmask 589312
    %v8275 = vsel %vm8274, %v8273, %v8268
    %v8276 = vadd.s32 %v8215, 4294967224
    %v8277 = vlaneseq
    %v8278 = vshrl.u32 %v8277, 7
    %v8279 = vsub.s32 %v8276, %v8278
    %v8280 = vrot.slane %v8051, %v8279
    %vm8281 = vcmask 654912
    %v8282 = vsel %vm8281, %v8280, %v8275
    %v8283 = vadd.s32 %v8215, 4294967216
    %v8284 = vlaneseq
    %v8285 = vshrl.u32 %v8284, 7
    %v8286 = vsub.s32 %v8283, %v8285
    %v8287 = vrot.slane %v8054, %v8286
    %vm8288 = vcmask 720512
    %v8289 = vsel %vm8288, %v8287, %v8282
    %v8290 = vadd.s32 %v8215, 4294967208
    %v8291 = vlaneseq
    %v8292 = vshrl.u32 %v8291, 7
    %v8293 = vsub.s32 %v8290, %v8292
    %v8294 = vrot.slane %v8057, %v8293
    %vm8295 = vcmask 786112
    %v8296 = vsel %vm8295, %v8294, %v8289
    %v8297 = vadd.s32 %v8215, 4294967200
    %v8298 = vlaneseq
    %v8299 = vshrl.u32 %v8298, 7
    %v8300 = vsub.s32 %v8297, %v8299
    %v8301 = vrot.slane %v8060, %v8300
    %vm8302 = vcmask 851712
    %v8303 = vsel %vm8302, %v8301, %v8296
    %v8304 = vadd.s32 %v8215, 4294967192
    %v8305 = vlaneseq
    %v8306 = vshrl.u32 %v8305, 7
    %v8307 = vsub.s32 %v8304, %v8306
    %v8308 = vrot.slane %v8063, %v8307
    %vm8309 = vcmask 917312
    %v8310 = vsel %vm8309, %v8308, %v8303
    %v8311 = vadd.s32 %v8215, 4294967184
    %v8312 = vlaneseq
    %v8313 = vshrl.u32 %v8312, 7
    %v8314 = vsub.s32 %v8311, %v8313
    %v8315 = vrot.slane %v8066, %v8314
    %vm8316 = vcmask 982912
    %v8317 = vsel %vm8316, %v8315, %v8310
    %v8318 = vadd.s32 %v8215, 4294967176
    %v8319 = vlaneseq
    %v8320 = vshrl.u32 %v8319, 7
    %v8321 = vsub.s32 %v8318, %v8320
    %v8322 = vrot.slane %v8069, %v8321
    %vm8323 = vcmask 1048512
    %v8324 = vsel %vm8323, %v8322, %v8317
    %v8325 = vlaneseq
    %v8326 = vshrl.u32 %v8325, 7
    %v8327 = vsub.s32 %v8215, %v8326
    %v8328 = vrot.slane %v8072, %v8327
    %v8329 = vlaneseq
    %v8330 = vshrl.u32 %v8329, 7
    %v8331 = vsub.s32 %v8220, %v8330
    %v8332 = vrot.slane %v8075, %v8331
    %v8333 = vsel %vm8225, %v8332, %v8328
    %v8334 = vlaneseq
    %v8335 = vshrl.u32 %v8334, 7
    %v8336 = vsub.s32 %v8227, %v8335
    %v8337 = vrot.slane %v8078, %v8336
    %v8338 = vsel %vm8232, %v8337, %v8333
    %v8339 = vlaneseq
    %v8340 = vshrl.u32 %v8339, 7
    %v8341 = vsub.s32 %v8234, %v8340
    %v8342 = vrot.slane %v8081, %v8341
    %v8343 = vsel %vm8239, %v8342, %v8338
    %v8344 = vlaneseq
    %v8345 = vshrl.u32 %v8344, 7
    %v8346 = vsub.s32 %v8241, %v8345
    %v8347 = vrot.slane %v8084, %v8346
    %v8348 = vsel %vm8246, %v8347, %v8343
    %v8349 = vlaneseq
    %v8350 = vshrl.u32 %v8349, 7
    %v8351 = vsub.s32 %v8248, %v8350
    %v8352 = vrot.slane %v8087, %v8351
    %v8353 = vsel %vm8253, %v8352, %v8348
    %v8354 = vlaneseq
    %v8355 = vshrl.u32 %v8354, 7
    %v8356 = vsub.s32 %v8255, %v8355
    %v8357 = vrot.slane %v8090, %v8356
    %v8358 = vsel %vm8260, %v8357, %v8353
    %v8359 = vlaneseq
    %v8360 = vshrl.u32 %v8359, 7
    %v8361 = vsub.s32 %v8262, %v8360
    %v8362 = vrot.slane %v8093, %v8361
    %v8363 = vsel %vm8267, %v8362, %v8358
    %v8364 = vlaneseq
    %v8365 = vshrl.u32 %v8364, 7
    %v8366 = vsub.s32 %v8269, %v8365
    %v8367 = vrot.slane %v8096, %v8366
    %v8368 = vsel %vm8274, %v8367, %v8363
    %v8369 = vlaneseq
    %v8370 = vshrl.u32 %v8369, 7
    %v8371 = vsub.s32 %v8276, %v8370
    %v8372 = vrot.slane %v8099, %v8371
    %v8373 = vsel %vm8281, %v8372, %v8368
    %v8374 = vlaneseq
    %v8375 = vshrl.u32 %v8374, 7
    %v8376 = vsub.s32 %v8283, %v8375
    %v8377 = vrot.slane %v8102, %v8376
    %v8378 = vsel %vm8288, %v8377, %v8373
    %v8379 = vlaneseq
    %v8380 = vshrl.u32 %v8379, 7
    %v8381 = vsub.s32 %v8290, %v8380
    %v8382 = vrot.slane %v8105, %v8381
    %v8383 = vsel %vm8295, %v8382, %v8378
    %v8384 = vlaneseq
    %v8385 = vshrl.u32 %v8384, 7
    %v8386 = vsub.s32 %v8297, %v8385
    %v8387 = vrot.slane %v8108, %v8386
    %v8388 = vsel %vm8302, %v8387, %v8383
    %v8389 = vlaneseq
    %v8390 = vshrl.u32 %v8389, 7
    %v8391 = vsub.s32 %v8304, %v8390
    %v8392 = vrot.slane %v8111, %v8391
    %v8393 = vsel %vm8309, %v8392, %v8388
    %v8394 = vlaneseq
    %v8395 = vshrl.u32 %v8394, 7
    %v8396 = vsub.s32 %v8311, %v8395
    %v8397 = vrot.slane %v8114, %v8396
    %v8398 = vsel %vm8316, %v8397, %v8393
    %v8399 = vlaneseq
    %v8400 = vshrl.u32 %v8399, 7
    %v8401 = vsub.s32 %v8318, %v8400
    %v8402 = vrot.slane %v8117, %v8401
    %v8403 = vsel %vm8323, %v8402, %v8398
    %v8404 = vlaneseq
    %v8405 = vshrl.u32 %v8404, 7
    %v8406 = vsub.s32 %v8215, %v8405
    %v8407 = vrot.slane %v8120, %v8406
    %v8408 = vlaneseq
    %v8409 = vshrl.u32 %v8408, 7
    %v8410 = vsub.s32 %v8220, %v8409
    %v8411 = vrot.slane %v8123, %v8410
    %v8412 = vsel %vm8225, %v8411, %v8407
    %v8413 = vlaneseq
    %v8414 = vshrl.u32 %v8413, 7
    %v8415 = vsub.s32 %v8227, %v8414
    %v8416 = vrot.slane %v8126, %v8415
    %v8417 = vsel %vm8232, %v8416, %v8412
    %v8418 = vlaneseq
    %v8419 = vshrl.u32 %v8418, 7
    %v8420 = vsub.s32 %v8234, %v8419
    %v8421 = vrot.slane %v8129, %v8420
    %v8422 = vsel %vm8239, %v8421, %v8417
    %v8423 = vlaneseq
    %v8424 = vshrl.u32 %v8423, 7
    %v8425 = vsub.s32 %v8241, %v8424
    %v8426 = vrot.slane %v8132, %v8425
    %v8427 = vsel %vm8246, %v8426, %v8422
    %v8428 = vlaneseq
    %v8429 = vshrl.u32 %v8428, 7
    %v8430 = vsub.s32 %v8248, %v8429
    %v8431 = vrot.slane %v8135, %v8430
    %v8432 = vsel %vm8253, %v8431, %v8427
    %v8433 = vlaneseq
    %v8434 = vshrl.u32 %v8433, 7
    %v8435 = vsub.s32 %v8255, %v8434
    %v8436 = vrot.slane %v8138, %v8435
    %v8437 = vsel %vm8260, %v8436, %v8432
    %v8438 = vlaneseq
    %v8439 = vshrl.u32 %v8438, 7
    %v8440 = vsub.s32 %v8262, %v8439
    %v8441 = vrot.slane %v8141, %v8440
    %v8442 = vsel %vm8267, %v8441, %v8437
    %v8443 = vlaneseq
    %v8444 = vshrl.u32 %v8443, 7
    %v8445 = vsub.s32 %v8269, %v8444
    %v8446 = vrot.slane %v8144, %v8445
    %v8447 = vsel %vm8274, %v8446, %v8442
    %v8448 = vlaneseq
    %v8449 = vshrl.u32 %v8448, 7
    %v8450 = vsub.s32 %v8276, %v8449
    %v8451 = vrot.slane %v8147, %v8450
    %v8452 = vsel %vm8281, %v8451, %v8447
    %v8453 = vlaneseq
    %v8454 = vshrl.u32 %v8453, 7
    %v8455 = vsub.s32 %v8283, %v8454
    %v8456 = vrot.slane %v8150, %v8455
    %v8457 = vsel %vm8288, %v8456, %v8452
    %v8458 = vlaneseq
    %v8459 = vshrl.u32 %v8458, 7
    %v8460 = vsub.s32 %v8290, %v8459
    %v8461 = vrot.slane %v8153, %v8460
    %v8462 = vsel %vm8295, %v8461, %v8457
    %v8463 = vlaneseq
    %v8464 = vshrl.u32 %v8463, 7
    %v8465 = vsub.s32 %v8297, %v8464
    %v8466 = vrot.slane %v8156, %v8465
    %v8467 = vsel %vm8302, %v8466, %v8462
    %v8468 = vlaneseq
    %v8469 = vshrl.u32 %v8468, 7
    %v8470 = vsub.s32 %v8304, %v8469
    %v8471 = vrot.slane %v8159, %v8470
    %v8472 = vsel %vm8309, %v8471, %v8467
    %v8473 = vlaneseq
    %v8474 = vshrl.u32 %v8473, 7
    %v8475 = vsub.s32 %v8311, %v8474
    %v8476 = vrot.slane %v8162, %v8475
    %v8477 = vsel %vm8316, %v8476, %v8472
    %v8478 = vlaneseq
    %v8479 = vshrl.u32 %v8478, 7
    %v8480 = vsub.s32 %v8318, %v8479
    %v8481 = vrot.slane %v8165, %v8480
    %v8482 = vsel %vm8323, %v8481, %v8477
    %v8483 = vlaneseq
    %v8484 = vshrl.u32 %v8483, 7
    %v8485 = vsub.s32 %v8215, %v8484
    %v8486 = vrot.slane %v8168, %v8485
    %v8487 = vlaneseq
    %v8488 = vshrl.u32 %v8487, 7
    %v8489 = vsub.s32 %v8220, %v8488
    %v8490 = vrot.slane %v8171, %v8489
    %v8491 = vsel %vm8225, %v8490, %v8486
    %v8492 = vlaneseq
    %v8493 = vshrl.u32 %v8492, 7
    %v8494 = vsub.s32 %v8227, %v8493
    %v8495 = vrot.slane %v8174, %v8494
    %v8496 = vsel %vm8232, %v8495, %v8491
    %v8497 = vlaneseq
    %v8498 = vshrl.u32 %v8497, 7
    %v8499 = vsub.s32 %v8234, %v8498
    %v8500 = vrot.slane %v8177, %v8499
    %v8501 = vsel %vm8239, %v8500, %v8496
    %v8502 = vlaneseq
    %v8503 = vshrl.u32 %v8502, 7
    %v8504 = vsub.s32 %v8241, %v8503
    %v8505 = vrot.slane %v8180, %v8504
    %v8506 = vsel %vm8246, %v8505, %v8501
    %v8507 = vlaneseq
    %v8508 = vshrl.u32 %v8507, 7
    %v8509 = vsub.s32 %v8248, %v8508
    %v8510 = vrot.slane %v8183, %v8509
    %v8511 = vsel %vm8253, %v8510, %v8506
    %v8512 = vlaneseq
    %v8513 = vshrl.u32 %v8512, 7
    %v8514 = vsub.s32 %v8255, %v8513
    %v8515 = vrot.slane %v8186, %v8514
    %v8516 = vsel %vm8260, %v8515, %v8511
    %v8517 = vlaneseq
    %v8518 = vshrl.u32 %v8517, 7
    %v8519 = vsub.s32 %v8262, %v8518
    %v8520 = vrot.slane %v8189, %v8519
    %v8521 = vsel %vm8267, %v8520, %v8516
    %v8522 = vlaneseq
    %v8523 = vshrl.u32 %v8522, 7
    %v8524 = vsub.s32 %v8269, %v8523
    %v8525 = vrot.slane %v8192, %v8524
    %v8526 = vsel %vm8274, %v8525, %v8521
    %v8527 = vlaneseq
    %v8528 = vshrl.u32 %v8527, 7
    %v8529 = vsub.s32 %v8276, %v8528
    %v8530 = vrot.slane %v8195, %v8529
    %v8531 = vsel %vm8281, %v8530, %v8526
    %v8532 = vlaneseq
    %v8533 = vshrl.u32 %v8532, 7
    %v8534 = vsub.s32 %v8283, %v8533
    %v8535 = vrot.slane %v8198, %v8534
    %v8536 = vsel %vm8288, %v8535, %v8531
    %v8537 = vlaneseq
    %v8538 = vshrl.u32 %v8537, 7
    %v8539 = vsub.s32 %v8290, %v8538
    %v8540 = vrot.slane %v8201, %v8539
    %v8541 = vsel %vm8295, %v8540, %v8536
    %v8542 = vlaneseq
    %v8543 = vshrl.u32 %v8542, 7
    %v8544 = vsub.s32 %v8297, %v8543
    %v8545 = vrot.slane %v8204, %v8544
    %v8546 = vsel %vm8302, %v8545, %v8541
    %v8547 = vlaneseq
    %v8548 = vshrl.u32 %v8547, 7
    %v8549 = vsub.s32 %v8304, %v8548
    %v8550 = vrot.slane %v8207, %v8549
    %v8551 = vsel %vm8309, %v8550, %v8546
    %v8552 = vlaneseq
    %v8553 = vshrl.u32 %v8552, 7
    %v8554 = vsub.s32 %v8311, %v8553
    %v8555 = vrot.slane %v8210, %v8554
    %v8556 = vsel %vm8316, %v8555, %v8551
    %v8557 = vlaneseq
    %v8558 = vshrl.u32 %v8557, 7
    %v8559 = vsub.s32 %v8318, %v8558
    %v8560 = vrot.slane %v8213, %v8559
    %v8561 = vsel %vm8323, %v8560, %v8556
    %vm8562 = vcmask 1041409
    %v8563 = vsel %vm8562, %v8482, %v8324
    %v8564 = vsel %vm8562, %v8561, %v8403
    %v8565 = vcombine.low %v8563, %v8564
    %v8567 = vunpack.c.l.s4 1983009808
    %v8568 = vunpack.c.0.s8 %v8567
    %v8569 = vlaneseq
    %v8570 = vshrl.u32 %v8569, 7
    %v8571 = vsub.s32 %v8568, %v8570
    %v8572 = vrot.slane %v8565, %v8571
    %8574 = vst [vmem:[#allocation8] sm:$0xf] %v8572
    // Predicated region
    $region58: #{tpu_custom_call.1} parent=1 // pred_check
      _
    $region59: #{tpu_custom_call.1} parent=1 // pred_check_branch
      %8576 = sbr.rel (0) target = $region61
    $region60: #{tpu_custom_call.1} parent=1 // pred_region
      %s8578 = ssub.s32 64, 64
      %8579 = vsyncadd [#allocation5], %s8578
      %s8581 = sshll.u32 [#allocation8], 4
      %s8582 = int_to_ptr.vmem [resolvable:$true] %s8581
      %8584 = dma.vmem_to_hbm [thread:$0]  %s8582, 64, %s12, [#allocation5]
    $region61: #{tpu_custom_call.1} parent=1 // pred_fallthru
      _
    // Predicated region
    $region62: #{tpu_custom_call.1} parent=1 // pred_check
      _
    $region63: #{tpu_custom_call.1} parent=1 // pred_check_branch
      %8586 = sbr.rel (0) target = $region65
    $region64: #{tpu_custom_call.1} parent=1 // pred_region
      %8587 = dma.done [#allocation5], 64
    $region65: #{tpu_custom_call.1} parent=1 // pred_fallthru
      _
    %8588 = vsyncpa [#allocation4], 1
    %8589 = vsyncpa [#allocation7], 1
    %8590 = vsyncpa [#allocation5], 1

</llo_original>
